<compile_context>
chip_gen: v5e
topology: v5e:2x2
jax: 0.10.0
libtpu: 0.0.40
codegen_flags: <defaults>
</compile_context>

<pallas_src>
import functools

import jax
import jax.numpy as jnp
from jax import lax
from jax.experimental import pallas as pl
from jax.experimental.pallas import tpu as pltpu

# MXU operand dtype (accumulation is always f32). Set to jnp.float32 for bit-closer
# numerics vs the f32 PyTorch reference.
MXU_DTYPE = jnp.bfloat16
WGT_DTYPE = jnp.bfloat16      # matmul weights as stored in HBM
ACT_DTYPE = jnp.bfloat16      # inter-kernel activations as stored in HBM


@functools.lru_cache(maxsize=None)
def _vmem_limit_bytes():
    """Per-generation VMEM budget: ~56 MiB on v7x (64 MiB/TC), ~100 MiB on v5e/v6e."""
    mib = 1024 * 1024
    try:
        cap = pltpu.get_tpu_info().vmem_capacity_bytes
    except Exception:  # TODO(synk): conservative default if the trace-time query fails
        cap = 64 * mib
    return int(min(cap - 8 * mib, 100 * mib))


def _pick_bsub(B, L):
    """Batch elements per grid step: batch up small-L cases so the MXU sees tall
    operands and per-step overhead is amortized; at real sequence lengths return 1
    so grid=(B,) keeps >=2 'parallel' steps for v7x megacore."""
    if L >= 128:
        return 1
    bsub = 1
    for c in range(1, B + 1):
        if B % c == 0 and c * L <= 256:
            bsub = c
    return bsub


# ----------------------------- in-kernel helpers ----------------------------

def _ln(x, g, b, eps=1e-5):
    """LayerNorm in f32 (x: (M, D), g/b: (1, D))."""
    mean = jnp.mean(x, axis=-1, keepdims=True)
    var = jnp.mean((x - mean) ** 2, axis=-1, keepdims=True)
    return (x - mean) * lax.rsqrt(var + eps) * g + b


def _mm(a, b):
    """MXU matmul: bf16 (or f32) operands, f32 accumulate."""
    return jnp.dot(a.astype(MXU_DTYPE), b.astype(MXU_DTYPE),
                   preferred_element_type=jnp.float32)


def _split_heads(t2d, num_heads, dh):
    """(L, H*dh) f32 -> (H, L, dh) MXU dtype, one lane-layout-aware relayout."""
    L = t2d.shape[0]
    t = t2d.reshape(L, num_heads, dh)
    if hasattr(pltpu, "einshape"):
        t = pltpu.einshape("lhd->hld", t)
    else:  # TODO(synk): fallback if einshape is unavailable in this jax build.
        t = jnp.transpose(t, (1, 0, 2))
    return t.astype(MXU_DTYPE)


def _merge_heads(t3d):
    """(H, L, dh) f32 -> (L, H*dh)."""
    H, L, dh = t3d.shape
    if hasattr(pltpu, "einshape"):
        t = pltpu.einshape("hld->lhd", t3d)
    else:
        t = jnp.transpose(t3d, (1, 0, 2))
    return t.reshape(L, H * dh)


# ----------------------------- Pallas kernels ------------------------------

def _gmst_block_kernel(*refs, num_heads, with_embed, with_pre_pos, with_enc_tail):
    """Fully fused GMST transformer block for `bsub` batch elements.

    Optional fusions:
      with_embed    : patch embedding (im2col @ W + b) before the block (first enc block)
      with_pre_pos  : +decoder_pos_embed before the block (first decoder block)
      with_enc_tail : final encoder LN + pos_embed + decoder_embed linear after the block
    """
    idx = 0
    x_ref = refs[idx]; idx += 1
    if with_pre_pos:
        prepos_ref = refs[idx]; idx += 1
    if with_embed:
        pew_ref, peb_ref = refs[idx], refs[idx + 1]; idx += 2
    (ln1g, ln1b, qkvw, qkvb, projw, projb,
     ln2g, ln2b, fc1w, fc1b, fc2w, fc2b) = refs[idx:idx + 12]
    idx += 12
    if with_enc_tail:
        ng, nb, pos_ref, dew, deb = refs[idx:idx + 5]
        idx += 5
    o_ref = refs[idx]

    x = x_ref[...].astype(jnp.float32)                    # (bs, L, Din)
    bs, L, _ = x.shape
    xf = x.reshape(bs * L, x.shape[-1])                   # flatten: tall MXU operands
    if with_embed:
        xf = _mm(xf, pew_ref[...]) + peb_ref[...]         # (bs*L, D) patch embedding
    D = xf.shape[-1]
    if with_pre_pos:
        pos = prepos_ref[0].astype(jnp.float32)           # (L, D)
        xf = (xf.reshape(bs, L, D) + pos).reshape(bs * L, D)

    dh = D // num_heads
    scale = 1.0 / (dh ** 0.5)

    # ---- pre-norm 1 + fused QKV projection + batched-head attention ----
    h = _ln(xf, ln1g[...], ln1b[...])
    qkv = _mm(h, qkvw[...]) + qkvb[...]                   # (bs*L, 3D) f32
    q3 = qkv[:, 0 * D:1 * D].reshape(bs, L, D)
    k3 = qkv[:, 1 * D:2 * D].reshape(bs, L, D)
    v3 = qkv[:, 2 * D:3 * D].reshape(bs, L, D)

    o_parts = []
    for i in range(bs):                                   # static; bs == 1 at real dims
        qh = _split_heads(q3[i], num_heads, dh)           # (H, L, dh) bf16
        kh = _split_heads(k3[i], num_heads, dh)
        vh = _split_heads(v3[i], num_heads, dh)
        s = jnp.einsum('hqd,hkd->hqk', qh, kh,
                       preferred_element_type=jnp.float32) * scale     # (H, L, L) f32
        s = s - jnp.max(s, axis=-1, keepdims=True)
        p = jnp.exp(s)
        p = p * pl.reciprocal(jnp.sum(p, axis=-1, keepdims=True), approx=True)
        oh = jnp.einsum('hqk,hkd->hqd', p.astype(MXU_DTYPE), vh,
                        preferred_element_type=jnp.float32)            # (H, L, dh)
        o_parts.append(_merge_heads(oh))                  # (L, D) f32
    o_all = o_parts[0] if bs == 1 else jnp.concatenate(o_parts, axis=0)  # (bs*L, D)
    xf = xf + _mm(o_all, projw[...]) + projb[...]         # ONE output projection, residual 1

    # ---- pre-norm 2 + MLP (GELU fused) ----
    h = _ln(xf, ln2g[...], ln2b[...])
    h = _mm(h, fc1w[...]) + fc1b[...]
    # TODO(synk): torch nn.GELU defaults to the exact erf form; tanh approximation is
    # used for guaranteed Mosaic lowering (tiny numeric difference).
    h = jax.nn.gelu(h, approximate=True)
    xf = xf + (_mm(h, fc2w[...]) + fc2b[...])             # residual 2

    if with_enc_tail:
        # final encoder LayerNorm + pos_embed + decoder_embed projection, fused.
        xf = _ln(xf, ng[...], nb[...])
        pos = pos_ref[0].astype(jnp.float32)
        xf = (xf.reshape(bs, L, D) + pos).reshape(bs * L, D)
        xf = _mm(xf, dew[...]) + deb[...]                  # (bs*L, Dd)

    o_ref[...] = xf.reshape(bs, L, xf.shape[-1]).astype(o_ref.dtype)


def _decoder_tail_loss_kernel(x_ref, g_ref, b_ref, w_ref, pb_ref, t_ref, m_ref, o_ref,
                              num_ref, den_ref):
    """decoder_norm -> decoder_pred -> masked MSE, tiled over batch with f32 accumulators."""
    @pl.when(pl.program_id(0) == 0)
    def _():
        num_ref[...] = jnp.zeros_like(num_ref)
        den_ref[...] = jnp.zeros_like(den_ref)

    x = x_ref[0].astype(jnp.float32)                      # (L, Dd)
    xn = _ln(x, g_ref[...], b_ref[...])
    pred = _mm(xn, w_ref[...]) + pb_ref[...]              # (L, P)
    d = pred - t_ref[0].astype(jnp.float32)
    m = m_ref[0].astype(jnp.float32)                      # (L, 1) row mask
    num_ref[...] += jnp.sum(d * d * m).reshape(1, 1)
    den_ref[...] += (jnp.sum(m) * pred.shape[-1]).reshape(1, 1)   # == mask_exp.sum()

    # Output block has a constant index across the grid; the last write is what lands.
    o_ref[...] = num_ref[...] / jnp.maximum(den_ref[...], 1e-6)


# --------------------------- Pallas call wrappers ---------------------------

def fused_gmst_block(x, bp, num_heads, *, embed=None, pre_pos=None, enc_tail=None):
    """One pallas_call for a whole GMST block (plus optional fused pre/post ops)."""
    B, L, Din = x.shape
    D = bp['proj_w'].shape[0]
    F = bp['fc1_w'].shape[1]
    bsub = _pick_bsub(B, L)

    inputs = [x]
    in_specs = [pl.BlockSpec((bsub, L, Din), lambda b: (b, 0, 0))]

    if pre_pos is not None:
        inputs.append(pre_pos)
        in_specs.append(pl.BlockSpec((1, L, D), lambda b: (0, 0, 0)))

    if embed is not None:
        pe_w, pe_b = embed
        pe_b2 = pe_b.reshape(1, -1)
        inputs += [pe_w, pe_b2]
        in_specs += [pl.BlockSpec(pe_w.shape, lambda b: (0, 0)),
                     pl.BlockSpec(pe_b2.shape, lambda b: (0, 0))]

    w_inputs = [bp['ln1_g'].reshape(1, D), bp['ln1_b'].reshape(1, D),
                bp['qkv_w'], bp['qkv_b'].reshape(1, 3 * D),
                bp['proj_w'], bp['proj_b'].reshape(1, D),
                bp['ln2_g'].reshape(1, D), bp['ln2_b'].reshape(1, D),
                bp['fc1_w'], bp['fc1_b'].reshape(1, F),
                bp['fc2_w'], bp['fc2_b'].reshape(1, D)]
    inputs += w_inputs
    in_specs += [pl.BlockSpec(a.shape, lambda b: (0, 0)) for a in w_inputs]

    out_dim = D
    if enc_tail is not None:
        ng, nb, pos, de_w, de_b = enc_tail
        out_dim = de_w.shape[1]
        inputs += [ng.reshape(1, D), nb.reshape(1, D), pos, de_w, de_b.reshape(1, out_dim)]
        in_specs += [pl.BlockSpec((1, D), lambda b: (0, 0)),
                     pl.BlockSpec((1, D), lambda b: (0, 0)),
                     pl.BlockSpec((1, L, D), lambda b: (0, 0, 0)),
                     pl.BlockSpec(de_w.shape, lambda b: (0, 0)),
                     pl.BlockSpec((1, out_dim), lambda b: (0, 0))]

    kern = functools.partial(_gmst_block_kernel, num_heads=num_heads,
                             with_embed=embed is not None,
                             with_pre_pos=pre_pos is not None,
                             with_enc_tail=enc_tail is not None)
    return pl.pallas_call(
        kern,
        out_shape=jax.ShapeDtypeStruct((B, L, out_dim), ACT_DTYPE),
        grid=(B // bsub,),
        in_specs=in_specs,
        out_specs=pl.BlockSpec((bsub, L, out_dim), lambda b: (b, 0, 0)),
        compiler_params=pltpu.CompilerParams(
            dimension_semantics=("parallel",),
            vmem_limit_bytes=_vmem_limit_bytes()),
    )(*inputs)


def decoder_tail_loss(xd, g, b, w, pb, target, row_mask):
    B, L, Dd = xd.shape
    P = w.shape[1]
    out = pl.pallas_call(
        _decoder_tail_loss_kernel,
        out_shape=jax.ShapeDtypeStruct((1, 1), jnp.float32),
        grid=(B,),
        in_specs=[pl.BlockSpec((1, L, Dd), lambda i: (i, 0, 0)),
                  pl.BlockSpec((1, Dd), lambda i: (0, 0)),
                  pl.BlockSpec((1, Dd), lambda i: (0, 0)),
                  pl.BlockSpec((Dd, P), lambda i: (0, 0)),
                  pl.BlockSpec((1, P), lambda i: (0, 0)),
                  pl.BlockSpec((1, L, P), lambda i: (i, 0, 0)),
                  pl.BlockSpec((1, L, 1), lambda i: (i, 0, 0))],
        out_specs=pl.BlockSpec((1, 1), lambda i: (0, 0)),
        scratch_shapes=[pltpu.VMEM((1, 1), jnp.float32),
                        pltpu.VMEM((1, 1), jnp.float32)],
        compiler_params=pltpu.CompilerParams(
            dimension_semantics=("arbitrary",),
            vmem_limit_bytes=_vmem_limit_bytes()),
    )(xd, g.reshape(1, Dd), b.reshape(1, Dd), w, pb.reshape(1, P), target, row_mask)
    return out[0, 0]


# ------------------------------- model config -------------------------------

class Cfg:
    img_size = 16
    in_channels = 4
    patch_size = 4
    overlap_patches = 0          # non-overlapping => conv == patch extraction + matmul
    embed_dim = 32
    num_heads = 4
    depth = 1
    ffn_hidden_channels_encoder = 64
    decoder_embed_dim = 32
    decoder_num_heads = 4
    decoder_depth = 1
    ffn_hidden_channels_decoder = 64
    mask_ratio = 0.5


# ----------------------------- parameter setup ------------------------------

def _xavier(key, fan_in, fan_out, dtype=WGT_DTYPE):
    lim = (6.0 / (fan_in + fan_out)) ** 0.5
    return jax.random.uniform(key, (fan_in, fan_out), jnp.float32, -lim, lim).astype(dtype)


def _init_block(key, dim, ffn_hidden):
    ks = jax.random.split(key, 4)
    return dict(
        ln1_g=jnp.ones((dim,), jnp.float32), ln1_b=jnp.zeros((dim,), jnp.float32),
        qkv_w=_xavier(ks[0], dim, 3 * dim), qkv_b=jnp.zeros((3 * dim,), jnp.float32),
        proj_w=_xavier(ks[1], dim, dim), proj_b=jnp.zeros((dim,), jnp.float32),
        ln2_g=jnp.ones((dim,), jnp.float32), ln2_b=jnp.zeros((dim,), jnp.float32),
        fc1_w=_xavier(ks[2], dim, ffn_hidden), fc1_b=jnp.zeros((ffn_hidden,), jnp.float32),
        fc2_w=_xavier(ks[3], ffn_hidden, dim), fc2_b=jnp.zeros((dim,), jnp.float32),
    )


def init_params(key, cfg):
    L = (cfg.img_size // cfg.patch_size) ** 2
    keys = jax.random.split(key, 10)
    enc_blocks = [_init_block(k, cfg.embed_dim, cfg.ffn_hidden_channels_encoder)
                  for k in jax.random.split(keys[0], cfg.depth)]
    dec_blocks = [_init_block(k, cfg.decoder_embed_dim, cfg.ffn_hidden_channels_decoder)
                  for k in jax.random.split(keys[1], cfg.decoder_depth)]
    pred_dim = cfg.patch_size ** 2 * cfg.in_channels
    return dict(
        # matmul weights stored bf16 in HBM (converted once here); LN/bias/pos stay f32.
        patch_w=(0.02 * jax.random.normal(
            keys[2], (cfg.embed_dim, cfg.in_channels, cfg.patch_size, cfg.patch_size),
            jnp.float32)).astype(WGT_DTYPE),
        patch_b=jnp.zeros((cfg.embed_dim,), jnp.float32),
        enc_blocks=enc_blocks,
        enc_norm_g=jnp.ones((cfg.embed_dim,), jnp.float32),
        enc_norm_b=jnp.zeros((cfg.embed_dim,), jnp.float32),
        pos_embed=0.02 * jax.random.normal(keys[3], (1, L, cfg.embed_dim), jnp.float32),
        mask_token=0.02 * jax.random.normal(keys[4], (1, 1, cfg.decoder_embed_dim), jnp.float32),
        dec_pos_embed=0.02 * jax.random.normal(keys[5], (1, L, cfg.decoder_embed_dim), jnp.float32),
        dec_embed_w=_xavier(keys[6], cfg.embed_dim, cfg.decoder_embed_dim),
        dec_embed_b=jnp.zeros((cfg.decoder_embed_dim,), jnp.float32),
        dec_blocks=dec_blocks,
        dec_norm_g=jnp.ones((cfg.decoder_embed_dim,), jnp.float32),
        dec_norm_b=jnp.zeros((cfg.decoder_embed_dim,), jnp.float32),
        dec_pred_w=_xavier(keys[7], cfg.decoder_embed_dim, pred_dim),
        dec_pred_b=jnp.zeros((pred_dim,), jnp.float32),
    )


# ------------------------------ forward pieces ------------------------------

def im2col_patches(imgs, p):
    # TODO(synk): only overlap_patches == 0 supported (stride == kernel, no padding);
    # a general overlapping conv would need an im2col gather.
    N, C, H, W = imgs.shape
    h, w = H // p, W // p
    x = imgs.reshape(N, C, h, p, w, p)
    x = jnp.transpose(x, (0, 2, 4, 1, 3, 5))            # N, h, w, C, p, p
    return x.reshape(N, h * w, C * p * p), h, w


def patchify(imgs, p):
    N, C, H, W = imgs.shape
    h = w = H // p
    x = imgs.reshape(N, C, h, p, w, p)
    x = jnp.einsum('nchpwq->nhwpqc', x)
    return x.reshape(N, h * w, p * p * C)


def random_masking(x, mask_ratio, key):
    # TODO(synk): argsort-based shuffling / gather has no clean Pallas equivalent;
    # done in plain JAX (matches torch semantics).
    N, L, D = x.shape
    len_keep = int(L * (1 - mask_ratio))
    noise = jax.random.uniform(key, (N, L))
    ids_shuffle = jnp.argsort(noise, axis=1)
    ids_restore = jnp.argsort(ids_shuffle, axis=1)
    ids_keep = ids_shuffle[:, :len_keep]
    x_masked = jnp.take_along_axis(x, ids_keep[:, :, None], axis=1)
    mask = jnp.concatenate(
        [jnp.zeros((N, len_keep), jnp.float32), jnp.ones((N, L - len_keep), jnp.float32)], axis=1)
    mask = jnp.take_along_axis(mask, ids_restore, axis=1)
    return x_masked, mask, ids_restore


def gmae_forward(params, imgs, cfg, mask_key):
    # NOTE: matches the GMAE spec — the encoder runs on ALL tokens, then
    # +pos_embed, then random masking (unlike vanilla MAE which masks first).
    # TODO(synk): exact GMSTBlock internals are not given in the source; a standard
    # pre-norm MHSA + GELU-MLP transformer block is used (H, W unused).
    p = cfg.patch_size

    # ----- encoder (patch embed fused into the first block; final LN + pos_embed +
    #        decoder_embed fused into the last block — linear commutes with the gather) -----
    x_patches, _, _ = im2col_patches(imgs, p)                        # (B, L, C*p*p)
    pe_w = params['patch_w'].reshape(cfg.embed_dim, -1).T            # (C*p*p, E) bf16
    pe_b = params['patch_b']
    enc_tail = (params['enc_norm_g'], params['enc_norm_b'], params['pos_embed'],
                params['dec_embed_w'], params['dec_embed_b'])

    x = x_patches
    n_enc = len(params['enc_blocks'])
    for i, bp in enumerate(params['enc_blocks']):
        x = fused_gmst_block(x, bp, cfg.num_heads,
                             embed=(pe_w, pe_b) if i == 0 else None,
                             enc_tail=enc_tail if i == n_enc - 1 else None)
    B, L, Dd = x.shape                                               # already in decoder dim

    x_vis, mask, ids_restore = random_masking(x, cfg.mask_ratio, mask_key)

    # ----- decoder (mask-token fill + restore gather in JAX; +dec_pos_embed fused
    #        into the first decoder block) -----
    mask_tokens = jnp.broadcast_to(params['mask_token'].astype(x_vis.dtype),
                                   (B, L - x_vis.shape[1], Dd))
    xd = jnp.concatenate([x_vis, mask_tokens], axis=1)
    xd = jnp.take_along_axis(xd, ids_restore[:, :, None], axis=1)
    for i, bp in enumerate(params['dec_blocks']):
        xd = fused_gmst_block(xd, bp, cfg.decoder_num_heads,
                              pre_pos=params['dec_pos_embed'] if i == 0 else None)

    # ----- fused decoder tail: norm -> pred -> masked MSE loss (tiled over batch) -----
    target = patchify(imgs, p)                                       # (B, L, P)
    row_mask = mask[:, :, None]                                      # (B, L, 1)
    return decoder_tail_loss(xd, params['dec_norm_g'], params['dec_norm_b'],
                             params['dec_pred_w'], params['dec_pred_b'],
                             target, row_mask)


# ---------------------------------- main ------------------------------------

if __name__ == "__main__":
    cfg = Cfg()
    key = jax.random.PRNGKey(0)
    pkey, xkey, mkey = jax.random.split(key, 3)

    params = init_params(pkey, cfg)
    imgs = jax.random.normal(xkey, (2, cfg.in_channels, cfg.img_size, cfg.img_size), jnp.float32)

    loss_fn = jax.jit(lambda pr, im, k: gmae_forward(pr, im, cfg, k))
    loss = loss_fn(params, imgs, mkey)
    jax.block_until_ready(loss)
    assert loss.shape == () and jnp.isfinite(loss)
    print("KERNEL_OK")
</pallas_src>

<mosaic_0001>
module attributes {stable_mosaic.version = 11 : i64} {
  func.func @_gmst_block_kernel(%arg0: i32, %arg1: memref<2x16x64xf32, #tpu.memory_space<vmem>>, %arg2: memref<64x32xbf16, #tpu.memory_space<vmem>>, %arg3: memref<1x32xf32, #tpu.memory_space<vmem>>, %arg4: memref<1x32xf32, #tpu.memory_space<vmem>>, %arg5: memref<1x32xf32, #tpu.memory_space<vmem>>, %arg6: memref<32x96xbf16, #tpu.memory_space<vmem>>, %arg7: memref<1x96xf32, #tpu.memory_space<vmem>>, %arg8: memref<32x32xbf16, #tpu.memory_space<vmem>>, %arg9: memref<1x32xf32, #tpu.memory_space<vmem>>, %arg10: memref<1x32xf32, #tpu.memory_space<vmem>>, %arg11: memref<1x32xf32, #tpu.memory_space<vmem>>, %arg12: memref<32x64xbf16, #tpu.memory_space<vmem>>, %arg13: memref<1x64xf32, #tpu.memory_space<vmem>>, %arg14: memref<64x32xbf16, #tpu.memory_space<vmem>>, %arg15: memref<1x32xf32, #tpu.memory_space<vmem>>, %arg16: memref<1x32xf32, #tpu.memory_space<vmem>>, %arg17: memref<1x32xf32, #tpu.memory_space<vmem>>, %arg18: memref<1x16x32xf32, #tpu.memory_space<vmem>>, %arg19: memref<32x32xbf16, #tpu.memory_space<vmem>>, %arg20: memref<1x32xf32, #tpu.memory_space<vmem>>, %arg21: memref<2x16x32xbf16, #tpu.memory_space<vmem>>) attributes {dimension_semantics = [#tpu.dimension_semantics<parallel>], iteration_bounds = array<i64: 1>, scalar_prefetch = 0 : i64, scratch_operands = 0 : i64, tpu.core_type = #tpu.core_type<tc>, window_params = [{transform_indices = @transform_0, window_bounds = array<i64: 2, 16, 64>}, {pipeline_mode = #tpu.pipeline_mode<synchronous>, transform_indices = @transform_1, window_bounds = array<i64: 64, 32>}, {pipeline_mode = #tpu.pipeline_mode<synchronous>, transform_indices = @transform_2, window_bounds = array<i64: 1, 32>}, {pipeline_mode = #tpu.pipeline_mode<synchronous>, transform_indices = @transform_3, window_bounds = array<i64: 1, 32>}, {pipeline_mode = #tpu.pipeline_mode<synchronous>, transform_indices = @transform_4, window_bounds = array<i64: 1, 32>}, {pipeline_mode = #tpu.pipeline_mode<synchronous>, transform_indices = @transform_5, window_bounds = array<i64: 32, 96>}, {pipeline_mode = #tpu.pipeline_mode<synchronous>, transform_indices = @transform_6, window_bounds = array<i64: 1, 96>}, {pipeline_mode = #tpu.pipeline_mode<synchronous>, transform_indices = @transform_7, window_bounds = array<i64: 32, 32>}, {pipeline_mode = #tpu.pipeline_mode<synchronous>, transform_indices = @transform_8, window_bounds = array<i64: 1, 32>}, {pipeline_mode = #tpu.pipeline_mode<synchronous>, transform_indices = @transform_9, window_bounds = array<i64: 1, 32>}, {pipeline_mode = #tpu.pipeline_mode<synchronous>, transform_indices = @transform_10, window_bounds = array<i64: 1, 32>}, {pipeline_mode = #tpu.pipeline_mode<synchronous>, transform_indices = @transform_11, window_bounds = array<i64: 32, 64>}, {pipeline_mode = #tpu.pipeline_mode<synchronous>, transform_indices = @transform_12, window_bounds = array<i64: 1, 64>}, {pipeline_mode = #tpu.pipeline_mode<synchronous>, transform_indices = @transform_13, window_bounds = array<i64: 64, 32>}, {pipeline_mode = #tpu.pipeline_mode<synchronous>, transform_indices = @transform_14, window_bounds = array<i64: 1, 32>}, {pipeline_mode = #tpu.pipeline_mode<synchronous>, transform_indices = @transform_15, window_bounds = array<i64: 1, 32>}, {pipeline_mode = #tpu.pipeline_mode<synchronous>, transform_indices = @transform_16, window_bounds = array<i64: 1, 32>}, {pipeline_mode = #tpu.pipeline_mode<synchronous>, transform_indices = @transform_17, window_bounds = array<i64: 1, 16, 32>}, {pipeline_mode = #tpu.pipeline_mode<synchronous>, transform_indices = @transform_18, window_bounds = array<i64: 32, 32>}, {pipeline_mode = #tpu.pipeline_mode<synchronous>, transform_indices = @transform_19, window_bounds = array<i64: 1, 32>}, {transform_indices = @transform_20, window_bounds = array<i64: 2, 16, 32>}]} {
    %c0 = arith.constant 0 : index
    %c0_0 = arith.constant 0 : index
    %c0_1 = arith.constant 0 : index
    %0 = vector.load %arg1[%c0, %c0_0, %c0_1] : memref<2x16x64xf32, #tpu.memory_space<vmem>>, vector<2x16x64xf32>
    %1 = vector.shape_cast %0 : vector<2x16x64xf32> to vector<32x64xf32>
    %c0_2 = arith.constant 0 : index
    %c0_3 = arith.constant 0 : index
    %2 = vector.load %arg2[%c0_2, %c0_3] : memref<64x32xbf16, #tpu.memory_space<vmem>>, vector<64x32xbf16>
    %3 = arith.truncf %1 : vector<32x64xf32> to vector<32x64xbf16>
    %cst = arith.constant dense<0.000000e+00> : vector<32x32xf32>
    %4 = tpu.matmul %3, %2, %cst {dimension_numbers = #tpu.dot_dimension_numbers<[1], [0], [0], [1], [0, 0, 1, 1], [], []>} : vector<32x64xbf16>, vector<64x32xbf16>, vector<32x32xf32> -> vector<32x32xf32>
    %c0_4 = arith.constant 0 : index
    %c0_5 = arith.constant 0 : index
    %5 = vector.load %arg3[%c0_4, %c0_5] : memref<1x32xf32, #tpu.memory_space<vmem>>, vector<1x32xf32>
    %6 = vector.broadcast %5 : vector<1x32xf32> to vector<32x32xf32>
    %7 = arith.addf %4, %6 : vector<32x32xf32>
    %c0_6 = arith.constant 0 : index
    %c0_7 = arith.constant 0 : index
    %8 = vector.load %arg4[%c0_6, %c0_7] : memref<1x32xf32, #tpu.memory_space<vmem>>, vector<1x32xf32>
    %c0_8 = arith.constant 0 : index
    %c0_9 = arith.constant 0 : index
    %9 = vector.load %arg5[%c0_8, %c0_9] : memref<1x32xf32, #tpu.memory_space<vmem>>, vector<1x32xf32>
    %cst_10 = arith.constant dense<0.000000e+00> : vector<32xf32>
    %10 = vector.multi_reduction <add>, %7, %cst_10 [1] : vector<32x32xf32> to vector<32xf32>
    %11 = vector.shape_cast %10 : vector<32xf32> to vector<32x1xf32>
    %cst_11 = arith.constant 3.200000e+01 : f32
    %12 = vector.broadcast %cst_11 : f32 to vector<32x1xf32>
    %13 = arith.divf %11, %12 : vector<32x1xf32>
    %14 = vector.broadcast %13 : vector<32x1xf32> to vector<32x32xf32>
    %15 = arith.subf %7, %14 : vector<32x32xf32>
    %16 = arith.mulf %15, %15 : vector<32x32xf32>
    %cst_12 = arith.constant dense<0.000000e+00> : vector<32xf32>
    %17 = vector.multi_reduction <add>, %16, %cst_12 [1] : vector<32x32xf32> to vector<32xf32>
    %18 = vector.shape_cast %17 : vector<32xf32> to vector<32x1xf32>
    %cst_13 = arith.constant 3.200000e+01 : f32
    %19 = vector.broadcast %cst_13 : f32 to vector<32x1xf32>
    %20 = arith.divf %18, %19 : vector<32x1xf32>
    %21 = vector.broadcast %13 : vector<32x1xf32> to vector<32x32xf32>
    %22 = arith.subf %7, %21 : vector<32x32xf32>
    %cst_14 = arith.constant 9.99999974E-6 : f32
    %23 = vector.broadcast %cst_14 : f32 to vector<32x1xf32>
    %24 = arith.addf %20, %23 : vector<32x1xf32>
    %25 = math.rsqrt %24 : vector<32x1xf32>
    %26 = vector.broadcast %25 : vector<32x1xf32> to vector<32x32xf32>
    %27 = arith.mulf %22, %26 : vector<32x32xf32>
    %28 = vector.broadcast %8 : vector<1x32xf32> to vector<32x32xf32>
    %29 = arith.mulf %27, %28 : vector<32x32xf32>
    %30 = vector.broadcast %9 : vector<1x32xf32> to vector<32x32xf32>
    %31 = arith.addf %29, %30 : vector<32x32xf32>
    %c0_15 = arith.constant 0 : index
    %c0_16 = arith.constant 0 : index
    %32 = vector.load %arg6[%c0_15, %c0_16] : memref<32x96xbf16, #tpu.memory_space<vmem>>, vector<32x96xbf16>
    %33 = arith.truncf %31 : vector<32x32xf32> to vector<32x32xbf16>
    %cst_17 = arith.constant dense<0.000000e+00> : vector<32x96xf32>
    %34 = tpu.matmul %33, %32, %cst_17 {dimension_numbers = #tpu.dot_dimension_numbers<[1], [0], [0], [1], [0, 0, 1, 1], [], []>} : vector<32x32xbf16>, vector<32x96xbf16>, vector<32x96xf32> -> vector<32x96xf32>
    %c0_18 = arith.constant 0 : index
    %c0_19 = arith.constant 0 : index
    %35 = vector.load %arg7[%c0_18, %c0_19] : memref<1x96xf32, #tpu.memory_space<vmem>>, vector<1x96xf32>
    %36 = vector.broadcast %35 : vector<1x96xf32> to vector<32x96xf32>
    %37 = arith.addf %34, %36 : vector<32x96xf32>
    %38 = vector.extract_strided_slice %37 {offsets = [0, 0], sizes = [32, 32], strides = [1, 1]} : vector<32x96xf32> to vector<32x32xf32>
    %39 = vector.shape_cast %38 : vector<32x32xf32> to vector<2x16x32xf32>
    %40 = vector.extract_strided_slice %37 {offsets = [0, 32], sizes = [32, 32], strides = [1, 1]} : vector<32x96xf32> to vector<32x32xf32>
    %41 = vector.shape_cast %40 : vector<32x32xf32> to vector<2x16x32xf32>
    %42 = vector.extract_strided_slice %37 {offsets = [0, 64], sizes = [32, 32], strides = [1, 1]} : vector<32x96xf32> to vector<32x32xf32>
    %43 = vector.shape_cast %42 : vector<32x32xf32> to vector<2x16x32xf32>
    %44 = vector.extract_strided_slice %39 {offsets = [0, 0, 0], sizes = [1, 16, 32], strides = [1, 1, 1]} : vector<2x16x32xf32> to vector<1x16x32xf32>
    %45 = vector.shape_cast %44 : vector<1x16x32xf32> to vector<16x32xf32>
    %46 = vector.shape_cast %45 : vector<16x32xf32> to vector<16x4x8xf32>
    %47 = tpu.transpose %46, [1, 0, 2] : vector<16x4x8xf32> -> vector<4x16x8xf32>
    %48 = arith.truncf %47 : vector<4x16x8xf32> to vector<4x16x8xbf16>
    %49 = vector.extract_strided_slice %41 {offsets = [0, 0, 0], sizes = [1, 16, 32], strides = [1, 1, 1]} : vector<2x16x32xf32> to vector<1x16x32xf32>
    %50 = vector.shape_cast %49 : vector<1x16x32xf32> to vector<16x32xf32>
    %51 = vector.shape_cast %50 : vector<16x32xf32> to vector<16x4x8xf32>
    %52 = tpu.transpose %51, [1, 0, 2] : vector<16x4x8xf32> -> vector<4x16x8xf32>
    %53 = arith.truncf %52 : vector<4x16x8xf32> to vector<4x16x8xbf16>
    %54 = vector.extract_strided_slice %43 {offsets = [0, 0, 0], sizes = [1, 16, 32], strides = [1, 1, 1]} : vector<2x16x32xf32> to vector<1x16x32xf32>
    %55 = vector.shape_cast %54 : vector<1x16x32xf32> to vector<16x32xf32>
    %56 = vector.shape_cast %55 : vector<16x32xf32> to vector<16x4x8xf32>
    %57 = tpu.transpose %56, [1, 0, 2] : vector<16x4x8xf32> -> vector<4x16x8xf32>
    %58 = arith.truncf %57 : vector<4x16x8xf32> to vector<4x16x8xbf16>
    "tpu.trace_start"() <{level = 10 : i32, message = "hqd,hkd->hqk"}> : () -> ()
    %cst_20 = arith.constant dense<0.000000e+00> : vector<4x16x16xf32>
    %59 = tpu.matmul %48, %53, %cst_20 {dimension_numbers = #tpu.dot_dimension_numbers<[2], [2], [1], [1], [0, 0, 0, 1, 1, 1], [0], [0]>} : vector<4x16x8xbf16>, vector<4x16x8xbf16>, vector<4x16x16xf32> -> vector<4x16x16xf32>
    "tpu.trace_stop"() : () -> ()
    %cst_21 = arith.constant 0.353553385 : f32
    %60 = vector.broadcast %cst_21 : f32 to vector<4x16x16xf32>
    %61 = arith.mulf %59, %60 : vector<4x16x16xf32>
    %cst_22 = arith.constant dense<0xFF800000> : vector<4x16xf32>
    %62 = vector.multi_reduction <maximumf>, %61, %cst_22 [2] : vector<4x16x16xf32> to vector<4x16xf32>
    %63 = vector.shape_cast %62 : vector<4x16xf32> to vector<4x16x1xf32>
    %64 = vector.broadcast %63 : vector<4x16x1xf32> to vector<4x16x16xf32>
    %65 = arith.subf %61, %64 : vector<4x16x16xf32>
    %66 = math.exp %65 : vector<4x16x16xf32>
    %cst_23 = arith.constant dense<0.000000e+00> : vector<4x16xf32>
    %67 = vector.multi_reduction <add>, %66, %cst_23 [2] : vector<4x16x16xf32> to vector<4x16xf32>
    %68 = vector.shape_cast %67 : vector<4x16xf32> to vector<4x16x1xf32>
    %69 = tpu.reciprocal %68 {approx = true} : vector<4x16x1xf32> -> vector<4x16x1xf32>
    %70 = vector.broadcast %69 : vector<4x16x1xf32> to vector<4x16x16xf32>
    %71 = arith.mulf %66, %70 : vector<4x16x16xf32>
    %72 = arith.truncf %71 : vector<4x16x16xf32> to vector<4x16x16xbf16>
    "tpu.trace_start"() <{level = 10 : i32, message = "hqk,hkd->hqd"}> : () -> ()
    %cst_24 = arith.constant dense<0.000000e+00> : vector<4x16x8xf32>
    %73 = tpu.matmul %72, %58, %cst_24 {dimension_numbers = #tpu.dot_dimension_numbers<[2], [1], [1], [2], [0, 0, 0, 1, 1, 2], [0], [0]>} : vector<4x16x16xbf16>, vector<4x16x8xbf16>, vector<4x16x8xf32> -> vector<4x16x8xf32>
    "tpu.trace_stop"() : () -> ()
    %74 = tpu.transpose %73, [1, 0, 2] : vector<4x16x8xf32> -> vector<16x4x8xf32>
    %75 = vector.shape_cast %74 : vector<16x4x8xf32> to vector<16x32xf32>
    %76 = vector.extract_strided_slice %39 {offsets = [1, 0, 0], sizes = [1, 16, 32], strides = [1, 1, 1]} : vector<2x16x32xf32> to vector<1x16x32xf32>
    %77 = vector.shape_cast %76 : vector<1x16x32xf32> to vector<16x32xf32>
    %78 = vector.shape_cast %77 : vector<16x32xf32> to vector<16x4x8xf32>
    %79 = tpu.transpose %78, [1, 0, 2] : vector<16x4x8xf32> -> vector<4x16x8xf32>
    %80 = arith.truncf %79 : vector<4x16x8xf32> to vector<4x16x8xbf16>
    %81 = vector.extract_strided_slice %41 {offsets = [1, 0, 0], sizes = [1, 16, 32], strides = [1, 1, 1]} : vector<2x16x32xf32> to vector<1x16x32xf32>
    %82 = vector.shape_cast %81 : vector<1x16x32xf32> to vector<16x32xf32>
    %83 = vector.shape_cast %82 : vector<16x32xf32> to vector<16x4x8xf32>
    %84 = tpu.transpose %83, [1, 0, 2] : vector<16x4x8xf32> -> vector<4x16x8xf32>
    %85 = arith.truncf %84 : vector<4x16x8xf32> to vector<4x16x8xbf16>
    %86 = vector.extract_strided_slice %43 {offsets = [1, 0, 0], sizes = [1, 16, 32], strides = [1, 1, 1]} : vector<2x16x32xf32> to vector<1x16x32xf32>
    %87 = vector.shape_cast %86 : vector<1x16x32xf32> to vector<16x32xf32>
    %88 = vector.shape_cast %87 : vector<16x32xf32> to vector<16x4x8xf32>
    %89 = tpu.transpose %88, [1, 0, 2] : vector<16x4x8xf32> -> vector<4x16x8xf32>
    %90 = arith.truncf %89 : vector<4x16x8xf32> to vector<4x16x8xbf16>
    "tpu.trace_start"() <{level = 10 : i32, message = "hqd,hkd->hqk"}> : () -> ()
    %cst_25 = arith.constant dense<0.000000e+00> : vector<4x16x16xf32>
    %91 = tpu.matmul %80, %85, %cst_25 {dimension_numbers = #tpu.dot_dimension_numbers<[2], [2], [1], [1], [0, 0, 0, 1, 1, 1], [0], [0]>} : vector<4x16x8xbf16>, vector<4x16x8xbf16>, vector<4x16x16xf32> -> vector<4x16x16xf32>
    "tpu.trace_stop"() : () -> ()
    %cst_26 = arith.constant 0.353553385 : f32
    %92 = vector.broadcast %cst_26 : f32 to vector<4x16x16xf32>
    %93 = arith.mulf %91, %92 : vector<4x16x16xf32>
    %cst_27 = arith.constant dense<0xFF800000> : vector<4x16xf32>
    %94 = vector.multi_reduction <maximumf>, %93, %cst_27 [2] : vector<4x16x16xf32> to vector<4x16xf32>
    %95 = vector.shape_cast %94 : vector<4x16xf32> to vector<4x16x1xf32>
    %96 = vector.broadcast %95 : vector<4x16x1xf32> to vector<4x16x16xf32>
    %97 = arith.subf %93, %96 : vector<4x16x16xf32>
    %98 = math.exp %97 : vector<4x16x16xf32>
    %cst_28 = arith.constant dense<0.000000e+00> : vector<4x16xf32>
    %99 = vector.multi_reduction <add>, %98, %cst_28 [2] : vector<4x16x16xf32> to vector<4x16xf32>
    %100 = vector.shape_cast %99 : vector<4x16xf32> to vector<4x16x1xf32>
    %101 = tpu.reciprocal %100 {approx = true} : vector<4x16x1xf32> -> vector<4x16x1xf32>
    %102 = vector.broadcast %101 : vector<4x16x1xf32> to vector<4x16x16xf32>
    %103 = arith.mulf %98, %102 : vector<4x16x16xf32>
    %104 = arith.truncf %103 : vector<4x16x16xf32> to vector<4x16x16xbf16>
    "tpu.trace_start"() <{level = 10 : i32, message = "hqk,hkd->hqd"}> : () -> ()
    %cst_29 = arith.constant dense<0.000000e+00> : vector<4x16x8xf32>
    %105 = tpu.matmul %104, %90, %cst_29 {dimension_numbers = #tpu.dot_dimension_numbers<[2], [1], [1], [2], [0, 0, 0, 1, 1, 2], [0], [0]>} : vector<4x16x16xbf16>, vector<4x16x8xbf16>, vector<4x16x8xf32> -> vector<4x16x8xf32>
    "tpu.trace_stop"() : () -> ()
    %106 = tpu.transpose %105, [1, 0, 2] : vector<4x16x8xf32> -> vector<16x4x8xf32>
    %107 = vector.shape_cast %106 : vector<16x4x8xf32> to vector<16x32xf32>
    %108 = tpu.concatenate %75, %107 in 0 : vector<16x32xf32>, vector<16x32xf32> -> vector<32x32xf32>
    %c0_30 = arith.constant 0 : index
    %c0_31 = arith.constant 0 : index
    %109 = vector.load %arg8[%c0_30, %c0_31] : memref<32x32xbf16, #tpu.memory_space<vmem>>, vector<32x32xbf16>
    %110 = arith.truncf %108 : vector<32x32xf32> to vector<32x32xbf16>
    %cst_32 = arith.constant dense<0.000000e+00> : vector<32x32xf32>
    %111 = tpu.matmul %110, %109, %cst_32 {dimension_numbers = #tpu.dot_dimension_numbers<[1], [0], [0], [1], [0, 0, 1, 1], [], []>} : vector<32x32xbf16>, vector<32x32xbf16>, vector<32x32xf32> -> vector<32x32xf32>
    %112 = arith.addf %7, %111 : vector<32x32xf32>
    %c0_33 = arith.constant 0 : index
    %c0_34 = arith.constant 0 : index
    %113 = vector.load %arg9[%c0_33, %c0_34] : memref<1x32xf32, #tpu.memory_space<vmem>>, vector<1x32xf32>
    %114 = vector.broadcast %113 : vector<1x32xf32> to vector<32x32xf32>
    %115 = arith.addf %112, %114 : vector<32x32xf32>
    %c0_35 = arith.constant 0 : index
    %c0_36 = arith.constant 0 : index
    %116 = vector.load %arg10[%c0_35, %c0_36] : memref<1x32xf32, #tpu.memory_space<vmem>>, vector<1x32xf32>
    %c0_37 = arith.constant 0 : index
    %c0_38 = arith.constant 0 : index
    %117 = vector.load %arg11[%c0_37, %c0_38] : memref<1x32xf32, #tpu.memory_space<vmem>>, vector<1x32xf32>
    %cst_39 = arith.constant dense<0.000000e+00> : vector<32xf32>
    %118 = vector.multi_reduction <add>, %115, %cst_39 [1] : vector<32x32xf32> to vector<32xf32>
    %119 = vector.shape_cast %118 : vector<32xf32> to vector<32x1xf32>
    %cst_40 = arith.constant 3.200000e+01 : f32
    %120 = vector.broadcast %cst_40 : f32 to vector<32x1xf32>
    %121 = arith.divf %119, %120 : vector<32x1xf32>
    %122 = vector.broadcast %121 : vector<32x1xf32> to vector<32x32xf32>
    %123 = arith.subf %115, %122 : vector<32x32xf32>
    %124 = arith.mulf %123, %123 : vector<32x32xf32>
    %cst_41 = arith.constant dense<0.000000e+00> : vector<32xf32>
    %125 = vector.multi_reduction <add>, %124, %cst_41 [1] : vector<32x32xf32> to vector<32xf32>
    %126 = vector.shape_cast %125 : vector<32xf32> to vector<32x1xf32>
    %cst_42 = arith.constant 3.200000e+01 : f32
    %127 = vector.broadcast %cst_42 : f32 to vector<32x1xf32>
    %128 = arith.divf %126, %127 : vector<32x1xf32>
    %129 = vector.broadcast %121 : vector<32x1xf32> to vector<32x32xf32>
    %130 = arith.subf %115, %129 : vector<32x32xf32>
    %cst_43 = arith.constant 9.99999974E-6 : f32
    %131 = vector.broadcast %cst_43 : f32 to vector<32x1xf32>
    %132 = arith.addf %128, %131 : vector<32x1xf32>
    %133 = math.rsqrt %132 : vector<32x1xf32>
    %134 = vector.broadcast %133 : vector<32x1xf32> to vector<32x32xf32>
    %135 = arith.mulf %130, %134 : vector<32x32xf32>
    %136 = vector.broadcast %116 : vector<1x32xf32> to vector<32x32xf32>
    %137 = arith.mulf %135, %136 : vector<32x32xf32>
    %138 = vector.broadcast %117 : vector<1x32xf32> to vector<32x32xf32>
    %139 = arith.addf %137, %138 : vector<32x32xf32>
    %c0_44 = arith.constant 0 : index
    %c0_45 = arith.constant 0 : index
    %140 = vector.load %arg12[%c0_44, %c0_45] : memref<32x64xbf16, #tpu.memory_space<vmem>>, vector<32x64xbf16>
    %141 = arith.truncf %139 : vector<32x32xf32> to vector<32x32xbf16>
    %cst_46 = arith.constant dense<0.000000e+00> : vector<32x64xf32>
    %142 = tpu.matmul %141, %140, %cst_46 {dimension_numbers = #tpu.dot_dimension_numbers<[1], [0], [0], [1], [0, 0, 1, 1], [], []>} : vector<32x32xbf16>, vector<32x64xbf16>, vector<32x64xf32> -> vector<32x64xf32>
    %c0_47 = arith.constant 0 : index
    %c0_48 = arith.constant 0 : index
    %143 = vector.load %arg13[%c0_47, %c0_48] : memref<1x64xf32, #tpu.memory_space<vmem>>, vector<1x64xf32>
    %144 = vector.broadcast %143 : vector<1x64xf32> to vector<32x64xf32>
    %145 = arith.addf %142, %144 : vector<32x64xf32>
    %146 = arith.mulf %145, %145 : vector<32x64xf32>
    %147 = arith.mulf %145, %146 : vector<32x64xf32>
    %cst_49 = arith.constant 4.471500e-02 : f32
    %148 = vector.broadcast %cst_49 : f32 to vector<32x64xf32>
    %149 = arith.mulf %148, %147 : vector<32x64xf32>
    %150 = arith.addf %145, %149 : vector<32x64xf32>
    %cst_50 = arith.constant 0.797884583 : f32
    %151 = vector.broadcast %cst_50 : f32 to vector<32x64xf32>
    %152 = arith.mulf %151, %150 : vector<32x64xf32>
    %153 = math.tanh %152 : vector<32x64xf32>
    %cst_51 = arith.constant 1.000000e+00 : f32
    %154 = vector.broadcast %cst_51 : f32 to vector<32x64xf32>
    %155 = arith.addf %154, %153 : vector<32x64xf32>
    %cst_52 = arith.constant 5.000000e-01 : f32
    %156 = vector.broadcast %cst_52 : f32 to vector<32x64xf32>
    %157 = arith.mulf %156, %155 : vector<32x64xf32>
    %158 = arith.mulf %145, %157 : vector<32x64xf32>
    %c0_53 = arith.constant 0 : index
    %c0_54 = arith.constant 0 : index
    %159 = vector.load %arg14[%c0_53, %c0_54] : memref<64x32xbf16, #tpu.memory_space<vmem>>, vector<64x32xbf16>
    %160 = arith.truncf %158 : vector<32x64xf32> to vector<32x64xbf16>
    %cst_55 = arith.constant dense<0.000000e+00> : vector<32x32xf32>
    %161 = tpu.matmul %160, %159, %cst_55 {dimension_numbers = #tpu.dot_dimension_numbers<[1], [0], [0], [1], [0, 0, 1, 1], [], []>} : vector<32x64xbf16>, vector<64x32xbf16>, vector<32x32xf32> -> vector<32x32xf32>
    %c0_56 = arith.constant 0 : index
    %c0_57 = arith.constant 0 : index
    %162 = vector.load %arg15[%c0_56, %c0_57] : memref<1x32xf32, #tpu.memory_space<vmem>>, vector<1x32xf32>
    %163 = vector.broadcast %162 : vector<1x32xf32> to vector<32x32xf32>
    %164 = arith.addf %161, %163 : vector<32x32xf32>
    %165 = arith.addf %115, %164 : vector<32x32xf32>
    %c0_58 = arith.constant 0 : index
    %c0_59 = arith.constant 0 : index
    %166 = vector.load %arg16[%c0_58, %c0_59] : memref<1x32xf32, #tpu.memory_space<vmem>>, vector<1x32xf32>
    %c0_60 = arith.constant 0 : index
    %c0_61 = arith.constant 0 : index
    %167 = vector.load %arg17[%c0_60, %c0_61] : memref<1x32xf32, #tpu.memory_space<vmem>>, vector<1x32xf32>
    %cst_62 = arith.constant dense<0.000000e+00> : vector<32xf32>
    %168 = vector.multi_reduction <add>, %165, %cst_62 [1] : vector<32x32xf32> to vector<32xf32>
    %169 = vector.shape_cast %168 : vector<32xf32> to vector<32x1xf32>
    %cst_63 = arith.constant 3.200000e+01 : f32
    %170 = vector.broadcast %cst_63 : f32 to vector<32x1xf32>
    %171 = arith.divf %169, %170 : vector<32x1xf32>
    %172 = vector.broadcast %171 : vector<32x1xf32> to vector<32x32xf32>
    %173 = arith.subf %165, %172 : vector<32x32xf32>
    %174 = arith.mulf %173, %173 : vector<32x32xf32>
    %cst_64 = arith.constant dense<0.000000e+00> : vector<32xf32>
    %175 = vector.multi_reduction <add>, %174, %cst_64 [1] : vector<32x32xf32> to vector<32xf32>
    %176 = vector.shape_cast %175 : vector<32xf32> to vector<32x1xf32>
    %cst_65 = arith.constant 3.200000e+01 : f32
    %177 = vector.broadcast %cst_65 : f32 to vector<32x1xf32>
    %178 = arith.divf %176, %177 : vector<32x1xf32>
    %179 = vector.broadcast %171 : vector<32x1xf32> to vector<32x32xf32>
    %180 = arith.subf %165, %179 : vector<32x32xf32>
    %cst_66 = arith.constant 9.99999974E-6 : f32
    %181 = vector.broadcast %cst_66 : f32 to vector<32x1xf32>
    %182 = arith.addf %178, %181 : vector<32x1xf32>
    %183 = math.rsqrt %182 : vector<32x1xf32>
    %184 = vector.broadcast %183 : vector<32x1xf32> to vector<32x32xf32>
    %185 = arith.mulf %180, %184 : vector<32x32xf32>
    %186 = vector.broadcast %166 : vector<1x32xf32> to vector<32x32xf32>
    %187 = arith.mulf %185, %186 : vector<32x32xf32>
    %188 = vector.broadcast %167 : vector<1x32xf32> to vector<32x32xf32>
    %189 = arith.addf %187, %188 : vector<32x32xf32>
    %c0_67 = arith.constant 0 : index
    %c0_68 = arith.constant 0 : index
    %c0_69 = arith.constant 0 : index
    %190 = vector.load %arg18[%c0_67, %c0_68, %c0_69] : memref<1x16x32xf32, #tpu.memory_space<vmem>>, vector<1x16x32xf32>
    %191 = vector.shape_cast %190 : vector<1x16x32xf32> to vector<16x32xf32>
    %192 = vector.shape_cast %189 : vector<32x32xf32> to vector<2x16x32xf32>
    %193 = vector.shape_cast %191 : vector<16x32xf32> to vector<1x16x32xf32>
    %194 = vector.broadcast %193 : vector<1x16x32xf32> to vector<2x16x32xf32>
    %195 = arith.addf %192, %194 : vector<2x16x32xf32>
    %196 = vector.shape_cast %195 : vector<2x16x32xf32> to vector<32x32xf32>
    %c0_70 = arith.constant 0 : index
    %c0_71 = arith.constant 0 : index
    %197 = vector.load %arg19[%c0_70, %c0_71] : memref<32x32xbf16, #tpu.memory_space<vmem>>, vector<32x32xbf16>
    %198 = arith.truncf %196 : vector<32x32xf32> to vector<32x32xbf16>
    %cst_72 = arith.constant dense<0.000000e+00> : vector<32x32xf32>
    %199 = tpu.matmul %198, %197, %cst_72 {dimension_numbers = #tpu.dot_dimension_numbers<[1], [0], [0], [1], [0, 0, 1, 1], [], []>} : vector<32x32xbf16>, vector<32x32xbf16>, vector<32x32xf32> -> vector<32x32xf32>
    %c0_73 = arith.constant 0 : index
    %c0_74 = arith.constant 0 : index
    %200 = vector.load %arg20[%c0_73, %c0_74] : memref<1x32xf32, #tpu.memory_space<vmem>>, vector<1x32xf32>
    %201 = vector.broadcast %200 : vector<1x32xf32> to vector<32x32xf32>
    %202 = arith.addf %199, %201 : vector<32x32xf32>
    %203 = vector.shape_cast %202 : vector<32x32xf32> to vector<2x16x32xf32>
    %204 = arith.truncf %203 : vector<2x16x32xf32> to vector<2x16x32xbf16>
    %c0_75 = arith.constant 0 : index
    %c0_76 = arith.constant 0 : index
    %c0_77 = arith.constant 0 : index
    %205 = vector.load %arg21[%c0_75, %c0_76, %c0_77] : memref<2x16x32xbf16, #tpu.memory_space<vmem>>, vector<2x16x32xbf16>
    tpu.vector_store %arg21[%c0_75, %c0_76, %c0_77], %204 {strides = array<i32>} : memref<2x16x32xbf16, #tpu.memory_space<vmem>>, vector<2x16x32xbf16>,
    return
  }
  func.func @transform_0(%arg0: i32) -> (i32, i32, i32) {
    %c0_i32 = arith.constant 0 : i32
    %c0_i32_0 = arith.constant 0 : i32
    %c0_i32_1 = arith.constant 0 : i32
    return %arg0, %c0_i32, %c0_i32_0 : i32, i32, i32
  }
  func.func @transform_1(%arg0: i32) -> (i32, i32) {
    %c0_i32 = arith.constant 0 : i32
    %c0_i32_0 = arith.constant 0 : i32
    %c0_i32_1 = arith.constant 0 : i32
    return %c0_i32, %c0_i32_0 : i32, i32
  }
  func.func @transform_2(%arg0: i32) -> (i32, i32) {
    %c0_i32 = arith.constant 0 : i32
    %c0_i32_0 = arith.constant 0 : i32
    %c0_i32_1 = arith.constant 0 : i32
    return %c0_i32, %c0_i32_0 : i32, i32
  }
  func.func @transform_3(%arg0: i32) -> (i32, i32) {
    %c0_i32 = arith.constant 0 : i32
    %c0_i32_0 = arith.constant 0 : i32
    %c0_i32_1 = arith.constant 0 : i32
    return %c0_i32, %c0_i32_0 : i32, i32
  }
  func.func @transform_4(%arg0: i32) -> (i32, i32) {
    %c0_i32 = arith.constant 0 : i32
    %c0_i32_0 = arith.constant 0 : i32
    %c0_i32_1 = arith.constant 0 : i32
    return %c0_i32, %c0_i32_0 : i32, i32
  }
  func.func @transform_5(%arg0: i32) -> (i32, i32) {
    %c0_i32 = arith.constant 0 : i32
    %c0_i32_0 = arith.constant 0 : i32
    %c0_i32_1 = arith.constant 0 : i32
    return %c0_i32, %c0_i32_0 : i32, i32
  }
  func.func @transform_6(%arg0: i32) -> (i32, i32) {
    %c0_i32 = arith.constant 0 : i32
    %c0_i32_0 = arith.constant 0 : i32
    %c0_i32_1 = arith.constant 0 : i32
    return %c0_i32, %c0_i32_0 : i32, i32
  }
  func.func @transform_7(%arg0: i32) -> (i32, i32) {
    %c0_i32 = arith.constant 0 : i32
    %c0_i32_0 = arith.constant 0 : i32
    %c0_i32_1 = arith.constant 0 : i32
    return %c0_i32, %c0_i32_0 : i32, i32
  }
  func.func @transform_8(%arg0: i32) -> (i32, i32) {
    %c0_i32 = arith.constant 0 : i32
    %c0_i32_0 = arith.constant 0 : i32
    %c0_i32_1 = arith.constant 0 : i32
    return %c0_i32, %c0_i32_0 : i32, i32
  }
  func.func @transform_9(%arg0: i32) -> (i32, i32) {
    %c0_i32 = arith.constant 0 : i32
    %c0_i32_0 = arith.constant 0 : i32
    %c0_i32_1 = arith.constant 0 : i32
    return %c0_i32, %c0_i32_0 : i32, i32
  }
  func.func @transform_10(%arg0: i32) -> (i32, i32) {
    %c0_i32 = arith.constant 0 : i32
    %c0_i32_0 = arith.constant 0 : i32
    %c0_i32_1 = arith.constant 0 : i32
    return %c0_i32, %c0_i32_0 : i32, i32
  }
  func.func @transform_11(%arg0: i32) -> (i32, i32) {
    %c0_i32 = arith.constant 0 : i32
    %c0_i32_0 = arith.constant 0 : i32
    %c0_i32_1 = arith.constant 0 : i32
    return %c0_i32, %c0_i32_0 : i32, i32
  }
  func.func @transform_12(%arg0: i32) -> (i32, i32) {
    %c0_i32 = arith.constant 0 : i32
    %c0_i32_0 = arith.constant 0 : i32
    %c0_i32_1 = arith.constant 0 : i32
    return %c0_i32, %c0_i32_0 : i32, i32
  }
  func.func @transform_13(%arg0: i32) -> (i32, i32) {
    %c0_i32 = arith.constant 0 : i32
    %c0_i32_0 = arith.constant 0 : i32
    %c0_i32_1 = arith.constant 0 : i32
    return %c0_i32, %c0_i32_0 : i32, i32
  }
  func.func @transform_14(%arg0: i32) -> (i32, i32) {
    %c0_i32 = arith.constant 0 : i32
    %c0_i32_0 = arith.constant 0 : i32
    %c0_i32_1 = arith.constant 0 : i32
    return %c0_i32, %c0_i32_0 : i32, i32
  }
  func.func @transform_15(%arg0: i32) -> (i32, i32) {
    %c0_i32 = arith.constant 0 : i32
    %c0_i32_0 = arith.constant 0 : i32
    %c0_i32_1 = arith.constant 0 : i32
    return %c0_i32, %c0_i32_0 : i32, i32
  }
  func.func @transform_16(%arg0: i32) -> (i32, i32) {
    %c0_i32 = arith.constant 0 : i32
    %c0_i32_0 = arith.constant 0 : i32
    %c0_i32_1 = arith.constant 0 : i32
    return %c0_i32, %c0_i32_0 : i32, i32
  }
  func.func @transform_17(%arg0: i32) -> (i32, i32, i32) {
    %c0_i32 = arith.constant 0 : i32
    %c0_i32_0 = arith.constant 0 : i32
    %c0_i32_1 = arith.constant 0 : i32
    %c0_i32_2 = arith.constant 0 : i32
    return %c0_i32, %c0_i32_0, %c0_i32_1 : i32, i32, i32
  }
  func.func @transform_18(%arg0: i32) -> (i32, i32) {
    %c0_i32 = arith.constant 0 : i32
    %c0_i32_0 = arith.constant 0 : i32
    %c0_i32_1 = arith.constant 0 : i32
    return %c0_i32, %c0_i32_0 : i32, i32
  }
  func.func @transform_19(%arg0: i32) -> (i32, i32) {
    %c0_i32 = arith.constant 0 : i32
    %c0_i32_0 = arith.constant 0 : i32
    %c0_i32_1 = arith.constant 0 : i32
    return %c0_i32, %c0_i32_0 : i32, i32
  }
  func.func @transform_20(%arg0: i32) -> (i32, i32, i32) {
    %c0_i32 = arith.constant 0 : i32
    %c0_i32_0 = arith.constant 0 : i32
    %c0_i32_1 = arith.constant 0 : i32
    return %arg0, %c0_i32, %c0_i32_0 : i32, i32, i32
  }
}

module attributes {stable_mosaic.version = 11 : i64} {
  func.func @_gmst_block_kernel(%arg0: i32, %arg1: memref<2x16x32xbf16, #tpu.memory_space<vmem>>, %arg2: memref<1x16x32xf32, #tpu.memory_space<vmem>>, %arg3: memref<1x32xf32, #tpu.memory_space<vmem>>, %arg4: memref<1x32xf32, #tpu.memory_space<vmem>>, %arg5: memref<32x96xbf16, #tpu.memory_space<vmem>>, %arg6: memref<1x96xf32, #tpu.memory_space<vmem>>, %arg7: memref<32x32xbf16, #tpu.memory_space<vmem>>, %arg8: memref<1x32xf32, #tpu.memory_space<vmem>>, %arg9: memref<1x32xf32, #tpu.memory_space<vmem>>, %arg10: memref<1x32xf32, #tpu.memory_space<vmem>>, %arg11: memref<32x64xbf16, #tpu.memory_space<vmem>>, %arg12: memref<1x64xf32, #tpu.memory_space<vmem>>, %arg13: memref<64x32xbf16, #tpu.memory_space<vmem>>, %arg14: memref<1x32xf32, #tpu.memory_space<vmem>>, %arg15: memref<2x16x32xbf16, #tpu.memory_space<vmem>>) attributes {dimension_semantics = [#tpu.dimension_semantics<parallel>], iteration_bounds = array<i64: 1>, scalar_prefetch = 0 : i64, scratch_operands = 0 : i64, tpu.core_type = #tpu.core_type<tc>, window_params = [{transform_indices = @transform_0, window_bounds = array<i64: 2, 16, 32>}, {pipeline_mode = #tpu.pipeline_mode<synchronous>, transform_indices = @transform_1, window_bounds = array<i64: 1, 16, 32>}, {pipeline_mode = #tpu.pipeline_mode<synchronous>, transform_indices = @transform_2, window_bounds = array<i64: 1, 32>}, {pipeline_mode = #tpu.pipeline_mode<synchronous>, transform_indices = @transform_3, window_bounds = array<i64: 1, 32>}, {pipeline_mode = #tpu.pipeline_mode<synchronous>, transform_indices = @transform_4, window_bounds = array<i64: 32, 96>}, {pipeline_mode = #tpu.pipeline_mode<synchronous>, transform_indices = @transform_5, window_bounds = array<i64: 1, 96>}, {pipeline_mode = #tpu.pipeline_mode<synchronous>, transform_indices = @transform_6, window_bounds = array<i64: 32, 32>}, {pipeline_mode = #tpu.pipeline_mode<synchronous>, transform_indices = @transform_7, window_bounds = array<i64: 1, 32>}, {pipeline_mode = #tpu.pipeline_mode<synchronous>, transform_indices = @transform_8, window_bounds = array<i64: 1, 32>}, {pipeline_mode = #tpu.pipeline_mode<synchronous>, transform_indices = @transform_9, window_bounds = array<i64: 1, 32>}, {pipeline_mode = #tpu.pipeline_mode<synchronous>, transform_indices = @transform_10, window_bounds = array<i64: 32, 64>}, {pipeline_mode = #tpu.pipeline_mode<synchronous>, transform_indices = @transform_11, window_bounds = array<i64: 1, 64>}, {pipeline_mode = #tpu.pipeline_mode<synchronous>, transform_indices = @transform_12, window_bounds = array<i64: 64, 32>}, {pipeline_mode = #tpu.pipeline_mode<synchronous>, transform_indices = @transform_13, window_bounds = array<i64: 1, 32>}, {transform_indices = @transform_14, window_bounds = array<i64: 2, 16, 32>}]} {
    %c0 = arith.constant 0 : index
    %c0_0 = arith.constant 0 : index
    %c0_1 = arith.constant 0 : index
    %0 = vector.load %arg1[%c0, %c0_0, %c0_1] : memref<2x16x32xbf16, #tpu.memory_space<vmem>>, vector<2x16x32xbf16>
    %1 = arith.extf %0 : vector<2x16x32xbf16> to vector<2x16x32xf32>
    %2 = vector.shape_cast %1 : vector<2x16x32xf32> to vector<32x32xf32>
    %c0_2 = arith.constant 0 : index
    %c0_3 = arith.constant 0 : index
    %c0_4 = arith.constant 0 : index
    %3 = vector.load %arg2[%c0_2, %c0_3, %c0_4] : memref<1x16x32xf32, #tpu.memory_space<vmem>>, vector<1x16x32xf32>
    %4 = vector.shape_cast %3 : vector<1x16x32xf32> to vector<16x32xf32>
    %5 = vector.shape_cast %2 : vector<32x32xf32> to vector<2x16x32xf32>
    %6 = vector.shape_cast %4 : vector<16x32xf32> to vector<1x16x32xf32>
    %7 = vector.broadcast %6 : vector<1x16x32xf32> to vector<2x16x32xf32>
    %8 = arith.addf %5, %7 : vector<2x16x32xf32>
    %9 = vector.shape_cast %8 : vector<2x16x32xf32> to vector<32x32xf32>
    %c0_5 = arith.constant 0 : index
    %c0_6 = arith.constant 0 : index
    %10 = vector.load %arg3[%c0_5, %c0_6] : memref<1x32xf32, #tpu.memory_space<vmem>>, vector<1x32xf32>
    %c0_7 = arith.constant 0 : index
    %c0_8 = arith.constant 0 : index
    %11 = vector.load %arg4[%c0_7, %c0_8] : memref<1x32xf32, #tpu.memory_space<vmem>>, vector<1x32xf32>
    %cst = arith.constant dense<0.000000e+00> : vector<32xf32>
    %12 = vector.multi_reduction <add>, %9, %cst [1] : vector<32x32xf32> to vector<32xf32>
    %13 = vector.shape_cast %12 : vector<32xf32> to vector<32x1xf32>
    %cst_9 = arith.constant 3.200000e+01 : f32
    %14 = vector.broadcast %cst_9 : f32 to vector<32x1xf32>
    %15 = arith.divf %13, %14 : vector<32x1xf32>
    %16 = vector.broadcast %15 : vector<32x1xf32> to vector<32x32xf32>
    %17 = arith.subf %9, %16 : vector<32x32xf32>
    %18 = arith.mulf %17, %17 : vector<32x32xf32>
    %cst_10 = arith.constant dense<0.000000e+00> : vector<32xf32>
    %19 = vector.multi_reduction <add>, %18, %cst_10 [1] : vector<32x32xf32> to vector<32xf32>
    %20 = vector.shape_cast %19 : vector<32xf32> to vector<32x1xf32>
    %cst_11 = arith.constant 3.200000e+01 : f32
    %21 = vector.broadcast %cst_11 : f32 to vector<32x1xf32>
    %22 = arith.divf %20, %21 : vector<32x1xf32>
    %23 = vector.broadcast %15 : vector<32x1xf32> to vector<32x32xf32>
    %24 = arith.subf %9, %23 : vector<32x32xf32>
    %cst_12 = arith.constant 9.99999974E-6 : f32
    %25 = vector.broadcast %cst_12 : f32 to vector<32x1xf32>
    %26 = arith.addf %22, %25 : vector<32x1xf32>
    %27 = math.rsqrt %26 : vector<32x1xf32>
    %28 = vector.broadcast %27 : vector<32x1xf32> to vector<32x32xf32>
    %29 = arith.mulf %24, %28 : vector<32x32xf32>
    %30 = vector.broadcast %10 : vector<1x32xf32> to vector<32x32xf32>
    %31 = arith.mulf %29, %30 : vector<32x32xf32>
    %32 = vector.broadcast %11 : vector<1x32xf32> to vector<32x32xf32>
    %33 = arith.addf %31, %32 : vector<32x32xf32>
    %c0_13 = arith.constant 0 : index
    %c0_14 = arith.constant 0 : index
    %34 = vector.load %arg5[%c0_13, %c0_14] : memref<32x96xbf16, #tpu.memory_space<vmem>>, vector<32x96xbf16>
    %35 = arith.truncf %33 : vector<32x32xf32> to vector<32x32xbf16>
    %cst_15 = arith.constant dense<0.000000e+00> : vector<32x96xf32>
    %36 = tpu.matmul %35, %34, %cst_15 {dimension_numbers = #tpu.dot_dimension_numbers<[1], [0], [0], [1], [0, 0, 1, 1], [], []>} : vector<32x32xbf16>, vector<32x96xbf16>, vector<32x96xf32> -> vector<32x96xf32>
    %c0_16 = arith.constant 0 : index
    %c0_17 = arith.constant 0 : index
    %37 = vector.load %arg6[%c0_16, %c0_17] : memref<1x96xf32, #tpu.memory_space<vmem>>, vector<1x96xf32>
    %38 = vector.broadcast %37 : vector<1x96xf32> to vector<32x96xf32>
    %39 = arith.addf %36, %38 : vector<32x96xf32>
    %40 = vector.extract_strided_slice %39 {offsets = [0, 0], sizes = [32, 32], strides = [1, 1]} : vector<32x96xf32> to vector<32x32xf32>
    %41 = vector.shape_cast %40 : vector<32x32xf32> to vector<2x16x32xf32>
    %42 = vector.extract_strided_slice %39 {offsets = [0, 32], sizes = [32, 32], strides = [1, 1]} : vector<32x96xf32> to vector<32x32xf32>
    %43 = vector.shape_cast %42 : vector<32x32xf32> to vector<2x16x32xf32>
    %44 = vector.extract_strided_slice %39 {offsets = [0, 64], sizes = [32, 32], strides = [1, 1]} : vector<32x96xf32> to vector<32x32xf32>
    %45 = vector.shape_cast %44 : vector<32x32xf32> to vector<2x16x32xf32>
    %46 = vector.extract_strided_slice %41 {offsets = [0, 0, 0], sizes = [1, 16, 32], strides = [1, 1, 1]} : vector<2x16x32xf32> to vector<1x16x32xf32>
    %47 = vector.shape_cast %46 : vector<1x16x32xf32> to vector<16x32xf32>
    %48 = vector.shape_cast %47 : vector<16x32xf32> to vector<16x4x8xf32>
    %49 = tpu.transpose %48, [1, 0, 2] : vector<16x4x8xf32> -> vector<4x16x8xf32>
    %50 = arith.truncf %49 : vector<4x16x8xf32> to vector<4x16x8xbf16>
    %51 = vector.extract_strided_slice %43 {offsets = [0, 0, 0], sizes = [1, 16, 32], strides = [1, 1, 1]} : vector<2x16x32xf32> to vector<1x16x32xf32>
    %52 = vector.shape_cast %51 : vector<1x16x32xf32> to vector<16x32xf32>
    %53 = vector.shape_cast %52 : vector<16x32xf32> to vector<16x4x8xf32>
    %54 = tpu.transpose %53, [1, 0, 2] : vector<16x4x8xf32> -> vector<4x16x8xf32>
    %55 = arith.truncf %54 : vector<4x16x8xf32> to vector<4x16x8xbf16>
    %56 = vector.extract_strided_slice %45 {offsets = [0, 0, 0], sizes = [1, 16, 32], strides = [1, 1, 1]} : vector<2x16x32xf32> to vector<1x16x32xf32>
    %57 = vector.shape_cast %56 : vector<1x16x32xf32> to vector<16x32xf32>
    %58 = vector.shape_cast %57 : vector<16x32xf32> to vector<16x4x8xf32>
    %59 = tpu.transpose %58, [1, 0, 2] : vector<16x4x8xf32> -> vector<4x16x8xf32>
    %60 = arith.truncf %59 : vector<4x16x8xf32> to vector<4x16x8xbf16>
    "tpu.trace_start"() <{level = 10 : i32, message = "hqd,hkd->hqk"}> : () -> ()
    %cst_18 = arith.constant dense<0.000000e+00> : vector<4x16x16xf32>
    %61 = tpu.matmul %50, %55, %cst_18 {dimension_numbers = #tpu.dot_dimension_numbers<[2], [2], [1], [1], [0, 0, 0, 1, 1, 1], [0], [0]>} : vector<4x16x8xbf16>, vector<4x16x8xbf16>, vector<4x16x16xf32> -> vector<4x16x16xf32>
    "tpu.trace_stop"() : () -> ()
    %cst_19 = arith.constant 0.353553385 : f32
    %62 = vector.broadcast %cst_19 : f32 to vector<4x16x16xf32>
    %63 = arith.mulf %61, %62 : vector<4x16x16xf32>
    %cst_20 = arith.constant dense<0xFF800000> : vector<4x16xf32>
    %64 = vector.multi_reduction <maximumf>, %63, %cst_20 [2] : vector<4x16x16xf32> to vector<4x16xf32>
    %65 = vector.shape_cast %64 : vector<4x16xf32> to vector<4x16x1xf32>
    %66 = vector.broadcast %65 : vector<4x16x1xf32> to vector<4x16x16xf32>
    %67 = arith.subf %63, %66 : vector<4x16x16xf32>
    %68 = math.exp %67 : vector<4x16x16xf32>
    %cst_21 = arith.constant dense<0.000000e+00> : vector<4x16xf32>
    %69 = vector.multi_reduction <add>, %68, %cst_21 [2] : vector<4x16x16xf32> to vector<4x16xf32>
    %70 = vector.shape_cast %69 : vector<4x16xf32> to vector<4x16x1xf32>
    %71 = tpu.reciprocal %70 {approx = true} : vector<4x16x1xf32> -> vector<4x16x1xf32>
    %72 = vector.broadcast %71 : vector<4x16x1xf32> to vector<4x16x16xf32>
    %73 = arith.mulf %68, %72 : vector<4x16x16xf32>
    %74 = arith.truncf %73 : vector<4x16x16xf32> to vector<4x16x16xbf16>
    "tpu.trace_start"() <{level = 10 : i32, message = "hqk,hkd->hqd"}> : () -> ()
    %cst_22 = arith.constant dense<0.000000e+00> : vector<4x16x8xf32>
    %75 = tpu.matmul %74, %60, %cst_22 {dimension_numbers = #tpu.dot_dimension_numbers<[2], [1], [1], [2], [0, 0, 0, 1, 1, 2], [0], [0]>} : vector<4x16x16xbf16>, vector<4x16x8xbf16>, vector<4x16x8xf32> -> vector<4x16x8xf32>
    "tpu.trace_stop"() : () -> ()
    %76 = tpu.transpose %75, [1, 0, 2] : vector<4x16x8xf32> -> vector<16x4x8xf32>
    %77 = vector.shape_cast %76 : vector<16x4x8xf32> to vector<16x32xf32>
    %78 = vector.extract_strided_slice %41 {offsets = [1, 0, 0], sizes = [1, 16, 32], strides = [1, 1, 1]} : vector<2x16x32xf32> to vector<1x16x32xf32>
    %79 = vector.shape_cast %78 : vector<1x16x32xf32> to vector<16x32xf32>
    %80 = vector.shape_cast %79 : vector<16x32xf32> to vector<16x4x8xf32>
    %81 = tpu.transpose %80, [1, 0, 2] : vector<16x4x8xf32> -> vector<4x16x8xf32>
    %82 = arith.truncf %81 : vector<4x16x8xf32> to vector<4x16x8xbf16>
    %83 = vector.extract_strided_slice %43 {offsets = [1, 0, 0], sizes = [1, 16, 32], strides = [1, 1, 1]} : vector<2x16x32xf32> to vector<1x16x32xf32>
    %84 = vector.shape_cast %83 : vector<1x16x32xf32> to vector<16x32xf32>
    %85 = vector.shape_cast %84 : vector<16x32xf32> to vector<16x4x8xf32>
    %86 = tpu.transpose %85, [1, 0, 2] : vector<16x4x8xf32> -> vector<4x16x8xf32>
    %87 = arith.truncf %86 : vector<4x16x8xf32> to vector<4x16x8xbf16>
    %88 = vector.extract_strided_slice %45 {offsets = [1, 0, 0], sizes = [1, 16, 32], strides = [1, 1, 1]} : vector<2x16x32xf32> to vector<1x16x32xf32>
    %89 = vector.shape_cast %88 : vector<1x16x32xf32> to vector<16x32xf32>
    %90 = vector.shape_cast %89 : vector<16x32xf32> to vector<16x4x8xf32>
    %91 = tpu.transpose %90, [1, 0, 2] : vector<16x4x8xf32> -> vector<4x16x8xf32>
    %92 = arith.truncf %91 : vector<4x16x8xf32> to vector<4x16x8xbf16>
    "tpu.trace_start"() <{level = 10 : i32, message = "hqd,hkd->hqk"}> : () -> ()
    %cst_23 = arith.constant dense<0.000000e+00> : vector<4x16x16xf32>
    %93 = tpu.matmul %82, %87, %cst_23 {dimension_numbers = #tpu.dot_dimension_numbers<[2], [2], [1], [1], [0, 0, 0, 1, 1, 1], [0], [0]>} : vector<4x16x8xbf16>, vector<4x16x8xbf16>, vector<4x16x16xf32> -> vector<4x16x16xf32>
    "tpu.trace_stop"() : () -> ()
    %cst_24 = arith.constant 0.353553385 : f32
    %94 = vector.broadcast %cst_24 : f32 to vector<4x16x16xf32>
    %95 = arith.mulf %93, %94 : vector<4x16x16xf32>
    %cst_25 = arith.constant dense<0xFF800000> : vector<4x16xf32>
    %96 = vector.multi_reduction <maximumf>, %95, %cst_25 [2] : vector<4x16x16xf32> to vector<4x16xf32>
    %97 = vector.shape_cast %96 : vector<4x16xf32> to vector<4x16x1xf32>
    %98 = vector.broadcast %97 : vector<4x16x1xf32> to vector<4x16x16xf32>
    %99 = arith.subf %95, %98 : vector<4x16x16xf32>
    %100 = math.exp %99 : vector<4x16x16xf32>
    %cst_26 = arith.constant dense<0.000000e+00> : vector<4x16xf32>
    %101 = vector.multi_reduction <add>, %100, %cst_26 [2] : vector<4x16x16xf32> to vector<4x16xf32>
    %102 = vector.shape_cast %101 : vector<4x16xf32> to vector<4x16x1xf32>
    %103 = tpu.reciprocal %102 {approx = true} : vector<4x16x1xf32> -> vector<4x16x1xf32>
    %104 = vector.broadcast %103 : vector<4x16x1xf32> to vector<4x16x16xf32>
    %105 = arith.mulf %100, %104 : vector<4x16x16xf32>
    %106 = arith.truncf %105 : vector<4x16x16xf32> to vector<4x16x16xbf16>
    "tpu.trace_start"() <{level = 10 : i32, message = "hqk,hkd->hqd"}> : () -> ()
    %cst_27 = arith.constant dense<0.000000e+00> : vector<4x16x8xf32>
    %107 = tpu.matmul %106, %92, %cst_27 {dimension_numbers = #tpu.dot_dimension_numbers<[2], [1], [1], [2], [0, 0, 0, 1, 1, 2], [0], [0]>} : vector<4x16x16xbf16>, vector<4x16x8xbf16>, vector<4x16x8xf32> -> vector<4x16x8xf32>
    "tpu.trace_stop"() : () -> ()
    %108 = tpu.transpose %107, [1, 0, 2] : vector<4x16x8xf32> -> vector<16x4x8xf32>
    %109 = vector.shape_cast %108 : vector<16x4x8xf32> to vector<16x32xf32>
    %110 = tpu.concatenate %77, %109 in 0 : vector<16x32xf32>, vector<16x32xf32> -> vector<32x32xf32>
    %c0_28 = arith.constant 0 : index
    %c0_29 = arith.constant 0 : index
    %111 = vector.load %arg7[%c0_28, %c0_29] : memref<32x32xbf16, #tpu.memory_space<vmem>>, vector<32x32xbf16>
    %112 = arith.truncf %110 : vector<32x32xf32> to vector<32x32xbf16>
    %cst_30 = arith.constant dense<0.000000e+00> : vector<32x32xf32>
    %113 = tpu.matmul %112, %111, %cst_30 {dimension_numbers = #tpu.dot_dimension_numbers<[1], [0], [0], [1], [0, 0, 1, 1], [], []>} : vector<32x32xbf16>, vector<32x32xbf16>, vector<32x32xf32> -> vector<32x32xf32>
    %114 = arith.addf %9, %113 : vector<32x32xf32>
    %c0_31 = arith.constant 0 : index
    %c0_32 = arith.constant 0 : index
    %115 = vector.load %arg8[%c0_31, %c0_32] : memref<1x32xf32, #tpu.memory_space<vmem>>, vector<1x32xf32>
    %116 = vector.broadcast %115 : vector<1x32xf32> to vector<32x32xf32>
    %117 = arith.addf %114, %116 : vector<32x32xf32>
    %c0_33 = arith.constant 0 : index
    %c0_34 = arith.constant 0 : index
    %118 = vector.load %arg9[%c0_33, %c0_34] : memref<1x32xf32, #tpu.memory_space<vmem>>, vector<1x32xf32>
    %c0_35 = arith.constant 0 : index
    %c0_36 = arith.constant 0 : index
    %119 = vector.load %arg10[%c0_35, %c0_36] : memref<1x32xf32, #tpu.memory_space<vmem>>, vector<1x32xf32>
    %cst_37 = arith.constant dense<0.000000e+00> : vector<32xf32>
    %120 = vector.multi_reduction <add>, %117, %cst_37 [1] : vector<32x32xf32> to vector<32xf32>
    %121 = vector.shape_cast %120 : vector<32xf32> to vector<32x1xf32>
    %cst_38 = arith.constant 3.200000e+01 : f32
    %122 = vector.broadcast %cst_38 : f32 to vector<32x1xf32>
    %123 = arith.divf %121, %122 : vector<32x1xf32>
    %124 = vector.broadcast %123 : vector<32x1xf32> to vector<32x32xf32>
    %125 = arith.subf %117, %124 : vector<32x32xf32>
    %126 = arith.mulf %125, %125 : vector<32x32xf32>
    %cst_39 = arith.constant dense<0.000000e+00> : vector<32xf32>
    %127 = vector.multi_reduction <add>, %126, %cst_39 [1] : vector<32x32xf32> to vector<32xf32>
    %128 = vector.shape_cast %127 : vector<32xf32> to vector<32x1xf32>
    %cst_40 = arith.constant 3.200000e+01 : f32
    %129 = vector.broadcast %cst_40 : f32 to vector<32x1xf32>
    %130 = arith.divf %128, %129 : vector<32x1xf32>
    %131 = vector.broadcast %123 : vector<32x1xf32> to vector<32x32xf32>
    %132 = arith.subf %117, %131 : vector<32x32xf32>
    %cst_41 = arith.constant 9.99999974E-6 : f32
    %133 = vector.broadcast %cst_41 : f32 to vector<32x1xf32>
    %134 = arith.addf %130, %133 : vector<32x1xf32>
    %135 = math.rsqrt %134 : vector<32x1xf32>
    %136 = vector.broadcast %135 : vector<32x1xf32> to vector<32x32xf32>
    %137 = arith.mulf %132, %136 : vector<32x32xf32>
    %138 = vector.broadcast %118 : vector<1x32xf32> to vector<32x32xf32>
    %139 = arith.mulf %137, %138 : vector<32x32xf32>
    %140 = vector.broadcast %119 : vector<1x32xf32> to vector<32x32xf32>
    %141 = arith.addf %139, %140 : vector<32x32xf32>
    %c0_42 = arith.constant 0 : index
    %c0_43 = arith.constant 0 : index
    %142 = vector.load %arg11[%c0_42, %c0_43] : memref<32x64xbf16, #tpu.memory_space<vmem>>, vector<32x64xbf16>
    %143 = arith.truncf %141 : vector<32x32xf32> to vector<32x32xbf16>
    %cst_44 = arith.constant dense<0.000000e+00> : vector<32x64xf32>
    %144 = tpu.matmul %143, %142, %cst_44 {dimension_numbers = #tpu.dot_dimension_numbers<[1], [0], [0], [1], [0, 0, 1, 1], [], []>} : vector<32x32xbf16>, vector<32x64xbf16>, vector<32x64xf32> -> vector<32x64xf32>
    %c0_45 = arith.constant 0 : index
    %c0_46 = arith.constant 0 : index
    %145 = vector.load %arg12[%c0_45, %c0_46] : memref<1x64xf32, #tpu.memory_space<vmem>>, vector<1x64xf32>
    %146 = vector.broadcast %145 : vector<1x64xf32> to vector<32x64xf32>
    %147 = arith.addf %144, %146 : vector<32x64xf32>
    %148 = arith.mulf %147, %147 : vector<32x64xf32>
    %149 = arith.mulf %147, %148 : vector<32x64xf32>
    %cst_47 = arith.constant 4.471500e-02 : f32
    %150 = vector.broadcast %cst_47 : f32 to vector<32x64xf32>
    %151 = arith.mulf %150, %149 : vector<32x64xf32>
    %152 = arith.addf %147, %151 : vector<32x64xf32>
    %cst_48 = arith.constant 0.797884583 : f32
    %153 = vector.broadcast %cst_48 : f32 to vector<32x64xf32>
    %154 = arith.mulf %153, %152 : vector<32x64xf32>
    %155 = math.tanh %154 : vector<32x64xf32>
    %cst_49 = arith.constant 1.000000e+00 : f32
    %156 = vector.broadcast %cst_49 : f32 to vector<32x64xf32>
    %157 = arith.addf %156, %155 : vector<32x64xf32>
    %cst_50 = arith.constant 5.000000e-01 : f32
    %158 = vector.broadcast %cst_50 : f32 to vector<32x64xf32>
    %159 = arith.mulf %158, %157 : vector<32x64xf32>
    %160 = arith.mulf %147, %159 : vector<32x64xf32>
    %c0_51 = arith.constant 0 : index
    %c0_52 = arith.constant 0 : index
    %161 = vector.load %arg13[%c0_51, %c0_52] : memref<64x32xbf16, #tpu.memory_space<vmem>>, vector<64x32xbf16>
    %162 = arith.truncf %160 : vector<32x64xf32> to vector<32x64xbf16>
    %cst_53 = arith.constant dense<0.000000e+00> : vector<32x32xf32>
    %163 = tpu.matmul %162, %161, %cst_53 {dimension_numbers = #tpu.dot_dimension_numbers<[1], [0], [0], [1], [0, 0, 1, 1], [], []>} : vector<32x64xbf16>, vector<64x32xbf16>, vector<32x32xf32> -> vector<32x32xf32>
    %c0_54 = arith.constant 0 : index
    %c0_55 = arith.constant 0 : index
    %164 = vector.load %arg14[%c0_54, %c0_55] : memref<1x32xf32, #tpu.memory_space<vmem>>, vector<1x32xf32>
    %165 = vector.broadcast %164 : vector<1x32xf32> to vector<32x32xf32>
    %166 = arith.addf %163, %165 : vector<32x32xf32>
    %167 = arith.addf %117, %166 : vector<32x32xf32>
    %168 = vector.shape_cast %167 : vector<32x32xf32> to vector<2x16x32xf32>
    %169 = arith.truncf %168 : vector<2x16x32xf32> to vector<2x16x32xbf16>
    %c0_56 = arith.constant 0 : index
    %c0_57 = arith.constant 0 : index
    %c0_58 = arith.constant 0 : index
    %170 = vector.load %arg15[%c0_56, %c0_57, %c0_58] : memref<2x16x32xbf16, #tpu.memory_space<vmem>>, vector<2x16x32xbf16>
    tpu.vector_store %arg15[%c0_56, %c0_57, %c0_58], %169 {strides = array<i32>} : memref<2x16x32xbf16, #tpu.memory_space<vmem>>, vector<2x16x32xbf16>,
    return
  }
  func.func @transform_0(%arg0: i32) -> (i32, i32, i32) {
    %c0_i32 = arith.constant 0 : i32
    %c0_i32_0 = arith.constant 0 : i32
    %c0_i32_1 = arith.constant 0 : i32
    return %arg0, %c0_i32, %c0_i32_0 : i32, i32, i32
  }
  func.func @transform_1(%arg0: i32) -> (i32, i32, i32) {
    %c0_i32 = arith.constant 0 : i32
    %c0_i32_0 = arith.constant 0 : i32
    %c0_i32_1 = arith.constant 0 : i32
    %c0_i32_2 = arith.constant 0 : i32
    return %c0_i32, %c0_i32_0, %c0_i32_1 : i32, i32, i32
  }
  func.func @transform_2(%arg0: i32) -> (i32, i32) {
    %c0_i32 = arith.constant 0 : i32
    %c0_i32_0 = arith.constant 0 : i32
    %c0_i32_1 = arith.constant 0 : i32
    return %c0_i32, %c0_i32_0 : i32, i32
  }
  func.func @transform_3(%arg0: i32) -> (i32, i32) {
    %c0_i32 = arith.constant 0 : i32
    %c0_i32_0 = arith.constant 0 : i32
    %c0_i32_1 = arith.constant 0 : i32
    return %c0_i32, %c0_i32_0 : i32, i32
  }
  func.func @transform_4(%arg0: i32) -> (i32, i32) {
    %c0_i32 = arith.constant 0 : i32
    %c0_i32_0 = arith.constant 0 : i32
    %c0_i32_1 = arith.constant 0 : i32
    return %c0_i32, %c0_i32_0 : i32, i32
  }
  func.func @transform_5(%arg0: i32) -> (i32, i32) {
    %c0_i32 = arith.constant 0 : i32
    %c0_i32_0 = arith.constant 0 : i32
    %c0_i32_1 = arith.constant 0 : i32
    return %c0_i32, %c0_i32_0 : i32, i32
  }
  func.func @transform_6(%arg0: i32) -> (i32, i32) {
    %c0_i32 = arith.constant 0 : i32
    %c0_i32_0 = arith.constant 0 : i32
    %c0_i32_1 = arith.constant 0 : i32
    return %c0_i32, %c0_i32_0 : i32, i32
  }
  func.func @transform_7(%arg0: i32) -> (i32, i32) {
    %c0_i32 = arith.constant 0 : i32
    %c0_i32_0 = arith.constant 0 : i32
    %c0_i32_1 = arith.constant 0 : i32
    return %c0_i32, %c0_i32_0 : i32, i32
  }
  func.func @transform_8(%arg0: i32) -> (i32, i32) {
    %c0_i32 = arith.constant 0 : i32
    %c0_i32_0 = arith.constant 0 : i32
    %c0_i32_1 = arith.constant 0 : i32
    return %c0_i32, %c0_i32_0 : i32, i32
  }
  func.func @transform_9(%arg0: i32) -> (i32, i32) {
    %c0_i32 = arith.constant 0 : i32
    %c0_i32_0 = arith.constant 0 : i32
    %c0_i32_1 = arith.constant 0 : i32
    return %c0_i32, %c0_i32_0 : i32, i32
  }
  func.func @transform_10(%arg0: i32) -> (i32, i32) {
    %c0_i32 = arith.constant 0 : i32
    %c0_i32_0 = arith.constant 0 : i32
    %c0_i32_1 = arith.constant 0 : i32
    return %c0_i32, %c0_i32_0 : i32, i32
  }
  func.func @transform_11(%arg0: i32) -> (i32, i32) {
    %c0_i32 = arith.constant 0 : i32
    %c0_i32_0 = arith.constant 0 : i32
    %c0_i32_1 = arith.constant 0 : i32
    return %c0_i32, %c0_i32_0 : i32, i32
  }
  func.func @transform_12(%arg0: i32) -> (i32, i32) {
    %c0_i32 = arith.constant 0 : i32
    %c0_i32_0 = arith.constant 0 : i32
    %c0_i32_1 = arith.constant 0 : i32
    return %c0_i32, %c0_i32_0 : i32, i32
  }
  func.func @transform_13(%arg0: i32) -> (i32, i32) {
    %c0_i32 = arith.constant 0 : i32
    %c0_i32_0 = arith.constant 0 : i32
    %c0_i32_1 = arith.constant 0 : i32
    return %c0_i32, %c0_i32_0 : i32, i32
  }
  func.func @transform_14(%arg0: i32) -> (i32, i32, i32) {
    %c0_i32 = arith.constant 0 : i32
    %c0_i32_0 = arith.constant 0 : i32
    %c0_i32_1 = arith.constant 0 : i32
    return %arg0, %c0_i32, %c0_i32_0 : i32, i32, i32
  }
}

module attributes {stable_mosaic.version = 11 : i64} {
  func.func @_decoder_tail_loss_kernel(%arg0: i32, %arg1: memref<1x16x32xbf16, #tpu.memory_space<vmem>>, %arg2: memref<1x32xf32, #tpu.memory_space<vmem>>, %arg3: memref<1x32xf32, #tpu.memory_space<vmem>>, %arg4: memref<32x64xbf16, #tpu.memory_space<vmem>>, %arg5: memref<1x64xf32, #tpu.memory_space<vmem>>, %arg6: memref<1x16x64xf32, #tpu.memory_space<vmem>>, %arg7: memref<1x16x1xf32, #tpu.memory_space<vmem>>, %arg8: memref<1x1xf32, #tpu.memory_space<vmem>>, %arg9: memref<1x1xf32, #tpu.memory_space<vmem>>, %arg10: memref<1x1xf32, #tpu.memory_space<vmem>>) attributes {dimension_semantics = [#tpu.dimension_semantics<arbitrary>], iteration_bounds = array<i64: 2>, scalar_prefetch = 0 : i64, scratch_operands = 2 : i64, tpu.core_type = #tpu.core_type<tc>, window_params = [{transform_indices = @transform_0, window_bounds = array<i64: 1, 16, 32>}, {pipeline_mode = #tpu.pipeline_mode<synchronous>, transform_indices = @transform_1, window_bounds = array<i64: 1, 32>}, {pipeline_mode = #tpu.pipeline_mode<synchronous>, transform_indices = @transform_2, window_bounds = array<i64: 1, 32>}, {pipeline_mode = #tpu.pipeline_mode<synchronous>, transform_indices = @transform_3, window_bounds = array<i64: 32, 64>}, {pipeline_mode = #tpu.pipeline_mode<synchronous>, transform_indices = @transform_4, window_bounds = array<i64: 1, 64>}, {transform_indices = @transform_5, window_bounds = array<i64: 1, 16, 64>}, {transform_indices = @transform_6, window_bounds = array<i64: 1, 16, 1>}, {pipeline_mode = #tpu.pipeline_mode<synchronous>, transform_indices = @transform_7, window_bounds = array<i64: 1, 1>}]} {
    %c0_i32 = arith.constant 0 : i32
    %0 = arith.cmpi eq, %arg0, %c0_i32 : i32
    %1 = arith.extui %0 : i1 to i32
    %c0_i32_0 = arith.constant 0 : i32
    %2 = arith.cmpi ne, %1, %c0_i32_0 : i32
    scf.if %2 {
      %cst_40 = arith.constant 0.000000e+00 : f32
      %67 = vector.broadcast %cst_40 : f32 to vector<1x1xf32>
      %c0_41 = arith.constant 0 : index
      %c0_42 = arith.constant 0 : index
      %68 = vector.load %arg9[%c0_41, %c0_42] : memref<1x1xf32, #tpu.memory_space<vmem>>, vector<1x1xf32>
      tpu.vector_store %arg9[%c0_41, %c0_42], %67 {strides = array<i32>} : memref<1x1xf32, #tpu.memory_space<vmem>>, vector<1x1xf32>,
      %cst_43 = arith.constant 0.000000e+00 : f32
      %69 = vector.broadcast %cst_43 : f32 to vector<1x1xf32>
      %c0_44 = arith.constant 0 : index
      %c0_45 = arith.constant 0 : index
      %70 = vector.load %arg10[%c0_44, %c0_45] : memref<1x1xf32, #tpu.memory_space<vmem>>, vector<1x1xf32>
      tpu.vector_store %arg10[%c0_44, %c0_45], %69 {strides = array<i32>} : memref<1x1xf32, #tpu.memory_space<vmem>>, vector<1x1xf32>,
    } else {
    }
    %c0 = arith.constant 0 : index
    %c0_1 = arith.constant 0 : index
    %c0_2 = arith.constant 0 : index
    %3 = vector.load %arg1[%c0, %c0_1, %c0_2] : memref<1x16x32xbf16, #tpu.memory_space<vmem>>, vector<1x16x32xbf16>
    %4 = vector.shape_cast %3 : vector<1x16x32xbf16> to vector<16x32xbf16>
    %5 = arith.extf %4 : vector<16x32xbf16> to vector<16x32xf32>
    %c0_3 = arith.constant 0 : index
    %c0_4 = arith.constant 0 : index
    %6 = vector.load %arg2[%c0_3, %c0_4] : memref<1x32xf32, #tpu.memory_space<vmem>>, vector<1x32xf32>
    %c0_5 = arith.constant 0 : index
    %c0_6 = arith.constant 0 : index
    %7 = vector.load %arg3[%c0_5, %c0_6] : memref<1x32xf32, #tpu.memory_space<vmem>>, vector<1x32xf32>
    %cst = arith.constant dense<0.000000e+00> : vector<16xf32>
    %8 = vector.multi_reduction <add>, %5, %cst [1] : vector<16x32xf32> to vector<16xf32>
    %9 = vector.shape_cast %8 : vector<16xf32> to vector<16x1xf32>
    %cst_7 = arith.constant 3.200000e+01 : f32
    %10 = vector.broadcast %cst_7 : f32 to vector<16x1xf32>
    %11 = arith.divf %9, %10 : vector<16x1xf32>
    %12 = vector.broadcast %11 : vector<16x1xf32> to vector<16x32xf32>
    %13 = arith.subf %5, %12 : vector<16x32xf32>
    %14 = arith.mulf %13, %13 : vector<16x32xf32>
    %cst_8 = arith.constant dense<0.000000e+00> : vector<16xf32>
    %15 = vector.multi_reduction <add>, %14, %cst_8 [1] : vector<16x32xf32> to vector<16xf32>
    %16 = vector.shape_cast %15 : vector<16xf32> to vector<16x1xf32>
    %cst_9 = arith.constant 3.200000e+01 : f32
    %17 = vector.broadcast %cst_9 : f32 to vector<16x1xf32>
    %18 = arith.divf %16, %17 : vector<16x1xf32>
    %19 = vector.broadcast %11 : vector<16x1xf32> to vector<16x32xf32>
    %20 = arith.subf %5, %19 : vector<16x32xf32>
    %cst_10 = arith.constant 9.99999974E-6 : f32
    %21 = vector.broadcast %cst_10 : f32 to vector<16x1xf32>
    %22 = arith.addf %18, %21 : vector<16x1xf32>
    %23 = math.rsqrt %22 : vector<16x1xf32>
    %24 = vector.broadcast %23 : vector<16x1xf32> to vector<16x32xf32>
    %25 = arith.mulf %20, %24 : vector<16x32xf32>
    %26 = vector.broadcast %6 : vector<1x32xf32> to vector<16x32xf32>
    %27 = arith.mulf %25, %26 : vector<16x32xf32>
    %28 = vector.broadcast %7 : vector<1x32xf32> to vector<16x32xf32>
    %29 = arith.addf %27, %28 : vector<16x32xf32>
    %c0_11 = arith.constant 0 : index
    %c0_12 = arith.constant 0 : index
    %30 = vector.load %arg4[%c0_11, %c0_12] : memref<32x64xbf16, #tpu.memory_space<vmem>>, vector<32x64xbf16>
    %31 = arith.truncf %29 : vector<16x32xf32> to vector<16x32xbf16>
    %cst_13 = arith.constant dense<0.000000e+00> : vector<16x64xf32>
    %32 = tpu.matmul %31, %30, %cst_13 {dimension_numbers = #tpu.dot_dimension_numbers<[1], [0], [0], [1], [0, 0, 1, 1], [], []>} : vector<16x32xbf16>, vector<32x64xbf16>, vector<16x64xf32> -> vector<16x64xf32>
    %c0_14 = arith.constant 0 : index
    %c0_15 = arith.constant 0 : index
    %33 = vector.load %arg5[%c0_14, %c0_15] : memref<1x64xf32, #tpu.memory_space<vmem>>, vector<1x64xf32>
    %34 = vector.broadcast %33 : vector<1x64xf32> to vector<16x64xf32>
    %35 = arith.addf %32, %34 : vector<16x64xf32>
    %c0_16 = arith.constant 0 : index
    %c0_17 = arith.constant 0 : index
    %c0_18 = arith.constant 0 : index
    %36 = vector.load %arg6[%c0_16, %c0_17, %c0_18] : memref<1x16x64xf32, #tpu.memory_space<vmem>>, vector<1x16x64xf32>
    %37 = vector.shape_cast %36 : vector<1x16x64xf32> to vector<16x64xf32>
    %38 = arith.subf %35, %37 : vector<16x64xf32>
    %c0_19 = arith.constant 0 : index
    %c0_20 = arith.constant 0 : index
    %c0_21 = arith.constant 0 : index
    %39 = vector.load %arg7[%c0_19, %c0_20, %c0_21] : memref<1x16x1xf32, #tpu.memory_space<vmem>>, vector<1x16x1xf32>
    %40 = vector.shape_cast %39 : vector<1x16x1xf32> to vector<16x1xf32>
    %c0_22 = arith.constant 0 : index
    %c0_23 = arith.constant 0 : index
    %41 = vector.load %arg9[%c0_22, %c0_23] : memref<1x1xf32, #tpu.memory_space<vmem>>, vector<1x1xf32>
    %42 = arith.mulf %38, %38 : vector<16x64xf32>
    %43 = vector.broadcast %40 : vector<16x1xf32> to vector<16x64xf32>
    %44 = arith.mulf %42, %43 : vector<16x64xf32>
    %45 = vector.shape_cast %44 : vector<16x64xf32> to vector<1x16x64xf32>
    %cst_24 = arith.constant dense<0.000000e+00> : vector<1xf32>
    %46 = vector.multi_reduction <add>, %45, %cst_24 [1, 2] : vector<1x16x64xf32> to vector<1xf32>
    %47 = vector.shape_cast %46 : vector<1xf32> to vector<1x1x1xf32>
    %48 = vector.extract %47[0, 0, 0] : f32 from vector<1x1x1xf32>
    %49 = vector.broadcast %48 : f32 to vector<1x1xf32>
    %50 = arith.addf %41, %49 : vector<1x1xf32>
    %c0_25 = arith.constant 0 : index
    %c0_26 = arith.constant 0 : index
    %51 = vector.load %arg9[%c0_25, %c0_26] : memref<1x1xf32, #tpu.memory_space<vmem>>, vector<1x1xf32>
    tpu.vector_store %arg9[%c0_25, %c0_26], %50 {strides = array<i32>} : memref<1x1xf32, #tpu.memory_space<vmem>>, vector<1x1xf32>,
    %c0_27 = arith.constant 0 : index
    %c0_28 = arith.constant 0 : index
    %52 = vector.load %arg10[%c0_27, %c0_28] : memref<1x1xf32, #tpu.memory_space<vmem>>, vector<1x1xf32>
    %53 = vector.shape_cast %40 : vector<16x1xf32> to vector<1x16x1xf32>
    %cst_29 = arith.constant dense<0.000000e+00> : vector<1xf32>
    %54 = vector.multi_reduction <add>, %53, %cst_29 [1, 2] : vector<1x16x1xf32> to vector<1xf32>
    %55 = vector.shape_cast %54 : vector<1xf32> to vector<1x1x1xf32>
    %56 = vector.extract %55[0, 0, 0] : f32 from vector<1x1x1xf32>
    %cst_30 = arith.constant 6.400000e+01 : f32
    %57 = arith.mulf %56, %cst_30 : f32
    %58 = vector.broadcast %57 : f32 to vector<1x1xf32>
    %59 = arith.addf %52, %58 : vector<1x1xf32>
    %c0_31 = arith.constant 0 : index
    %c0_32 = arith.constant 0 : index
    %60 = vector.load %arg10[%c0_31, %c0_32] : memref<1x1xf32, #tpu.memory_space<vmem>>, vector<1x1xf32>
    tpu.vector_store %arg10[%c0_31, %c0_32], %59 {strides = array<i32>} : memref<1x1xf32, #tpu.memory_space<vmem>>, vector<1x1xf32>,
    %c0_33 = arith.constant 0 : index
    %c0_34 = arith.constant 0 : index
    %61 = vector.load %arg9[%c0_33, %c0_34] : memref<1x1xf32, #tpu.memory_space<vmem>>, vector<1x1xf32>
    %c0_35 = arith.constant 0 : index
    %c0_36 = arith.constant 0 : index
    %62 = vector.load %arg10[%c0_35, %c0_36] : memref<1x1xf32, #tpu.memory_space<vmem>>, vector<1x1xf32>
    %cst_37 = arith.constant 9.99999997E-7 : f32
    %63 = vector.broadcast %cst_37 : f32 to vector<1x1xf32>
    %64 = arith.maximumf %62, %63 : vector<1x1xf32>
    %65 = arith.divf %61, %64 : vector<1x1xf32>
    %c0_38 = arith.constant 0 : index
    %c0_39 = arith.constant 0 : index
    %66 = vector.load %arg8[%c0_38, %c0_39] : memref<1x1xf32, #tpu.memory_space<vmem>>, vector<1x1xf32>
    tpu.vector_store %arg8[%c0_38, %c0_39], %65 {strides = array<i32>} : memref<1x1xf32, #tpu.memory_space<vmem>>, vector<1x1xf32>,
    return
  }
  func.func @transform_0(%arg0: i32) -> (i32, i32, i32) {
    %c0_i32 = arith.constant 0 : i32
    %c0_i32_0 = arith.constant 0 : i32
    %c0_i32_1 = arith.constant 0 : i32
    return %arg0, %c0_i32, %c0_i32_0 : i32, i32, i32
  }
  func.func @transform_1(%arg0: i32) -> (i32, i32) {
    %c0_i32 = arith.constant 0 : i32
    %c0_i32_0 = arith.constant 0 : i32
    %c0_i32_1 = arith.constant 0 : i32
    return %c0_i32, %c0_i32_0 : i32, i32
  }
  func.func @transform_2(%arg0: i32) -> (i32, i32) {
    %c0_i32 = arith.constant 0 : i32
    %c0_i32_0 = arith.constant 0 : i32
    %c0_i32_1 = arith.constant 0 : i32
    return %c0_i32, %c0_i32_0 : i32, i32
  }
  func.func @transform_3(%arg0: i32) -> (i32, i32) {
    %c0_i32 = arith.constant 0 : i32
    %c0_i32_0 = arith.constant 0 : i32
    %c0_i32_1 = arith.constant 0 : i32
    return %c0_i32, %c0_i32_0 : i32, i32
  }
  func.func @transform_4(%arg0: i32) -> (i32, i32) {
    %c0_i32 = arith.constant 0 : i32
    %c0_i32_0 = arith.constant 0 : i32
    %c0_i32_1 = arith.constant 0 : i32
    return %c0_i32, %c0_i32_0 : i32, i32
  }
  func.func @transform_5(%arg0: i32) -> (i32, i32, i32) {
    %c0_i32 = arith.constant 0 : i32
    %c0_i32_0 = arith.constant 0 : i32
    %c0_i32_1 = arith.constant 0 : i32
    return %arg0, %c0_i32, %c0_i32_0 : i32, i32, i32
  }
  func.func @transform_6(%arg0: i32) -> (i32, i32, i32) {
    %c0_i32 = arith.constant 0 : i32
    %c0_i32_0 = arith.constant 0 : i32
    %c0_i32_1 = arith.constant 0 : i32
    return %arg0, %c0_i32, %c0_i32_0 : i32, i32, i32
  }
  func.func @transform_7(%arg0: i32) -> (i32, i32) {
    %c0_i32 = arith.constant 0 : i32
    %c0_i32_0 = arith.constant 0 : i32
    %c0_i32_1 = arith.constant 0 : i32
    return %c0_i32, %c0_i32_0 : i32, i32
  }
}

</mosaic_0001>

<llo_original>
// kernel: _lambda_.5
$region0: #{_lambda_.5}
  #allocation0 [shape = 'u32[]', space=smem, size = 0x4, offset = 0x4, fixed_abs, tag = 'smem constant byte address 0x4 - core index']
  #allocation1 [shape = 'u32[72,128]{1,0:T(1,128)}', space=vmem, size = 0x9000, scoped, tag = 'internal scratch']
  #allocation2 [shape = 'f32[1,1]{1,0:T(1,128)}', space=vmem, size = 0x200, scoped, tag = 'scratch operand']
  #allocation3 [shape = 'f32[1,1]{1,0:T(1,128)}', space=vmem, size = 0x200, scoped, tag = 'scratch operand']
  %s0 = inlined_call_operand.vmem [shape: bf16[2,16,32], index: 0, kind: input, shape index: {}]
  %s1 = inlined_call_operand.vmem [shape: f32[1,32], index: 1, kind: input, shape index: {}]
  %s2 = inlined_call_operand.vmem [shape: f32[1,32], index: 2, kind: input, shape index: {}]
  %s3 = inlined_call_operand.vmem [shape: bf16[32,64], index: 3, kind: input, shape index: {}]
  %s4 = inlined_call_operand.vmem [shape: f32[1,64], index: 4, kind: input, shape index: {}]
  %s5 = inlined_call_operand.vmem [shape: f32[2,16,64], index: 5, kind: input, shape index: {}]
  %s6 = inlined_call_operand.vmem [shape: f32[2,16,1], index: 6, kind: input, shape index: {}]
  %s7 = inlined_call_operand.hbm [shape: f32[1,1], index: 7, kind: output, shape index: {}]
  %s8 = sld [smem:[#allocation0]]
  $region65: #{_lambda_.5} parent=0
    _
  %s10 = ssub.s32 1, %s8
  %s11 = scalar_select 0, %s10, %s8
  $region1: #{_lambda_.5} parent=0
    #allocation4 [shape = 'u8[512]{0}', space=vmem, size = 0x400, scoped, tag = 'output window, operand 0, single buffered']
    #allocation5 [shape = 's32[2]{0}', space=sflag, size = 0x8, scoped, tag = 'scoped memory for _lambda_.5']
    %12 = vsyncpa [#allocation5], 0
    loop: start=0, step=1, limit=4
    $region2: #{_lambda_.5} parent=1 // loop_pre_header
      _
    $region3: #{_lambda_.5} parent=1 // loop_header
      %s14 = sphi 0, %s18
      %p15 = scmp.ge.s32.totalorder %s14, 4
      %s24 = sphi 0, %s26
      %s27 = sphi 0, %s24
      %s28 = sphi 0, %s27
      %s44 = sphi 0, %s28
      %s48 = sphi 0, %s48
      %s50 = sphi 0, %s48
      %s51 = sphi 0, %s50
      %s65 = sphi 0, %s51
      %s69 = sphi 0, %s69
      %s71 = sphi 0, %s69
      %s72 = sphi 0, %s71
      %s86 = sphi 0, %s72
      %s90 = sphi 0, %s90
      %s92 = sphi 0, %s90
      %s93 = sphi 0, %s92
      %s107 = sphi 0, %s93
      %s111 = sphi 0, %s111
      %s113 = sphi 0, %s111
      %s114 = sphi 0, %s113
      %s128 = sphi 0, %s114
      %s134 = sphi 0, %s136
      %s137 = sphi 0, %s134
      %s138 = sphi 0, %s137
      %s154 = sphi 0, %s138
      %s160 = sphi 0, %s162
      %s163 = sphi 0, %s160
      %s164 = sphi 0, %s163
      %s180 = sphi 0, %s164
      %s184 = sphi 0, %s184
      %s186 = sphi 0, %s184
      %s187 = sphi 0, %s186
      %s201 = sphi 0, %s187
    $region4: #{_lambda_.5} parent=1 // loop_header_branch
      %17 = sbr.rel (%p15) target = $region8
    $region5: #{_lambda_.5} parent=1 // loop_body
      %s19 = ssub.s32 %s14, 1
      %s20 = ssub.s32 %s14, 2
      %s21 = sadd.s32 %s14, 1
      %s22 = ssub.s32 %s14, %s21
      %p23 = scmp.eq.s32.totalorder %s22, 0
      %s25 = sadd.s32 %s24, 1
      %s26 = scalar_select %p23, %s24, %s25
      %p29 = pneg %p23
      %p30 = scmp.eq.s32.totalorder %s14, 1
      %p31 = por %p29, %p30
      %p32 = scmp.ne.s32.totalorder %s24, %s27
      %p33 = scmp.eq.s32.totalorder %s14, 0
      %p34 = por %p32, %p33
      %p35 = scmp.ne.s32.totalorder %s24, %s27
      %p36 = scmp.eq.s32.totalorder %s19, 1
      %p37 = por %p35, %p36
      %p38 = scmp.ne.s32.totalorder %s27, %s28
      %p39 = scmp.eq.s32.totalorder %s19, 0
      %p40 = por %p38, %p39
      %p41 = scmp.ne.s32.totalorder %s27, %s28
      %p42 = scmp.eq.s32.totalorder %s20, 1
      %p43 = por %p41, %p42
      %p45 = scmp.ne.s32.totalorder %s28, %s44
      %p46 = scmp.eq.s32.totalorder %s20, 0
      %p47 = por %p45, %p46
      %s49 = sadd.s32 %s48, 1
      %p52 = scmp.eq.s32.totalorder %s14, 1
      %p53 = scmp.ne.s32.totalorder %s48, %s50
      %p54 = scmp.eq.s32.totalorder %s14, 0
      %p55 = por %p53, %p54
      %p56 = scmp.ne.s32.totalorder %s48, %s50
      %p57 = scmp.eq.s32.totalorder %s19, 1
      %p58 = por %p56, %p57
      %p59 = scmp.ne.s32.totalorder %s50, %s51
      %p60 = scmp.eq.s32.totalorder %s19, 0
      %p61 = por %p59, %p60
      %p62 = scmp.ne.s32.totalorder %s50, %s51
      %p63 = scmp.eq.s32.totalorder %s20, 1
      %p64 = por %p62, %p63
      %p66 = scmp.ne.s32.totalorder %s51, %s65
      %p67 = scmp.eq.s32.totalorder %s20, 0
      %p68 = por %p66, %p67
      %s70 = sadd.s32 %s69, 1
      %p73 = scmp.eq.s32.totalorder %s14, 1
      %p74 = scmp.ne.s32.totalorder %s69, %s71
      %p75 = scmp.eq.s32.totalorder %s14, 0
      %p76 = por %p74, %p75
      %p77 = scmp.ne.s32.totalorder %s69, %s71
      %p78 = scmp.eq.s32.totalorder %s19, 1
      %p79 = por %p77, %p78
      %p80 = scmp.ne.s32.totalorder %s71, %s72
      %p81 = scmp.eq.s32.totalorder %s19, 0
      %p82 = por %p80, %p81
      %p83 = scmp.ne.s32.totalorder %s71, %s72
      %p84 = scmp.eq.s32.totalorder %s20, 1
      %p85 = por %p83, %p84
      %p87 = scmp.ne.s32.totalorder %s72, %s86
      %p88 = scmp.eq.s32.totalorder %s20, 0
      %p89 = por %p87, %p88
      %s91 = sadd.s32 %s90, 1
      %p94 = scmp.eq.s32.totalorder %s14, 1
      %p95 = scmp.ne.s32.totalorder %s90, %s92
      %p96 = scmp.eq.s32.totalorder %s14, 0
      %p97 = por %p95, %p96
      %p98 = scmp.ne.s32.totalorder %s90, %s92
      %p99 = scmp.eq.s32.totalorder %s19, 1
      %p100 = por %p98, %p99
      %p101 = scmp.ne.s32.totalorder %s92, %s93
      %p102 = scmp.eq.s32.totalorder %s19, 0
      %p103 = por %p101, %p102
      %p104 = scmp.ne.s32.totalorder %s92, %s93
      %p105 = scmp.eq.s32.totalorder %s20, 1
      %p106 = por %p104, %p105
      %p108 = scmp.ne.s32.totalorder %s93, %s107
      %p109 = scmp.eq.s32.totalorder %s20, 0
      %p110 = por %p108, %p109
      %s112 = sadd.s32 %s111, 1
      %p115 = scmp.eq.s32.totalorder %s14, 1
      %p116 = scmp.ne.s32.totalorder %s111, %s113
      %p117 = scmp.eq.s32.totalorder %s14, 0
      %p118 = por %p116, %p117
      %p119 = scmp.ne.s32.totalorder %s111, %s113
      %p120 = scmp.eq.s32.totalorder %s19, 1
      %p121 = por %p119, %p120
      %p122 = scmp.ne.s32.totalorder %s113, %s114
      %p123 = scmp.eq.s32.totalorder %s19, 0
      %p124 = por %p122, %p123
      %p125 = scmp.ne.s32.totalorder %s113, %s114
      %p126 = scmp.eq.s32.totalorder %s20, 1
      %p127 = por %p125, %p126
      %p129 = scmp.ne.s32.totalorder %s114, %s128
      %p130 = scmp.eq.s32.totalorder %s20, 0
      %p131 = por %p129, %p130
      %s132 = ssub.s32 %s14, %s21
      %p133 = scmp.eq.s32.totalorder %s132, 0
      %s135 = sadd.s32 %s134, 1
      %s136 = scalar_select %p133, %s134, %s135
      %p139 = pneg %p133
      %p140 = scmp.eq.s32.totalorder %s14, 1
      %p141 = por %p139, %p140
      %p142 = scmp.ne.s32.totalorder %s134, %s137
      %p143 = scmp.eq.s32.totalorder %s14, 0
      %p144 = por %p142, %p143
      %p145 = scmp.ne.s32.totalorder %s134, %s137
      %p146 = scmp.eq.s32.totalorder %s19, 1
      %p147 = por %p145, %p146
      %p148 = scmp.ne.s32.totalorder %s137, %s138
      %p149 = scmp.eq.s32.totalorder %s19, 0
      %p150 = por %p148, %p149
      %p151 = scmp.ne.s32.totalorder %s137, %s138
      %p152 = scmp.eq.s32.totalorder %s20, 1
      %p153 = por %p151, %p152
      %p155 = scmp.ne.s32.totalorder %s138, %s154
      %p156 = scmp.eq.s32.totalorder %s20, 0
      %p157 = por %p155, %p156
      %s158 = ssub.s32 %s14, %s21
      %p159 = scmp.eq.s32.totalorder %s158, 0
      %s161 = sadd.s32 %s160, 1
      %s162 = scalar_select %p159, %s160, %s161
      %p165 = pneg %p159
      %p166 = scmp.eq.s32.totalorder %s14, 1
      %p167 = por %p165, %p166
      %p168 = scmp.ne.s32.totalorder %s160, %s163
      %p169 = scmp.eq.s32.totalorder %s14, 0
      %p170 = por %p168, %p169
      %p171 = scmp.ne.s32.totalorder %s160, %s163
      %p172 = scmp.eq.s32.totalorder %s19, 1
      %p173 = por %p171, %p172
      %p174 = scmp.ne.s32.totalorder %s163, %s164
      %p175 = scmp.eq.s32.totalorder %s19, 0
      %p176 = por %p174, %p175
      %p177 = scmp.ne.s32.totalorder %s163, %s164
      %p178 = scmp.eq.s32.totalorder %s20, 1
      %p179 = por %p177, %p178
      %p181 = scmp.ne.s32.totalorder %s164, %s180
      %p182 = scmp.eq.s32.totalorder %s20, 0
      %p183 = por %p181, %p182
      %s185 = sadd.s32 %s184, 1
      %p188 = scmp.eq.s32.totalorder %s14, 1
      %p189 = scmp.ne.s32.totalorder %s184, %s186
      %p190 = scmp.eq.s32.totalorder %s14, 0
      %p191 = por %p189, %p190
      %p192 = scmp.ne.s32.totalorder %s184, %s186
      %p193 = scmp.eq.s32.totalorder %s19, 1
      %p194 = por %p192, %p193
      %p195 = scmp.ne.s32.totalorder %s186, %s187
      %p196 = scmp.eq.s32.totalorder %s19, 0
      %p197 = por %p195, %p196
      %p198 = scmp.ne.s32.totalorder %s186, %s187
      %p199 = scmp.eq.s32.totalorder %s20, 1
      %p200 = por %p198, %p199
      %p202 = scmp.ne.s32.totalorder %s187, %s201
      %p203 = scmp.eq.s32.totalorder %s20, 0
      %p204 = por %p202, %p203
      %p205 = scmp.le.s32.totalorder 1, %s14
      %p206 = scmp.lt.s32.totalorder %s14, 3
      %p207 = pnand %p205, %p206
      %p208 = pneg %p207
      // Predicated region
      $region9: #{_lambda_.5} parent=5 // pred_check
        _
      $region10: #{_lambda_.5} parent=5 // pred_check_branch
        %210 = sbr.rel (%p207) target = $region12
      $region11: #{_lambda_.5} parent=5 // pred_region
        %s211 = ssub.s32 %s14, 1
        // Predicated region
        $region13: #{_lambda_.5} parent=11 // pred_check
          %p212 = pneg %p61
        $region14: #{_lambda_.5} parent=11 // pred_check_branch
          %214 = sbr.rel (%p212) target = $region16
        $region15: #{_lambda_.5} parent=11 // pred_region
          _
        $region16: #{_lambda_.5} parent=11 // pred_fallthru
          _
        // Predicated region
        $region17: #{_lambda_.5} parent=11 // pred_check
          %p215 = pneg %p82
        $region18: #{_lambda_.5} parent=11 // pred_check_branch
          %217 = sbr.rel (%p215) target = $region20
        $region19: #{_lambda_.5} parent=11 // pred_region
          _
        $region20: #{_lambda_.5} parent=11 // pred_fallthru
          _
        // Predicated region
        $region21: #{_lambda_.5} parent=11 // pred_check
          %p218 = pneg %p103
        $region22: #{_lambda_.5} parent=11 // pred_check_branch
          %220 = sbr.rel (%p218) target = $region24
        $region23: #{_lambda_.5} parent=11 // pred_region
          _
        $region24: #{_lambda_.5} parent=11 // pred_fallthru
          _
        // Predicated region
        $region25: #{_lambda_.5} parent=11 // pred_check
          %p221 = pneg %p124
        $region26: #{_lambda_.5} parent=11 // pred_check_branch
          %223 = sbr.rel (%p221) target = $region28
        $region27: #{_lambda_.5} parent=11 // pred_region
          _
        $region28: #{_lambda_.5} parent=11 // pred_fallthru
          _
      $region12: #{_lambda_.5} parent=5 // pred_fallthru
        _
      %p224 = scmp.lt.s32.totalorder %s14, 2
      // Predicated region
      $region29: #{_lambda_.5} parent=5 // pred_check
        %p225 = pneg %p224
      $region30: #{_lambda_.5} parent=5 // pred_check_branch
        %227 = sbr.rel (%p225) target = $region32
      $region31: #{_lambda_.5} parent=5 // pred_region
        // Predicated region
        $region33: #{_lambda_.5} parent=31 // pred_check
          %p228 = pneg %p34
        $region34: #{_lambda_.5} parent=31 // pred_check_branch
          %230 = sbr.rel (%p228) target = $region36
        $region35: #{_lambda_.5} parent=31 // pred_region
          %p231 = scmp.lt.s32.totalorder %s14, 1
          %s232 = scalar_select %p231, %s14, 1
          %s233 = smul.addr %s232, 2
          %s234 = smul.addr %s233, 4
          %s235 = scalar_lea.vmem %s0, %s234
        $region36: #{_lambda_.5} parent=31 // pred_fallthru
          _
        // Predicated region
        $region37: #{_lambda_.5} parent=31 // pred_check
          %p236 = pneg %p144
        $region38: #{_lambda_.5} parent=31 // pred_check_branch
          %238 = sbr.rel (%p236) target = $region40
        $region39: #{_lambda_.5} parent=31 // pred_region
          %p239 = scmp.lt.s32.totalorder %s14, 1
          %s240 = scalar_select %p239, %s14, 1
          %s241 = smul.addr %s240, 2
          %s242 = smul.addr %s241, 8
          %s243 = scalar_lea.vmem %s5, %s242
        $region40: #{_lambda_.5} parent=31 // pred_fallthru
          _
        // Predicated region
        $region41: #{_lambda_.5} parent=31 // pred_check
          %p244 = pneg %p170
        $region42: #{_lambda_.5} parent=31 // pred_check_branch
          %246 = sbr.rel (%p244) target = $region44
        $region43: #{_lambda_.5} parent=31 // pred_region
          %p247 = scmp.lt.s32.totalorder %s14, 1
          %s248 = scalar_select %p247, %s14, 1
          %s249 = smul.addr %s248, 2
          %s250 = smul.addr %s249, 8
          %s251 = scalar_lea.vmem %s6, %s250
        $region44: #{_lambda_.5} parent=31 // pred_fallthru
          _
      $region32: #{_lambda_.5} parent=5 // pred_fallthru
        _
      %p252 = scmp.le.s32.totalorder 1, %s14
      %p253 = scmp.lt.s32.totalorder %s14, 3
      %p254 = pnand %p252, %p253
      %p255 = pneg %p254
      // Predicated region
      $region45: #{_lambda_.5} parent=5 // pred_check
        _
      $region46: #{_lambda_.5} parent=5 // pred_check_branch
        %257 = sbr.rel (%p254) target = $region48
      $region47: #{_lambda_.5} parent=5 // pred_region
        %s258 = ssub.s32 %s14, 1
        %p259 = scmp.lt.s32.totalorder %s19, 1
        %s260 = scalar_select %p259, %s19, 1
        %s261 = smul.addr %s260, 2
        %s262 = smul.addr %s261, 4
        %s263 = scalar_lea.vmem %s0, %s262
        %p264 = pneg %p40
        %p265 = pneg %p37
        %p266 = pneg %p61
        %p267 = pneg %p58
        %p268 = pneg %p82
        %p269 = pneg %p79
        %p270 = pneg %p103
        %p271 = pneg %p100
        %p272 = pneg %p124
        %p273 = pneg %p121
        %p274 = scmp.lt.s32.totalorder %s19, 1
        %s275 = scalar_select %p274, %s19, 1
        %s276 = smul.addr %s275, 2
        %s277 = smul.addr %s276, 8
        %s278 = scalar_lea.vmem %s5, %s277
        %p279 = pneg %p150
        %p280 = pneg %p147
        %p281 = scmp.lt.s32.totalorder %s19, 1
        %s282 = scalar_select %p281, %s19, 1
        %s283 = smul.addr %s282, 2
        %s284 = smul.addr %s283, 8
        %s285 = scalar_lea.vmem %s6, %s284
        %p286 = pneg %p176
        %p287 = pneg %p173
        %p288 = pneg %p197
        %p289 = pneg %p194
        %p290 = scmp.lt.s32.totalorder %s19, 1
        %s291 = scalar_select %p290, %s19, 1
        %s292 = smul.addr %s291, 2
        %s293 = smul.addr %s292, 4
        %s294 = scalar_lea.vmem %s0, %s293
        %p295 = scmp.lt.s32.totalorder %s19, 1
        %s296 = scalar_select %p295, %s19, 1
        %s297 = smul.addr %s296, 2
        %s298 = smul.addr %s297, 8
        %s299 = scalar_lea.vmem %s5, %s298
        %p300 = scmp.lt.s32.totalorder %s19, 1
        %s301 = scalar_select %p300, %s19, 1
        %s302 = smul.addr %s301, 2
        %s303 = smul.addr %s302, 8
        %s304 = scalar_lea.vmem %s6, %s303
        %p306 = scmp.eq.s32.totalorder %s19, 0
        // Predicated region
        $region49: #{_lambda_.5} parent=47 // pred_check
          %p307 = pneg %p306
        $region50: #{_lambda_.5} parent=47 // pred_check_branch
          %309 = sbr.rel (%p307) target = $region52
        $region51: #{_lambda_.5} parent=47 // pred_region
          %vm310 = vcmask 0
          %311 = vst.msk [vmem:[#allocation2] sm:$0x1] %vm310, 0.0
          %312 = vst.msk [vmem:[#allocation3] sm:$0x1] %vm310, 0.0
        $region52: #{_lambda_.5} parent=47 // pred_fallthru
          _
        %v313 = vld [vmem:[%s294] sm:$0xf]
        %v314 = vld [vmem:[%s294 + $0x4] sm:$0xf]
        %v315 = vunpack.c.l.bf16 %v313
        %v316 = vunpack.c.l.bf16 %v314
        %v317 = vld [vmem:[%s1] sm:$0x1]
        %v318 = vld [vmem:[%s2] sm:$0x1]
        %vm319 = vcmask 261120
        %v320 = vsel %vm319, %v315, 0.0
        %321 = vadd.xlane.f32.xlu0 %v320
        %v322 = vpop.xlane.xlu0 %321
        %v323 = vsel %vm319, %v316, 0.0
        %324 = vadd.xlane.f32.xlu0 %v323
        %v325 = vpop.xlane.xlu0 %324
        %v326 = vrcp.pop 32.0
        %v327 = vmul.f32 32.0, %v326
        %v328 = vsub.f32 1.0, %v327
        %v329 = vmul.f32 %v326, %v328
        %v330 = vadd.f32 %v326, %v329
        %vm331 = vweird.f32 %v326
        %v332 = vsel %vm331, %v326, %v330
        %v333 = vmul.f32 %v322, %v332
        %v334 = vmul.f32 %v325, %v332
        %v335 = vsub.f32 %v315, %v333
        %v336 = vsub.f32 %v316, %v334
        %v337 = vmul.f32 %v335, %v335
        %v338 = vmul.f32 %v336, %v336
        %v339 = vsel %vm319, %v337, 0.0
        %340 = vadd.xlane.f32.xlu0 %v339
        %v341 = vpop.xlane.xlu0 %340
        %v342 = vsel %vm319, %v338, 0.0
        %343 = vadd.xlane.f32.xlu0 %v342
        %v344 = vpop.xlane.xlu0 %343
        %v345 = vmul.f32 %v341, %v332
        %v346 = vmul.f32 %v344, %v332
        %v347 = vadd.f32 %v345, 1e-05
        %v348 = vadd.f32 %v346, 1e-05
        %v349 = vrsqrt.pop %v347
        %v350 = vmul.f32 %v349, %v347
        %v351 = vmul.f32 %v350, %v349
        %v352 = vmul.f32 0.5, %v351
        %v353 = vsub.f32 1.5, %v352
        %v354 = vmul.f32 %v349, %v353
        %vm355 = vweird.f32 %v347
        %vm356 = vweird.f32 %v349
        %vm357 = vmor %vm355, %vm356
        %v358 = vsel %vm357, %v349, %v354
        %v359 = vrsqrt.pop %v348
        %v360 = vmul.f32 %v359, %v348
        %v361 = vmul.f32 %v360, %v359
        %v362 = vmul.f32 0.5, %v361
        %v363 = vsub.f32 1.5, %v362
        %v364 = vmul.f32 %v359, %v363
        %vm365 = vweird.f32 %v348
        %vm366 = vweird.f32 %v359
        %vm367 = vmor %vm365, %vm366
        %v368 = vsel %vm367, %v359, %v364
        %v369 = vmul.f32 %v335, %v358
        %v370 = vmul.f32 %v336, %v368
        %v372 = vperm.slane %v317, 0
        %v374 = vmul.f32 %v369, %v372
        %v375 = vmul.f32 %v370, %v372
        %v377 = vperm.slane %v318, 0
        %v379 = vadd.f32 %v374, %v377
        %v380 = vadd.f32 %v375, %v377
        %v381 = vld [vmem:[%s3] sm:$0xf]
        %v382 = vld [vmem:[%s3 + $0x4] sm:$0xf]
        %v383 = vld [vmem:[%s3 + $0x8] sm:$0xf]
        %v384 = vld [vmem:[%s3 + $0xc] sm:$0xf]
        %v385 = vpack.c.bf16 %v380, %v379
        %v386 = vld [vmem:[%s4] sm:$0x1]
        %v388 = vperm.slane %v386, 0
        %v394 = vunpack.c.l.b16 %v381
        %v395 = vunpack.c.l.b16 %v382
        %v396 = vunpack.c.l.b16 %v383
        %v397 = vunpack.c.l.b16 %v384
        %v398 = vpack.c.b16 %v395, %v394
        %v399 = vpack.c.b16 %v397, %v396
        %v403 = vsel %vm319, %v385, 0
        %405 = vmatpush.bf16.msra.mxu0 0
        %406 = vmatpush.bf16.msra.mxu0 0
        %407 = vmatpush.bf16.msra.mxu0 0
        %408 = vmatpush.bf16.msra.mxu0 0
        %409 = vmatpush.bf16.msra.mxu0 0
        %410 = vmatpush.bf16.msra.mxu0 0
        %411 = vmatpush.bf16.msra.mxu0 %v399
        %412 = vmatpush.bf16.msra.mxu0 %v398
        %413 = vmatmul.bf16.gmra.mxu0 %v403
        %v414 = vpop.f32.mrf.mxu0
        %v415 = vadd.f32 %v388, %v414
        %v416 = vpop.f32.mrf.mxu0
        %v417 = vadd.f32 %v388, %v416
        %418 = vdwg.mxu0
        %v419 = vld [vmem:[%s299] sm:$0xff]
        %v420 = vld [vmem:[%s299 + $0x8] sm:$0xff]
        %v421 = vsub.f32 %v415, %v419
        %v422 = vsub.f32 %v417, %v420
        %v423 = vld [vmem:[%s304] sm:$0xff]
        %v424 = vld [vmem:[%s304 + $0x8] sm:$0xff]
        %v425 = vld [vmem:[#allocation2] sm:$0x1]
        %v426 = vmul.f32 %v421, %v421
        %v427 = vmul.f32 %v422, %v422
        %429 = vset.pattern.permute.xlu0 0
        %430 = vperm.xlu0 %429, %v423
        %v431 = vpop.permute.xlu0 %430
        %434 = vset.pattern.permute.xlu0 0
        %435 = vperm.xlu0 %434, %v424
        %v436 = vpop.permute.xlu0 %435
        %v438 = vmul.f32 %v426, %v431
        %v439 = vmul.f32 %v427, %v436
        %vm440 = vcmask 523264
        %v441 = vsel %vm440, %v438, 0.0
        %v442 = vsel %vm440, %v439, 0.0
        %v443 = vadd.f32 %v441, %v442
        %444 = vadd.xlane.f32.xlu0 %v443
        %v445 = vpop.xlane.xlu0 %444
        %v446 = vrot.slane %v445, 4
        %v447 = vadd.f32 %v445, %v446
        %v448 = vrot.slane %v447, 2
        %v449 = vadd.f32 %v447, %v448
        %v450 = vrot.slane %v449, 1
        %v451 = vadd.f32 %v449, %v450
        %s452 = vtos %v451
        %v453 = vstv %s452
        %v454 = vadd.f32 %v425, %v453
        %vm455 = vcmask 0
        %456 = vst.msk [vmem:[#allocation2] sm:$0x1] %vm455, %v454
        %v457 = vld [vmem:[#allocation3] sm:$0x1]
        %vm458 = vcmask 7168
        %v459 = vsel %vm458, %v423, 0.0
        %v460 = vsel %vm458, %v424, 0.0
        %v461 = vadd.f32 %v459, %v460
        %462 = vadd.xlane.f32.xlu0 %v461
        %v463 = vpop.xlane.xlu0 %462
        %v464 = vrot.slane %v463, 4
        %v465 = vadd.f32 %v463, %v464
        %v466 = vrot.slane %v465, 2
        %v467 = vadd.f32 %v465, %v466
        %v468 = vrot.slane %v467, 1
        %v469 = vadd.f32 %v467, %v468
        %s470 = vtos %v469
        %s471 = smul.f32 %s470, 64.0
        %v472 = vstv %s471
        %v473 = vadd.f32 %v457, %v472
        %474 = vst.msk [vmem:[#allocation3] sm:$0x1] %vm455, %v473
        %v475 = vld [vmem:[#allocation2] sm:$0x1]
        %v476 = vld [vmem:[#allocation3] sm:$0x1]
        %v477 = vmax.f32 %v476, 1e-06
        %v478 = vrcp.pop %v477
        %v479 = vmul.f32 %v477, %v478
        %v480 = vsub.f32 1.0, %v479
        %v481 = vmul.f32 %v478, %v480
        %v482 = vadd.f32 %v478, %v481
        %vm483 = vweird.f32 %v477
        %vm484 = vweird.f32 %v478
        %vm485 = vmor %vm483, %vm484
        %v486 = vsel %vm485, %v478, %v482
        %v487 = vand.u32 2147483647, %v477
        %vm488 = vcmp.eq.f32.partialorder %v487, 8.507059e+37
        %v489 = vand.u32 %v477, 2147483648
        %v490 = vor.u32 1.1754944e-38, %v489
        %v491 = vsel %vm488, %v490, %v486
        %v492 = vmul.f32 %v475, %v491
        %493 = vst.msk [vmem:[#allocation4] sm:$0x1] %vm455, %v492
        // Predicated region
        $region53: #{_lambda_.5} parent=47 // pred_check
          %p494 = pneg %p194
        $region54: #{_lambda_.5} parent=47 // pred_check_branch
          %496 = sbr.rel (%p494) target = $region56
        $region55: #{_lambda_.5} parent=47 // pred_region
          %498 = vsyncadd [#allocation5], 0
          %s500 = sshll.u32 [#allocation4], 4
          %s501 = int_to_ptr.vmem [resolvable:$true] %s500
          %s502 = sshll.u32 %s7, 4
          %s503 = int_to_ptr.hbm [resolvable:$true] %s502
          %505 = dma.vmem_to_hbm [thread:$0]  %s501, 16, %s503, [#allocation5]
        $region56: #{_lambda_.5} parent=47 // pred_fallthru
          _
        // Predicated region
        $region57: #{_lambda_.5} parent=47 // pred_check
          %p506 = pneg %p194
        $region58: #{_lambda_.5} parent=47 // pred_check_branch
          %508 = sbr.rel (%p506) target = $region60
        $region59: #{_lambda_.5} parent=47 // pred_region
          %510 = dma.done [#allocation5], 16
        $region60: #{_lambda_.5} parent=47 // pred_fallthru
          _
      $region48: #{_lambda_.5} parent=5 // pred_fallthru
        _
      %p511 = scmp.le.s32.totalorder 2, %s14
      // Predicated region
      $region61: #{_lambda_.5} parent=5 // pred_check
        %p512 = pneg %p511
      $region62: #{_lambda_.5} parent=5 // pred_check_branch
        %514 = sbr.rel (%p512) target = $region64
      $region63: #{_lambda_.5} parent=5 // pred_region
        %s515 = ssub.s32 %s14, 2
      $region64: #{_lambda_.5} parent=5 // pred_fallthru
        _
    $region6: #{_lambda_.5} parent=1 // loop_footer
      %s18 = sadd.s32 1, %s14
    $region7: #{_lambda_.5} parent=1 // loop_footer_branch
      %13 = sbr.rel target = $region3
    $region8: #{_lambda_.5} parent=1 // loop_exit
      _
    %516 = vsyncpa [#allocation5], 1
    %s517 = scalar_lea.sflag [#allocation5], 1
    %518 = vsyncpa %s517, 1

// kernel: _lambda_.4
$region0: #{_lambda_.4}
  #allocation0 [shape = 'u32[]', space=smem, size = 0x4, offset = 0x4, fixed_abs, tag = 'smem constant byte address 0x4 - core index']
  #allocation1 [shape = 'u32[72,128]{1,0:T(1,128)}', space=vmem, size = 0x9000, scoped, tag = 'internal scratch']
  %s0 = inlined_call_operand.vmem [shape: bf16[2,16,32], index: 0, kind: input, shape index: {}]
  %s1 = inlined_call_operand.vmem [shape: f32[1,16,32], index: 1, kind: input, shape index: {}]
  %s2 = inlined_call_operand.vmem [shape: f32[1,32], index: 2, kind: input, shape index: {}]
  %s3 = inlined_call_operand.vmem [shape: f32[1,32], index: 3, kind: input, shape index: {}]
  %s4 = inlined_call_operand.vmem [shape: bf16[32,96], index: 4, kind: input, shape index: {}]
  %s5 = inlined_call_operand.vmem [shape: f32[1,96], index: 5, kind: input, shape index: {}]
  %s6 = inlined_call_operand.vmem [shape: bf16[32,32], index: 6, kind: input, shape index: {}]
  %s7 = inlined_call_operand.vmem [shape: f32[1,32], index: 7, kind: input, shape index: {}]
  %s8 = inlined_call_operand.vmem [shape: f32[1,32], index: 8, kind: input, shape index: {}]
  %s9 = inlined_call_operand.vmem [shape: f32[1,32], index: 9, kind: input, shape index: {}]
  %s10 = inlined_call_operand.vmem [shape: bf16[32,64], index: 10, kind: input, shape index: {}]
  %s11 = inlined_call_operand.vmem [shape: f32[1,64], index: 11, kind: input, shape index: {}]
  %s12 = inlined_call_operand.vmem [shape: bf16[64,32], index: 12, kind: input, shape index: {}]
  %s13 = inlined_call_operand.vmem [shape: f32[1,32], index: 13, kind: input, shape index: {}]
  %s14 = inlined_call_operand.vmem [shape: bf16[2,16,32], index: 14, kind: output, shape index: {}]
  %s15 = sld [smem:[#allocation0]]
  $region66: #{_lambda_.4} parent=0
    _
  %s17 = ssub.s32 1, %s15
  %s18 = scalar_select 0, %s17, %s15
  // Predicated region
  $region2: #{_lambda_.4} parent=0 // pred_check
    _
  $region3: #{_lambda_.4} parent=0 // pred_check_branch
    %20 = sbr.rel (0) target = $region5
  $region4: #{_lambda_.4} parent=0 // pred_region
    _
  $region5: #{_lambda_.4} parent=0 // pred_fallthru
    _
  // Predicated region
  $region6: #{_lambda_.4} parent=0 // pred_check
    _
  $region7: #{_lambda_.4} parent=0 // pred_check_branch
    %22 = sbr.rel (0) target = $region9
  $region8: #{_lambda_.4} parent=0 // pred_region
    _
  $region9: #{_lambda_.4} parent=0 // pred_fallthru
    _
  // Predicated region
  $region10: #{_lambda_.4} parent=0 // pred_check
    _
  $region11: #{_lambda_.4} parent=0 // pred_check_branch
    %24 = sbr.rel (0) target = $region13
  $region12: #{_lambda_.4} parent=0 // pred_region
    _
  $region13: #{_lambda_.4} parent=0 // pred_fallthru
    _
  // Predicated region
  $region14: #{_lambda_.4} parent=0 // pred_check
    _
  $region15: #{_lambda_.4} parent=0 // pred_check_branch
    %26 = sbr.rel (0) target = $region17
  $region16: #{_lambda_.4} parent=0 // pred_region
    _
  $region17: #{_lambda_.4} parent=0 // pred_fallthru
    _
  // Predicated region
  $region18: #{_lambda_.4} parent=0 // pred_check
    _
  $region19: #{_lambda_.4} parent=0 // pred_check_branch
    %28 = sbr.rel (0) target = $region21
  $region20: #{_lambda_.4} parent=0 // pred_region
    _
  $region21: #{_lambda_.4} parent=0 // pred_fallthru
    _
  // Predicated region
  $region22: #{_lambda_.4} parent=0 // pred_check
    _
  $region23: #{_lambda_.4} parent=0 // pred_check_branch
    %30 = sbr.rel (0) target = $region25
  $region24: #{_lambda_.4} parent=0 // pred_region
    _
  $region25: #{_lambda_.4} parent=0 // pred_fallthru
    _
  // Predicated region
  $region26: #{_lambda_.4} parent=0 // pred_check
    _
  $region27: #{_lambda_.4} parent=0 // pred_check_branch
    %32 = sbr.rel (0) target = $region29
  $region28: #{_lambda_.4} parent=0 // pred_region
    _
  $region29: #{_lambda_.4} parent=0 // pred_fallthru
    _
  // Predicated region
  $region30: #{_lambda_.4} parent=0 // pred_check
    _
  $region31: #{_lambda_.4} parent=0 // pred_check_branch
    %34 = sbr.rel (0) target = $region33
  $region32: #{_lambda_.4} parent=0 // pred_region
    _
  $region33: #{_lambda_.4} parent=0 // pred_fallthru
    _
  // Predicated region
  $region34: #{_lambda_.4} parent=0 // pred_check
    _
  $region35: #{_lambda_.4} parent=0 // pred_check_branch
    %36 = sbr.rel (0) target = $region37
  $region36: #{_lambda_.4} parent=0 // pred_region
    _
  $region37: #{_lambda_.4} parent=0 // pred_fallthru
    _
  // Predicated region
  $region38: #{_lambda_.4} parent=0 // pred_check
    _
  $region39: #{_lambda_.4} parent=0 // pred_check_branch
    %38 = sbr.rel (0) target = $region41
  $region40: #{_lambda_.4} parent=0 // pred_region
    _
  $region41: #{_lambda_.4} parent=0 // pred_fallthru
    _
  // Predicated region
  $region42: #{_lambda_.4} parent=0 // pred_check
    _
  $region43: #{_lambda_.4} parent=0 // pred_check_branch
    %40 = sbr.rel (0) target = $region45
  $region44: #{_lambda_.4} parent=0 // pred_region
    _
  $region45: #{_lambda_.4} parent=0 // pred_fallthru
    _
  // Predicated region
  $region46: #{_lambda_.4} parent=0 // pred_check
    _
  $region47: #{_lambda_.4} parent=0 // pred_check_branch
    %42 = sbr.rel (0) target = $region49
  $region48: #{_lambda_.4} parent=0 // pred_region
    _
  $region49: #{_lambda_.4} parent=0 // pred_fallthru
    _
  // Predicated region
  $region50: #{_lambda_.4} parent=0 // pred_check
    _
  $region51: #{_lambda_.4} parent=0 // pred_check_branch
    %44 = sbr.rel (0) target = $region53
  $region52: #{_lambda_.4} parent=0 // pred_region
    _
  $region53: #{_lambda_.4} parent=0 // pred_fallthru
    _
  // Predicated region
  $region54: #{_lambda_.4} parent=0 // pred_check
    _
  $region55: #{_lambda_.4} parent=0 // pred_check_branch
    %46 = sbr.rel (0) target = $region57
  $region56: #{_lambda_.4} parent=0 // pred_region
    _
  $region57: #{_lambda_.4} parent=0 // pred_fallthru
    _
  %v48 = vld [vmem:[%s0] sm:$0xf]
  %v49 = vld [vmem:[%s0 + $0x4] sm:$0xf]
  %v50 = vld [vmem:[%s0 + $0x8] sm:$0xf]
  %v51 = vld [vmem:[%s0 + $0xc] sm:$0xf]
  %v52 = vunpack.c.l.bf16 %v48
  %v53 = vunpack.c.l.bf16 %v49
  %v54 = vunpack.c.l.bf16 %v50
  %v55 = vunpack.c.l.bf16 %v51
  %v56 = vld [vmem:[%s1] sm:$0xff]
  %v57 = vld [vmem:[%s1 + $0x8] sm:$0xff]
  %v58 = vadd.f32 %v52, %v56
  %v59 = vadd.f32 %v53, %v57
  %v60 = vadd.f32 %v54, %v56
  %v61 = vadd.f32 %v55, %v57
  %v62 = vld [vmem:[%s2] sm:$0x1]
  %v63 = vld [vmem:[%s3] sm:$0x1]
  %vm64 = vcmask 261120
  %v65 = vsel %vm64, %v58, 0.0
  %66 = vadd.xlane.f32.xlu0 %v65
  %v67 = vpop.xlane.xlu0 %66
  %v68 = vsel %vm64, %v59, 0.0
  %69 = vadd.xlane.f32.xlu0 %v68
  %v70 = vpop.xlane.xlu0 %69
  %v71 = vsel %vm64, %v60, 0.0
  %72 = vadd.xlane.f32.xlu0 %v71
  %v73 = vpop.xlane.xlu0 %72
  %v74 = vsel %vm64, %v61, 0.0
  %75 = vadd.xlane.f32.xlu0 %v74
  %v76 = vpop.xlane.xlu0 %75
  %v77 = vrcp.pop 32.0
  %v78 = vmul.f32 32.0, %v77
  %v79 = vsub.f32 1.0, %v78
  %v80 = vmul.f32 %v77, %v79
  %v81 = vadd.f32 %v77, %v80
  %vm82 = vweird.f32 %v77
  %v83 = vsel %vm82, %v77, %v81
  %v84 = vmul.f32 %v67, %v83
  %v85 = vmul.f32 %v70, %v83
  %v86 = vmul.f32 %v73, %v83
  %v87 = vmul.f32 %v76, %v83
  %v88 = vsub.f32 %v58, %v84
  %v89 = vsub.f32 %v59, %v85
  %v90 = vsub.f32 %v60, %v86
  %v91 = vsub.f32 %v61, %v87
  %v92 = vmul.f32 %v88, %v88
  %v93 = vmul.f32 %v89, %v89
  %v94 = vmul.f32 %v90, %v90
  %v95 = vmul.f32 %v91, %v91
  %v96 = vsel %vm64, %v92, 0.0
  %97 = vadd.xlane.f32.xlu0 %v96
  %v98 = vpop.xlane.xlu0 %97
  %v99 = vsel %vm64, %v93, 0.0
  %100 = vadd.xlane.f32.xlu0 %v99
  %v101 = vpop.xlane.xlu0 %100
  %v102 = vsel %vm64, %v94, 0.0
  %103 = vadd.xlane.f32.xlu0 %v102
  %v104 = vpop.xlane.xlu0 %103
  %v105 = vsel %vm64, %v95, 0.0
  %106 = vadd.xlane.f32.xlu0 %v105
  %v107 = vpop.xlane.xlu0 %106
  %v108 = vmul.f32 %v98, %v83
  %v109 = vmul.f32 %v101, %v83
  %v110 = vmul.f32 %v104, %v83
  %v111 = vmul.f32 %v107, %v83
  %v112 = vadd.f32 %v108, 1e-05
  %v113 = vadd.f32 %v109, 1e-05
  %v114 = vadd.f32 %v110, 1e-05
  %v115 = vadd.f32 %v111, 1e-05
  %v116 = vrsqrt.pop %v112
  %v117 = vmul.f32 %v116, %v112
  %v118 = vmul.f32 %v117, %v116
  %v119 = vmul.f32 0.5, %v118
  %v120 = vsub.f32 1.5, %v119
  %v121 = vmul.f32 %v116, %v120
  %vm122 = vweird.f32 %v112
  %vm123 = vweird.f32 %v116
  %vm124 = vmor %vm122, %vm123
  %v125 = vsel %vm124, %v116, %v121
  %v126 = vrsqrt.pop %v113
  %v127 = vmul.f32 %v126, %v113
  %v128 = vmul.f32 %v127, %v126
  %v129 = vmul.f32 0.5, %v128
  %v130 = vsub.f32 1.5, %v129
  %v131 = vmul.f32 %v126, %v130
  %vm132 = vweird.f32 %v113
  %vm133 = vweird.f32 %v126
  %vm134 = vmor %vm132, %vm133
  %v135 = vsel %vm134, %v126, %v131
  %v136 = vrsqrt.pop %v114
  %v137 = vmul.f32 %v136, %v114
  %v138 = vmul.f32 %v137, %v136
  %v139 = vmul.f32 0.5, %v138
  %v140 = vsub.f32 1.5, %v139
  %v141 = vmul.f32 %v136, %v140
  %vm142 = vweird.f32 %v114
  %vm143 = vweird.f32 %v136
  %vm144 = vmor %vm142, %vm143
  %v145 = vsel %vm144, %v136, %v141
  %v146 = vrsqrt.pop %v115
  %v147 = vmul.f32 %v146, %v115
  %v148 = vmul.f32 %v147, %v146
  %v149 = vmul.f32 0.5, %v148
  %v150 = vsub.f32 1.5, %v149
  %v151 = vmul.f32 %v146, %v150
  %vm152 = vweird.f32 %v115
  %vm153 = vweird.f32 %v146
  %vm154 = vmor %vm152, %vm153
  %v155 = vsel %vm154, %v146, %v151
  %v156 = vmul.f32 %v88, %v125
  %v157 = vmul.f32 %v89, %v135
  %v158 = vmul.f32 %v90, %v145
  %v159 = vmul.f32 %v91, %v155
  %v161 = vperm.slane %v62, 0
  %v163 = vmul.f32 %v156, %v161
  %v164 = vmul.f32 %v157, %v161
  %v165 = vmul.f32 %v158, %v161
  %v166 = vmul.f32 %v159, %v161
  %v168 = vperm.slane %v63, 0
  %v170 = vadd.f32 %v163, %v168
  %v171 = vadd.f32 %v164, %v168
  %v172 = vadd.f32 %v165, %v168
  %v173 = vadd.f32 %v166, %v168
  %v174 = vld [vmem:[%s4] sm:$0xf]
  %v175 = vld [vmem:[%s4 + $0x4] sm:$0xf]
  %v176 = vld [vmem:[%s4 + $0x8] sm:$0xf]
  %v177 = vld [vmem:[%s4 + $0xc] sm:$0xf]
  %v178 = vpack.c.bf16 %v171, %v170
  %v179 = vpack.c.bf16 %v173, %v172
  %v180 = vld [vmem:[%s5] sm:$0x1]
  %v182 = vperm.slane %v180, 0
  %v188 = vunpack.c.l.b16 %v174
  %v189 = vunpack.c.l.b16 %v175
  %v190 = vunpack.c.l.b16 %v176
  %v191 = vunpack.c.l.b16 %v177
  %v192 = vpack.c.b16 %v189, %v188
  %v193 = vpack.c.b16 %v191, %v190
  %v197 = vsel %vm64, %v178, 0
  %v200 = vsel %vm64, %v179, 0
  %202 = vmatpush.bf16.msra.mxu0 0
  %203 = vmatpush.bf16.msra.mxu0 0
  %204 = vmatpush.bf16.msra.mxu0 0
  %205 = vmatpush.bf16.msra.mxu0 0
  %206 = vmatpush.bf16.msra.mxu0 0
  %207 = vmatpush.bf16.msra.mxu0 0
  %208 = vmatpush.bf16.msra.mxu0 %v193
  %209 = vmatpush.bf16.msra.mxu0 %v192
  %210 = vmatmul.bf16.gmra.mxu0 %v197
  %v211 = vpop.f32.mrf.mxu0
  %v212 = vadd.f32 %v182, %v211
  %v213 = vpop.f32.mrf.mxu0
  %v214 = vadd.f32 %v182, %v213
  %215 = vmatmul.bf16.gmra.mxu0 %v200
  %v216 = vpop.f32.mrf.mxu0
  %v217 = vadd.f32 %v182, %v216
  %v218 = vpop.f32.mrf.mxu0
  %v219 = vadd.f32 %v182, %v218
  %220 = vdwg.mxu0
  %223 = vrot.lane.b32.xlu0 %v212, 120
  %v224 = vpop.permute.xlu0 %223
  %225 = vrot.lane.b32.xlu0 %v214, 120
  %v226 = vpop.permute.xlu0 %225
  %229 = vrot.lane.b32.xlu0 %v212, 112
  %v230 = vpop.permute.xlu0 %229
  %231 = vrot.lane.b32.xlu0 %v214, 112
  %v232 = vpop.permute.xlu0 %231
  %235 = vrot.lane.b32.xlu0 %v212, 104
  %v236 = vpop.permute.xlu0 %235
  %237 = vrot.lane.b32.xlu0 %v214, 104
  %v238 = vpop.permute.xlu0 %237
  %v241 = vrot.slane %v230, 4
  %vm242 = vcmask 1047556
  %v243 = vsel %vm242, %v241, %v212
  %v244 = vrot.slane %v212, 4
  %v245 = vsel %vm242, %v230, %v244
  %v247 = vunpack.c.l.s4 1983009808
  %v248 = vunpack.c.0.s8 %v247
  %v249 = vperm.slane %v243, %v248
  %v251 = vunpack.c.l.s4 1983009808
  %v252 = vunpack.c.0.s8 %v251
  %v253 = vperm.slane %v245, %v252
  %v254 = vrot.slane %v236, 4
  %v255 = vsel %vm242, %v254, %v224
  %v256 = vrot.slane %v224, 4
  %v257 = vsel %vm242, %v236, %v256
  %v259 = vunpack.c.l.s4 1983009808
  %v260 = vunpack.c.0.s8 %v259
  %v261 = vperm.slane %v255, %v260
  %v263 = vunpack.c.l.s4 1983009808
  %v264 = vunpack.c.0.s8 %v263
  %v265 = vperm.slane %v257, %v264
  %v266 = vrot.slane %v261, 4
  %v267 = vsel %vm242, %v266, %v249
  %v268 = vrot.slane %v249, 4
  %v269 = vsel %vm242, %v261, %v268
  %v271 = vunpack.c.l.s4 1934713408
  %v272 = vunpack.c.0.s8 %v271
  %v273 = vperm.slane %v267, %v272
  %v275 = vunpack.c.l.s4 1934713408
  %v276 = vunpack.c.0.s8 %v275
  %v277 = vperm.slane %v269, %v276
  %v278 = vrot.slane %v265, 4
  %v279 = vsel %vm242, %v278, %v253
  %v280 = vrot.slane %v253, 4
  %v281 = vsel %vm242, %v265, %v280
  %v283 = vunpack.c.l.s4 1934713408
  %v284 = vunpack.c.0.s8 %v283
  %v285 = vperm.slane %v279, %v284
  %v287 = vunpack.c.l.s4 1934713408
  %v288 = vunpack.c.0.s8 %v287
  %v289 = vperm.slane %v281, %v288
  %v290 = vrot.slane %v273, 4
  %v291 = vsel %vm242, 0.0, %v290
  %v292 = vrot.slane %v277, 4
  %v293 = vsel %vm242, 0.0, %v292
  %v294 = vrot.slane %v285, 4
  %v295 = vsel %vm242, 0.0, %v294
  %v296 = vrot.slane %v289, 4
  %v297 = vsel %vm242, 0.0, %v296
  %v298 = vrot.slane %v232, 4
  %v299 = vsel %vm242, %v298, %v214
  %v300 = vrot.slane %v214, 4
  %v301 = vsel %vm242, %v232, %v300
  %v303 = vunpack.c.l.s4 1983009808
  %v304 = vunpack.c.0.s8 %v303
  %v305 = vperm.slane %v299, %v304
  %v307 = vunpack.c.l.s4 1983009808
  %v308 = vunpack.c.0.s8 %v307
  %v309 = vperm.slane %v301, %v308
  %v310 = vrot.slane %v238, 4
  %v311 = vsel %vm242, %v310, %v226
  %v312 = vrot.slane %v226, 4
  %v313 = vsel %vm242, %v238, %v312
  %v315 = vunpack.c.l.s4 1983009808
  %v316 = vunpack.c.0.s8 %v315
  %v317 = vperm.slane %v311, %v316
  %v319 = vunpack.c.l.s4 1983009808
  %v320 = vunpack.c.0.s8 %v319
  %v321 = vperm.slane %v313, %v320
  %v322 = vrot.slane %v317, 4
  %v323 = vsel %vm242, %v322, %v305
  %v324 = vrot.slane %v305, 4
  %v325 = vsel %vm242, %v317, %v324
  %v327 = vunpack.c.l.s4 1934713408
  %v328 = vunpack.c.0.s8 %v327
  %v329 = vperm.slane %v323, %v328
  %v331 = vunpack.c.l.s4 1934713408
  %v332 = vunpack.c.0.s8 %v331
  %v333 = vperm.slane %v325, %v332
  %v334 = vrot.slane %v321, 4
  %v335 = vsel %vm242, %v334, %v309
  %v336 = vrot.slane %v309, 4
  %v337 = vsel %vm242, %v321, %v336
  %v339 = vunpack.c.l.s4 1934713408
  %v340 = vunpack.c.0.s8 %v339
  %v341 = vperm.slane %v335, %v340
  %v343 = vunpack.c.l.s4 1934713408
  %v344 = vunpack.c.0.s8 %v343
  %v345 = vperm.slane %v337, %v344
  %v346 = vrot.slane %v329, 4
  %v347 = vsel %vm242, 0.0, %v346
  %v348 = vrot.slane %v333, 4
  %v349 = vsel %vm242, 0.0, %v348
  %v350 = vrot.slane %v341, 4
  %v351 = vsel %vm242, 0.0, %v350
  %v352 = vrot.slane %v345, 4
  %v353 = vsel %vm242, 0.0, %v352
  %v354 = vsel %vm242, %v292, %v273
  %v356 = vunpack.c.l.s4 1983009808
  %v357 = vunpack.c.0.s8 %v356
  %v358 = vperm.slane %v354, %v357
  %v359 = vrot.slane %v293, 4
  %v360 = vsel %vm242, %v359, %v291
  %v362 = vunpack.c.l.s4 1983009808
  %v363 = vunpack.c.0.s8 %v362
  %v364 = vperm.slane %v360, %v363
  %v365 = vsel %vm242, %v296, %v285
  %v367 = vunpack.c.l.s4 1983009808
  %v368 = vunpack.c.0.s8 %v367
  %v369 = vperm.slane %v365, %v368
  %v370 = vrot.slane %v297, 4
  %v371 = vsel %vm242, %v370, %v295
  %v373 = vunpack.c.l.s4 1983009808
  %v374 = vunpack.c.0.s8 %v373
  %v375 = vperm.slane %v371, %v374
  %v376 = vrot.slane %v364, 4
  %v377 = vsel %vm242, %v376, %v358
  %v378 = vrot.slane %v358, 4
  %v379 = vsel %vm242, %v364, %v378
  %v381 = vunpack.c.l.s4 1934713408
  %v382 = vunpack.c.0.s8 %v381
  %v383 = vperm.slane %v377, %v382
  %v385 = vunpack.c.l.s4 1934713408
  %v386 = vunpack.c.0.s8 %v385
  %v387 = vperm.slane %v379, %v386
  %v388 = vrot.slane %v375, 4
  %v389 = vsel %vm242, %v388, %v369
  %v390 = vrot.slane %v369, 4
  %v391 = vsel %vm242, %v375, %v390
  %v393 = vunpack.c.l.s4 1934713408
  %v394 = vunpack.c.0.s8 %v393
  %v395 = vperm.slane %v389, %v394
  %v397 = vunpack.c.l.s4 1934713408
  %v398 = vunpack.c.0.s8 %v397
  %v399 = vperm.slane %v391, %v398
  %v400 = vrot.slane %v395, 4
  %v401 = vsel %vm242, %v400, %v383
  %v402 = vrot.slane %v383, 4
  %v403 = vsel %vm242, %v395, %v402
  %v404 = vrot.slane %v399, 4
  %v405 = vsel %vm242, %v404, %v387
  %v406 = vrot.slane %v387, 4
  %v407 = vsel %vm242, %v399, %v406
  %v408 = vsel %vm242, %v348, %v329
  %v410 = vunpack.c.l.s4 1983009808
  %v411 = vunpack.c.0.s8 %v410
  %v412 = vperm.slane %v408, %v411
  %v413 = vrot.slane %v349, 4
  %v414 = vsel %vm242, %v413, %v347
  %v416 = vunpack.c.l.s4 1983009808
  %v417 = vunpack.c.0.s8 %v416
  %v418 = vperm.slane %v414, %v417
  %v419 = vsel %vm242, %v352, %v341
  %v421 = vunpack.c.l.s4 1983009808
  %v422 = vunpack.c.0.s8 %v421
  %v423 = vperm.slane %v419, %v422
  %v424 = vrot.slane %v353, 4
  %v425 = vsel %vm242, %v424, %v351
  %v427 = vunpack.c.l.s4 1983009808
  %v428 = vunpack.c.0.s8 %v427
  %v429 = vperm.slane %v425, %v428
  %v430 = vrot.slane %v418, 4
  %v431 = vsel %vm242, %v430, %v412
  %v432 = vrot.slane %v412, 4
  %v433 = vsel %vm242, %v418, %v432
  %v435 = vunpack.c.l.s4 1934713408
  %v436 = vunpack.c.0.s8 %v435
  %v437 = vperm.slane %v431, %v436
  %v439 = vunpack.c.l.s4 1934713408
  %v440 = vunpack.c.0.s8 %v439
  %v441 = vperm.slane %v433, %v440
  %v442 = vrot.slane %v429, 4
  %v443 = vsel %vm242, %v442, %v423
  %v444 = vrot.slane %v423, 4
  %v445 = vsel %vm242, %v429, %v444
  %v447 = vunpack.c.l.s4 1934713408
  %v448 = vunpack.c.0.s8 %v447
  %v449 = vperm.slane %v443, %v448
  %v451 = vunpack.c.l.s4 1934713408
  %v452 = vunpack.c.0.s8 %v451
  %v453 = vperm.slane %v445, %v452
  %v454 = vrot.slane %v449, 4
  %v455 = vsel %vm242, %v454, %v437
  %v456 = vrot.slane %v437, 4
  %v457 = vsel %vm242, %v449, %v456
  %v458 = vrot.slane %v453, 4
  %v459 = vsel %vm242, %v458, %v441
  %v460 = vrot.slane %v441, 4
  %v461 = vsel %vm242, %v453, %v460
  %v462 = vpack.c.bf16 %v401, %v401
  %v463 = vpack.c.bf16 %v455, %v455
  %v464 = vpack.c.bf16 %v403, %v403
  %v465 = vpack.c.bf16 %v457, %v457
  %v466 = vpack.c.bf16 %v405, %v405
  %v467 = vpack.c.bf16 %v459, %v459
  %v468 = vpack.c.bf16 %v407, %v407
  %v469 = vpack.c.bf16 %v461, %v461
  %470 = vrot.lane.b32.xlu0 %v212, 96
  %v471 = vpop.permute.xlu0 %470
  %472 = vrot.lane.b32.xlu0 %v214, 96
  %v473 = vpop.permute.xlu0 %472
  %474 = vrot.lane.b32.xlu0 %v224, 96
  %v475 = vpop.permute.xlu0 %474
  %476 = vrot.lane.b32.xlu0 %v226, 96
  %v477 = vpop.permute.xlu0 %476
  %478 = vrot.lane.b32.xlu0 %v230, 96
  %v479 = vpop.permute.xlu0 %478
  %480 = vrot.lane.b32.xlu0 %v232, 96
  %v481 = vpop.permute.xlu0 %480
  %482 = vrot.lane.b32.xlu0 %v236, 96
  %v483 = vpop.permute.xlu0 %482
  %484 = vrot.lane.b32.xlu0 %v238, 96
  %v485 = vpop.permute.xlu0 %484
  %v494 = vrot.slane %v479, 4
  %v495 = vsel %vm242, %v494, %v471
  %v496 = vrot.slane %v471, 4
  %v497 = vsel %vm242, %v479, %v496
  %v499 = vunpack.c.l.s4 1983009808
  %v500 = vunpack.c.0.s8 %v499
  %v501 = vperm.slane %v495, %v500
  %v503 = vunpack.c.l.s4 1983009808
  %v504 = vunpack.c.0.s8 %v503
  %v505 = vperm.slane %v497, %v504
  %v506 = vrot.slane %v483, 4
  %v507 = vsel %vm242, %v506, %v475
  %v508 = vrot.slane %v475, 4
  %v509 = vsel %vm242, %v483, %v508
  %v511 = vunpack.c.l.s4 1983009808
  %v512 = vunpack.c.0.s8 %v511
  %v513 = vperm.slane %v507, %v512
  %v515 = vunpack.c.l.s4 1983009808
  %v516 = vunpack.c.0.s8 %v515
  %v517 = vperm.slane %v509, %v516
  %v518 = vrot.slane %v513, 4
  %v519 = vsel %vm242, %v518, %v501
  %v520 = vrot.slane %v501, 4
  %v521 = vsel %vm242, %v513, %v520
  %v523 = vunpack.c.l.s4 1934713408
  %v524 = vunpack.c.0.s8 %v523
  %v525 = vperm.slane %v519, %v524
  %v527 = vunpack.c.l.s4 1934713408
  %v528 = vunpack.c.0.s8 %v527
  %v529 = vperm.slane %v521, %v528
  %v530 = vrot.slane %v517, 4
  %v531 = vsel %vm242, %v530, %v505
  %v532 = vrot.slane %v505, 4
  %v533 = vsel %vm242, %v517, %v532
  %v535 = vunpack.c.l.s4 1934713408
  %v536 = vunpack.c.0.s8 %v535
  %v537 = vperm.slane %v531, %v536
  %v539 = vunpack.c.l.s4 1934713408
  %v540 = vunpack.c.0.s8 %v539
  %v541 = vperm.slane %v533, %v540
  %v542 = vrot.slane %v525, 4
  %v543 = vsel %vm242, 0.0, %v542
  %v544 = vrot.slane %v529, 4
  %v545 = vsel %vm242, 0.0, %v544
  %v546 = vrot.slane %v537, 4
  %v547 = vsel %vm242, 0.0, %v546
  %v548 = vrot.slane %v541, 4
  %v549 = vsel %vm242, 0.0, %v548
  %v550 = vrot.slane %v481, 4
  %v551 = vsel %vm242, %v550, %v473
  %v552 = vrot.slane %v473, 4
  %v553 = vsel %vm242, %v481, %v552
  %v555 = vunpack.c.l.s4 1983009808
  %v556 = vunpack.c.0.s8 %v555
  %v557 = vperm.slane %v551, %v556
  %v559 = vunpack.c.l.s4 1983009808
  %v560 = vunpack.c.0.s8 %v559
  %v561 = vperm.slane %v553, %v560
  %v562 = vrot.slane %v485, 4
  %v563 = vsel %vm242, %v562, %v477
  %v564 = vrot.slane %v477, 4
  %v565 = vsel %vm242, %v485, %v564
  %v567 = vunpack.c.l.s4 1983009808
  %v568 = vunpack.c.0.s8 %v567
  %v569 = vperm.slane %v563, %v568
  %v571 = vunpack.c.l.s4 1983009808
  %v572 = vunpack.c.0.s8 %v571
  %v573 = vperm.slane %v565, %v572
  %v574 = vrot.slane %v569, 4
  %v575 = vsel %vm242, %v574, %v557
  %v576 = vrot.slane %v557, 4
  %v577 = vsel %vm242, %v569, %v576
  %v579 = vunpack.c.l.s4 1934713408
  %v580 = vunpack.c.0.s8 %v579
  %v581 = vperm.slane %v575, %v580
  %v583 = vunpack.c.l.s4 1934713408
  %v584 = vunpack.c.0.s8 %v583
  %v585 = vperm.slane %v577, %v584
  %v586 = vrot.slane %v573, 4
  %v587 = vsel %vm242, %v586, %v561
  %v588 = vrot.slane %v561, 4
  %v589 = vsel %vm242, %v573, %v588
  %v591 = vunpack.c.l.s4 1934713408
  %v592 = vunpack.c.0.s8 %v591
  %v593 = vperm.slane %v587, %v592
  %v595 = vunpack.c.l.s4 1934713408
  %v596 = vunpack.c.0.s8 %v595
  %v597 = vperm.slane %v589, %v596
  %v598 = vrot.slane %v581, 4
  %v599 = vsel %vm242, 0.0, %v598
  %v600 = vrot.slane %v585, 4
  %v601 = vsel %vm242, 0.0, %v600
  %v602 = vrot.slane %v593, 4
  %v603 = vsel %vm242, 0.0, %v602
  %v604 = vrot.slane %v597, 4
  %v605 = vsel %vm242, 0.0, %v604
  %v606 = vsel %vm242, %v544, %v525
  %v608 = vunpack.c.l.s4 1983009808
  %v609 = vunpack.c.0.s8 %v608
  %v610 = vperm.slane %v606, %v609
  %v611 = vrot.slane %v545, 4
  %v612 = vsel %vm242, %v611, %v543
  %v614 = vunpack.c.l.s4 1983009808
  %v615 = vunpack.c.0.s8 %v614
  %v616 = vperm.slane %v612, %v615
  %v617 = vsel %vm242, %v548, %v537
  %v619 = vunpack.c.l.s4 1983009808
  %v620 = vunpack.c.0.s8 %v619
  %v621 = vperm.slane %v617, %v620
  %v622 = vrot.slane %v549, 4
  %v623 = vsel %vm242, %v622, %v547
  %v625 = vunpack.c.l.s4 1983009808
  %v626 = vunpack.c.0.s8 %v625
  %v627 = vperm.slane %v623, %v626
  %v628 = vrot.slane %v616, 4
  %v629 = vsel %vm242, %v628, %v610
  %v630 = vrot.slane %v610, 4
  %v631 = vsel %vm242, %v616, %v630
  %v633 = vunpack.c.l.s4 1934713408
  %v634 = vunpack.c.0.s8 %v633
  %v635 = vperm.slane %v629, %v634
  %v637 = vunpack.c.l.s4 1934713408
  %v638 = vunpack.c.0.s8 %v637
  %v639 = vperm.slane %v631, %v638
  %v640 = vrot.slane %v627, 4
  %v641 = vsel %vm242, %v640, %v621
  %v642 = vrot.slane %v621, 4
  %v643 = vsel %vm242, %v627, %v642
  %v645 = vunpack.c.l.s4 1934713408
  %v646 = vunpack.c.0.s8 %v645
  %v647 = vperm.slane %v641, %v646
  %v649 = vunpack.c.l.s4 1934713408
  %v650 = vunpack.c.0.s8 %v649
  %v651 = vperm.slane %v643, %v650
  %v652 = vrot.slane %v647, 4
  %v653 = vsel %vm242, %v652, %v635
  %v654 = vrot.slane %v635, 4
  %v655 = vsel %vm242, %v647, %v654
  %v656 = vrot.slane %v651, 4
  %v657 = vsel %vm242, %v656, %v639
  %v658 = vrot.slane %v639, 4
  %v659 = vsel %vm242, %v651, %v658
  %v660 = vsel %vm242, %v600, %v581
  %v662 = vunpack.c.l.s4 1983009808
  %v663 = vunpack.c.0.s8 %v662
  %v664 = vperm.slane %v660, %v663
  %v665 = vrot.slane %v601, 4
  %v666 = vsel %vm242, %v665, %v599
  %v668 = vunpack.c.l.s4 1983009808
  %v669 = vunpack.c.0.s8 %v668
  %v670 = vperm.slane %v666, %v669
  %v671 = vsel %vm242, %v604, %v593
  %v673 = vunpack.c.l.s4 1983009808
  %v674 = vunpack.c.0.s8 %v673
  %v675 = vperm.slane %v671, %v674
  %v676 = vrot.slane %v605, 4
  %v677 = vsel %vm242, %v676, %v603
  %v679 = vunpack.c.l.s4 1983009808
  %v680 = vunpack.c.0.s8 %v679
  %v681 = vperm.slane %v677, %v680
  %v682 = vrot.slane %v670, 4
  %v683 = vsel %vm242, %v682, %v664
  %v684 = vrot.slane %v664, 4
  %v685 = vsel %vm242, %v670, %v684
  %v687 = vunpack.c.l.s4 1934713408
  %v688 = vunpack.c.0.s8 %v687
  %v689 = vperm.slane %v683, %v688
  %v691 = vunpack.c.l.s4 1934713408
  %v692 = vunpack.c.0.s8 %v691
  %v693 = vperm.slane %v685, %v692
  %v694 = vrot.slane %v681, 4
  %v695 = vsel %vm242, %v694, %v675
  %v696 = vrot.slane %v675, 4
  %v697 = vsel %vm242, %v681, %v696
  %v699 = vunpack.c.l.s4 1934713408
  %v700 = vunpack.c.0.s8 %v699
  %v701 = vperm.slane %v695, %v700
  %v703 = vunpack.c.l.s4 1934713408
  %v704 = vunpack.c.0.s8 %v703
  %v705 = vperm.slane %v697, %v704
  %v706 = vrot.slane %v701, 4
  %v707 = vsel %vm242, %v706, %v689
  %v708 = vrot.slane %v689, 4
  %v709 = vsel %vm242, %v701, %v708
  %v710 = vrot.slane %v705, 4
  %v711 = vsel %vm242, %v710, %v693
  %v712 = vrot.slane %v693, 4
  %v713 = vsel %vm242, %v705, %v712
  %v714 = vpack.c.bf16 %v653, %v653
  %v715 = vpack.c.bf16 %v707, %v707
  %v716 = vpack.c.bf16 %v655, %v655
  %v717 = vpack.c.bf16 %v709, %v709
  %v718 = vpack.c.bf16 %v657, %v657
  %v719 = vpack.c.bf16 %v711, %v711
  %v720 = vpack.c.bf16 %v659, %v659
  %v721 = vpack.c.bf16 %v713, %v713
  %722 = vrot.lane.b32.xlu0 %v212, 64
  %v723 = vpop.permute.xlu0 %722
  %724 = vrot.lane.b32.xlu0 %v214, 64
  %v725 = vpop.permute.xlu0 %724
  %726 = vrot.lane.b32.xlu0 %v224, 64
  %v727 = vpop.permute.xlu0 %726
  %728 = vrot.lane.b32.xlu0 %v226, 64
  %v729 = vpop.permute.xlu0 %728
  %730 = vrot.lane.b32.xlu0 %v230, 64
  %v731 = vpop.permute.xlu0 %730
  %732 = vrot.lane.b32.xlu0 %v232, 64
  %v733 = vpop.permute.xlu0 %732
  %734 = vrot.lane.b32.xlu0 %v236, 64
  %v735 = vpop.permute.xlu0 %734
  %736 = vrot.lane.b32.xlu0 %v238, 64
  %v737 = vpop.permute.xlu0 %736
  %v746 = vrot.slane %v731, 4
  %v747 = vsel %vm242, %v746, %v723
  %v748 = vrot.slane %v723, 4
  %v749 = vsel %vm242, %v731, %v748
  %v751 = vunpack.c.l.s4 1983009808
  %v752 = vunpack.c.0.s8 %v751
  %v753 = vperm.slane %v747, %v752
  %v755 = vunpack.c.l.s4 1983009808
  %v756 = vunpack.c.0.s8 %v755
  %v757 = vperm.slane %v749, %v756
  %v758 = vrot.slane %v735, 4
  %v759 = vsel %vm242, %v758, %v727
  %v760 = vrot.slane %v727, 4
  %v761 = vsel %vm242, %v735, %v760
  %v763 = vunpack.c.l.s4 1983009808
  %v764 = vunpack.c.0.s8 %v763
  %v765 = vperm.slane %v759, %v764
  %v767 = vunpack.c.l.s4 1983009808
  %v768 = vunpack.c.0.s8 %v767
  %v769 = vperm.slane %v761, %v768
  %v770 = vrot.slane %v765, 4
  %v771 = vsel %vm242, %v770, %v753
  %v772 = vrot.slane %v753, 4
  %v773 = vsel %vm242, %v765, %v772
  %v775 = vunpack.c.l.s4 1934713408
  %v776 = vunpack.c.0.s8 %v775
  %v777 = vperm.slane %v771, %v776
  %v779 = vunpack.c.l.s4 1934713408
  %v780 = vunpack.c.0.s8 %v779
  %v781 = vperm.slane %v773, %v780
  %v782 = vrot.slane %v769, 4
  %v783 = vsel %vm242, %v782, %v757
  %v784 = vrot.slane %v757, 4
  %v785 = vsel %vm242, %v769, %v784
  %v787 = vunpack.c.l.s4 1934713408
  %v788 = vunpack.c.0.s8 %v787
  %v789 = vperm.slane %v783, %v788
  %v791 = vunpack.c.l.s4 1934713408
  %v792 = vunpack.c.0.s8 %v791
  %v793 = vperm.slane %v785, %v792
  %v794 = vrot.slane %v777, 4
  %v795 = vsel %vm242, 0.0, %v794
  %v796 = vrot.slane %v781, 4
  %v797 = vsel %vm242, 0.0, %v796
  %v798 = vrot.slane %v789, 4
  %v799 = vsel %vm242, 0.0, %v798
  %v800 = vrot.slane %v793, 4
  %v801 = vsel %vm242, 0.0, %v800
  %v802 = vrot.slane %v733, 4
  %v803 = vsel %vm242, %v802, %v725
  %v804 = vrot.slane %v725, 4
  %v805 = vsel %vm242, %v733, %v804
  %v807 = vunpack.c.l.s4 1983009808
  %v808 = vunpack.c.0.s8 %v807
  %v809 = vperm.slane %v803, %v808
  %v811 = vunpack.c.l.s4 1983009808
  %v812 = vunpack.c.0.s8 %v811
  %v813 = vperm.slane %v805, %v812
  %v814 = vrot.slane %v737, 4
  %v815 = vsel %vm242, %v814, %v729
  %v816 = vrot.slane %v729, 4
  %v817 = vsel %vm242, %v737, %v816
  %v819 = vunpack.c.l.s4 1983009808
  %v820 = vunpack.c.0.s8 %v819
  %v821 = vperm.slane %v815, %v820
  %v823 = vunpack.c.l.s4 1983009808
  %v824 = vunpack.c.0.s8 %v823
  %v825 = vperm.slane %v817, %v824
  %v826 = vrot.slane %v821, 4
  %v827 = vsel %vm242, %v826, %v809
  %v828 = vrot.slane %v809, 4
  %v829 = vsel %vm242, %v821, %v828
  %v831 = vunpack.c.l.s4 1934713408
  %v832 = vunpack.c.0.s8 %v831
  %v833 = vperm.slane %v827, %v832
  %v835 = vunpack.c.l.s4 1934713408
  %v836 = vunpack.c.0.s8 %v835
  %v837 = vperm.slane %v829, %v836
  %v838 = vrot.slane %v825, 4
  %v839 = vsel %vm242, %v838, %v813
  %v840 = vrot.slane %v813, 4
  %v841 = vsel %vm242, %v825, %v840
  %v843 = vunpack.c.l.s4 1934713408
  %v844 = vunpack.c.0.s8 %v843
  %v845 = vperm.slane %v839, %v844
  %v847 = vunpack.c.l.s4 1934713408
  %v848 = vunpack.c.0.s8 %v847
  %v849 = vperm.slane %v841, %v848
  %v850 = vrot.slane %v833, 4
  %v851 = vsel %vm242, 0.0, %v850
  %v852 = vrot.slane %v837, 4
  %v853 = vsel %vm242, 0.0, %v852
  %v854 = vrot.slane %v845, 4
  %v855 = vsel %vm242, 0.0, %v854
  %v856 = vrot.slane %v849, 4
  %v857 = vsel %vm242, 0.0, %v856
  %v858 = vsel %vm242, %v796, %v777
  %v860 = vunpack.c.l.s4 1983009808
  %v861 = vunpack.c.0.s8 %v860
  %v862 = vperm.slane %v858, %v861
  %v863 = vrot.slane %v797, 4
  %v864 = vsel %vm242, %v863, %v795
  %v866 = vunpack.c.l.s4 1983009808
  %v867 = vunpack.c.0.s8 %v866
  %v868 = vperm.slane %v864, %v867
  %v869 = vsel %vm242, %v800, %v789
  %v871 = vunpack.c.l.s4 1983009808
  %v872 = vunpack.c.0.s8 %v871
  %v873 = vperm.slane %v869, %v872
  %v874 = vrot.slane %v801, 4
  %v875 = vsel %vm242, %v874, %v799
  %v877 = vunpack.c.l.s4 1983009808
  %v878 = vunpack.c.0.s8 %v877
  %v879 = vperm.slane %v875, %v878
  %v880 = vrot.slane %v868, 4
  %v881 = vsel %vm242, %v880, %v862
  %v882 = vrot.slane %v862, 4
  %v883 = vsel %vm242, %v868, %v882
  %v885 = vunpack.c.l.s4 1934713408
  %v886 = vunpack.c.0.s8 %v885
  %v887 = vperm.slane %v881, %v886
  %v889 = vunpack.c.l.s4 1934713408
  %v890 = vunpack.c.0.s8 %v889
  %v891 = vperm.slane %v883, %v890
  %v892 = vrot.slane %v879, 4
  %v893 = vsel %vm242, %v892, %v873
  %v894 = vrot.slane %v873, 4
  %v895 = vsel %vm242, %v879, %v894
  %v897 = vunpack.c.l.s4 1934713408
  %v898 = vunpack.c.0.s8 %v897
  %v899 = vperm.slane %v893, %v898
  %v901 = vunpack.c.l.s4 1934713408
  %v902 = vunpack.c.0.s8 %v901
  %v903 = vperm.slane %v895, %v902
  %v904 = vrot.slane %v899, 4
  %v905 = vsel %vm242, %v904, %v887
  %v906 = vrot.slane %v887, 4
  %v907 = vsel %vm242, %v899, %v906
  %v908 = vrot.slane %v903, 4
  %v909 = vsel %vm242, %v908, %v891
  %v910 = vrot.slane %v891, 4
  %v911 = vsel %vm242, %v903, %v910
  %v912 = vsel %vm242, %v852, %v833
  %v914 = vunpack.c.l.s4 1983009808
  %v915 = vunpack.c.0.s8 %v914
  %v916 = vperm.slane %v912, %v915
  %v917 = vrot.slane %v853, 4
  %v918 = vsel %vm242, %v917, %v851
  %v920 = vunpack.c.l.s4 1983009808
  %v921 = vunpack.c.0.s8 %v920
  %v922 = vperm.slane %v918, %v921
  %v923 = vsel %vm242, %v856, %v845
  %v925 = vunpack.c.l.s4 1983009808
  %v926 = vunpack.c.0.s8 %v925
  %v927 = vperm.slane %v923, %v926
  %v928 = vrot.slane %v857, 4
  %v929 = vsel %vm242, %v928, %v855
  %v931 = vunpack.c.l.s4 1983009808
  %v932 = vunpack.c.0.s8 %v931
  %v933 = vperm.slane %v929, %v932
  %v934 = vrot.slane %v922, 4
  %v935 = vsel %vm242, %v934, %v916
  %v936 = vrot.slane %v916, 4
  %v937 = vsel %vm242, %v922, %v936
  %v939 = vunpack.c.l.s4 1934713408
  %v940 = vunpack.c.0.s8 %v939
  %v941 = vperm.slane %v935, %v940
  %v943 = vunpack.c.l.s4 1934713408
  %v944 = vunpack.c.0.s8 %v943
  %v945 = vperm.slane %v937, %v944
  %v946 = vrot.slane %v933, 4
  %v947 = vsel %vm242, %v946, %v927
  %v948 = vrot.slane %v927, 4
  %v949 = vsel %vm242, %v933, %v948
  %v951 = vunpack.c.l.s4 1934713408
  %v952 = vunpack.c.0.s8 %v951
  %v953 = vperm.slane %v947, %v952
  %v955 = vunpack.c.l.s4 1934713408
  %v956 = vunpack.c.0.s8 %v955
  %v957 = vperm.slane %v949, %v956
  %v958 = vrot.slane %v953, 4
  %v959 = vsel %vm242, %v958, %v941
  %v960 = vrot.slane %v941, 4
  %v961 = vsel %vm242, %v953, %v960
  %v962 = vrot.slane %v957, 4
  %v963 = vsel %vm242, %v962, %v945
  %v964 = vrot.slane %v945, 4
  %v965 = vsel %vm242, %v957, %v964
  %v966 = vpack.c.bf16 %v905, %v905
  %v967 = vpack.c.bf16 %v959, %v959
  %v968 = vpack.c.bf16 %v907, %v907
  %v969 = vpack.c.bf16 %v961, %v961
  %v970 = vpack.c.bf16 %v909, %v909
  %v971 = vpack.c.bf16 %v963, %v963
  %v972 = vpack.c.bf16 %v911, %v911
  %v973 = vpack.c.bf16 %v965, %v965
  %v976 = vunpack.c.l.b16 %v462
  %v977 = vunpack.c.l.b16 %v463
  %v978 = vpack.c.b16 %v977, %v976
  %v981 = vunpack.c.l.b16 %v714
  %v982 = vunpack.c.l.b16 %v715
  %v983 = vpack.c.b16 %v982, %v981
  %vm984 = vcmask 64512
  %v986 = vsel %vm984, %v978, 0
  %v989 = vsel %vm984, %v983, 0
  %991 = vmatpush.bf16.xpose.msra.mxu0 0
  %992 = vmatpush.bf16.xpose.msra.mxu0 0
  %993 = vmatpush.bf16.xpose.msra.mxu0 0
  %994 = vmatpush.bf16.xpose.msra.mxu0 0
  %995 = vmatpush.bf16.xpose.msra.mxu0 0
  %996 = vmatpush.bf16.xpose.msra.mxu0 0
  %997 = vmatpush.bf16.xpose.msra.mxu0 0
  %998 = vmatpush.bf16.xpose.msra.mxu0 %v989
  %999 = vmatmul.bf16.gmra.mxu0 %v986
  %v1000 = vpop.f32.mrf.mxu0
  %v1001 = vadd.f32 0.0, %v1000
  %v1002 = vpop.f32.mrf.mxu0
  %v1003 = vadd.f32 0.0, %v1002
  %1004 = vdwg.mxu0
  %v1007 = vunpack.c.l.b16 %v464
  %v1008 = vunpack.c.l.b16 %v465
  %v1009 = vpack.c.b16 %v1008, %v1007
  %v1012 = vunpack.c.l.b16 %v716
  %v1013 = vunpack.c.l.b16 %v717
  %v1014 = vpack.c.b16 %v1013, %v1012
  %v1016 = vsel %vm984, %v1009, 0
  %v1019 = vsel %vm984, %v1014, 0
  %1021 = vmatpush.bf16.xpose.msra.mxu0 0
  %1022 = vmatpush.bf16.xpose.msra.mxu0 0
  %1023 = vmatpush.bf16.xpose.msra.mxu0 0
  %1024 = vmatpush.bf16.xpose.msra.mxu0 0
  %1025 = vmatpush.bf16.xpose.msra.mxu0 0
  %1026 = vmatpush.bf16.xpose.msra.mxu0 0
  %1027 = vmatpush.bf16.xpose.msra.mxu0 0
  %1028 = vmatpush.bf16.xpose.msra.mxu0 %v1019
  %1029 = vmatmul.bf16.gmra.mxu0 %v1016
  %v1030 = vpop.f32.mrf.mxu0
  %v1031 = vadd.f32 0.0, %v1030
  %v1032 = vpop.f32.mrf.mxu0
  %v1033 = vadd.f32 0.0, %v1032
  %1034 = vdwg.mxu0
  %v1037 = vunpack.c.l.b16 %v466
  %v1038 = vunpack.c.l.b16 %v467
  %v1039 = vpack.c.b16 %v1038, %v1037
  %v1042 = vunpack.c.l.b16 %v718
  %v1043 = vunpack.c.l.b16 %v719
  %v1044 = vpack.c.b16 %v1043, %v1042
  %v1046 = vsel %vm984, %v1039, 0
  %v1049 = vsel %vm984, %v1044, 0
  %1051 = vmatpush.bf16.xpose.msra.mxu0 0
  %1052 = vmatpush.bf16.xpose.msra.mxu0 0
  %1053 = vmatpush.bf16.xpose.msra.mxu0 0
  %1054 = vmatpush.bf16.xpose.msra.mxu0 0
  %1055 = vmatpush.bf16.xpose.msra.mxu0 0
  %1056 = vmatpush.bf16.xpose.msra.mxu0 0
  %1057 = vmatpush.bf16.xpose.msra.mxu0 0
  %1058 = vmatpush.bf16.xpose.msra.mxu0 %v1049
  %1059 = vmatmul.bf16.gmra.mxu0 %v1046
  %v1060 = vpop.f32.mrf.mxu0
  %v1061 = vadd.f32 0.0, %v1060
  %v1062 = vpop.f32.mrf.mxu0
  %v1063 = vadd.f32 0.0, %v1062
  %1064 = vdwg.mxu0
  %v1067 = vunpack.c.l.b16 %v468
  %v1068 = vunpack.c.l.b16 %v469
  %v1069 = vpack.c.b16 %v1068, %v1067
  %v1072 = vunpack.c.l.b16 %v720
  %v1073 = vunpack.c.l.b16 %v721
  %v1074 = vpack.c.b16 %v1073, %v1072
  %v1076 = vsel %vm984, %v1069, 0
  %v1079 = vsel %vm984, %v1074, 0
  %1081 = vmatpush.bf16.xpose.msra.mxu0 0
  %1082 = vmatpush.bf16.xpose.msra.mxu0 0
  %1083 = vmatpush.bf16.xpose.msra.mxu0 0
  %1084 = vmatpush.bf16.xpose.msra.mxu0 0
  %1085 = vmatpush.bf16.xpose.msra.mxu0 0
  %1086 = vmatpush.bf16.xpose.msra.mxu0 0
  %1087 = vmatpush.bf16.xpose.msra.mxu0 0
  %1088 = vmatpush.bf16.xpose.msra.mxu0 %v1079
  %1089 = vmatmul.bf16.gmra.mxu0 %v1076
  %v1090 = vpop.f32.mrf.mxu0
  %v1091 = vadd.f32 0.0, %v1090
  %v1092 = vpop.f32.mrf.mxu0
  %v1093 = vadd.f32 0.0, %v1092
  %1094 = vdwg.mxu0
  %v1095 = vmul.f32 %v1001, 0.35355338
  %v1096 = vmul.f32 %v1003, 0.35355338
  %v1097 = vmul.f32 %v1031, 0.35355338
  %v1098 = vmul.f32 %v1033, 0.35355338
  %v1099 = vmul.f32 %v1061, 0.35355338
  %v1100 = vmul.f32 %v1063, 0.35355338
  %v1101 = vmul.f32 %v1091, 0.35355338
  %v1102 = vmul.f32 %v1093, 0.35355338
  %vm1103 = vcmask 130048
  %v1104 = vsel %vm1103, %v1095, -inf
  %1105 = vmax.xlane.f32.xlu0 %v1104
  %v1106 = vpop.xlane.xlu0 %1105
  %v1107 = vsel %vm1103, %v1096, -inf
  %1108 = vmax.xlane.f32.xlu0 %v1107
  %v1109 = vpop.xlane.xlu0 %1108
  %v1110 = vsel %vm1103, %v1097, -inf
  %1111 = vmax.xlane.f32.xlu0 %v1110
  %v1112 = vpop.xlane.xlu0 %1111
  %v1113 = vsel %vm1103, %v1098, -inf
  %1114 = vmax.xlane.f32.xlu0 %v1113
  %v1115 = vpop.xlane.xlu0 %1114
  %v1116 = vsel %vm1103, %v1099, -inf
  %1117 = vmax.xlane.f32.xlu0 %v1116
  %v1118 = vpop.xlane.xlu0 %1117
  %v1119 = vsel %vm1103, %v1100, -inf
  %1120 = vmax.xlane.f32.xlu0 %v1119
  %v1121 = vpop.xlane.xlu0 %1120
  %v1122 = vsel %vm1103, %v1101, -inf
  %1123 = vmax.xlane.f32.xlu0 %v1122
  %v1124 = vpop.xlane.xlu0 %1123
  %v1125 = vsel %vm1103, %v1102, -inf
  %1126 = vmax.xlane.f32.xlu0 %v1125
  %v1127 = vpop.xlane.xlu0 %1126
  %v1128 = vsub.f32 %v1095, %v1106
  %v1129 = vsub.f32 %v1096, %v1109
  %v1130 = vsub.f32 %v1097, %v1112
  %v1131 = vsub.f32 %v1098, %v1115
  %v1132 = vsub.f32 %v1099, %v1118
  %v1133 = vsub.f32 %v1100, %v1121
  %v1134 = vsub.f32 %v1101, %v1124
  %v1135 = vsub.f32 %v1102, %v1127
  %v1136 = vmul.f32 %v1128, 1.442695
  %v1137 = vpow.pop %v1136
  %v1138 = vmul.f32 %v1129, 1.442695
  %v1139 = vpow.pop %v1138
  %v1140 = vmul.f32 %v1130, 1.442695
  %v1141 = vpow.pop %v1140
  %v1142 = vmul.f32 %v1131, 1.442695
  %v1143 = vpow.pop %v1142
  %v1144 = vmul.f32 %v1132, 1.442695
  %v1145 = vpow.pop %v1144
  %v1146 = vmul.f32 %v1133, 1.442695
  %v1147 = vpow.pop %v1146
  %v1148 = vmul.f32 %v1134, 1.442695
  %v1149 = vpow.pop %v1148
  %v1150 = vmul.f32 %v1135, 1.442695
  %v1151 = vpow.pop %v1150
  %v1152 = vsel %vm1103, %v1137, 0.0
  %1153 = vadd.xlane.f32.xlu0 %v1152
  %v1154 = vpop.xlane.xlu0 %1153
  %v1155 = vsel %vm1103, %v1139, 0.0
  %1156 = vadd.xlane.f32.xlu0 %v1155
  %v1157 = vpop.xlane.xlu0 %1156
  %v1158 = vsel %vm1103, %v1141, 0.0
  %1159 = vadd.xlane.f32.xlu0 %v1158
  %v1160 = vpop.xlane.xlu0 %1159
  %v1161 = vsel %vm1103, %v1143, 0.0
  %1162 = vadd.xlane.f32.xlu0 %v1161
  %v1163 = vpop.xlane.xlu0 %1162
  %v1164 = vsel %vm1103, %v1145, 0.0
  %1165 = vadd.xlane.f32.xlu0 %v1164
  %v1166 = vpop.xlane.xlu0 %1165
  %v1167 = vsel %vm1103, %v1147, 0.0
  %1168 = vadd.xlane.f32.xlu0 %v1167
  %v1169 = vpop.xlane.xlu0 %1168
  %v1170 = vsel %vm1103, %v1149, 0.0
  %1171 = vadd.xlane.f32.xlu0 %v1170
  %v1172 = vpop.xlane.xlu0 %1171
  %v1173 = vsel %vm1103, %v1151, 0.0
  %1174 = vadd.xlane.f32.xlu0 %v1173
  %v1175 = vpop.xlane.xlu0 %1174
  %v1176 = vrcp.pop %v1154
  %v1177 = vrcp.pop %v1157
  %v1178 = vrcp.pop %v1160
  %v1179 = vrcp.pop %v1163
  %v1180 = vrcp.pop %v1166
  %v1181 = vrcp.pop %v1169
  %v1182 = vrcp.pop %v1172
  %v1183 = vrcp.pop %v1175
  %v1184 = vmul.f32 %v1137, %v1176
  %v1185 = vmul.f32 %v1139, %v1177
  %v1186 = vmul.f32 %v1141, %v1178
  %v1187 = vmul.f32 %v1143, %v1179
  %v1188 = vmul.f32 %v1145, %v1180
  %v1189 = vmul.f32 %v1147, %v1181
  %v1190 = vmul.f32 %v1149, %v1182
  %v1191 = vmul.f32 %v1151, %v1183
  %v1192 = vpack.c.bf16 %v1184, %v1184
  %v1193 = vpack.c.bf16 %v1185, %v1185
  %v1194 = vpack.c.bf16 %v1186, %v1186
  %v1195 = vpack.c.bf16 %v1187, %v1187
  %v1196 = vpack.c.bf16 %v1188, %v1188
  %v1197 = vpack.c.bf16 %v1189, %v1189
  %v1198 = vpack.c.bf16 %v1190, %v1190
  %v1199 = vpack.c.bf16 %v1191, %v1191
  %v1202 = vunpack.c.l.b16 %v1192
  %v1203 = vunpack.c.l.b16 %v1193
  %v1204 = vpack.c.b16 %v1203, %v1202
  %v1207 = vunpack.c.l.b16 %v966
  %v1208 = vunpack.c.l.b16 %v967
  %v1209 = vpack.c.b16 %v1208, %v1207
  %v1212 = vsel %vm1103, %v1204, 0
  %1214 = vmatpush.bf16.msra.mxu0 0
  %1215 = vmatpush.bf16.msra.mxu0 0
  %1216 = vmatpush.bf16.msra.mxu0 0
  %1217 = vmatpush.bf16.msra.mxu0 0
  %1218 = vmatpush.bf16.msra.mxu0 0
  %1219 = vmatpush.bf16.msra.mxu0 0
  %1220 = vmatpush.bf16.msra.mxu0 0
  %1221 = vmatpush.bf16.msra.mxu0 %v1209
  %1222 = vmatmul.bf16.gmra.mxu0 %v1212
  %v1223 = vpop.f32.mrf.mxu0
  %v1224 = vadd.f32 0.0, %v1223
  %v1225 = vpop.f32.mrf.mxu0
  %v1226 = vadd.f32 0.0, %v1225
  %1227 = vdwg.mxu0
  %v1230 = vunpack.c.l.b16 %v1194
  %v1231 = vunpack.c.l.b16 %v1195
  %v1232 = vpack.c.b16 %v1231, %v1230
  %v1235 = vunpack.c.l.b16 %v968
  %v1236 = vunpack.c.l.b16 %v969
  %v1237 = vpack.c.b16 %v1236, %v1235
  %v1240 = vsel %vm1103, %v1232, 0
  %1242 = vmatpush.bf16.msra.mxu0 0
  %1243 = vmatpush.bf16.msra.mxu0 0
  %1244 = vmatpush.bf16.msra.mxu0 0
  %1245 = vmatpush.bf16.msra.mxu0 0
  %1246 = vmatpush.bf16.msra.mxu0 0
  %1247 = vmatpush.bf16.msra.mxu0 0
  %1248 = vmatpush.bf16.msra.mxu0 0
  %1249 = vmatpush.bf16.msra.mxu0 %v1237
  %1250 = vmatmul.bf16.gmra.mxu0 %v1240
  %v1251 = vpop.f32.mrf.mxu0
  %v1252 = vadd.f32 0.0, %v1251
  %v1253 = vpop.f32.mrf.mxu0
  %v1254 = vadd.f32 0.0, %v1253
  %1255 = vdwg.mxu0
  %v1258 = vunpack.c.l.b16 %v1196
  %v1259 = vunpack.c.l.b16 %v1197
  %v1260 = vpack.c.b16 %v1259, %v1258
  %v1263 = vunpack.c.l.b16 %v970
  %v1264 = vunpack.c.l.b16 %v971
  %v1265 = vpack.c.b16 %v1264, %v1263
  %v1268 = vsel %vm1103, %v1260, 0
  %1270 = vmatpush.bf16.msra.mxu0 0
  %1271 = vmatpush.bf16.msra.mxu0 0
  %1272 = vmatpush.bf16.msra.mxu0 0
  %1273 = vmatpush.bf16.msra.mxu0 0
  %1274 = vmatpush.bf16.msra.mxu0 0
  %1275 = vmatpush.bf16.msra.mxu0 0
  %1276 = vmatpush.bf16.msra.mxu0 0
  %1277 = vmatpush.bf16.msra.mxu0 %v1265
  %1278 = vmatmul.bf16.gmra.mxu0 %v1268
  %v1279 = vpop.f32.mrf.mxu0
  %v1280 = vadd.f32 0.0, %v1279
  %v1281 = vpop.f32.mrf.mxu0
  %v1282 = vadd.f32 0.0, %v1281
  %1283 = vdwg.mxu0
  %v1286 = vunpack.c.l.b16 %v1198
  %v1287 = vunpack.c.l.b16 %v1199
  %v1288 = vpack.c.b16 %v1287, %v1286
  %v1291 = vunpack.c.l.b16 %v972
  %v1292 = vunpack.c.l.b16 %v973
  %v1293 = vpack.c.b16 %v1292, %v1291
  %v1296 = vsel %vm1103, %v1288, 0
  %1298 = vmatpush.bf16.msra.mxu0 0
  %1299 = vmatpush.bf16.msra.mxu0 0
  %1300 = vmatpush.bf16.msra.mxu0 0
  %1301 = vmatpush.bf16.msra.mxu0 0
  %1302 = vmatpush.bf16.msra.mxu0 0
  %1303 = vmatpush.bf16.msra.mxu0 0
  %1304 = vmatpush.bf16.msra.mxu0 0
  %1305 = vmatpush.bf16.msra.mxu0 %v1293
  %1306 = vmatmul.bf16.gmra.mxu0 %v1296
  %v1307 = vpop.f32.mrf.mxu0
  %v1308 = vadd.f32 0.0, %v1307
  %v1309 = vpop.f32.mrf.mxu0
  %v1310 = vadd.f32 0.0, %v1309
  %1311 = vdwg.mxu0
  %v1312 = vrot.slane %v1280, 4
  %v1313 = vsel %vm242, %v1312, %v1224
  %v1314 = vrot.slane %v1224, 4
  %v1315 = vsel %vm242, %v1280, %v1314
  %v1317 = vunpack.c.l.s4 1983009808
  %v1318 = vunpack.c.0.s8 %v1317
  %v1319 = vperm.slane %v1313, %v1318
  %v1321 = vunpack.c.l.s4 1983009808
  %v1322 = vunpack.c.0.s8 %v1321
  %v1323 = vperm.slane %v1315, %v1322
  %v1324 = vrot.slane %v1308, 4
  %v1325 = vsel %vm242, %v1324, %v1252
  %v1326 = vrot.slane %v1252, 4
  %v1327 = vsel %vm242, %v1308, %v1326
  %v1329 = vunpack.c.l.s4 1983009808
  %v1330 = vunpack.c.0.s8 %v1329
  %v1331 = vperm.slane %v1325, %v1330
  %v1333 = vunpack.c.l.s4 1983009808
  %v1334 = vunpack.c.0.s8 %v1333
  %v1335 = vperm.slane %v1327, %v1334
  %v1336 = vrot.slane %v1331, 4
  %v1337 = vsel %vm242, %v1336, %v1319
  %v1338 = vrot.slane %v1319, 4
  %v1339 = vsel %vm242, %v1331, %v1338
  %v1341 = vunpack.c.l.s4 1934713408
  %v1342 = vunpack.c.0.s8 %v1341
  %v1343 = vperm.slane %v1337, %v1342
  %v1345 = vunpack.c.l.s4 1934713408
  %v1346 = vunpack.c.0.s8 %v1345
  %v1347 = vperm.slane %v1339, %v1346
  %v1348 = vrot.slane %v1335, 4
  %v1349 = vsel %vm242, %v1348, %v1323
  %v1350 = vrot.slane %v1323, 4
  %v1351 = vsel %vm242, %v1335, %v1350
  %v1353 = vunpack.c.l.s4 1934713408
  %v1354 = vunpack.c.0.s8 %v1353
  %v1355 = vperm.slane %v1349, %v1354
  %v1357 = vunpack.c.l.s4 1934713408
  %v1358 = vunpack.c.0.s8 %v1357
  %v1359 = vperm.slane %v1351, %v1358
  %v1360 = vrot.slane %v1343, 4
  %v1361 = vsel %vm242, 0.0, %v1360
  %v1362 = vrot.slane %v1347, 4
  %v1363 = vsel %vm242, 0.0, %v1362
  %v1364 = vrot.slane %v1355, 4
  %v1365 = vsel %vm242, 0.0, %v1364
  %v1366 = vrot.slane %v1359, 4
  %v1367 = vsel %vm242, 0.0, %v1366
  %v1368 = vrot.slane %v1282, 4
  %v1369 = vsel %vm242, %v1368, %v1226
  %v1370 = vrot.slane %v1226, 4
  %v1371 = vsel %vm242, %v1282, %v1370
  %v1373 = vunpack.c.l.s4 1983009808
  %v1374 = vunpack.c.0.s8 %v1373
  %v1375 = vperm.slane %v1369, %v1374
  %v1377 = vunpack.c.l.s4 1983009808
  %v1378 = vunpack.c.0.s8 %v1377
  %v1379 = vperm.slane %v1371, %v1378
  %v1380 = vrot.slane %v1310, 4
  %v1381 = vsel %vm242, %v1380, %v1254
  %v1382 = vrot.slane %v1254, 4
  %v1383 = vsel %vm242, %v1310, %v1382
  %v1385 = vunpack.c.l.s4 1983009808
  %v1386 = vunpack.c.0.s8 %v1385
  %v1387 = vperm.slane %v1381, %v1386
  %v1389 = vunpack.c.l.s4 1983009808
  %v1390 = vunpack.c.0.s8 %v1389
  %v1391 = vperm.slane %v1383, %v1390
  %v1392 = vrot.slane %v1387, 4
  %v1393 = vsel %vm242, %v1392, %v1375
  %v1394 = vrot.slane %v1375, 4
  %v1395 = vsel %vm242, %v1387, %v1394
  %v1397 = vunpack.c.l.s4 1934713408
  %v1398 = vunpack.c.0.s8 %v1397
  %v1399 = vperm.slane %v1393, %v1398
  %v1401 = vunpack.c.l.s4 1934713408
  %v1402 = vunpack.c.0.s8 %v1401
  %v1403 = vperm.slane %v1395, %v1402
  %v1404 = vrot.slane %v1391, 4
  %v1405 = vsel %vm242, %v1404, %v1379
  %v1406 = vrot.slane %v1379, 4
  %v1407 = vsel %vm242, %v1391, %v1406
  %v1409 = vunpack.c.l.s4 1934713408
  %v1410 = vunpack.c.0.s8 %v1409
  %v1411 = vperm.slane %v1405, %v1410
  %v1413 = vunpack.c.l.s4 1934713408
  %v1414 = vunpack.c.0.s8 %v1413
  %v1415 = vperm.slane %v1407, %v1414
  %v1416 = vrot.slane %v1399, 4
  %v1417 = vsel %vm242, 0.0, %v1416
  %v1418 = vrot.slane %v1403, 4
  %v1419 = vsel %vm242, 0.0, %v1418
  %v1420 = vrot.slane %v1411, 4
  %v1421 = vsel %vm242, 0.0, %v1420
  %v1422 = vrot.slane %v1415, 4
  %v1423 = vsel %vm242, 0.0, %v1422
  %v1424 = vsel %vm242, %v1362, %v1343
  %v1426 = vunpack.c.l.s4 1983009808
  %v1427 = vunpack.c.0.s8 %v1426
  %v1428 = vperm.slane %v1424, %v1427
  %v1429 = vrot.slane %v1363, 4
  %v1430 = vsel %vm242, %v1429, %v1361
  %v1432 = vunpack.c.l.s4 1983009808
  %v1433 = vunpack.c.0.s8 %v1432
  %v1434 = vperm.slane %v1430, %v1433
  %v1435 = vsel %vm242, %v1366, %v1355
  %v1437 = vunpack.c.l.s4 1983009808
  %v1438 = vunpack.c.0.s8 %v1437
  %v1439 = vperm.slane %v1435, %v1438
  %v1440 = vrot.slane %v1367, 4
  %v1441 = vsel %vm242, %v1440, %v1365
  %v1443 = vunpack.c.l.s4 1983009808
  %v1444 = vunpack.c.0.s8 %v1443
  %v1445 = vperm.slane %v1441, %v1444
  %v1446 = vrot.slane %v1434, 4
  %v1447 = vsel %vm242, %v1446, %v1428
  %v1448 = vrot.slane %v1428, 4
  %v1449 = vsel %vm242, %v1434, %v1448
  %v1451 = vunpack.c.l.s4 1934713408
  %v1452 = vunpack.c.0.s8 %v1451
  %v1453 = vperm.slane %v1447, %v1452
  %v1455 = vunpack.c.l.s4 1934713408
  %v1456 = vunpack.c.0.s8 %v1455
  %v1457 = vperm.slane %v1449, %v1456
  %v1458 = vrot.slane %v1445, 4
  %v1459 = vsel %vm242, %v1458, %v1439
  %v1460 = vrot.slane %v1439, 4
  %v1461 = vsel %vm242, %v1445, %v1460
  %v1463 = vunpack.c.l.s4 1934713408
  %v1464 = vunpack.c.0.s8 %v1463
  %v1465 = vperm.slane %v1459, %v1464
  %v1467 = vunpack.c.l.s4 1934713408
  %v1468 = vunpack.c.0.s8 %v1467
  %v1469 = vperm.slane %v1461, %v1468
  %v1470 = vrot.slane %v1465, 4
  %v1471 = vsel %vm242, %v1470, %v1453
  %v1472 = vrot.slane %v1453, 4
  %v1473 = vsel %vm242, %v1465, %v1472
  %v1474 = vrot.slane %v1469, 4
  %v1475 = vsel %vm242, %v1474, %v1457
  %v1476 = vrot.slane %v1457, 4
  %v1477 = vsel %vm242, %v1469, %v1476
  %v1478 = vsel %vm242, %v1418, %v1399
  %v1480 = vunpack.c.l.s4 1983009808
  %v1481 = vunpack.c.0.s8 %v1480
  %v1482 = vperm.slane %v1478, %v1481
  %v1483 = vrot.slane %v1419, 4
  %v1484 = vsel %vm242, %v1483, %v1417
  %v1486 = vunpack.c.l.s4 1983009808
  %v1487 = vunpack.c.0.s8 %v1486
  %v1488 = vperm.slane %v1484, %v1487
  %v1489 = vsel %vm242, %v1422, %v1411
  %v1491 = vunpack.c.l.s4 1983009808
  %v1492 = vunpack.c.0.s8 %v1491
  %v1493 = vperm.slane %v1489, %v1492
  %v1494 = vrot.slane %v1423, 4
  %v1495 = vsel %vm242, %v1494, %v1421
  %v1497 = vunpack.c.l.s4 1983009808
  %v1498 = vunpack.c.0.s8 %v1497
  %v1499 = vperm.slane %v1495, %v1498
  %v1500 = vrot.slane %v1488, 4
  %v1501 = vsel %vm242, %v1500, %v1482
  %v1502 = vrot.slane %v1482, 4
  %v1503 = vsel %vm242, %v1488, %v1502
  %v1505 = vunpack.c.l.s4 1934713408
  %v1506 = vunpack.c.0.s8 %v1505
  %v1507 = vperm.slane %v1501, %v1506
  %v1509 = vunpack.c.l.s4 1934713408
  %v1510 = vunpack.c.0.s8 %v1509
  %v1511 = vperm.slane %v1503, %v1510
  %v1512 = vrot.slane %v1499, 4
  %v1513 = vsel %vm242, %v1512, %v1493
  %v1514 = vrot.slane %v1493, 4
  %v1515 = vsel %vm242, %v1499, %v1514
  %v1517 = vunpack.c.l.s4 1934713408
  %v1518 = vunpack.c.0.s8 %v1517
  %v1519 = vperm.slane %v1513, %v1518
  %v1521 = vunpack.c.l.s4 1934713408
  %v1522 = vunpack.c.0.s8 %v1521
  %v1523 = vperm.slane %v1515, %v1522
  %v1524 = vrot.slane %v1519, 4
  %v1525 = vsel %vm242, %v1524, %v1507
  %v1526 = vrot.slane %v1507, 4
  %v1527 = vsel %vm242, %v1519, %v1526
  %v1528 = vrot.slane %v1523, 4
  %v1529 = vsel %vm242, %v1528, %v1511
  %v1530 = vrot.slane %v1511, 4
  %v1531 = vsel %vm242, %v1523, %v1530
  %1534 = vrot.lane.b32.xlu0 %v1473, 8
  %v1535 = vpop.permute.xlu0 %1534
  %1536 = vrot.lane.b32.xlu0 %v1527, 8
  %v1537 = vpop.permute.xlu0 %1536
  %1542 = vrot.lane.b32.xlu0 %v1475, 16
  %v1543 = vpop.permute.xlu0 %1542
  %1544 = vrot.lane.b32.xlu0 %v1529, 16
  %v1545 = vpop.permute.xlu0 %1544
  %1550 = vrot.lane.b32.xlu0 %v1477, 24
  %v1551 = vpop.permute.xlu0 %1550
  %1552 = vrot.lane.b32.xlu0 %v1531, 24
  %v1553 = vpop.permute.xlu0 %1552
  %v1556 = vsel %vm984, %v1471, %v1535
  %v1557 = vsel %vm984, %v1525, %v1537
  %v1558 = vsel %vm1103, %v1556, %v1543
  %v1559 = vsel %vm1103, %v1557, %v1545
  %vm1560 = vcmask 195584
  %v1561 = vsel %vm1560, %v1558, %v1551
  %v1562 = vsel %vm1560, %v1559, %v1553
  %1565 = vrot.lane.b32.xlu0 %v217, 120
  %v1566 = vpop.permute.xlu0 %1565
  %1567 = vrot.lane.b32.xlu0 %v219, 120
  %v1568 = vpop.permute.xlu0 %1567
  %1571 = vrot.lane.b32.xlu0 %v217, 112
  %v1572 = vpop.permute.xlu0 %1571
  %1573 = vrot.lane.b32.xlu0 %v219, 112
  %v1574 = vpop.permute.xlu0 %1573
  %1577 = vrot.lane.b32.xlu0 %v217, 104
  %v1578 = vpop.permute.xlu0 %1577
  %1579 = vrot.lane.b32.xlu0 %v219, 104
  %v1580 = vpop.permute.xlu0 %1579
  %v1583 = vrot.slane %v1572, 4
  %v1584 = vsel %vm242, %v1583, %v217
  %v1585 = vrot.slane %v217, 4
  %v1586 = vsel %vm242, %v1572, %v1585
  %v1588 = vunpack.c.l.s4 1983009808
  %v1589 = vunpack.c.0.s8 %v1588
  %v1590 = vperm.slane %v1584, %v1589
  %v1592 = vunpack.c.l.s4 1983009808
  %v1593 = vunpack.c.0.s8 %v1592
  %v1594 = vperm.slane %v1586, %v1593
  %v1595 = vrot.slane %v1578, 4
  %v1596 = vsel %vm242, %v1595, %v1566
  %v1597 = vrot.slane %v1566, 4
  %v1598 = vsel %vm242, %v1578, %v1597
  %v1600 = vunpack.c.l.s4 1983009808
  %v1601 = vunpack.c.0.s8 %v1600
  %v1602 = vperm.slane %v1596, %v1601
  %v1604 = vunpack.c.l.s4 1983009808
  %v1605 = vunpack.c.0.s8 %v1604
  %v1606 = vperm.slane %v1598, %v1605
  %v1607 = vrot.slane %v1602, 4
  %v1608 = vsel %vm242, %v1607, %v1590
  %v1609 = vrot.slane %v1590, 4
  %v1610 = vsel %vm242, %v1602, %v1609
  %v1612 = vunpack.c.l.s4 1934713408
  %v1613 = vunpack.c.0.s8 %v1612
  %v1614 = vperm.slane %v1608, %v1613
  %v1616 = vunpack.c.l.s4 1934713408
  %v1617 = vunpack.c.0.s8 %v1616
  %v1618 = vperm.slane %v1610, %v1617
  %v1619 = vrot.slane %v1606, 4
  %v1620 = vsel %vm242, %v1619, %v1594
  %v1621 = vrot.slane %v1594, 4
  %v1622 = vsel %vm242, %v1606, %v1621
  %v1624 = vunpack.c.l.s4 1934713408
  %v1625 = vunpack.c.0.s8 %v1624
  %v1626 = vperm.slane %v1620, %v1625
  %v1628 = vunpack.c.l.s4 1934713408
  %v1629 = vunpack.c.0.s8 %v1628
  %v1630 = vperm.slane %v1622, %v1629
  %v1631 = vrot.slane %v1614, 4
  %v1632 = vsel %vm242, 0.0, %v1631
  %v1633 = vrot.slane %v1618, 4
  %v1634 = vsel %vm242, 0.0, %v1633
  %v1635 = vrot.slane %v1626, 4
  %v1636 = vsel %vm242, 0.0, %v1635
  %v1637 = vrot.slane %v1630, 4
  %v1638 = vsel %vm242, 0.0, %v1637
  %v1639 = vrot.slane %v1574, 4
  %v1640 = vsel %vm242, %v1639, %v219
  %v1641 = vrot.slane %v219, 4
  %v1642 = vsel %vm242, %v1574, %v1641
  %v1644 = vunpack.c.l.s4 1983009808
  %v1645 = vunpack.c.0.s8 %v1644
  %v1646 = vperm.slane %v1640, %v1645
  %v1648 = vunpack.c.l.s4 1983009808
  %v1649 = vunpack.c.0.s8 %v1648
  %v1650 = vperm.slane %v1642, %v1649
  %v1651 = vrot.slane %v1580, 4
  %v1652 = vsel %vm242, %v1651, %v1568
  %v1653 = vrot.slane %v1568, 4
  %v1654 = vsel %vm242, %v1580, %v1653
  %v1656 = vunpack.c.l.s4 1983009808
  %v1657 = vunpack.c.0.s8 %v1656
  %v1658 = vperm.slane %v1652, %v1657
  %v1660 = vunpack.c.l.s4 1983009808
  %v1661 = vunpack.c.0.s8 %v1660
  %v1662 = vperm.slane %v1654, %v1661
  %v1663 = vrot.slane %v1658, 4
  %v1664 = vsel %vm242, %v1663, %v1646
  %v1665 = vrot.slane %v1646, 4
  %v1666 = vsel %vm242, %v1658, %v1665
  %v1668 = vunpack.c.l.s4 1934713408
  %v1669 = vunpack.c.0.s8 %v1668
  %v1670 = vperm.slane %v1664, %v1669
  %v1672 = vunpack.c.l.s4 1934713408
  %v1673 = vunpack.c.0.s8 %v1672
  %v1674 = vperm.slane %v1666, %v1673
  %v1675 = vrot.slane %v1662, 4
  %v1676 = vsel %vm242, %v1675, %v1650
  %v1677 = vrot.slane %v1650, 4
  %v1678 = vsel %vm242, %v1662, %v1677
  %v1680 = vunpack.c.l.s4 1934713408
  %v1681 = vunpack.c.0.s8 %v1680
  %v1682 = vperm.slane %v1676, %v1681
  %v1684 = vunpack.c.l.s4 1934713408
  %v1685 = vunpack.c.0.s8 %v1684
  %v1686 = vperm.slane %v1678, %v1685
  %v1687 = vrot.slane %v1670, 4
  %v1688 = vsel %vm242, 0.0, %v1687
  %v1689 = vrot.slane %v1674, 4
  %v1690 = vsel %vm242, 0.0, %v1689
  %v1691 = vrot.slane %v1682, 4
  %v1692 = vsel %vm242, 0.0, %v1691
  %v1693 = vrot.slane %v1686, 4
  %v1694 = vsel %vm242, 0.0, %v1693
  %v1695 = vsel %vm242, %v1633, %v1614
  %v1697 = vunpack.c.l.s4 1983009808
  %v1698 = vunpack.c.0.s8 %v1697
  %v1699 = vperm.slane %v1695, %v1698
  %v1700 = vrot.slane %v1634, 4
  %v1701 = vsel %vm242, %v1700, %v1632
  %v1703 = vunpack.c.l.s4 1983009808
  %v1704 = vunpack.c.0.s8 %v1703
  %v1705 = vperm.slane %v1701, %v1704
  %v1706 = vsel %vm242, %v1637, %v1626
  %v1708 = vunpack.c.l.s4 1983009808
  %v1709 = vunpack.c.0.s8 %v1708
  %v1710 = vperm.slane %v1706, %v1709
  %v1711 = vrot.slane %v1638, 4
  %v1712 = vsel %vm242, %v1711, %v1636
  %v1714 = vunpack.c.l.s4 1983009808
  %v1715 = vunpack.c.0.s8 %v1714
  %v1716 = vperm.slane %v1712, %v1715
  %v1717 = vrot.slane %v1705, 4
  %v1718 = vsel %vm242, %v1717, %v1699
  %v1719 = vrot.slane %v1699, 4
  %v1720 = vsel %vm242, %v1705, %v1719
  %v1722 = vunpack.c.l.s4 1934713408
  %v1723 = vunpack.c.0.s8 %v1722
  %v1724 = vperm.slane %v1718, %v1723
  %v1726 = vunpack.c.l.s4 1934713408
  %v1727 = vunpack.c.0.s8 %v1726
  %v1728 = vperm.slane %v1720, %v1727
  %v1729 = vrot.slane %v1716, 4
  %v1730 = vsel %vm242, %v1729, %v1710
  %v1731 = vrot.slane %v1710, 4
  %v1732 = vsel %vm242, %v1716, %v1731
  %v1734 = vunpack.c.l.s4 1934713408
  %v1735 = vunpack.c.0.s8 %v1734
  %v1736 = vperm.slane %v1730, %v1735
  %v1738 = vunpack.c.l.s4 1934713408
  %v1739 = vunpack.c.0.s8 %v1738
  %v1740 = vperm.slane %v1732, %v1739
  %v1741 = vrot.slane %v1736, 4
  %v1742 = vsel %vm242, %v1741, %v1724
  %v1743 = vrot.slane %v1724, 4
  %v1744 = vsel %vm242, %v1736, %v1743
  %v1745 = vrot.slane %v1740, 4
  %v1746 = vsel %vm242, %v1745, %v1728
  %v1747 = vrot.slane %v1728, 4
  %v1748 = vsel %vm242, %v1740, %v1747
  %v1749 = vsel %vm242, %v1689, %v1670
  %v1751 = vunpack.c.l.s4 1983009808
  %v1752 = vunpack.c.0.s8 %v1751
  %v1753 = vperm.slane %v1749, %v1752
  %v1754 = vrot.slane %v1690, 4
  %v1755 = vsel %vm242, %v1754, %v1688
  %v1757 = vunpack.c.l.s4 1983009808
  %v1758 = vunpack.c.0.s8 %v1757
  %v1759 = vperm.slane %v1755, %v1758
  %v1760 = vsel %vm242, %v1693, %v1682
  %v1762 = vunpack.c.l.s4 1983009808
  %v1763 = vunpack.c.0.s8 %v1762
  %v1764 = vperm.slane %v1760, %v1763
  %v1765 = vrot.slane %v1694, 4
  %v1766 = vsel %vm242, %v1765, %v1692
  %v1768 = vunpack.c.l.s4 1983009808
  %v1769 = vunpack.c.0.s8 %v1768
  %v1770 = vperm.slane %v1766, %v1769
  %v1771 = vrot.slane %v1759, 4
  %v1772 = vsel %vm242, %v1771, %v1753
  %v1773 = vrot.slane %v1753, 4
  %v1774 = vsel %vm242, %v1759, %v1773
  %v1776 = vunpack.c.l.s4 1934713408
  %v1777 = vunpack.c.0.s8 %v1776
  %v1778 = vperm.slane %v1772, %v1777
  %v1780 = vunpack.c.l.s4 1934713408
  %v1781 = vunpack.c.0.s8 %v1780
  %v1782 = vperm.slane %v1774, %v1781
  %v1783 = vrot.slane %v1770, 4
  %v1784 = vsel %vm242, %v1783, %v1764
  %v1785 = vrot.slane %v1764, 4
  %v1786 = vsel %vm242, %v1770, %v1785
  %v1788 = vunpack.c.l.s4 1934713408
  %v1789 = vunpack.c.0.s8 %v1788
  %v1790 = vperm.slane %v1784, %v1789
  %v1792 = vunpack.c.l.s4 1934713408
  %v1793 = vunpack.c.0.s8 %v1792
  %v1794 = vperm.slane %v1786, %v1793
  %v1795 = vrot.slane %v1790, 4
  %v1796 = vsel %vm242, %v1795, %v1778
  %v1797 = vrot.slane %v1778, 4
  %v1798 = vsel %vm242, %v1790, %v1797
  %v1799 = vrot.slane %v1794, 4
  %v1800 = vsel %vm242, %v1799, %v1782
  %v1801 = vrot.slane %v1782, 4
  %v1802 = vsel %vm242, %v1794, %v1801
  %v1803 = vpack.c.bf16 %v1742, %v1742
  %v1804 = vpack.c.bf16 %v1796, %v1796
  %v1805 = vpack.c.bf16 %v1744, %v1744
  %v1806 = vpack.c.bf16 %v1798, %v1798
  %v1807 = vpack.c.bf16 %v1746, %v1746
  %v1808 = vpack.c.bf16 %v1800, %v1800
  %v1809 = vpack.c.bf16 %v1748, %v1748
  %v1810 = vpack.c.bf16 %v1802, %v1802
  %1811 = vrot.lane.b32.xlu0 %v217, 96
  %v1812 = vpop.permute.xlu0 %1811
  %1813 = vrot.lane.b32.xlu0 %v219, 96
  %v1814 = vpop.permute.xlu0 %1813
  %1815 = vrot.lane.b32.xlu0 %v1566, 96
  %v1816 = vpop.permute.xlu0 %1815
  %1817 = vrot.lane.b32.xlu0 %v1568, 96
  %v1818 = vpop.permute.xlu0 %1817
  %1819 = vrot.lane.b32.xlu0 %v1572, 96
  %v1820 = vpop.permute.xlu0 %1819
  %1821 = vrot.lane.b32.xlu0 %v1574, 96
  %v1822 = vpop.permute.xlu0 %1821
  %1823 = vrot.lane.b32.xlu0 %v1578, 96
  %v1824 = vpop.permute.xlu0 %1823
  %1825 = vrot.lane.b32.xlu0 %v1580, 96
  %v1826 = vpop.permute.xlu0 %1825
  %v1835 = vrot.slane %v1820, 4
  %v1836 = vsel %vm242, %v1835, %v1812
  %v1837 = vrot.slane %v1812, 4
  %v1838 = vsel %vm242, %v1820, %v1837
  %v1840 = vunpack.c.l.s4 1983009808
  %v1841 = vunpack.c.0.s8 %v1840
  %v1842 = vperm.slane %v1836, %v1841
  %v1844 = vunpack.c.l.s4 1983009808
  %v1845 = vunpack.c.0.s8 %v1844
  %v1846 = vperm.slane %v1838, %v1845
  %v1847 = vrot.slane %v1824, 4
  %v1848 = vsel %vm242, %v1847, %v1816
  %v1849 = vrot.slane %v1816, 4
  %v1850 = vsel %vm242, %v1824, %v1849
  %v1852 = vunpack.c.l.s4 1983009808
  %v1853 = vunpack.c.0.s8 %v1852
  %v1854 = vperm.slane %v1848, %v1853
  %v1856 = vunpack.c.l.s4 1983009808
  %v1857 = vunpack.c.0.s8 %v1856
  %v1858 = vperm.slane %v1850, %v1857
  %v1859 = vrot.slane %v1854, 4
  %v1860 = vsel %vm242, %v1859, %v1842
  %v1861 = vrot.slane %v1842, 4
  %v1862 = vsel %vm242, %v1854, %v1861
  %v1864 = vunpack.c.l.s4 1934713408
  %v1865 = vunpack.c.0.s8 %v1864
  %v1866 = vperm.slane %v1860, %v1865
  %v1868 = vunpack.c.l.s4 1934713408
  %v1869 = vunpack.c.0.s8 %v1868
  %v1870 = vperm.slane %v1862, %v1869
  %v1871 = vrot.slane %v1858, 4
  %v1872 = vsel %vm242, %v1871, %v1846
  %v1873 = vrot.slane %v1846, 4
  %v1874 = vsel %vm242, %v1858, %v1873
  %v1876 = vunpack.c.l.s4 1934713408
  %v1877 = vunpack.c.0.s8 %v1876
  %v1878 = vperm.slane %v1872, %v1877
  %v1880 = vunpack.c.l.s4 1934713408
  %v1881 = vunpack.c.0.s8 %v1880
  %v1882 = vperm.slane %v1874, %v1881
  %v1883 = vrot.slane %v1866, 4
  %v1884 = vsel %vm242, 0.0, %v1883
  %v1885 = vrot.slane %v1870, 4
  %v1886 = vsel %vm242, 0.0, %v1885
  %v1887 = vrot.slane %v1878, 4
  %v1888 = vsel %vm242, 0.0, %v1887
  %v1889 = vrot.slane %v1882, 4
  %v1890 = vsel %vm242, 0.0, %v1889
  %v1891 = vrot.slane %v1822, 4
  %v1892 = vsel %vm242, %v1891, %v1814
  %v1893 = vrot.slane %v1814, 4
  %v1894 = vsel %vm242, %v1822, %v1893
  %v1896 = vunpack.c.l.s4 1983009808
  %v1897 = vunpack.c.0.s8 %v1896
  %v1898 = vperm.slane %v1892, %v1897
  %v1900 = vunpack.c.l.s4 1983009808
  %v1901 = vunpack.c.0.s8 %v1900
  %v1902 = vperm.slane %v1894, %v1901
  %v1903 = vrot.slane %v1826, 4
  %v1904 = vsel %vm242, %v1903, %v1818
  %v1905 = vrot.slane %v1818, 4
  %v1906 = vsel %vm242, %v1826, %v1905
  %v1908 = vunpack.c.l.s4 1983009808
  %v1909 = vunpack.c.0.s8 %v1908
  %v1910 = vperm.slane %v1904, %v1909
  %v1912 = vunpack.c.l.s4 1983009808
  %v1913 = vunpack.c.0.s8 %v1912
  %v1914 = vperm.slane %v1906, %v1913
  %v1915 = vrot.slane %v1910, 4
  %v1916 = vsel %vm242, %v1915, %v1898
  %v1917 = vrot.slane %v1898, 4
  %v1918 = vsel %vm242, %v1910, %v1917
  %v1920 = vunpack.c.l.s4 1934713408
  %v1921 = vunpack.c.0.s8 %v1920
  %v1922 = vperm.slane %v1916, %v1921
  %v1924 = vunpack.c.l.s4 1934713408
  %v1925 = vunpack.c.0.s8 %v1924
  %v1926 = vperm.slane %v1918, %v1925
  %v1927 = vrot.slane %v1914, 4
  %v1928 = vsel %vm242, %v1927, %v1902
  %v1929 = vrot.slane %v1902, 4
  %v1930 = vsel %vm242, %v1914, %v1929
  %v1932 = vunpack.c.l.s4 1934713408
  %v1933 = vunpack.c.0.s8 %v1932
  %v1934 = vperm.slane %v1928, %v1933
  %v1936 = vunpack.c.l.s4 1934713408
  %v1937 = vunpack.c.0.s8 %v1936
  %v1938 = vperm.slane %v1930, %v1937
  %v1939 = vrot.slane %v1922, 4
  %v1940 = vsel %vm242, 0.0, %v1939
  %v1941 = vrot.slane %v1926, 4
  %v1942 = vsel %vm242, 0.0, %v1941
  %v1943 = vrot.slane %v1934, 4
  %v1944 = vsel %vm242, 0.0, %v1943
  %v1945 = vrot.slane %v1938, 4
  %v1946 = vsel %vm242, 0.0, %v1945
  %v1947 = vsel %vm242, %v1885, %v1866
  %v1949 = vunpack.c.l.s4 1983009808
  %v1950 = vunpack.c.0.s8 %v1949
  %v1951 = vperm.slane %v1947, %v1950
  %v1952 = vrot.slane %v1886, 4
  %v1953 = vsel %vm242, %v1952, %v1884
  %v1955 = vunpack.c.l.s4 1983009808
  %v1956 = vunpack.c.0.s8 %v1955
  %v1957 = vperm.slane %v1953, %v1956
  %v1958 = vsel %vm242, %v1889, %v1878
  %v1960 = vunpack.c.l.s4 1983009808
  %v1961 = vunpack.c.0.s8 %v1960
  %v1962 = vperm.slane %v1958, %v1961
  %v1963 = vrot.slane %v1890, 4
  %v1964 = vsel %vm242, %v1963, %v1888
  %v1966 = vunpack.c.l.s4 1983009808
  %v1967 = vunpack.c.0.s8 %v1966
  %v1968 = vperm.slane %v1964, %v1967
  %v1969 = vrot.slane %v1957, 4
  %v1970 = vsel %vm242, %v1969, %v1951
  %v1971 = vrot.slane %v1951, 4
  %v1972 = vsel %vm242, %v1957, %v1971
  %v1974 = vunpack.c.l.s4 1934713408
  %v1975 = vunpack.c.0.s8 %v1974
  %v1976 = vperm.slane %v1970, %v1975
  %v1978 = vunpack.c.l.s4 1934713408
  %v1979 = vunpack.c.0.s8 %v1978
  %v1980 = vperm.slane %v1972, %v1979
  %v1981 = vrot.slane %v1968, 4
  %v1982 = vsel %vm242, %v1981, %v1962
  %v1983 = vrot.slane %v1962, 4
  %v1984 = vsel %vm242, %v1968, %v1983
  %v1986 = vunpack.c.l.s4 1934713408
  %v1987 = vunpack.c.0.s8 %v1986
  %v1988 = vperm.slane %v1982, %v1987
  %v1990 = vunpack.c.l.s4 1934713408
  %v1991 = vunpack.c.0.s8 %v1990
  %v1992 = vperm.slane %v1984, %v1991
  %v1993 = vrot.slane %v1988, 4
  %v1994 = vsel %vm242, %v1993, %v1976
  %v1995 = vrot.slane %v1976, 4
  %v1996 = vsel %vm242, %v1988, %v1995
  %v1997 = vrot.slane %v1992, 4
  %v1998 = vsel %vm242, %v1997, %v1980
  %v1999 = vrot.slane %v1980, 4
  %v2000 = vsel %vm242, %v1992, %v1999
  %v2001 = vsel %vm242, %v1941, %v1922
  %v2003 = vunpack.c.l.s4 1983009808
  %v2004 = vunpack.c.0.s8 %v2003
  %v2005 = vperm.slane %v2001, %v2004
  %v2006 = vrot.slane %v1942, 4
  %v2007 = vsel %vm242, %v2006, %v1940
  %v2009 = vunpack.c.l.s4 1983009808
  %v2010 = vunpack.c.0.s8 %v2009
  %v2011 = vperm.slane %v2007, %v2010
  %v2012 = vsel %vm242, %v1945, %v1934
  %v2014 = vunpack.c.l.s4 1983009808
  %v2015 = vunpack.c.0.s8 %v2014
  %v2016 = vperm.slane %v2012, %v2015
  %v2017 = vrot.slane %v1946, 4
  %v2018 = vsel %vm242, %v2017, %v1944
  %v2020 = vunpack.c.l.s4 1983009808
  %v2021 = vunpack.c.0.s8 %v2020
  %v2022 = vperm.slane %v2018, %v2021
  %v2023 = vrot.slane %v2011, 4
  %v2024 = vsel %vm242, %v2023, %v2005
  %v2025 = vrot.slane %v2005, 4
  %v2026 = vsel %vm242, %v2011, %v2025
  %v2028 = vunpack.c.l.s4 1934713408
  %v2029 = vunpack.c.0.s8 %v2028
  %v2030 = vperm.slane %v2024, %v2029
  %v2032 = vunpack.c.l.s4 1934713408
  %v2033 = vunpack.c.0.s8 %v2032
  %v2034 = vperm.slane %v2026, %v2033
  %v2035 = vrot.slane %v2022, 4
  %v2036 = vsel %vm242, %v2035, %v2016
  %v2037 = vrot.slane %v2016, 4
  %v2038 = vsel %vm242, %v2022, %v2037
  %v2040 = vunpack.c.l.s4 1934713408
  %v2041 = vunpack.c.0.s8 %v2040
  %v2042 = vperm.slane %v2036, %v2041
  %v2044 = vunpack.c.l.s4 1934713408
  %v2045 = vunpack.c.0.s8 %v2044
  %v2046 = vperm.slane %v2038, %v2045
  %v2047 = vrot.slane %v2042, 4
  %v2048 = vsel %vm242, %v2047, %v2030
  %v2049 = vrot.slane %v2030, 4
  %v2050 = vsel %vm242, %v2042, %v2049
  %v2051 = vrot.slane %v2046, 4
  %v2052 = vsel %vm242, %v2051, %v2034
  %v2053 = vrot.slane %v2034, 4
  %v2054 = vsel %vm242, %v2046, %v2053
  %v2055 = vpack.c.bf16 %v1994, %v1994
  %v2056 = vpack.c.bf16 %v2048, %v2048
  %v2057 = vpack.c.bf16 %v1996, %v1996
  %v2058 = vpack.c.bf16 %v2050, %v2050
  %v2059 = vpack.c.bf16 %v1998, %v1998
  %v2060 = vpack.c.bf16 %v2052, %v2052
  %v2061 = vpack.c.bf16 %v2000, %v2000
  %v2062 = vpack.c.bf16 %v2054, %v2054
  %2063 = vrot.lane.b32.xlu0 %v217, 64
  %v2064 = vpop.permute.xlu0 %2063
  %2065 = vrot.lane.b32.xlu0 %v219, 64
  %v2066 = vpop.permute.xlu0 %2065
  %2067 = vrot.lane.b32.xlu0 %v1566, 64
  %v2068 = vpop.permute.xlu0 %2067
  %2069 = vrot.lane.b32.xlu0 %v1568, 64
  %v2070 = vpop.permute.xlu0 %2069
  %2071 = vrot.lane.b32.xlu0 %v1572, 64
  %v2072 = vpop.permute.xlu0 %2071
  %2073 = vrot.lane.b32.xlu0 %v1574, 64
  %v2074 = vpop.permute.xlu0 %2073
  %2075 = vrot.lane.b32.xlu0 %v1578, 64
  %v2076 = vpop.permute.xlu0 %2075
  %2077 = vrot.lane.b32.xlu0 %v1580, 64
  %v2078 = vpop.permute.xlu0 %2077
  %v2087 = vrot.slane %v2072, 4
  %v2088 = vsel %vm242, %v2087, %v2064
  %v2089 = vrot.slane %v2064, 4
  %v2090 = vsel %vm242, %v2072, %v2089
  %v2092 = vunpack.c.l.s4 1983009808
  %v2093 = vunpack.c.0.s8 %v2092
  %v2094 = vperm.slane %v2088, %v2093
  %v2096 = vunpack.c.l.s4 1983009808
  %v2097 = vunpack.c.0.s8 %v2096
  %v2098 = vperm.slane %v2090, %v2097
  %v2099 = vrot.slane %v2076, 4
  %v2100 = vsel %vm242, %v2099, %v2068
  %v2101 = vrot.slane %v2068, 4
  %v2102 = vsel %vm242, %v2076, %v2101
  %v2104 = vunpack.c.l.s4 1983009808
  %v2105 = vunpack.c.0.s8 %v2104
  %v2106 = vperm.slane %v2100, %v2105
  %v2108 = vunpack.c.l.s4 1983009808
  %v2109 = vunpack.c.0.s8 %v2108
  %v2110 = vperm.slane %v2102, %v2109
  %v2111 = vrot.slane %v2106, 4
  %v2112 = vsel %vm242, %v2111, %v2094
  %v2113 = vrot.slane %v2094, 4
  %v2114 = vsel %vm242, %v2106, %v2113
  %v2116 = vunpack.c.l.s4 1934713408
  %v2117 = vunpack.c.0.s8 %v2116
  %v2118 = vperm.slane %v2112, %v2117
  %v2120 = vunpack.c.l.s4 1934713408
  %v2121 = vunpack.c.0.s8 %v2120
  %v2122 = vperm.slane %v2114, %v2121
  %v2123 = vrot.slane %v2110, 4
  %v2124 = vsel %vm242, %v2123, %v2098
  %v2125 = vrot.slane %v2098, 4
  %v2126 = vsel %vm242, %v2110, %v2125
  %v2128 = vunpack.c.l.s4 1934713408
  %v2129 = vunpack.c.0.s8 %v2128
  %v2130 = vperm.slane %v2124, %v2129
  %v2132 = vunpack.c.l.s4 1934713408
  %v2133 = vunpack.c.0.s8 %v2132
  %v2134 = vperm.slane %v2126, %v2133
  %v2135 = vrot.slane %v2118, 4
  %v2136 = vsel %vm242, 0.0, %v2135
  %v2137 = vrot.slane %v2122, 4
  %v2138 = vsel %vm242, 0.0, %v2137
  %v2139 = vrot.slane %v2130, 4
  %v2140 = vsel %vm242, 0.0, %v2139
  %v2141 = vrot.slane %v2134, 4
  %v2142 = vsel %vm242, 0.0, %v2141
  %v2143 = vrot.slane %v2074, 4
  %v2144 = vsel %vm242, %v2143, %v2066
  %v2145 = vrot.slane %v2066, 4
  %v2146 = vsel %vm242, %v2074, %v2145
  %v2148 = vunpack.c.l.s4 1983009808
  %v2149 = vunpack.c.0.s8 %v2148
  %v2150 = vperm.slane %v2144, %v2149
  %v2152 = vunpack.c.l.s4 1983009808
  %v2153 = vunpack.c.0.s8 %v2152
  %v2154 = vperm.slane %v2146, %v2153
  %v2155 = vrot.slane %v2078, 4
  %v2156 = vsel %vm242, %v2155, %v2070
  %v2157 = vrot.slane %v2070, 4
  %v2158 = vsel %vm242, %v2078, %v2157
  %v2160 = vunpack.c.l.s4 1983009808
  %v2161 = vunpack.c.0.s8 %v2160
  %v2162 = vperm.slane %v2156, %v2161
  %v2164 = vunpack.c.l.s4 1983009808
  %v2165 = vunpack.c.0.s8 %v2164
  %v2166 = vperm.slane %v2158, %v2165
  %v2167 = vrot.slane %v2162, 4
  %v2168 = vsel %vm242, %v2167, %v2150
  %v2169 = vrot.slane %v2150, 4
  %v2170 = vsel %vm242, %v2162, %v2169
  %v2172 = vunpack.c.l.s4 1934713408
  %v2173 = vunpack.c.0.s8 %v2172
  %v2174 = vperm.slane %v2168, %v2173
  %v2176 = vunpack.c.l.s4 1934713408
  %v2177 = vunpack.c.0.s8 %v2176
  %v2178 = vperm.slane %v2170, %v2177
  %v2179 = vrot.slane %v2166, 4
  %v2180 = vsel %vm242, %v2179, %v2154
  %v2181 = vrot.slane %v2154, 4
  %v2182 = vsel %vm242, %v2166, %v2181
  %v2184 = vunpack.c.l.s4 1934713408
  %v2185 = vunpack.c.0.s8 %v2184
  %v2186 = vperm.slane %v2180, %v2185
  %v2188 = vunpack.c.l.s4 1934713408
  %v2189 = vunpack.c.0.s8 %v2188
  %v2190 = vperm.slane %v2182, %v2189
  %v2191 = vrot.slane %v2174, 4
  %v2192 = vsel %vm242, 0.0, %v2191
  %v2193 = vrot.slane %v2178, 4
  %v2194 = vsel %vm242, 0.0, %v2193
  %v2195 = vrot.slane %v2186, 4
  %v2196 = vsel %vm242, 0.0, %v2195
  %v2197 = vrot.slane %v2190, 4
  %v2198 = vsel %vm242, 0.0, %v2197
  %v2199 = vsel %vm242, %v2137, %v2118
  %v2201 = vunpack.c.l.s4 1983009808
  %v2202 = vunpack.c.0.s8 %v2201
  %v2203 = vperm.slane %v2199, %v2202
  %v2204 = vrot.slane %v2138, 4
  %v2205 = vsel %vm242, %v2204, %v2136
  %v2207 = vunpack.c.l.s4 1983009808
  %v2208 = vunpack.c.0.s8 %v2207
  %v2209 = vperm.slane %v2205, %v2208
  %v2210 = vsel %vm242, %v2141, %v2130
  %v2212 = vunpack.c.l.s4 1983009808
  %v2213 = vunpack.c.0.s8 %v2212
  %v2214 = vperm.slane %v2210, %v2213
  %v2215 = vrot.slane %v2142, 4
  %v2216 = vsel %vm242, %v2215, %v2140
  %v2218 = vunpack.c.l.s4 1983009808
  %v2219 = vunpack.c.0.s8 %v2218
  %v2220 = vperm.slane %v2216, %v2219
  %v2221 = vrot.slane %v2209, 4
  %v2222 = vsel %vm242, %v2221, %v2203
  %v2223 = vrot.slane %v2203, 4
  %v2224 = vsel %vm242, %v2209, %v2223
  %v2226 = vunpack.c.l.s4 1934713408
  %v2227 = vunpack.c.0.s8 %v2226
  %v2228 = vperm.slane %v2222, %v2227
  %v2230 = vunpack.c.l.s4 1934713408
  %v2231 = vunpack.c.0.s8 %v2230
  %v2232 = vperm.slane %v2224, %v2231
  %v2233 = vrot.slane %v2220, 4
  %v2234 = vsel %vm242, %v2233, %v2214
  %v2235 = vrot.slane %v2214, 4
  %v2236 = vsel %vm242, %v2220, %v2235
  %v2238 = vunpack.c.l.s4 1934713408
  %v2239 = vunpack.c.0.s8 %v2238
  %v2240 = vperm.slane %v2234, %v2239
  %v2242 = vunpack.c.l.s4 1934713408
  %v2243 = vunpack.c.0.s8 %v2242
  %v2244 = vperm.slane %v2236, %v2243
  %v2245 = vrot.slane %v2240, 4
  %v2246 = vsel %vm242, %v2245, %v2228
  %v2247 = vrot.slane %v2228, 4
  %v2248 = vsel %vm242, %v2240, %v2247
  %v2249 = vrot.slane %v2244, 4
  %v2250 = vsel %vm242, %v2249, %v2232
  %v2251 = vrot.slane %v2232, 4
  %v2252 = vsel %vm242, %v2244, %v2251
  %v2253 = vsel %vm242, %v2193, %v2174
  %v2255 = vunpack.c.l.s4 1983009808
  %v2256 = vunpack.c.0.s8 %v2255
  %v2257 = vperm.slane %v2253, %v2256
  %v2258 = vrot.slane %v2194, 4
  %v2259 = vsel %vm242, %v2258, %v2192
  %v2261 = vunpack.c.l.s4 1983009808
  %v2262 = vunpack.c.0.s8 %v2261
  %v2263 = vperm.slane %v2259, %v2262
  %v2264 = vsel %vm242, %v2197, %v2186
  %v2266 = vunpack.c.l.s4 1983009808
  %v2267 = vunpack.c.0.s8 %v2266
  %v2268 = vperm.slane %v2264, %v2267
  %v2269 = vrot.slane %v2198, 4
  %v2270 = vsel %vm242, %v2269, %v2196
  %v2272 = vunpack.c.l.s4 1983009808
  %v2273 = vunpack.c.0.s8 %v2272
  %v2274 = vperm.slane %v2270, %v2273
  %v2275 = vrot.slane %v2263, 4
  %v2276 = vsel %vm242, %v2275, %v2257
  %v2277 = vrot.slane %v2257, 4
  %v2278 = vsel %vm242, %v2263, %v2277
  %v2280 = vunpack.c.l.s4 1934713408
  %v2281 = vunpack.c.0.s8 %v2280
  %v2282 = vperm.slane %v2276, %v2281
  %v2284 = vunpack.c.l.s4 1934713408
  %v2285 = vunpack.c.0.s8 %v2284
  %v2286 = vperm.slane %v2278, %v2285
  %v2287 = vrot.slane %v2274, 4
  %v2288 = vsel %vm242, %v2287, %v2268
  %v2289 = vrot.slane %v2268, 4
  %v2290 = vsel %vm242, %v2274, %v2289
  %v2292 = vunpack.c.l.s4 1934713408
  %v2293 = vunpack.c.0.s8 %v2292
  %v2294 = vperm.slane %v2288, %v2293
  %v2296 = vunpack.c.l.s4 1934713408
  %v2297 = vunpack.c.0.s8 %v2296
  %v2298 = vperm.slane %v2290, %v2297
  %v2299 = vrot.slane %v2294, 4
  %v2300 = vsel %vm242, %v2299, %v2282
  %v2301 = vrot.slane %v2282, 4
  %v2302 = vsel %vm242, %v2294, %v2301
  %v2303 = vrot.slane %v2298, 4
  %v2304 = vsel %vm242, %v2303, %v2286
  %v2305 = vrot.slane %v2286, 4
  %v2306 = vsel %vm242, %v2298, %v2305
  %v2307 = vpack.c.bf16 %v2246, %v2246
  %v2308 = vpack.c.bf16 %v2300, %v2300
  %v2309 = vpack.c.bf16 %v2248, %v2248
  %v2310 = vpack.c.bf16 %v2302, %v2302
  %v2311 = vpack.c.bf16 %v2250, %v2250
  %v2312 = vpack.c.bf16 %v2304, %v2304
  %v2313 = vpack.c.bf16 %v2252, %v2252
  %v2314 = vpack.c.bf16 %v2306, %v2306
  %v2317 = vunpack.c.l.b16 %v1803
  %v2318 = vunpack.c.l.b16 %v1804
  %v2319 = vpack.c.b16 %v2318, %v2317
  %v2322 = vunpack.c.l.b16 %v2055
  %v2323 = vunpack.c.l.b16 %v2056
  %v2324 = vpack.c.b16 %v2323, %v2322
  %v2326 = vsel %vm984, %v2319, 0
  %v2329 = vsel %vm984, %v2324, 0
  %2331 = vmatpush.bf16.xpose.msra.mxu0 0
  %2332 = vmatpush.bf16.xpose.msra.mxu0 0
  %2333 = vmatpush.bf16.xpose.msra.mxu0 0
  %2334 = vmatpush.bf16.xpose.msra.mxu0 0
  %2335 = vmatpush.bf16.xpose.msra.mxu0 0
  %2336 = vmatpush.bf16.xpose.msra.mxu0 0
  %2337 = vmatpush.bf16.xpose.msra.mxu0 0
  %2338 = vmatpush.bf16.xpose.msra.mxu0 %v2329
  %2339 = vmatmul.bf16.gmra.mxu0 %v2326
  %v2340 = vpop.f32.mrf.mxu0
  %v2341 = vadd.f32 0.0, %v2340
  %v2342 = vpop.f32.mrf.mxu0
  %v2343 = vadd.f32 0.0, %v2342
  %2344 = vdwg.mxu0
  %v2347 = vunpack.c.l.b16 %v1805
  %v2348 = vunpack.c.l.b16 %v1806
  %v2349 = vpack.c.b16 %v2348, %v2347
  %v2352 = vunpack.c.l.b16 %v2057
  %v2353 = vunpack.c.l.b16 %v2058
  %v2354 = vpack.c.b16 %v2353, %v2352
  %v2356 = vsel %vm984, %v2349, 0
  %v2359 = vsel %vm984, %v2354, 0
  %2361 = vmatpush.bf16.xpose.msra.mxu0 0
  %2362 = vmatpush.bf16.xpose.msra.mxu0 0
  %2363 = vmatpush.bf16.xpose.msra.mxu0 0
  %2364 = vmatpush.bf16.xpose.msra.mxu0 0
  %2365 = vmatpush.bf16.xpose.msra.mxu0 0
  %2366 = vmatpush.bf16.xpose.msra.mxu0 0
  %2367 = vmatpush.bf16.xpose.msra.mxu0 0
  %2368 = vmatpush.bf16.xpose.msra.mxu0 %v2359
  %2369 = vmatmul.bf16.gmra.mxu0 %v2356
  %v2370 = vpop.f32.mrf.mxu0
  %v2371 = vadd.f32 0.0, %v2370
  %v2372 = vpop.f32.mrf.mxu0
  %v2373 = vadd.f32 0.0, %v2372
  %2374 = vdwg.mxu0
  %v2377 = vunpack.c.l.b16 %v1807
  %v2378 = vunpack.c.l.b16 %v1808
  %v2379 = vpack.c.b16 %v2378, %v2377
  %v2382 = vunpack.c.l.b16 %v2059
  %v2383 = vunpack.c.l.b16 %v2060
  %v2384 = vpack.c.b16 %v2383, %v2382
  %v2386 = vsel %vm984, %v2379, 0
  %v2389 = vsel %vm984, %v2384, 0
  %2391 = vmatpush.bf16.xpose.msra.mxu0 0
  %2392 = vmatpush.bf16.xpose.msra.mxu0 0
  %2393 = vmatpush.bf16.xpose.msra.mxu0 0
  %2394 = vmatpush.bf16.xpose.msra.mxu0 0
  %2395 = vmatpush.bf16.xpose.msra.mxu0 0
  %2396 = vmatpush.bf16.xpose.msra.mxu0 0
  %2397 = vmatpush.bf16.xpose.msra.mxu0 0
  %2398 = vmatpush.bf16.xpose.msra.mxu0 %v2389
  %2399 = vmatmul.bf16.gmra.mxu0 %v2386
  %v2400 = vpop.f32.mrf.mxu0
  %v2401 = vadd.f32 0.0, %v2400
  %v2402 = vpop.f32.mrf.mxu0
  %v2403 = vadd.f32 0.0, %v2402
  %2404 = vdwg.mxu0
  %v2407 = vunpack.c.l.b16 %v1809
  %v2408 = vunpack.c.l.b16 %v1810
  %v2409 = vpack.c.b16 %v2408, %v2407
  %v2412 = vunpack.c.l.b16 %v2061
  %v2413 = vunpack.c.l.b16 %v2062
  %v2414 = vpack.c.b16 %v2413, %v2412
  %v2416 = vsel %vm984, %v2409, 0
  %v2419 = vsel %vm984, %v2414, 0
  %2421 = vmatpush.bf16.xpose.msra.mxu0 0
  %2422 = vmatpush.bf16.xpose.msra.mxu0 0
  %2423 = vmatpush.bf16.xpose.msra.mxu0 0
  %2424 = vmatpush.bf16.xpose.msra.mxu0 0
  %2425 = vmatpush.bf16.xpose.msra.mxu0 0
  %2426 = vmatpush.bf16.xpose.msra.mxu0 0
  %2427 = vmatpush.bf16.xpose.msra.mxu0 0
  %2428 = vmatpush.bf16.xpose.msra.mxu0 %v2419
  %2429 = vmatmul.bf16.gmra.mxu0 %v2416
  %v2430 = vpop.f32.mrf.mxu0
  %v2431 = vadd.f32 0.0, %v2430
  %v2432 = vpop.f32.mrf.mxu0
  %v2433 = vadd.f32 0.0, %v2432
  %2434 = vdwg.mxu0
  %v2435 = vmul.f32 %v2341, 0.35355338
  %v2436 = vmul.f32 %v2343, 0.35355338
  %v2437 = vmul.f32 %v2371, 0.35355338
  %v2438 = vmul.f32 %v2373, 0.35355338
  %v2439 = vmul.f32 %v2401, 0.35355338
  %v2440 = vmul.f32 %v2403, 0.35355338
  %v2441 = vmul.f32 %v2431, 0.35355338
  %v2442 = vmul.f32 %v2433, 0.35355338
  %v2443 = vsel %vm1103, %v2435, -inf
  %2444 = vmax.xlane.f32.xlu0 %v2443
  %v2445 = vpop.xlane.xlu0 %2444
  %v2446 = vsel %vm1103, %v2436, -inf
  %2447 = vmax.xlane.f32.xlu0 %v2446
  %v2448 = vpop.xlane.xlu0 %2447
  %v2449 = vsel %vm1103, %v2437, -inf
  %2450 = vmax.xlane.f32.xlu0 %v2449
  %v2451 = vpop.xlane.xlu0 %2450
  %v2452 = vsel %vm1103, %v2438, -inf
  %2453 = vmax.xlane.f32.xlu0 %v2452
  %v2454 = vpop.xlane.xlu0 %2453
  %v2455 = vsel %vm1103, %v2439, -inf
  %2456 = vmax.xlane.f32.xlu0 %v2455
  %v2457 = vpop.xlane.xlu0 %2456
  %v2458 = vsel %vm1103, %v2440, -inf
  %2459 = vmax.xlane.f32.xlu0 %v2458
  %v2460 = vpop.xlane.xlu0 %2459
  %v2461 = vsel %vm1103, %v2441, -inf
  %2462 = vmax.xlane.f32.xlu0 %v2461
  %v2463 = vpop.xlane.xlu0 %2462
  %v2464 = vsel %vm1103, %v2442, -inf
  %2465 = vmax.xlane.f32.xlu0 %v2464
  %v2466 = vpop.xlane.xlu0 %2465
  %v2467 = vsub.f32 %v2435, %v2445
  %v2468 = vsub.f32 %v2436, %v2448
  %v2469 = vsub.f32 %v2437, %v2451
  %v2470 = vsub.f32 %v2438, %v2454
  %v2471 = vsub.f32 %v2439, %v2457
  %v2472 = vsub.f32 %v2440, %v2460
  %v2473 = vsub.f32 %v2441, %v2463
  %v2474 = vsub.f32 %v2442, %v2466
  %v2475 = vmul.f32 %v2467, 1.442695
  %v2476 = vpow.pop %v2475
  %v2477 = vmul.f32 %v2468, 1.442695
  %v2478 = vpow.pop %v2477
  %v2479 = vmul.f32 %v2469, 1.442695
  %v2480 = vpow.pop %v2479
  %v2481 = vmul.f32 %v2470, 1.442695
  %v2482 = vpow.pop %v2481
  %v2483 = vmul.f32 %v2471, 1.442695
  %v2484 = vpow.pop %v2483
  %v2485 = vmul.f32 %v2472, 1.442695
  %v2486 = vpow.pop %v2485
  %v2487 = vmul.f32 %v2473, 1.442695
  %v2488 = vpow.pop %v2487
  %v2489 = vmul.f32 %v2474, 1.442695
  %v2490 = vpow.pop %v2489
  %v2491 = vsel %vm1103, %v2476, 0.0
  %2492 = vadd.xlane.f32.xlu0 %v2491
  %v2493 = vpop.xlane.xlu0 %2492
  %v2494 = vsel %vm1103, %v2478, 0.0
  %2495 = vadd.xlane.f32.xlu0 %v2494
  %v2496 = vpop.xlane.xlu0 %2495
  %v2497 = vsel %vm1103, %v2480, 0.0
  %2498 = vadd.xlane.f32.xlu0 %v2497
  %v2499 = vpop.xlane.xlu0 %2498
  %v2500 = vsel %vm1103, %v2482, 0.0
  %2501 = vadd.xlane.f32.xlu0 %v2500
  %v2502 = vpop.xlane.xlu0 %2501
  %v2503 = vsel %vm1103, %v2484, 0.0
  %2504 = vadd.xlane.f32.xlu0 %v2503
  %v2505 = vpop.xlane.xlu0 %2504
  %v2506 = vsel %vm1103, %v2486, 0.0
  %2507 = vadd.xlane.f32.xlu0 %v2506
  %v2508 = vpop.xlane.xlu0 %2507
  %v2509 = vsel %vm1103, %v2488, 0.0
  %2510 = vadd.xlane.f32.xlu0 %v2509
  %v2511 = vpop.xlane.xlu0 %2510
  %v2512 = vsel %vm1103, %v2490, 0.0
  %2513 = vadd.xlane.f32.xlu0 %v2512
  %v2514 = vpop.xlane.xlu0 %2513
  %v2515 = vrcp.pop %v2493
  %v2516 = vrcp.pop %v2496
  %v2517 = vrcp.pop %v2499
  %v2518 = vrcp.pop %v2502
  %v2519 = vrcp.pop %v2505
  %v2520 = vrcp.pop %v2508
  %v2521 = vrcp.pop %v2511
  %v2522 = vrcp.pop %v2514
  %v2523 = vmul.f32 %v2476, %v2515
  %v2524 = vmul.f32 %v2478, %v2516
  %v2525 = vmul.f32 %v2480, %v2517
  %v2526 = vmul.f32 %v2482, %v2518
  %v2527 = vmul.f32 %v2484, %v2519
  %v2528 = vmul.f32 %v2486, %v2520
  %v2529 = vmul.f32 %v2488, %v2521
  %v2530 = vmul.f32 %v2490, %v2522
  %v2531 = vpack.c.bf16 %v2523, %v2523
  %v2532 = vpack.c.bf16 %v2524, %v2524
  %v2533 = vpack.c.bf16 %v2525, %v2525
  %v2534 = vpack.c.bf16 %v2526, %v2526
  %v2535 = vpack.c.bf16 %v2527, %v2527
  %v2536 = vpack.c.bf16 %v2528, %v2528
  %v2537 = vpack.c.bf16 %v2529, %v2529
  %v2538 = vpack.c.bf16 %v2530, %v2530
  %v2541 = vunpack.c.l.b16 %v2531
  %v2542 = vunpack.c.l.b16 %v2532
  %v2543 = vpack.c.b16 %v2542, %v2541
  %v2546 = vunpack.c.l.b16 %v2307
  %v2547 = vunpack.c.l.b16 %v2308
  %v2548 = vpack.c.b16 %v2547, %v2546
  %v2551 = vsel %vm1103, %v2543, 0
  %2553 = vmatpush.bf16.msra.mxu0 0
  %2554 = vmatpush.bf16.msra.mxu0 0
  %2555 = vmatpush.bf16.msra.mxu0 0
  %2556 = vmatpush.bf16.msra.mxu0 0
  %2557 = vmatpush.bf16.msra.mxu0 0
  %2558 = vmatpush.bf16.msra.mxu0 0
  %2559 = vmatpush.bf16.msra.mxu0 0
  %2560 = vmatpush.bf16.msra.mxu0 %v2548
  %2561 = vmatmul.bf16.gmra.mxu0 %v2551
  %v2562 = vpop.f32.mrf.mxu0
  %v2563 = vadd.f32 0.0, %v2562
  %v2564 = vpop.f32.mrf.mxu0
  %v2565 = vadd.f32 0.0, %v2564
  %2566 = vdwg.mxu0
  %v2569 = vunpack.c.l.b16 %v2533
  %v2570 = vunpack.c.l.b16 %v2534
  %v2571 = vpack.c.b16 %v2570, %v2569
  %v2574 = vunpack.c.l.b16 %v2309
  %v2575 = vunpack.c.l.b16 %v2310
  %v2576 = vpack.c.b16 %v2575, %v2574
  %v2579 = vsel %vm1103, %v2571, 0
  %2581 = vmatpush.bf16.msra.mxu0 0
  %2582 = vmatpush.bf16.msra.mxu0 0
  %2583 = vmatpush.bf16.msra.mxu0 0
  %2584 = vmatpush.bf16.msra.mxu0 0
  %2585 = vmatpush.bf16.msra.mxu0 0
  %2586 = vmatpush.bf16.msra.mxu0 0
  %2587 = vmatpush.bf16.msra.mxu0 0
  %2588 = vmatpush.bf16.msra.mxu0 %v2576
  %2589 = vmatmul.bf16.gmra.mxu0 %v2579
  %v2590 = vpop.f32.mrf.mxu0
  %v2591 = vadd.f32 0.0, %v2590
  %v2592 = vpop.f32.mrf.mxu0
  %v2593 = vadd.f32 0.0, %v2592
  %2594 = vdwg.mxu0
  %v2597 = vunpack.c.l.b16 %v2535
  %v2598 = vunpack.c.l.b16 %v2536
  %v2599 = vpack.c.b16 %v2598, %v2597
  %v2602 = vunpack.c.l.b16 %v2311
  %v2603 = vunpack.c.l.b16 %v2312
  %v2604 = vpack.c.b16 %v2603, %v2602
  %v2607 = vsel %vm1103, %v2599, 0
  %2609 = vmatpush.bf16.msra.mxu0 0
  %2610 = vmatpush.bf16.msra.mxu0 0
  %2611 = vmatpush.bf16.msra.mxu0 0
  %2612 = vmatpush.bf16.msra.mxu0 0
  %2613 = vmatpush.bf16.msra.mxu0 0
  %2614 = vmatpush.bf16.msra.mxu0 0
  %2615 = vmatpush.bf16.msra.mxu0 0
  %2616 = vmatpush.bf16.msra.mxu0 %v2604
  %2617 = vmatmul.bf16.gmra.mxu0 %v2607
  %v2618 = vpop.f32.mrf.mxu0
  %v2619 = vadd.f32 0.0, %v2618
  %v2620 = vpop.f32.mrf.mxu0
  %v2621 = vadd.f32 0.0, %v2620
  %2622 = vdwg.mxu0
  %v2625 = vunpack.c.l.b16 %v2537
  %v2626 = vunpack.c.l.b16 %v2538
  %v2627 = vpack.c.b16 %v2626, %v2625
  %v2630 = vunpack.c.l.b16 %v2313
  %v2631 = vunpack.c.l.b16 %v2314
  %v2632 = vpack.c.b16 %v2631, %v2630
  %v2635 = vsel %vm1103, %v2627, 0
  %2637 = vmatpush.bf16.msra.mxu0 0
  %2638 = vmatpush.bf16.msra.mxu0 0
  %2639 = vmatpush.bf16.msra.mxu0 0
  %2640 = vmatpush.bf16.msra.mxu0 0
  %2641 = vmatpush.bf16.msra.mxu0 0
  %2642 = vmatpush.bf16.msra.mxu0 0
  %2643 = vmatpush.bf16.msra.mxu0 0
  %2644 = vmatpush.bf16.msra.mxu0 %v2632
  %2645 = vmatmul.bf16.gmra.mxu0 %v2635
  %v2646 = vpop.f32.mrf.mxu0
  %v2647 = vadd.f32 0.0, %v2646
  %v2648 = vpop.f32.mrf.mxu0
  %v2649 = vadd.f32 0.0, %v2648
  %2650 = vdwg.mxu0
  %v2651 = vrot.slane %v2619, 4
  %v2652 = vsel %vm242, %v2651, %v2563
  %v2653 = vrot.slane %v2563, 4
  %v2654 = vsel %vm242, %v2619, %v2653
  %v2656 = vunpack.c.l.s4 1983009808
  %v2657 = vunpack.c.0.s8 %v2656
  %v2658 = vperm.slane %v2652, %v2657
  %v2660 = vunpack.c.l.s4 1983009808
  %v2661 = vunpack.c.0.s8 %v2660
  %v2662 = vperm.slane %v2654, %v2661
  %v2663 = vrot.slane %v2647, 4
  %v2664 = vsel %vm242, %v2663, %v2591
  %v2665 = vrot.slane %v2591, 4
  %v2666 = vsel %vm242, %v2647, %v2665
  %v2668 = vunpack.c.l.s4 1983009808
  %v2669 = vunpack.c.0.s8 %v2668
  %v2670 = vperm.slane %v2664, %v2669
  %v2672 = vunpack.c.l.s4 1983009808
  %v2673 = vunpack.c.0.s8 %v2672
  %v2674 = vperm.slane %v2666, %v2673
  %v2675 = vrot.slane %v2670, 4
  %v2676 = vsel %vm242, %v2675, %v2658
  %v2677 = vrot.slane %v2658, 4
  %v2678 = vsel %vm242, %v2670, %v2677
  %v2680 = vunpack.c.l.s4 1934713408
  %v2681 = vunpack.c.0.s8 %v2680
  %v2682 = vperm.slane %v2676, %v2681
  %v2684 = vunpack.c.l.s4 1934713408
  %v2685 = vunpack.c.0.s8 %v2684
  %v2686 = vperm.slane %v2678, %v2685
  %v2687 = vrot.slane %v2674, 4
  %v2688 = vsel %vm242, %v2687, %v2662
  %v2689 = vrot.slane %v2662, 4
  %v2690 = vsel %vm242, %v2674, %v2689
  %v2692 = vunpack.c.l.s4 1934713408
  %v2693 = vunpack.c.0.s8 %v2692
  %v2694 = vperm.slane %v2688, %v2693
  %v2696 = vunpack.c.l.s4 1934713408
  %v2697 = vunpack.c.0.s8 %v2696
  %v2698 = vperm.slane %v2690, %v2697
  %v2699 = vrot.slane %v2682, 4
  %v2700 = vsel %vm242, 0.0, %v2699
  %v2701 = vrot.slane %v2686, 4
  %v2702 = vsel %vm242, 0.0, %v2701
  %v2703 = vrot.slane %v2694, 4
  %v2704 = vsel %vm242, 0.0, %v2703
  %v2705 = vrot.slane %v2698, 4
  %v2706 = vsel %vm242, 0.0, %v2705
  %v2707 = vrot.slane %v2621, 4
  %v2708 = vsel %vm242, %v2707, %v2565
  %v2709 = vrot.slane %v2565, 4
  %v2710 = vsel %vm242, %v2621, %v2709
  %v2712 = vunpack.c.l.s4 1983009808
  %v2713 = vunpack.c.0.s8 %v2712
  %v2714 = vperm.slane %v2708, %v2713
  %v2716 = vunpack.c.l.s4 1983009808
  %v2717 = vunpack.c.0.s8 %v2716
  %v2718 = vperm.slane %v2710, %v2717
  %v2719 = vrot.slane %v2649, 4
  %v2720 = vsel %vm242, %v2719, %v2593
  %v2721 = vrot.slane %v2593, 4
  %v2722 = vsel %vm242, %v2649, %v2721
  %v2724 = vunpack.c.l.s4 1983009808
  %v2725 = vunpack.c.0.s8 %v2724
  %v2726 = vperm.slane %v2720, %v2725
  %v2728 = vunpack.c.l.s4 1983009808
  %v2729 = vunpack.c.0.s8 %v2728
  %v2730 = vperm.slane %v2722, %v2729
  %v2731 = vrot.slane %v2726, 4
  %v2732 = vsel %vm242, %v2731, %v2714
  %v2733 = vrot.slane %v2714, 4
  %v2734 = vsel %vm242, %v2726, %v2733
  %v2736 = vunpack.c.l.s4 1934713408
  %v2737 = vunpack.c.0.s8 %v2736
  %v2738 = vperm.slane %v2732, %v2737
  %v2740 = vunpack.c.l.s4 1934713408
  %v2741 = vunpack.c.0.s8 %v2740
  %v2742 = vperm.slane %v2734, %v2741
  %v2743 = vrot.slane %v2730, 4
  %v2744 = vsel %vm242, %v2743, %v2718
  %v2745 = vrot.slane %v2718, 4
  %v2746 = vsel %vm242, %v2730, %v2745
  %v2748 = vunpack.c.l.s4 1934713408
  %v2749 = vunpack.c.0.s8 %v2748
  %v2750 = vperm.slane %v2744, %v2749
  %v2752 = vunpack.c.l.s4 1934713408
  %v2753 = vunpack.c.0.s8 %v2752
  %v2754 = vperm.slane %v2746, %v2753
  %v2755 = vrot.slane %v2738, 4
  %v2756 = vsel %vm242, 0.0, %v2755
  %v2757 = vrot.slane %v2742, 4
  %v2758 = vsel %vm242, 0.0, %v2757
  %v2759 = vrot.slane %v2750, 4
  %v2760 = vsel %vm242, 0.0, %v2759
  %v2761 = vrot.slane %v2754, 4
  %v2762 = vsel %vm242, 0.0, %v2761
  %v2763 = vsel %vm242, %v2701, %v2682
  %v2765 = vunpack.c.l.s4 1983009808
  %v2766 = vunpack.c.0.s8 %v2765
  %v2767 = vperm.slane %v2763, %v2766
  %v2768 = vrot.slane %v2702, 4
  %v2769 = vsel %vm242, %v2768, %v2700
  %v2771 = vunpack.c.l.s4 1983009808
  %v2772 = vunpack.c.0.s8 %v2771
  %v2773 = vperm.slane %v2769, %v2772
  %v2774 = vsel %vm242, %v2705, %v2694
  %v2776 = vunpack.c.l.s4 1983009808
  %v2777 = vunpack.c.0.s8 %v2776
  %v2778 = vperm.slane %v2774, %v2777
  %v2779 = vrot.slane %v2706, 4
  %v2780 = vsel %vm242, %v2779, %v2704
  %v2782 = vunpack.c.l.s4 1983009808
  %v2783 = vunpack.c.0.s8 %v2782
  %v2784 = vperm.slane %v2780, %v2783
  %v2785 = vrot.slane %v2773, 4
  %v2786 = vsel %vm242, %v2785, %v2767
  %v2787 = vrot.slane %v2767, 4
  %v2788 = vsel %vm242, %v2773, %v2787
  %v2790 = vunpack.c.l.s4 1934713408
  %v2791 = vunpack.c.0.s8 %v2790
  %v2792 = vperm.slane %v2786, %v2791
  %v2794 = vunpack.c.l.s4 1934713408
  %v2795 = vunpack.c.0.s8 %v2794
  %v2796 = vperm.slane %v2788, %v2795
  %v2797 = vrot.slane %v2784, 4
  %v2798 = vsel %vm242, %v2797, %v2778
  %v2799 = vrot.slane %v2778, 4
  %v2800 = vsel %vm242, %v2784, %v2799
  %v2802 = vunpack.c.l.s4 1934713408
  %v2803 = vunpack.c.0.s8 %v2802
  %v2804 = vperm.slane %v2798, %v2803
  %v2806 = vunpack.c.l.s4 1934713408
  %v2807 = vunpack.c.0.s8 %v2806
  %v2808 = vperm.slane %v2800, %v2807
  %v2809 = vrot.slane %v2804, 4
  %v2810 = vsel %vm242, %v2809, %v2792
  %v2811 = vrot.slane %v2792, 4
  %v2812 = vsel %vm242, %v2804, %v2811
  %v2813 = vrot.slane %v2808, 4
  %v2814 = vsel %vm242, %v2813, %v2796
  %v2815 = vrot.slane %v2796, 4
  %v2816 = vsel %vm242, %v2808, %v2815
  %v2817 = vsel %vm242, %v2757, %v2738
  %v2819 = vunpack.c.l.s4 1983009808
  %v2820 = vunpack.c.0.s8 %v2819
  %v2821 = vperm.slane %v2817, %v2820
  %v2822 = vrot.slane %v2758, 4
  %v2823 = vsel %vm242, %v2822, %v2756
  %v2825 = vunpack.c.l.s4 1983009808
  %v2826 = vunpack.c.0.s8 %v2825
  %v2827 = vperm.slane %v2823, %v2826
  %v2828 = vsel %vm242, %v2761, %v2750
  %v2830 = vunpack.c.l.s4 1983009808
  %v2831 = vunpack.c.0.s8 %v2830
  %v2832 = vperm.slane %v2828, %v2831
  %v2833 = vrot.slane %v2762, 4
  %v2834 = vsel %vm242, %v2833, %v2760
  %v2836 = vunpack.c.l.s4 1983009808
  %v2837 = vunpack.c.0.s8 %v2836
  %v2838 = vperm.slane %v2834, %v2837
  %v2839 = vrot.slane %v2827, 4
  %v2840 = vsel %vm242, %v2839, %v2821
  %v2841 = vrot.slane %v2821, 4
  %v2842 = vsel %vm242, %v2827, %v2841
  %v2844 = vunpack.c.l.s4 1934713408
  %v2845 = vunpack.c.0.s8 %v2844
  %v2846 = vperm.slane %v2840, %v2845
  %v2848 = vunpack.c.l.s4 1934713408
  %v2849 = vunpack.c.0.s8 %v2848
  %v2850 = vperm.slane %v2842, %v2849
  %v2851 = vrot.slane %v2838, 4
  %v2852 = vsel %vm242, %v2851, %v2832
  %v2853 = vrot.slane %v2832, 4
  %v2854 = vsel %vm242, %v2838, %v2853
  %v2856 = vunpack.c.l.s4 1934713408
  %v2857 = vunpack.c.0.s8 %v2856
  %v2858 = vperm.slane %v2852, %v2857
  %v2860 = vunpack.c.l.s4 1934713408
  %v2861 = vunpack.c.0.s8 %v2860
  %v2862 = vperm.slane %v2854, %v2861
  %v2863 = vrot.slane %v2858, 4
  %v2864 = vsel %vm242, %v2863, %v2846
  %v2865 = vrot.slane %v2846, 4
  %v2866 = vsel %vm242, %v2858, %v2865
  %v2867 = vrot.slane %v2862, 4
  %v2868 = vsel %vm242, %v2867, %v2850
  %v2869 = vrot.slane %v2850, 4
  %v2870 = vsel %vm242, %v2862, %v2869
  %2873 = vrot.lane.b32.xlu0 %v2812, 8
  %v2874 = vpop.permute.xlu0 %2873
  %2875 = vrot.lane.b32.xlu0 %v2866, 8
  %v2876 = vpop.permute.xlu0 %2875
  %2881 = vrot.lane.b32.xlu0 %v2814, 16
  %v2882 = vpop.permute.xlu0 %2881
  %2883 = vrot.lane.b32.xlu0 %v2868, 16
  %v2884 = vpop.permute.xlu0 %2883
  %2889 = vrot.lane.b32.xlu0 %v2816, 24
  %v2890 = vpop.permute.xlu0 %2889
  %2891 = vrot.lane.b32.xlu0 %v2870, 24
  %v2892 = vpop.permute.xlu0 %2891
  %v2895 = vsel %vm984, %v2810, %v2874
  %v2896 = vsel %vm984, %v2864, %v2876
  %v2897 = vsel %vm1103, %v2895, %v2882
  %v2898 = vsel %vm1103, %v2896, %v2884
  %v2899 = vsel %vm1560, %v2897, %v2890
  %v2900 = vsel %vm1560, %v2898, %v2892
  %v2901 = vld [vmem:[%s6] sm:$0xf]
  %v2902 = vld [vmem:[%s6 + $0x4] sm:$0xf]
  %v2903 = vld [vmem:[%s6 + $0x8] sm:$0xf]
  %v2904 = vld [vmem:[%s6 + $0xc] sm:$0xf]
  %v2905 = vpack.c.bf16 %v1562, %v1561
  %v2906 = vpack.c.bf16 %v2900, %v2899
  %v2911 = vunpack.c.l.b16 %v2901
  %v2912 = vunpack.c.l.b16 %v2902
  %v2913 = vunpack.c.l.b16 %v2903
  %v2914 = vunpack.c.l.b16 %v2904
  %v2915 = vpack.c.b16 %v2912, %v2911
  %v2916 = vpack.c.b16 %v2914, %v2913
  %v2920 = vsel %vm64, %v2905, 0
  %v2923 = vsel %vm64, %v2906, 0
  %2925 = vmatpush.bf16.msra.mxu0 0
  %2926 = vmatpush.bf16.msra.mxu0 0
  %2927 = vmatpush.bf16.msra.mxu0 0
  %2928 = vmatpush.bf16.msra.mxu0 0
  %2929 = vmatpush.bf16.msra.mxu0 0
  %2930 = vmatpush.bf16.msra.mxu0 0
  %2931 = vmatpush.bf16.msra.mxu0 %v2916
  %2932 = vmatpush.bf16.msra.mxu0 %v2915
  %2933 = vmatmul.bf16.gmra.mxu0 %v2920
  %v2934 = vpop.f32.mrf.mxu0
  %v2935 = vadd.f32 0.0, %v2934
  %v2936 = vpop.f32.mrf.mxu0
  %v2937 = vadd.f32 0.0, %v2936
  %2938 = vmatmul.bf16.gmra.mxu0 %v2923
  %v2939 = vpop.f32.mrf.mxu0
  %v2940 = vadd.f32 0.0, %v2939
  %v2941 = vpop.f32.mrf.mxu0
  %v2942 = vadd.f32 0.0, %v2941
  %2943 = vdwg.mxu0
  %v2944 = vadd.f32 %v58, %v2935
  %v2945 = vadd.f32 %v59, %v2937
  %v2946 = vadd.f32 %v60, %v2940
  %v2947 = vadd.f32 %v61, %v2942
  %v2948 = vld [vmem:[%s7] sm:$0x1]
  %v2950 = vperm.slane %v2948, 0
  %v2952 = vadd.f32 %v2944, %v2950
  %v2953 = vadd.f32 %v2945, %v2950
  %v2954 = vadd.f32 %v2946, %v2950
  %v2955 = vadd.f32 %v2947, %v2950
  %v2956 = vld [vmem:[%s8] sm:$0x1]
  %v2957 = vld [vmem:[%s9] sm:$0x1]
  %v2958 = vsel %vm64, %v2952, 0.0
  %2959 = vadd.xlane.f32.xlu0 %v2958
  %v2960 = vpop.xlane.xlu0 %2959
  %v2961 = vsel %vm64, %v2953, 0.0
  %2962 = vadd.xlane.f32.xlu0 %v2961
  %v2963 = vpop.xlane.xlu0 %2962
  %v2964 = vsel %vm64, %v2954, 0.0
  %2965 = vadd.xlane.f32.xlu0 %v2964
  %v2966 = vpop.xlane.xlu0 %2965
  %v2967 = vsel %vm64, %v2955, 0.0
  %2968 = vadd.xlane.f32.xlu0 %v2967
  %v2969 = vpop.xlane.xlu0 %2968
  %v2970 = vmul.f32 %v2960, %v83
  %v2971 = vmul.f32 %v2963, %v83
  %v2972 = vmul.f32 %v2966, %v83
  %v2973 = vmul.f32 %v2969, %v83
  %v2974 = vsub.f32 %v2952, %v2970
  %v2975 = vsub.f32 %v2953, %v2971
  %v2976 = vsub.f32 %v2954, %v2972
  %v2977 = vsub.f32 %v2955, %v2973
  %v2978 = vmul.f32 %v2974, %v2974
  %v2979 = vmul.f32 %v2975, %v2975
  %v2980 = vmul.f32 %v2976, %v2976
  %v2981 = vmul.f32 %v2977, %v2977
  %v2982 = vsel %vm64, %v2978, 0.0
  %2983 = vadd.xlane.f32.xlu0 %v2982
  %v2984 = vpop.xlane.xlu0 %2983
  %v2985 = vsel %vm64, %v2979, 0.0
  %2986 = vadd.xlane.f32.xlu0 %v2985
  %v2987 = vpop.xlane.xlu0 %2986
  %v2988 = vsel %vm64, %v2980, 0.0
  %2989 = vadd.xlane.f32.xlu0 %v2988
  %v2990 = vpop.xlane.xlu0 %2989
  %v2991 = vsel %vm64, %v2981, 0.0
  %2992 = vadd.xlane.f32.xlu0 %v2991
  %v2993 = vpop.xlane.xlu0 %2992
  %v2994 = vmul.f32 %v2984, %v83
  %v2995 = vmul.f32 %v2987, %v83
  %v2996 = vmul.f32 %v2990, %v83
  %v2997 = vmul.f32 %v2993, %v83
  %v2998 = vadd.f32 %v2994, 1e-05
  %v2999 = vadd.f32 %v2995, 1e-05
  %v3000 = vadd.f32 %v2996, 1e-05
  %v3001 = vadd.f32 %v2997, 1e-05
  %v3002 = vrsqrt.pop %v2998
  %v3003 = vmul.f32 %v3002, %v2998
  %v3004 = vmul.f32 %v3003, %v3002
  %v3005 = vmul.f32 0.5, %v3004
  %v3006 = vsub.f32 1.5, %v3005
  %v3007 = vmul.f32 %v3002, %v3006
  %vm3008 = vweird.f32 %v2998
  %vm3009 = vweird.f32 %v3002
  %vm3010 = vmor %vm3008, %vm3009
  %v3011 = vsel %vm3010, %v3002, %v3007
  %v3012 = vrsqrt.pop %v2999
  %v3013 = vmul.f32 %v3012, %v2999
  %v3014 = vmul.f32 %v3013, %v3012
  %v3015 = vmul.f32 0.5, %v3014
  %v3016 = vsub.f32 1.5, %v3015
  %v3017 = vmul.f32 %v3012, %v3016
  %vm3018 = vweird.f32 %v2999
  %vm3019 = vweird.f32 %v3012
  %vm3020 = vmor %vm3018, %vm3019
  %v3021 = vsel %vm3020, %v3012, %v3017
  %v3022 = vrsqrt.pop %v3000
  %v3023 = vmul.f32 %v3022, %v3000
  %v3024 = vmul.f32 %v3023, %v3022
  %v3025 = vmul.f32 0.5, %v3024
  %v3026 = vsub.f32 1.5, %v3025
  %v3027 = vmul.f32 %v3022, %v3026
  %vm3028 = vweird.f32 %v3000
  %vm3029 = vweird.f32 %v3022
  %vm3030 = vmor %vm3028, %vm3029
  %v3031 = vsel %vm3030, %v3022, %v3027
  %v3032 = vrsqrt.pop %v3001
  %v3033 = vmul.f32 %v3032, %v3001
  %v3034 = vmul.f32 %v3033, %v3032
  %v3035 = vmul.f32 0.5, %v3034
  %v3036 = vsub.f32 1.5, %v3035
  %v3037 = vmul.f32 %v3032, %v3036
  %vm3038 = vweird.f32 %v3001
  %vm3039 = vweird.f32 %v3032
  %vm3040 = vmor %vm3038, %vm3039
  %v3041 = vsel %vm3040, %v3032, %v3037
  %v3042 = vmul.f32 %v2974, %v3011
  %v3043 = vmul.f32 %v2975, %v3021
  %v3044 = vmul.f32 %v2976, %v3031
  %v3045 = vmul.f32 %v2977, %v3041
  %v3047 = vperm.slane %v2956, 0
  %v3049 = vmul.f32 %v3042, %v3047
  %v3050 = vmul.f32 %v3043, %v3047
  %v3051 = vmul.f32 %v3044, %v3047
  %v3052 = vmul.f32 %v3045, %v3047
  %v3054 = vperm.slane %v2957, 0
  %v3056 = vadd.f32 %v3049, %v3054
  %v3057 = vadd.f32 %v3050, %v3054
  %v3058 = vadd.f32 %v3051, %v3054
  %v3059 = vadd.f32 %v3052, %v3054
  %v3060 = vld [vmem:[%s10] sm:$0xf]
  %v3061 = vld [vmem:[%s10 + $0x4] sm:$0xf]
  %v3062 = vld [vmem:[%s10 + $0x8] sm:$0xf]
  %v3063 = vld [vmem:[%s10 + $0xc] sm:$0xf]
  %v3064 = vpack.c.bf16 %v3057, %v3056
  %v3065 = vpack.c.bf16 %v3059, %v3058
  %v3066 = vld [vmem:[%s11] sm:$0x1]
  %v3068 = vperm.slane %v3066, 0
  %v3074 = vunpack.c.l.b16 %v3060
  %v3075 = vunpack.c.l.b16 %v3061
  %v3076 = vunpack.c.l.b16 %v3062
  %v3077 = vunpack.c.l.b16 %v3063
  %v3078 = vpack.c.b16 %v3075, %v3074
  %v3079 = vpack.c.b16 %v3077, %v3076
  %v3083 = vsel %vm64, %v3064, 0
  %v3086 = vsel %vm64, %v3065, 0
  %3088 = vmatpush.bf16.msra.mxu0 0
  %3089 = vmatpush.bf16.msra.mxu0 0
  %3090 = vmatpush.bf16.msra.mxu0 0
  %3091 = vmatpush.bf16.msra.mxu0 0
  %3092 = vmatpush.bf16.msra.mxu0 0
  %3093 = vmatpush.bf16.msra.mxu0 0
  %3094 = vmatpush.bf16.msra.mxu0 %v3079
  %3095 = vmatpush.bf16.msra.mxu0 %v3078
  %3096 = vmatmul.bf16.gmra.mxu0 %v3083
  %v3097 = vpop.f32.mrf.mxu0
  %v3098 = vadd.f32 %v3068, %v3097
  %v3099 = vpop.f32.mrf.mxu0
  %v3100 = vadd.f32 %v3068, %v3099
  %3101 = vmatmul.bf16.gmra.mxu0 %v3086
  %v3102 = vpop.f32.mrf.mxu0
  %v3103 = vadd.f32 %v3068, %v3102
  %v3104 = vpop.f32.mrf.mxu0
  %v3105 = vadd.f32 %v3068, %v3104
  %3106 = vdwg.mxu0
  %v3107 = vmul.f32 %v3098, %v3098
  %v3108 = vmul.f32 %v3100, %v3100
  %v3109 = vmul.f32 %v3103, %v3103
  %v3110 = vmul.f32 %v3105, %v3105
  %v3111 = vmul.f32 %v3098, %v3107
  %v3112 = vmul.f32 %v3100, %v3108
  %v3113 = vmul.f32 %v3103, %v3109
  %v3114 = vmul.f32 %v3105, %v3110
  %v3115 = vmul.f32 %v3111, 0.044715
  %v3116 = vmul.f32 %v3112, 0.044715
  %v3117 = vmul.f32 %v3113, 0.044715
  %v3118 = vmul.f32 %v3114, 0.044715
  %v3119 = vadd.f32 %v3098, %v3115
  %v3120 = vadd.f32 %v3100, %v3116
  %v3121 = vadd.f32 %v3103, %v3117
  %v3122 = vadd.f32 %v3105, %v3118
  %v3123 = vmul.f32 %v3119, 0.7978846
  %v3124 = vmul.f32 %v3120, 0.7978846
  %v3125 = vmul.f32 %v3121, 0.7978846
  %v3126 = vmul.f32 %v3122, 0.7978846
  %v3127 = vtanh.pop %v3123
  %v3128 = vtanh.pop %v3124
  %v3129 = vtanh.pop %v3125
  %v3130 = vtanh.pop %v3126
  %v3131 = vadd.f32 %v3127, 1.0
  %v3132 = vadd.f32 %v3128, 1.0
  %v3133 = vadd.f32 %v3129, 1.0
  %v3134 = vadd.f32 %v3130, 1.0
  %v3135 = vmul.f32 %v3131, 0.5
  %v3136 = vmul.f32 %v3132, 0.5
  %v3137 = vmul.f32 %v3133, 0.5
  %v3138 = vmul.f32 %v3134, 0.5
  %v3139 = vmul.f32 %v3098, %v3135
  %v3140 = vmul.f32 %v3100, %v3136
  %v3141 = vmul.f32 %v3103, %v3137
  %v3142 = vmul.f32 %v3105, %v3138
  %v3143 = vld [vmem:[%s12] sm:$0xf]
  %v3144 = vld [vmem:[%s12 + $0x4] sm:$0xf]
  %v3145 = vld [vmem:[%s12 + $0x8] sm:$0xf]
  %v3146 = vld [vmem:[%s12 + $0xc] sm:$0xf]
  %v3147 = vld [vmem:[%s12 + $0x10] sm:$0xf]
  %v3148 = vld [vmem:[%s12 + $0x14] sm:$0xf]
  %v3149 = vld [vmem:[%s12 + $0x18] sm:$0xf]
  %v3150 = vld [vmem:[%s12 + $0x1c] sm:$0xf]
  %v3151 = vpack.c.bf16 %v3140, %v3139
  %v3152 = vpack.c.bf16 %v3142, %v3141
  %v3153 = vld [vmem:[%s13] sm:$0x1]
  %v3155 = vperm.slane %v3153, 0
  %v3165 = vunpack.c.l.b16 %v3143
  %v3166 = vunpack.c.l.b16 %v3144
  %v3167 = vunpack.c.l.b16 %v3145
  %v3168 = vunpack.c.l.b16 %v3146
  %v3169 = vunpack.c.l.b16 %v3147
  %v3170 = vunpack.c.l.b16 %v3148
  %v3171 = vunpack.c.l.b16 %v3149
  %v3172 = vunpack.c.l.b16 %v3150
  %v3173 = vpack.c.b16 %v3166, %v3165
  %v3174 = vpack.c.b16 %v3168, %v3167
  %v3175 = vpack.c.b16 %v3170, %v3169
  %v3176 = vpack.c.b16 %v3172, %v3171
  %vm3181 = vcmask 523264
  %v3183 = vsel %vm3181, %v3151, 0
  %v3186 = vsel %vm3181, %v3152, 0
  %3188 = vmatpush.bf16.msra.mxu0 0
  %3189 = vmatpush.bf16.msra.mxu0 0
  %3190 = vmatpush.bf16.msra.mxu0 0
  %3191 = vmatpush.bf16.msra.mxu0 0
  %3192 = vmatpush.bf16.msra.mxu0 %v3176
  %3193 = vmatpush.bf16.msra.mxu0 %v3175
  %3194 = vmatpush.bf16.msra.mxu0 %v3174
  %3195 = vmatpush.bf16.msra.mxu0 %v3173
  %3196 = vmatmul.bf16.gmra.mxu0 %v3183
  %v3197 = vpop.f32.mrf.mxu0
  %v3198 = vadd.f32 %v3155, %v3197
  %v3199 = vpop.f32.mrf.mxu0
  %v3200 = vadd.f32 %v3155, %v3199
  %3201 = vmatmul.bf16.gmra.mxu0 %v3186
  %v3202 = vpop.f32.mrf.mxu0
  %v3203 = vadd.f32 %v3155, %v3202
  %v3204 = vpop.f32.mrf.mxu0
  %v3205 = vadd.f32 %v3155, %v3204
  %3206 = vdwg.mxu0
  %v3207 = vadd.f32 %v2952, %v3198
  %v3208 = vadd.f32 %v2953, %v3200
  %v3209 = vadd.f32 %v2954, %v3203
  %v3210 = vadd.f32 %v2955, %v3205
  %v3211 = vpack.c.bf16 %v3207, %v3207
  %v3212 = vpack.c.bf16 %v3208, %v3208
  %v3213 = vpack.c.bf16 %v3209, %v3209
  %v3214 = vpack.c.bf16 %v3210, %v3210
  %vm3215 = vcmask 257024
  %3216 = vst.msk [vmem:[%s14] sm:$0xf] %vm3215, %v3211
  %3217 = vst.msk [vmem:[%s14 + $0x4] sm:$0xf] %vm3215, %v3212
  %3218 = vst.msk [vmem:[%s14 + $0x8] sm:$0xf] %vm3215, %v3213
  %3219 = vst.msk [vmem:[%s14 + $0xc] sm:$0xf] %vm3215, %v3214
  // Predicated region
  $region58: #{_lambda_.4} parent=0 // pred_check
    _
  $region59: #{_lambda_.4} parent=0 // pred_check_branch
    %3221 = sbr.rel (0) target = $region61
  $region60: #{_lambda_.4} parent=0 // pred_region
    _
  $region61: #{_lambda_.4} parent=0 // pred_fallthru
    _
  // Predicated region
  $region62: #{_lambda_.4} parent=0 // pred_check
    _
  $region63: #{_lambda_.4} parent=0 // pred_check_branch
    %3223 = sbr.rel (0) target = $region65
  $region64: #{_lambda_.4} parent=0 // pred_region
    _
  $region65: #{_lambda_.4} parent=0 // pred_fallthru
    _

// kernel: _lambda_.3
$region0: #{_lambda_.3}
  #allocation0 [shape = 'u32[]', space=smem, size = 0x4, offset = 0x4, fixed_abs, tag = 'smem constant byte address 0x4 - core index']
  #allocation1 [shape = 'u32[72,128]{1,0:T(1,128)}', space=vmem, size = 0x9000, scoped, tag = 'internal scratch']
  %s0 = inlined_call_operand.vmem [shape: f32[2,16,64], index: 0, kind: input, shape index: {}]
  %s1 = inlined_call_operand.vmem [shape: bf16[64,32], index: 1, kind: input, shape index: {}]
  %s2 = inlined_call_operand.vmem [shape: f32[1,32], index: 2, kind: input, shape index: {}]
  %s3 = inlined_call_operand.vmem [shape: f32[1,32], index: 3, kind: input, shape index: {}]
  %s4 = inlined_call_operand.vmem [shape: f32[1,32], index: 4, kind: input, shape index: {}]
  %s5 = inlined_call_operand.vmem [shape: bf16[32,96], index: 5, kind: input, shape index: {}]
  %s6 = inlined_call_operand.vmem [shape: f32[1,96], index: 6, kind: input, shape index: {}]
  %s7 = inlined_call_operand.vmem [shape: bf16[32,32], index: 7, kind: input, shape index: {}]
  %s8 = inlined_call_operand.vmem [shape: f32[1,32], index: 8, kind: input, shape index: {}]
  %s9 = inlined_call_operand.vmem [shape: f32[1,32], index: 9, kind: input, shape index: {}]
  %s10 = inlined_call_operand.vmem [shape: f32[1,32], index: 10, kind: input, shape index: {}]
  %s11 = inlined_call_operand.vmem [shape: bf16[32,64], index: 11, kind: input, shape index: {}]
  %s12 = inlined_call_operand.vmem [shape: f32[1,64], index: 12, kind: input, shape index: {}]
  %s13 = inlined_call_operand.vmem [shape: bf16[64,32], index: 13, kind: input, shape index: {}]
  %s14 = inlined_call_operand.vmem [shape: f32[1,32], index: 14, kind: input, shape index: {}]
  %s15 = inlined_call_operand.vmem [shape: f32[1,32], index: 15, kind: input, shape index: {}]
  %s16 = inlined_call_operand.vmem [shape: f32[1,32], index: 16, kind: input, shape index: {}]
  %s17 = inlined_call_operand.vmem [shape: f32[1,16,32], index: 17, kind: input, shape index: {}]
  %s18 = inlined_call_operand.vmem [shape: bf16[32,32], index: 18, kind: input, shape index: {}]
  %s19 = inlined_call_operand.vmem [shape: f32[1,32], index: 19, kind: input, shape index: {}]
  %s20 = inlined_call_operand.vmem [shape: bf16[2,16,32], index: 20, kind: output, shape index: {}]
  %s21 = sld [smem:[#allocation0]]
  $region90: #{_lambda_.3} parent=0
    _
  %s23 = ssub.s32 1, %s21
  %s24 = scalar_select 0, %s23, %s21
  // Predicated region
  $region2: #{_lambda_.3} parent=0 // pred_check
    _
  $region3: #{_lambda_.3} parent=0 // pred_check_branch
    %26 = sbr.rel (0) target = $region5
  $region4: #{_lambda_.3} parent=0 // pred_region
    _
  $region5: #{_lambda_.3} parent=0 // pred_fallthru
    _
  // Predicated region
  $region6: #{_lambda_.3} parent=0 // pred_check
    _
  $region7: #{_lambda_.3} parent=0 // pred_check_branch
    %28 = sbr.rel (0) target = $region9
  $region8: #{_lambda_.3} parent=0 // pred_region
    _
  $region9: #{_lambda_.3} parent=0 // pred_fallthru
    _
  // Predicated region
  $region10: #{_lambda_.3} parent=0 // pred_check
    _
  $region11: #{_lambda_.3} parent=0 // pred_check_branch
    %30 = sbr.rel (0) target = $region13
  $region12: #{_lambda_.3} parent=0 // pred_region
    _
  $region13: #{_lambda_.3} parent=0 // pred_fallthru
    _
  // Predicated region
  $region14: #{_lambda_.3} parent=0 // pred_check
    _
  $region15: #{_lambda_.3} parent=0 // pred_check_branch
    %32 = sbr.rel (0) target = $region17
  $region16: #{_lambda_.3} parent=0 // pred_region
    _
  $region17: #{_lambda_.3} parent=0 // pred_fallthru
    _
  // Predicated region
  $region18: #{_lambda_.3} parent=0 // pred_check
    _
  $region19: #{_lambda_.3} parent=0 // pred_check_branch
    %34 = sbr.rel (0) target = $region21
  $region20: #{_lambda_.3} parent=0 // pred_region
    _
  $region21: #{_lambda_.3} parent=0 // pred_fallthru
    _
  // Predicated region
  $region22: #{_lambda_.3} parent=0 // pred_check
    _
  $region23: #{_lambda_.3} parent=0 // pred_check_branch
    %36 = sbr.rel (0) target = $region25
  $region24: #{_lambda_.3} parent=0 // pred_region
    _
  $region25: #{_lambda_.3} parent=0 // pred_fallthru
    _
  // Predicated region
  $region26: #{_lambda_.3} parent=0 // pred_check
    _
  $region27: #{_lambda_.3} parent=0 // pred_check_branch
    %38 = sbr.rel (0) target = $region29
  $region28: #{_lambda_.3} parent=0 // pred_region
    _
  $region29: #{_lambda_.3} parent=0 // pred_fallthru
    _
  // Predicated region
  $region30: #{_lambda_.3} parent=0 // pred_check
    _
  $region31: #{_lambda_.3} parent=0 // pred_check_branch
    %40 = sbr.rel (0) target = $region33
  $region32: #{_lambda_.3} parent=0 // pred_region
    _
  $region33: #{_lambda_.3} parent=0 // pred_fallthru
    _
  // Predicated region
  $region34: #{_lambda_.3} parent=0 // pred_check
    _
  $region35: #{_lambda_.3} parent=0 // pred_check_branch
    %42 = sbr.rel (0) target = $region37
  $region36: #{_lambda_.3} parent=0 // pred_region
    _
  $region37: #{_lambda_.3} parent=0 // pred_fallthru
    _
  // Predicated region
  $region38: #{_lambda_.3} parent=0 // pred_check
    _
  $region39: #{_lambda_.3} parent=0 // pred_check_branch
    %44 = sbr.rel (0) target = $region41
  $region40: #{_lambda_.3} parent=0 // pred_region
    _
  $region41: #{_lambda_.3} parent=0 // pred_fallthru
    _
  // Predicated region
  $region42: #{_lambda_.3} parent=0 // pred_check
    _
  $region43: #{_lambda_.3} parent=0 // pred_check_branch
    %46 = sbr.rel (0) target = $region45
  $region44: #{_lambda_.3} parent=0 // pred_region
    _
  $region45: #{_lambda_.3} parent=0 // pred_fallthru
    _
  // Predicated region
  $region46: #{_lambda_.3} parent=0 // pred_check
    _
  $region47: #{_lambda_.3} parent=0 // pred_check_branch
    %48 = sbr.rel (0) target = $region49
  $region48: #{_lambda_.3} parent=0 // pred_region
    _
  $region49: #{_lambda_.3} parent=0 // pred_fallthru
    _
  // Predicated region
  $region50: #{_lambda_.3} parent=0 // pred_check
    _
  $region51: #{_lambda_.3} parent=0 // pred_check_branch
    %50 = sbr.rel (0) target = $region53
  $region52: #{_lambda_.3} parent=0 // pred_region
    _
  $region53: #{_lambda_.3} parent=0 // pred_fallthru
    _
  // Predicated region
  $region54: #{_lambda_.3} parent=0 // pred_check
    _
  $region55: #{_lambda_.3} parent=0 // pred_check_branch
    %52 = sbr.rel (0) target = $region57
  $region56: #{_lambda_.3} parent=0 // pred_region
    _
  $region57: #{_lambda_.3} parent=0 // pred_fallthru
    _
  // Predicated region
  $region58: #{_lambda_.3} parent=0 // pred_check
    _
  $region59: #{_lambda_.3} parent=0 // pred_check_branch
    %54 = sbr.rel (0) target = $region61
  $region60: #{_lambda_.3} parent=0 // pred_region
    _
  $region61: #{_lambda_.3} parent=0 // pred_fallthru
    _
  // Predicated region
  $region62: #{_lambda_.3} parent=0 // pred_check
    _
  $region63: #{_lambda_.3} parent=0 // pred_check_branch
    %56 = sbr.rel (0) target = $region65
  $region64: #{_lambda_.3} parent=0 // pred_region
    _
  $region65: #{_lambda_.3} parent=0 // pred_fallthru
    _
  // Predicated region
  $region66: #{_lambda_.3} parent=0 // pred_check
    _
  $region67: #{_lambda_.3} parent=0 // pred_check_branch
    %58 = sbr.rel (0) target = $region69
  $region68: #{_lambda_.3} parent=0 // pred_region
    _
  $region69: #{_lambda_.3} parent=0 // pred_fallthru
    _
  // Predicated region
  $region70: #{_lambda_.3} parent=0 // pred_check
    _
  $region71: #{_lambda_.3} parent=0 // pred_check_branch
    %60 = sbr.rel (0) target = $region73
  $region72: #{_lambda_.3} parent=0 // pred_region
    _
  $region73: #{_lambda_.3} parent=0 // pred_fallthru
    _
  // Predicated region
  $region74: #{_lambda_.3} parent=0 // pred_check
    _
  $region75: #{_lambda_.3} parent=0 // pred_check_branch
    %62 = sbr.rel (0) target = $region77
  $region76: #{_lambda_.3} parent=0 // pred_region
    _
  $region77: #{_lambda_.3} parent=0 // pred_fallthru
    _
  // Predicated region
  $region78: #{_lambda_.3} parent=0 // pred_check
    _
  $region79: #{_lambda_.3} parent=0 // pred_check_branch
    %64 = sbr.rel (0) target = $region81
  $region80: #{_lambda_.3} parent=0 // pred_region
    _
  $region81: #{_lambda_.3} parent=0 // pred_fallthru
    _
  %v66 = vld [vmem:[%s0] sm:$0xff]
  %v67 = vld [vmem:[%s0 + $0x8] sm:$0xff]
  %v68 = vld [vmem:[%s0 + $0x10] sm:$0xff]
  %v69 = vld [vmem:[%s0 + $0x18] sm:$0xff]
  %v70 = vld [vmem:[%s1] sm:$0xf]
  %v71 = vld [vmem:[%s1 + $0x4] sm:$0xf]
  %v72 = vld [vmem:[%s1 + $0x8] sm:$0xf]
  %v73 = vld [vmem:[%s1 + $0xc] sm:$0xf]
  %v74 = vld [vmem:[%s1 + $0x10] sm:$0xf]
  %v75 = vld [vmem:[%s1 + $0x14] sm:$0xf]
  %v76 = vld [vmem:[%s1 + $0x18] sm:$0xf]
  %v77 = vld [vmem:[%s1 + $0x1c] sm:$0xf]
  %v78 = vpack.c.bf16 %v67, %v66
  %v79 = vpack.c.bf16 %v69, %v68
  %v80 = vld [vmem:[%s2] sm:$0x1]
  %v82 = vperm.slane %v80, 0
  %v92 = vunpack.c.l.b16 %v70
  %v93 = vunpack.c.l.b16 %v71
  %v94 = vunpack.c.l.b16 %v72
  %v95 = vunpack.c.l.b16 %v73
  %v96 = vunpack.c.l.b16 %v74
  %v97 = vunpack.c.l.b16 %v75
  %v98 = vunpack.c.l.b16 %v76
  %v99 = vunpack.c.l.b16 %v77
  %v100 = vpack.c.b16 %v93, %v92
  %v101 = vpack.c.b16 %v95, %v94
  %v102 = vpack.c.b16 %v97, %v96
  %v103 = vpack.c.b16 %v99, %v98
  %vm108 = vcmask 523264
  %v110 = vsel %vm108, %v78, 0
  %v113 = vsel %vm108, %v79, 0
  %115 = vmatpush.bf16.msra.mxu0 0
  %116 = vmatpush.bf16.msra.mxu0 0
  %117 = vmatpush.bf16.msra.mxu0 0
  %118 = vmatpush.bf16.msra.mxu0 0
  %119 = vmatpush.bf16.msra.mxu0 %v103
  %120 = vmatpush.bf16.msra.mxu0 %v102
  %121 = vmatpush.bf16.msra.mxu0 %v101
  %122 = vmatpush.bf16.msra.mxu0 %v100
  %123 = vmatmul.bf16.gmra.mxu0 %v110
  %v124 = vpop.f32.mrf.mxu0
  %v125 = vadd.f32 %v82, %v124
  %v126 = vpop.f32.mrf.mxu0
  %v127 = vadd.f32 %v82, %v126
  %128 = vmatmul.bf16.gmra.mxu0 %v113
  %v129 = vpop.f32.mrf.mxu0
  %v130 = vadd.f32 %v82, %v129
  %v131 = vpop.f32.mrf.mxu0
  %v132 = vadd.f32 %v82, %v131
  %133 = vdwg.mxu0
  %v134 = vld [vmem:[%s3] sm:$0x1]
  %v135 = vld [vmem:[%s4] sm:$0x1]
  %vm136 = vcmask 261120
  %v137 = vsel %vm136, %v125, 0.0
  %138 = vadd.xlane.f32.xlu0 %v137
  %v139 = vpop.xlane.xlu0 %138
  %v140 = vsel %vm136, %v127, 0.0
  %141 = vadd.xlane.f32.xlu0 %v140
  %v142 = vpop.xlane.xlu0 %141
  %v143 = vsel %vm136, %v130, 0.0
  %144 = vadd.xlane.f32.xlu0 %v143
  %v145 = vpop.xlane.xlu0 %144
  %v146 = vsel %vm136, %v132, 0.0
  %147 = vadd.xlane.f32.xlu0 %v146
  %v148 = vpop.xlane.xlu0 %147
  %v149 = vrcp.pop 32.0
  %v150 = vmul.f32 32.0, %v149
  %v151 = vsub.f32 1.0, %v150
  %v152 = vmul.f32 %v149, %v151
  %v153 = vadd.f32 %v149, %v152
  %vm154 = vweird.f32 %v149
  %v155 = vsel %vm154, %v149, %v153
  %v156 = vmul.f32 %v139, %v155
  %v157 = vmul.f32 %v142, %v155
  %v158 = vmul.f32 %v145, %v155
  %v159 = vmul.f32 %v148, %v155
  %v160 = vsub.f32 %v125, %v156
  %v161 = vsub.f32 %v127, %v157
  %v162 = vsub.f32 %v130, %v158
  %v163 = vsub.f32 %v132, %v159
  %v164 = vmul.f32 %v160, %v160
  %v165 = vmul.f32 %v161, %v161
  %v166 = vmul.f32 %v162, %v162
  %v167 = vmul.f32 %v163, %v163
  %v168 = vsel %vm136, %v164, 0.0
  %169 = vadd.xlane.f32.xlu0 %v168
  %v170 = vpop.xlane.xlu0 %169
  %v171 = vsel %vm136, %v165, 0.0
  %172 = vadd.xlane.f32.xlu0 %v171
  %v173 = vpop.xlane.xlu0 %172
  %v174 = vsel %vm136, %v166, 0.0
  %175 = vadd.xlane.f32.xlu0 %v174
  %v176 = vpop.xlane.xlu0 %175
  %v177 = vsel %vm136, %v167, 0.0
  %178 = vadd.xlane.f32.xlu0 %v177
  %v179 = vpop.xlane.xlu0 %178
  %v180 = vmul.f32 %v170, %v155
  %v181 = vmul.f32 %v173, %v155
  %v182 = vmul.f32 %v176, %v155
  %v183 = vmul.f32 %v179, %v155
  %v184 = vadd.f32 %v180, 1e-05
  %v185 = vadd.f32 %v181, 1e-05
  %v186 = vadd.f32 %v182, 1e-05
  %v187 = vadd.f32 %v183, 1e-05
  %v188 = vrsqrt.pop %v184
  %v189 = vmul.f32 %v188, %v184
  %v190 = vmul.f32 %v189, %v188
  %v191 = vmul.f32 0.5, %v190
  %v192 = vsub.f32 1.5, %v191
  %v193 = vmul.f32 %v188, %v192
  %vm194 = vweird.f32 %v184
  %vm195 = vweird.f32 %v188
  %vm196 = vmor %vm194, %vm195
  %v197 = vsel %vm196, %v188, %v193
  %v198 = vrsqrt.pop %v185
  %v199 = vmul.f32 %v198, %v185
  %v200 = vmul.f32 %v199, %v198
  %v201 = vmul.f32 0.5, %v200
  %v202 = vsub.f32 1.5, %v201
  %v203 = vmul.f32 %v198, %v202
  %vm204 = vweird.f32 %v185
  %vm205 = vweird.f32 %v198
  %vm206 = vmor %vm204, %vm205
  %v207 = vsel %vm206, %v198, %v203
  %v208 = vrsqrt.pop %v186
  %v209 = vmul.f32 %v208, %v186
  %v210 = vmul.f32 %v209, %v208
  %v211 = vmul.f32 0.5, %v210
  %v212 = vsub.f32 1.5, %v211
  %v213 = vmul.f32 %v208, %v212
  %vm214 = vweird.f32 %v186
  %vm215 = vweird.f32 %v208
  %vm216 = vmor %vm214, %vm215
  %v217 = vsel %vm216, %v208, %v213
  %v218 = vrsqrt.pop %v187
  %v219 = vmul.f32 %v218, %v187
  %v220 = vmul.f32 %v219, %v218
  %v221 = vmul.f32 0.5, %v220
  %v222 = vsub.f32 1.5, %v221
  %v223 = vmul.f32 %v218, %v222
  %vm224 = vweird.f32 %v187
  %vm225 = vweird.f32 %v218
  %vm226 = vmor %vm224, %vm225
  %v227 = vsel %vm226, %v218, %v223
  %v228 = vmul.f32 %v160, %v197
  %v229 = vmul.f32 %v161, %v207
  %v230 = vmul.f32 %v162, %v217
  %v231 = vmul.f32 %v163, %v227
  %v233 = vperm.slane %v134, 0
  %v235 = vmul.f32 %v228, %v233
  %v236 = vmul.f32 %v229, %v233
  %v237 = vmul.f32 %v230, %v233
  %v238 = vmul.f32 %v231, %v233
  %v240 = vperm.slane %v135, 0
  %v242 = vadd.f32 %v235, %v240
  %v243 = vadd.f32 %v236, %v240
  %v244 = vadd.f32 %v237, %v240
  %v245 = vadd.f32 %v238, %v240
  %v246 = vld [vmem:[%s5] sm:$0xf]
  %v247 = vld [vmem:[%s5 + $0x4] sm:$0xf]
  %v248 = vld [vmem:[%s5 + $0x8] sm:$0xf]
  %v249 = vld [vmem:[%s5 + $0xc] sm:$0xf]
  %v250 = vpack.c.bf16 %v243, %v242
  %v251 = vpack.c.bf16 %v245, %v244
  %v252 = vld [vmem:[%s6] sm:$0x1]
  %v254 = vperm.slane %v252, 0
  %v260 = vunpack.c.l.b16 %v246
  %v261 = vunpack.c.l.b16 %v247
  %v262 = vunpack.c.l.b16 %v248
  %v263 = vunpack.c.l.b16 %v249
  %v264 = vpack.c.b16 %v261, %v260
  %v265 = vpack.c.b16 %v263, %v262
  %v269 = vsel %vm136, %v250, 0
  %v272 = vsel %vm136, %v251, 0
  %274 = vmatpush.bf16.msra.mxu0 0
  %275 = vmatpush.bf16.msra.mxu0 0
  %276 = vmatpush.bf16.msra.mxu0 0
  %277 = vmatpush.bf16.msra.mxu0 0
  %278 = vmatpush.bf16.msra.mxu0 0
  %279 = vmatpush.bf16.msra.mxu0 0
  %280 = vmatpush.bf16.msra.mxu0 %v265
  %281 = vmatpush.bf16.msra.mxu0 %v264
  %282 = vmatmul.bf16.gmra.mxu0 %v269
  %v283 = vpop.f32.mrf.mxu0
  %v284 = vadd.f32 %v254, %v283
  %v285 = vpop.f32.mrf.mxu0
  %v286 = vadd.f32 %v254, %v285
  %287 = vmatmul.bf16.gmra.mxu0 %v272
  %v288 = vpop.f32.mrf.mxu0
  %v289 = vadd.f32 %v254, %v288
  %v290 = vpop.f32.mrf.mxu0
  %v291 = vadd.f32 %v254, %v290
  %292 = vdwg.mxu0
  %295 = vrot.lane.b32.xlu0 %v284, 120
  %v296 = vpop.permute.xlu0 %295
  %297 = vrot.lane.b32.xlu0 %v286, 120
  %v298 = vpop.permute.xlu0 %297
  %301 = vrot.lane.b32.xlu0 %v284, 112
  %v302 = vpop.permute.xlu0 %301
  %303 = vrot.lane.b32.xlu0 %v286, 112
  %v304 = vpop.permute.xlu0 %303
  %307 = vrot.lane.b32.xlu0 %v284, 104
  %v308 = vpop.permute.xlu0 %307
  %309 = vrot.lane.b32.xlu0 %v286, 104
  %v310 = vpop.permute.xlu0 %309
  %v313 = vrot.slane %v302, 4
  %vm314 = vcmask 1047556
  %v315 = vsel %vm314, %v313, %v284
  %v316 = vrot.slane %v284, 4
  %v317 = vsel %vm314, %v302, %v316
  %v319 = vunpack.c.l.s4 1983009808
  %v320 = vunpack.c.0.s8 %v319
  %v321 = vperm.slane %v315, %v320
  %v323 = vunpack.c.l.s4 1983009808
  %v324 = vunpack.c.0.s8 %v323
  %v325 = vperm.slane %v317, %v324
  %v326 = vrot.slane %v308, 4
  %v327 = vsel %vm314, %v326, %v296
  %v328 = vrot.slane %v296, 4
  %v329 = vsel %vm314, %v308, %v328
  %v331 = vunpack.c.l.s4 1983009808
  %v332 = vunpack.c.0.s8 %v331
  %v333 = vperm.slane %v327, %v332
  %v335 = vunpack.c.l.s4 1983009808
  %v336 = vunpack.c.0.s8 %v335
  %v337 = vperm.slane %v329, %v336
  %v338 = vrot.slane %v333, 4
  %v339 = vsel %vm314, %v338, %v321
  %v340 = vrot.slane %v321, 4
  %v341 = vsel %vm314, %v333, %v340
  %v343 = vunpack.c.l.s4 1934713408
  %v344 = vunpack.c.0.s8 %v343
  %v345 = vperm.slane %v339, %v344
  %v347 = vunpack.c.l.s4 1934713408
  %v348 = vunpack.c.0.s8 %v347
  %v349 = vperm.slane %v341, %v348
  %v350 = vrot.slane %v337, 4
  %v351 = vsel %vm314, %v350, %v325
  %v352 = vrot.slane %v325, 4
  %v353 = vsel %vm314, %v337, %v352
  %v355 = vunpack.c.l.s4 1934713408
  %v356 = vunpack.c.0.s8 %v355
  %v357 = vperm.slane %v351, %v356
  %v359 = vunpack.c.l.s4 1934713408
  %v360 = vunpack.c.0.s8 %v359
  %v361 = vperm.slane %v353, %v360
  %v362 = vrot.slane %v345, 4
  %v363 = vsel %vm314, 0.0, %v362
  %v364 = vrot.slane %v349, 4
  %v365 = vsel %vm314, 0.0, %v364
  %v366 = vrot.slane %v357, 4
  %v367 = vsel %vm314, 0.0, %v366
  %v368 = vrot.slane %v361, 4
  %v369 = vsel %vm314, 0.0, %v368
  %v370 = vrot.slane %v304, 4
  %v371 = vsel %vm314, %v370, %v286
  %v372 = vrot.slane %v286, 4
  %v373 = vsel %vm314, %v304, %v372
  %v375 = vunpack.c.l.s4 1983009808
  %v376 = vunpack.c.0.s8 %v375
  %v377 = vperm.slane %v371, %v376
  %v379 = vunpack.c.l.s4 1983009808
  %v380 = vunpack.c.0.s8 %v379
  %v381 = vperm.slane %v373, %v380
  %v382 = vrot.slane %v310, 4
  %v383 = vsel %vm314, %v382, %v298
  %v384 = vrot.slane %v298, 4
  %v385 = vsel %vm314, %v310, %v384
  %v387 = vunpack.c.l.s4 1983009808
  %v388 = vunpack.c.0.s8 %v387
  %v389 = vperm.slane %v383, %v388
  %v391 = vunpack.c.l.s4 1983009808
  %v392 = vunpack.c.0.s8 %v391
  %v393 = vperm.slane %v385, %v392
  %v394 = vrot.slane %v389, 4
  %v395 = vsel %vm314, %v394, %v377
  %v396 = vrot.slane %v377, 4
  %v397 = vsel %vm314, %v389, %v396
  %v399 = vunpack.c.l.s4 1934713408
  %v400 = vunpack.c.0.s8 %v399
  %v401 = vperm.slane %v395, %v400
  %v403 = vunpack.c.l.s4 1934713408
  %v404 = vunpack.c.0.s8 %v403
  %v405 = vperm.slane %v397, %v404
  %v406 = vrot.slane %v393, 4
  %v407 = vsel %vm314, %v406, %v381
  %v408 = vrot.slane %v381, 4
  %v409 = vsel %vm314, %v393, %v408
  %v411 = vunpack.c.l.s4 1934713408
  %v412 = vunpack.c.0.s8 %v411
  %v413 = vperm.slane %v407, %v412
  %v415 = vunpack.c.l.s4 1934713408
  %v416 = vunpack.c.0.s8 %v415
  %v417 = vperm.slane %v409, %v416
  %v418 = vrot.slane %v401, 4
  %v419 = vsel %vm314, 0.0, %v418
  %v420 = vrot.slane %v405, 4
  %v421 = vsel %vm314, 0.0, %v420
  %v422 = vrot.slane %v413, 4
  %v423 = vsel %vm314, 0.0, %v422
  %v424 = vrot.slane %v417, 4
  %v425 = vsel %vm314, 0.0, %v424
  %v426 = vsel %vm314, %v364, %v345
  %v428 = vunpack.c.l.s4 1983009808
  %v429 = vunpack.c.0.s8 %v428
  %v430 = vperm.slane %v426, %v429
  %v431 = vrot.slane %v365, 4
  %v432 = vsel %vm314, %v431, %v363
  %v434 = vunpack.c.l.s4 1983009808
  %v435 = vunpack.c.0.s8 %v434
  %v436 = vperm.slane %v432, %v435
  %v437 = vsel %vm314, %v368, %v357
  %v439 = vunpack.c.l.s4 1983009808
  %v440 = vunpack.c.0.s8 %v439
  %v441 = vperm.slane %v437, %v440
  %v442 = vrot.slane %v369, 4
  %v443 = vsel %vm314, %v442, %v367
  %v445 = vunpack.c.l.s4 1983009808
  %v446 = vunpack.c.0.s8 %v445
  %v447 = vperm.slane %v443, %v446
  %v448 = vrot.slane %v436, 4
  %v449 = vsel %vm314, %v448, %v430
  %v450 = vrot.slane %v430, 4
  %v451 = vsel %vm314, %v436, %v450
  %v453 = vunpack.c.l.s4 1934713408
  %v454 = vunpack.c.0.s8 %v453
  %v455 = vperm.slane %v449, %v454
  %v457 = vunpack.c.l.s4 1934713408
  %v458 = vunpack.c.0.s8 %v457
  %v459 = vperm.slane %v451, %v458
  %v460 = vrot.slane %v447, 4
  %v461 = vsel %vm314, %v460, %v441
  %v462 = vrot.slane %v441, 4
  %v463 = vsel %vm314, %v447, %v462
  %v465 = vunpack.c.l.s4 1934713408
  %v466 = vunpack.c.0.s8 %v465
  %v467 = vperm.slane %v461, %v466
  %v469 = vunpack.c.l.s4 1934713408
  %v470 = vunpack.c.0.s8 %v469
  %v471 = vperm.slane %v463, %v470
  %v472 = vrot.slane %v467, 4
  %v473 = vsel %vm314, %v472, %v455
  %v474 = vrot.slane %v455, 4
  %v475 = vsel %vm314, %v467, %v474
  %v476 = vrot.slane %v471, 4
  %v477 = vsel %vm314, %v476, %v459
  %v478 = vrot.slane %v459, 4
  %v479 = vsel %vm314, %v471, %v478
  %v480 = vsel %vm314, %v420, %v401
  %v482 = vunpack.c.l.s4 1983009808
  %v483 = vunpack.c.0.s8 %v482
  %v484 = vperm.slane %v480, %v483
  %v485 = vrot.slane %v421, 4
  %v486 = vsel %vm314, %v485, %v419
  %v488 = vunpack.c.l.s4 1983009808
  %v489 = vunpack.c.0.s8 %v488
  %v490 = vperm.slane %v486, %v489
  %v491 = vsel %vm314, %v424, %v413
  %v493 = vunpack.c.l.s4 1983009808
  %v494 = vunpack.c.0.s8 %v493
  %v495 = vperm.slane %v491, %v494
  %v496 = vrot.slane %v425, 4
  %v497 = vsel %vm314, %v496, %v423
  %v499 = vunpack.c.l.s4 1983009808
  %v500 = vunpack.c.0.s8 %v499
  %v501 = vperm.slane %v497, %v500
  %v502 = vrot.slane %v490, 4
  %v503 = vsel %vm314, %v502, %v484
  %v504 = vrot.slane %v484, 4
  %v505 = vsel %vm314, %v490, %v504
  %v507 = vunpack.c.l.s4 1934713408
  %v508 = vunpack.c.0.s8 %v507
  %v509 = vperm.slane %v503, %v508
  %v511 = vunpack.c.l.s4 1934713408
  %v512 = vunpack.c.0.s8 %v511
  %v513 = vperm.slane %v505, %v512
  %v514 = vrot.slane %v501, 4
  %v515 = vsel %vm314, %v514, %v495
  %v516 = vrot.slane %v495, 4
  %v517 = vsel %vm314, %v501, %v516
  %v519 = vunpack.c.l.s4 1934713408
  %v520 = vunpack.c.0.s8 %v519
  %v521 = vperm.slane %v515, %v520
  %v523 = vunpack.c.l.s4 1934713408
  %v524 = vunpack.c.0.s8 %v523
  %v525 = vperm.slane %v517, %v524
  %v526 = vrot.slane %v521, 4
  %v527 = vsel %vm314, %v526, %v509
  %v528 = vrot.slane %v509, 4
  %v529 = vsel %vm314, %v521, %v528
  %v530 = vrot.slane %v525, 4
  %v531 = vsel %vm314, %v530, %v513
  %v532 = vrot.slane %v513, 4
  %v533 = vsel %vm314, %v525, %v532
  %v534 = vpack.c.bf16 %v473, %v473
  %v535 = vpack.c.bf16 %v527, %v527
  %v536 = vpack.c.bf16 %v475, %v475
  %v537 = vpack.c.bf16 %v529, %v529
  %v538 = vpack.c.bf16 %v477, %v477
  %v539 = vpack.c.bf16 %v531, %v531
  %v540 = vpack.c.bf16 %v479, %v479
  %v541 = vpack.c.bf16 %v533, %v533
  %542 = vrot.lane.b32.xlu0 %v284, 96
  %v543 = vpop.permute.xlu0 %542
  %544 = vrot.lane.b32.xlu0 %v286, 96
  %v545 = vpop.permute.xlu0 %544
  %546 = vrot.lane.b32.xlu0 %v296, 96
  %v547 = vpop.permute.xlu0 %546
  %548 = vrot.lane.b32.xlu0 %v298, 96
  %v549 = vpop.permute.xlu0 %548
  %550 = vrot.lane.b32.xlu0 %v302, 96
  %v551 = vpop.permute.xlu0 %550
  %552 = vrot.lane.b32.xlu0 %v304, 96
  %v553 = vpop.permute.xlu0 %552
  %554 = vrot.lane.b32.xlu0 %v308, 96
  %v555 = vpop.permute.xlu0 %554
  %556 = vrot.lane.b32.xlu0 %v310, 96
  %v557 = vpop.permute.xlu0 %556
  %v566 = vrot.slane %v551, 4
  %v567 = vsel %vm314, %v566, %v543
  %v568 = vrot.slane %v543, 4
  %v569 = vsel %vm314, %v551, %v568
  %v571 = vunpack.c.l.s4 1983009808
  %v572 = vunpack.c.0.s8 %v571
  %v573 = vperm.slane %v567, %v572
  %v575 = vunpack.c.l.s4 1983009808
  %v576 = vunpack.c.0.s8 %v575
  %v577 = vperm.slane %v569, %v576
  %v578 = vrot.slane %v555, 4
  %v579 = vsel %vm314, %v578, %v547
  %v580 = vrot.slane %v547, 4
  %v581 = vsel %vm314, %v555, %v580
  %v583 = vunpack.c.l.s4 1983009808
  %v584 = vunpack.c.0.s8 %v583
  %v585 = vperm.slane %v579, %v584
  %v587 = vunpack.c.l.s4 1983009808
  %v588 = vunpack.c.0.s8 %v587
  %v589 = vperm.slane %v581, %v588
  %v590 = vrot.slane %v585, 4
  %v591 = vsel %vm314, %v590, %v573
  %v592 = vrot.slane %v573, 4
  %v593 = vsel %vm314, %v585, %v592
  %v595 = vunpack.c.l.s4 1934713408
  %v596 = vunpack.c.0.s8 %v595
  %v597 = vperm.slane %v591, %v596
  %v599 = vunpack.c.l.s4 1934713408
  %v600 = vunpack.c.0.s8 %v599
  %v601 = vperm.slane %v593, %v600
  %v602 = vrot.slane %v589, 4
  %v603 = vsel %vm314, %v602, %v577
  %v604 = vrot.slane %v577, 4
  %v605 = vsel %vm314, %v589, %v604
  %v607 = vunpack.c.l.s4 1934713408
  %v608 = vunpack.c.0.s8 %v607
  %v609 = vperm.slane %v603, %v608
  %v611 = vunpack.c.l.s4 1934713408
  %v612 = vunpack.c.0.s8 %v611
  %v613 = vperm.slane %v605, %v612
  %v614 = vrot.slane %v597, 4
  %v615 = vsel %vm314, 0.0, %v614
  %v616 = vrot.slane %v601, 4
  %v617 = vsel %vm314, 0.0, %v616
  %v618 = vrot.slane %v609, 4
  %v619 = vsel %vm314, 0.0, %v618
  %v620 = vrot.slane %v613, 4
  %v621 = vsel %vm314, 0.0, %v620
  %v622 = vrot.slane %v553, 4
  %v623 = vsel %vm314, %v622, %v545
  %v624 = vrot.slane %v545, 4
  %v625 = vsel %vm314, %v553, %v624
  %v627 = vunpack.c.l.s4 1983009808
  %v628 = vunpack.c.0.s8 %v627
  %v629 = vperm.slane %v623, %v628
  %v631 = vunpack.c.l.s4 1983009808
  %v632 = vunpack.c.0.s8 %v631
  %v633 = vperm.slane %v625, %v632
  %v634 = vrot.slane %v557, 4
  %v635 = vsel %vm314, %v634, %v549
  %v636 = vrot.slane %v549, 4
  %v637 = vsel %vm314, %v557, %v636
  %v639 = vunpack.c.l.s4 1983009808
  %v640 = vunpack.c.0.s8 %v639
  %v641 = vperm.slane %v635, %v640
  %v643 = vunpack.c.l.s4 1983009808
  %v644 = vunpack.c.0.s8 %v643
  %v645 = vperm.slane %v637, %v644
  %v646 = vrot.slane %v641, 4
  %v647 = vsel %vm314, %v646, %v629
  %v648 = vrot.slane %v629, 4
  %v649 = vsel %vm314, %v641, %v648
  %v651 = vunpack.c.l.s4 1934713408
  %v652 = vunpack.c.0.s8 %v651
  %v653 = vperm.slane %v647, %v652
  %v655 = vunpack.c.l.s4 1934713408
  %v656 = vunpack.c.0.s8 %v655
  %v657 = vperm.slane %v649, %v656
  %v658 = vrot.slane %v645, 4
  %v659 = vsel %vm314, %v658, %v633
  %v660 = vrot.slane %v633, 4
  %v661 = vsel %vm314, %v645, %v660
  %v663 = vunpack.c.l.s4 1934713408
  %v664 = vunpack.c.0.s8 %v663
  %v665 = vperm.slane %v659, %v664
  %v667 = vunpack.c.l.s4 1934713408
  %v668 = vunpack.c.0.s8 %v667
  %v669 = vperm.slane %v661, %v668
  %v670 = vrot.slane %v653, 4
  %v671 = vsel %vm314, 0.0, %v670
  %v672 = vrot.slane %v657, 4
  %v673 = vsel %vm314, 0.0, %v672
  %v674 = vrot.slane %v665, 4
  %v675 = vsel %vm314, 0.0, %v674
  %v676 = vrot.slane %v669, 4
  %v677 = vsel %vm314, 0.0, %v676
  %v678 = vsel %vm314, %v616, %v597
  %v680 = vunpack.c.l.s4 1983009808
  %v681 = vunpack.c.0.s8 %v680
  %v682 = vperm.slane %v678, %v681
  %v683 = vrot.slane %v617, 4
  %v684 = vsel %vm314, %v683, %v615
  %v686 = vunpack.c.l.s4 1983009808
  %v687 = vunpack.c.0.s8 %v686
  %v688 = vperm.slane %v684, %v687
  %v689 = vsel %vm314, %v620, %v609
  %v691 = vunpack.c.l.s4 1983009808
  %v692 = vunpack.c.0.s8 %v691
  %v693 = vperm.slane %v689, %v692
  %v694 = vrot.slane %v621, 4
  %v695 = vsel %vm314, %v694, %v619
  %v697 = vunpack.c.l.s4 1983009808
  %v698 = vunpack.c.0.s8 %v697
  %v699 = vperm.slane %v695, %v698
  %v700 = vrot.slane %v688, 4
  %v701 = vsel %vm314, %v700, %v682
  %v702 = vrot.slane %v682, 4
  %v703 = vsel %vm314, %v688, %v702
  %v705 = vunpack.c.l.s4 1934713408
  %v706 = vunpack.c.0.s8 %v705
  %v707 = vperm.slane %v701, %v706
  %v709 = vunpack.c.l.s4 1934713408
  %v710 = vunpack.c.0.s8 %v709
  %v711 = vperm.slane %v703, %v710
  %v712 = vrot.slane %v699, 4
  %v713 = vsel %vm314, %v712, %v693
  %v714 = vrot.slane %v693, 4
  %v715 = vsel %vm314, %v699, %v714
  %v717 = vunpack.c.l.s4 1934713408
  %v718 = vunpack.c.0.s8 %v717
  %v719 = vperm.slane %v713, %v718
  %v721 = vunpack.c.l.s4 1934713408
  %v722 = vunpack.c.0.s8 %v721
  %v723 = vperm.slane %v715, %v722
  %v724 = vrot.slane %v719, 4
  %v725 = vsel %vm314, %v724, %v707
  %v726 = vrot.slane %v707, 4
  %v727 = vsel %vm314, %v719, %v726
  %v728 = vrot.slane %v723, 4
  %v729 = vsel %vm314, %v728, %v711
  %v730 = vrot.slane %v711, 4
  %v731 = vsel %vm314, %v723, %v730
  %v732 = vsel %vm314, %v672, %v653
  %v734 = vunpack.c.l.s4 1983009808
  %v735 = vunpack.c.0.s8 %v734
  %v736 = vperm.slane %v732, %v735
  %v737 = vrot.slane %v673, 4
  %v738 = vsel %vm314, %v737, %v671
  %v740 = vunpack.c.l.s4 1983009808
  %v741 = vunpack.c.0.s8 %v740
  %v742 = vperm.slane %v738, %v741
  %v743 = vsel %vm314, %v676, %v665
  %v745 = vunpack.c.l.s4 1983009808
  %v746 = vunpack.c.0.s8 %v745
  %v747 = vperm.slane %v743, %v746
  %v748 = vrot.slane %v677, 4
  %v749 = vsel %vm314, %v748, %v675
  %v751 = vunpack.c.l.s4 1983009808
  %v752 = vunpack.c.0.s8 %v751
  %v753 = vperm.slane %v749, %v752
  %v754 = vrot.slane %v742, 4
  %v755 = vsel %vm314, %v754, %v736
  %v756 = vrot.slane %v736, 4
  %v757 = vsel %vm314, %v742, %v756
  %v759 = vunpack.c.l.s4 1934713408
  %v760 = vunpack.c.0.s8 %v759
  %v761 = vperm.slane %v755, %v760
  %v763 = vunpack.c.l.s4 1934713408
  %v764 = vunpack.c.0.s8 %v763
  %v765 = vperm.slane %v757, %v764
  %v766 = vrot.slane %v753, 4
  %v767 = vsel %vm314, %v766, %v747
  %v768 = vrot.slane %v747, 4
  %v769 = vsel %vm314, %v753, %v768
  %v771 = vunpack.c.l.s4 1934713408
  %v772 = vunpack.c.0.s8 %v771
  %v773 = vperm.slane %v767, %v772
  %v775 = vunpack.c.l.s4 1934713408
  %v776 = vunpack.c.0.s8 %v775
  %v777 = vperm.slane %v769, %v776
  %v778 = vrot.slane %v773, 4
  %v779 = vsel %vm314, %v778, %v761
  %v780 = vrot.slane %v761, 4
  %v781 = vsel %vm314, %v773, %v780
  %v782 = vrot.slane %v777, 4
  %v783 = vsel %vm314, %v782, %v765
  %v784 = vrot.slane %v765, 4
  %v785 = vsel %vm314, %v777, %v784
  %v786 = vpack.c.bf16 %v725, %v725
  %v787 = vpack.c.bf16 %v779, %v779
  %v788 = vpack.c.bf16 %v727, %v727
  %v789 = vpack.c.bf16 %v781, %v781
  %v790 = vpack.c.bf16 %v729, %v729
  %v791 = vpack.c.bf16 %v783, %v783
  %v792 = vpack.c.bf16 %v731, %v731
  %v793 = vpack.c.bf16 %v785, %v785
  %794 = vrot.lane.b32.xlu0 %v284, 64
  %v795 = vpop.permute.xlu0 %794
  %796 = vrot.lane.b32.xlu0 %v286, 64
  %v797 = vpop.permute.xlu0 %796
  %798 = vrot.lane.b32.xlu0 %v296, 64
  %v799 = vpop.permute.xlu0 %798
  %800 = vrot.lane.b32.xlu0 %v298, 64
  %v801 = vpop.permute.xlu0 %800
  %802 = vrot.lane.b32.xlu0 %v302, 64
  %v803 = vpop.permute.xlu0 %802
  %804 = vrot.lane.b32.xlu0 %v304, 64
  %v805 = vpop.permute.xlu0 %804
  %806 = vrot.lane.b32.xlu0 %v308, 64
  %v807 = vpop.permute.xlu0 %806
  %808 = vrot.lane.b32.xlu0 %v310, 64
  %v809 = vpop.permute.xlu0 %808
  %v818 = vrot.slane %v803, 4
  %v819 = vsel %vm314, %v818, %v795
  %v820 = vrot.slane %v795, 4
  %v821 = vsel %vm314, %v803, %v820
  %v823 = vunpack.c.l.s4 1983009808
  %v824 = vunpack.c.0.s8 %v823
  %v825 = vperm.slane %v819, %v824
  %v827 = vunpack.c.l.s4 1983009808
  %v828 = vunpack.c.0.s8 %v827
  %v829 = vperm.slane %v821, %v828
  %v830 = vrot.slane %v807, 4
  %v831 = vsel %vm314, %v830, %v799
  %v832 = vrot.slane %v799, 4
  %v833 = vsel %vm314, %v807, %v832
  %v835 = vunpack.c.l.s4 1983009808
  %v836 = vunpack.c.0.s8 %v835
  %v837 = vperm.slane %v831, %v836
  %v839 = vunpack.c.l.s4 1983009808
  %v840 = vunpack.c.0.s8 %v839
  %v841 = vperm.slane %v833, %v840
  %v842 = vrot.slane %v837, 4
  %v843 = vsel %vm314, %v842, %v825
  %v844 = vrot.slane %v825, 4
  %v845 = vsel %vm314, %v837, %v844
  %v847 = vunpack.c.l.s4 1934713408
  %v848 = vunpack.c.0.s8 %v847
  %v849 = vperm.slane %v843, %v848
  %v851 = vunpack.c.l.s4 1934713408
  %v852 = vunpack.c.0.s8 %v851
  %v853 = vperm.slane %v845, %v852
  %v854 = vrot.slane %v841, 4
  %v855 = vsel %vm314, %v854, %v829
  %v856 = vrot.slane %v829, 4
  %v857 = vsel %vm314, %v841, %v856
  %v859 = vunpack.c.l.s4 1934713408
  %v860 = vunpack.c.0.s8 %v859
  %v861 = vperm.slane %v855, %v860
  %v863 = vunpack.c.l.s4 1934713408
  %v864 = vunpack.c.0.s8 %v863
  %v865 = vperm.slane %v857, %v864
  %v866 = vrot.slane %v849, 4
  %v867 = vsel %vm314, 0.0, %v866
  %v868 = vrot.slane %v853, 4
  %v869 = vsel %vm314, 0.0, %v868
  %v870 = vrot.slane %v861, 4
  %v871 = vsel %vm314, 0.0, %v870
  %v872 = vrot.slane %v865, 4
  %v873 = vsel %vm314, 0.0, %v872
  %v874 = vrot.slane %v805, 4
  %v875 = vsel %vm314, %v874, %v797
  %v876 = vrot.slane %v797, 4
  %v877 = vsel %vm314, %v805, %v876
  %v879 = vunpack.c.l.s4 1983009808
  %v880 = vunpack.c.0.s8 %v879
  %v881 = vperm.slane %v875, %v880
  %v883 = vunpack.c.l.s4 1983009808
  %v884 = vunpack.c.0.s8 %v883
  %v885 = vperm.slane %v877, %v884
  %v886 = vrot.slane %v809, 4
  %v887 = vsel %vm314, %v886, %v801
  %v888 = vrot.slane %v801, 4
  %v889 = vsel %vm314, %v809, %v888
  %v891 = vunpack.c.l.s4 1983009808
  %v892 = vunpack.c.0.s8 %v891
  %v893 = vperm.slane %v887, %v892
  %v895 = vunpack.c.l.s4 1983009808
  %v896 = vunpack.c.0.s8 %v895
  %v897 = vperm.slane %v889, %v896
  %v898 = vrot.slane %v893, 4
  %v899 = vsel %vm314, %v898, %v881
  %v900 = vrot.slane %v881, 4
  %v901 = vsel %vm314, %v893, %v900
  %v903 = vunpack.c.l.s4 1934713408
  %v904 = vunpack.c.0.s8 %v903
  %v905 = vperm.slane %v899, %v904
  %v907 = vunpack.c.l.s4 1934713408
  %v908 = vunpack.c.0.s8 %v907
  %v909 = vperm.slane %v901, %v908
  %v910 = vrot.slane %v897, 4
  %v911 = vsel %vm314, %v910, %v885
  %v912 = vrot.slane %v885, 4
  %v913 = vsel %vm314, %v897, %v912
  %v915 = vunpack.c.l.s4 1934713408
  %v916 = vunpack.c.0.s8 %v915
  %v917 = vperm.slane %v911, %v916
  %v919 = vunpack.c.l.s4 1934713408
  %v920 = vunpack.c.0.s8 %v919
  %v921 = vperm.slane %v913, %v920
  %v922 = vrot.slane %v905, 4
  %v923 = vsel %vm314, 0.0, %v922
  %v924 = vrot.slane %v909, 4
  %v925 = vsel %vm314, 0.0, %v924
  %v926 = vrot.slane %v917, 4
  %v927 = vsel %vm314, 0.0, %v926
  %v928 = vrot.slane %v921, 4
  %v929 = vsel %vm314, 0.0, %v928
  %v930 = vsel %vm314, %v868, %v849
  %v932 = vunpack.c.l.s4 1983009808
  %v933 = vunpack.c.0.s8 %v932
  %v934 = vperm.slane %v930, %v933
  %v935 = vrot.slane %v869, 4
  %v936 = vsel %vm314, %v935, %v867
  %v938 = vunpack.c.l.s4 1983009808
  %v939 = vunpack.c.0.s8 %v938
  %v940 = vperm.slane %v936, %v939
  %v941 = vsel %vm314, %v872, %v861
  %v943 = vunpack.c.l.s4 1983009808
  %v944 = vunpack.c.0.s8 %v943
  %v945 = vperm.slane %v941, %v944
  %v946 = vrot.slane %v873, 4
  %v947 = vsel %vm314, %v946, %v871
  %v949 = vunpack.c.l.s4 1983009808
  %v950 = vunpack.c.0.s8 %v949
  %v951 = vperm.slane %v947, %v950
  %v952 = vrot.slane %v940, 4
  %v953 = vsel %vm314, %v952, %v934
  %v954 = vrot.slane %v934, 4
  %v955 = vsel %vm314, %v940, %v954
  %v957 = vunpack.c.l.s4 1934713408
  %v958 = vunpack.c.0.s8 %v957
  %v959 = vperm.slane %v953, %v958
  %v961 = vunpack.c.l.s4 1934713408
  %v962 = vunpack.c.0.s8 %v961
  %v963 = vperm.slane %v955, %v962
  %v964 = vrot.slane %v951, 4
  %v965 = vsel %vm314, %v964, %v945
  %v966 = vrot.slane %v945, 4
  %v967 = vsel %vm314, %v951, %v966
  %v969 = vunpack.c.l.s4 1934713408
  %v970 = vunpack.c.0.s8 %v969
  %v971 = vperm.slane %v965, %v970
  %v973 = vunpack.c.l.s4 1934713408
  %v974 = vunpack.c.0.s8 %v973
  %v975 = vperm.slane %v967, %v974
  %v976 = vrot.slane %v971, 4
  %v977 = vsel %vm314, %v976, %v959
  %v978 = vrot.slane %v959, 4
  %v979 = vsel %vm314, %v971, %v978
  %v980 = vrot.slane %v975, 4
  %v981 = vsel %vm314, %v980, %v963
  %v982 = vrot.slane %v963, 4
  %v983 = vsel %vm314, %v975, %v982
  %v984 = vsel %vm314, %v924, %v905
  %v986 = vunpack.c.l.s4 1983009808
  %v987 = vunpack.c.0.s8 %v986
  %v988 = vperm.slane %v984, %v987
  %v989 = vrot.slane %v925, 4
  %v990 = vsel %vm314, %v989, %v923
  %v992 = vunpack.c.l.s4 1983009808
  %v993 = vunpack.c.0.s8 %v992
  %v994 = vperm.slane %v990, %v993
  %v995 = vsel %vm314, %v928, %v917
  %v997 = vunpack.c.l.s4 1983009808
  %v998 = vunpack.c.0.s8 %v997
  %v999 = vperm.slane %v995, %v998
  %v1000 = vrot.slane %v929, 4
  %v1001 = vsel %vm314, %v1000, %v927
  %v1003 = vunpack.c.l.s4 1983009808
  %v1004 = vunpack.c.0.s8 %v1003
  %v1005 = vperm.slane %v1001, %v1004
  %v1006 = vrot.slane %v994, 4
  %v1007 = vsel %vm314, %v1006, %v988
  %v1008 = vrot.slane %v988, 4
  %v1009 = vsel %vm314, %v994, %v1008
  %v1011 = vunpack.c.l.s4 1934713408
  %v1012 = vunpack.c.0.s8 %v1011
  %v1013 = vperm.slane %v1007, %v1012
  %v1015 = vunpack.c.l.s4 1934713408
  %v1016 = vunpack.c.0.s8 %v1015
  %v1017 = vperm.slane %v1009, %v1016
  %v1018 = vrot.slane %v1005, 4
  %v1019 = vsel %vm314, %v1018, %v999
  %v1020 = vrot.slane %v999, 4
  %v1021 = vsel %vm314, %v1005, %v1020
  %v1023 = vunpack.c.l.s4 1934713408
  %v1024 = vunpack.c.0.s8 %v1023
  %v1025 = vperm.slane %v1019, %v1024
  %v1027 = vunpack.c.l.s4 1934713408
  %v1028 = vunpack.c.0.s8 %v1027
  %v1029 = vperm.slane %v1021, %v1028
  %v1030 = vrot.slane %v1025, 4
  %v1031 = vsel %vm314, %v1030, %v1013
  %v1032 = vrot.slane %v1013, 4
  %v1033 = vsel %vm314, %v1025, %v1032
  %v1034 = vrot.slane %v1029, 4
  %v1035 = vsel %vm314, %v1034, %v1017
  %v1036 = vrot.slane %v1017, 4
  %v1037 = vsel %vm314, %v1029, %v1036
  %v1038 = vpack.c.bf16 %v977, %v977
  %v1039 = vpack.c.bf16 %v1031, %v1031
  %v1040 = vpack.c.bf16 %v979, %v979
  %v1041 = vpack.c.bf16 %v1033, %v1033
  %v1042 = vpack.c.bf16 %v981, %v981
  %v1043 = vpack.c.bf16 %v1035, %v1035
  %v1044 = vpack.c.bf16 %v983, %v983
  %v1045 = vpack.c.bf16 %v1037, %v1037
  %v1048 = vunpack.c.l.b16 %v534
  %v1049 = vunpack.c.l.b16 %v535
  %v1050 = vpack.c.b16 %v1049, %v1048
  %v1053 = vunpack.c.l.b16 %v786
  %v1054 = vunpack.c.l.b16 %v787
  %v1055 = vpack.c.b16 %v1054, %v1053
  %vm1056 = vcmask 64512
  %v1058 = vsel %vm1056, %v1050, 0
  %v1061 = vsel %vm1056, %v1055, 0
  %1063 = vmatpush.bf16.xpose.msra.mxu0 0
  %1064 = vmatpush.bf16.xpose.msra.mxu0 0
  %1065 = vmatpush.bf16.xpose.msra.mxu0 0
  %1066 = vmatpush.bf16.xpose.msra.mxu0 0
  %1067 = vmatpush.bf16.xpose.msra.mxu0 0
  %1068 = vmatpush.bf16.xpose.msra.mxu0 0
  %1069 = vmatpush.bf16.xpose.msra.mxu0 0
  %1070 = vmatpush.bf16.xpose.msra.mxu0 %v1061
  %1071 = vmatmul.bf16.gmra.mxu0 %v1058
  %v1072 = vpop.f32.mrf.mxu0
  %v1073 = vadd.f32 0.0, %v1072
  %v1074 = vpop.f32.mrf.mxu0
  %v1075 = vadd.f32 0.0, %v1074
  %1076 = vdwg.mxu0
  %v1079 = vunpack.c.l.b16 %v536
  %v1080 = vunpack.c.l.b16 %v537
  %v1081 = vpack.c.b16 %v1080, %v1079
  %v1084 = vunpack.c.l.b16 %v788
  %v1085 = vunpack.c.l.b16 %v789
  %v1086 = vpack.c.b16 %v1085, %v1084
  %v1088 = vsel %vm1056, %v1081, 0
  %v1091 = vsel %vm1056, %v1086, 0
  %1093 = vmatpush.bf16.xpose.msra.mxu0 0
  %1094 = vmatpush.bf16.xpose.msra.mxu0 0
  %1095 = vmatpush.bf16.xpose.msra.mxu0 0
  %1096 = vmatpush.bf16.xpose.msra.mxu0 0
  %1097 = vmatpush.bf16.xpose.msra.mxu0 0
  %1098 = vmatpush.bf16.xpose.msra.mxu0 0
  %1099 = vmatpush.bf16.xpose.msra.mxu0 0
  %1100 = vmatpush.bf16.xpose.msra.mxu0 %v1091
  %1101 = vmatmul.bf16.gmra.mxu0 %v1088
  %v1102 = vpop.f32.mrf.mxu0
  %v1103 = vadd.f32 0.0, %v1102
  %v1104 = vpop.f32.mrf.mxu0
  %v1105 = vadd.f32 0.0, %v1104
  %1106 = vdwg.mxu0
  %v1109 = vunpack.c.l.b16 %v538
  %v1110 = vunpack.c.l.b16 %v539
  %v1111 = vpack.c.b16 %v1110, %v1109
  %v1114 = vunpack.c.l.b16 %v790
  %v1115 = vunpack.c.l.b16 %v791
  %v1116 = vpack.c.b16 %v1115, %v1114
  %v1118 = vsel %vm1056, %v1111, 0
  %v1121 = vsel %vm1056, %v1116, 0
  %1123 = vmatpush.bf16.xpose.msra.mxu0 0
  %1124 = vmatpush.bf16.xpose.msra.mxu0 0
  %1125 = vmatpush.bf16.xpose.msra.mxu0 0
  %1126 = vmatpush.bf16.xpose.msra.mxu0 0
  %1127 = vmatpush.bf16.xpose.msra.mxu0 0
  %1128 = vmatpush.bf16.xpose.msra.mxu0 0
  %1129 = vmatpush.bf16.xpose.msra.mxu0 0
  %1130 = vmatpush.bf16.xpose.msra.mxu0 %v1121
  %1131 = vmatmul.bf16.gmra.mxu0 %v1118
  %v1132 = vpop.f32.mrf.mxu0
  %v1133 = vadd.f32 0.0, %v1132
  %v1134 = vpop.f32.mrf.mxu0
  %v1135 = vadd.f32 0.0, %v1134
  %1136 = vdwg.mxu0
  %v1139 = vunpack.c.l.b16 %v540
  %v1140 = vunpack.c.l.b16 %v541
  %v1141 = vpack.c.b16 %v1140, %v1139
  %v1144 = vunpack.c.l.b16 %v792
  %v1145 = vunpack.c.l.b16 %v793
  %v1146 = vpack.c.b16 %v1145, %v1144
  %v1148 = vsel %vm1056, %v1141, 0
  %v1151 = vsel %vm1056, %v1146, 0
  %1153 = vmatpush.bf16.xpose.msra.mxu0 0
  %1154 = vmatpush.bf16.xpose.msra.mxu0 0
  %1155 = vmatpush.bf16.xpose.msra.mxu0 0
  %1156 = vmatpush.bf16.xpose.msra.mxu0 0
  %1157 = vmatpush.bf16.xpose.msra.mxu0 0
  %1158 = vmatpush.bf16.xpose.msra.mxu0 0
  %1159 = vmatpush.bf16.xpose.msra.mxu0 0
  %1160 = vmatpush.bf16.xpose.msra.mxu0 %v1151
  %1161 = vmatmul.bf16.gmra.mxu0 %v1148
  %v1162 = vpop.f32.mrf.mxu0
  %v1163 = vadd.f32 0.0, %v1162
  %v1164 = vpop.f32.mrf.mxu0
  %v1165 = vadd.f32 0.0, %v1164
  %1166 = vdwg.mxu0
  %v1167 = vmul.f32 %v1073, 0.35355338
  %v1168 = vmul.f32 %v1075, 0.35355338
  %v1169 = vmul.f32 %v1103, 0.35355338
  %v1170 = vmul.f32 %v1105, 0.35355338
  %v1171 = vmul.f32 %v1133, 0.35355338
  %v1172 = vmul.f32 %v1135, 0.35355338
  %v1173 = vmul.f32 %v1163, 0.35355338
  %v1174 = vmul.f32 %v1165, 0.35355338
  %vm1175 = vcmask 130048
  %v1176 = vsel %vm1175, %v1167, -inf
  %1177 = vmax.xlane.f32.xlu0 %v1176
  %v1178 = vpop.xlane.xlu0 %1177
  %v1179 = vsel %vm1175, %v1168, -inf
  %1180 = vmax.xlane.f32.xlu0 %v1179
  %v1181 = vpop.xlane.xlu0 %1180
  %v1182 = vsel %vm1175, %v1169, -inf
  %1183 = vmax.xlane.f32.xlu0 %v1182
  %v1184 = vpop.xlane.xlu0 %1183
  %v1185 = vsel %vm1175, %v1170, -inf
  %1186 = vmax.xlane.f32.xlu0 %v1185
  %v1187 = vpop.xlane.xlu0 %1186
  %v1188 = vsel %vm1175, %v1171, -inf
  %1189 = vmax.xlane.f32.xlu0 %v1188
  %v1190 = vpop.xlane.xlu0 %1189
  %v1191 = vsel %vm1175, %v1172, -inf
  %1192 = vmax.xlane.f32.xlu0 %v1191
  %v1193 = vpop.xlane.xlu0 %1192
  %v1194 = vsel %vm1175, %v1173, -inf
  %1195 = vmax.xlane.f32.xlu0 %v1194
  %v1196 = vpop.xlane.xlu0 %1195
  %v1197 = vsel %vm1175, %v1174, -inf
  %1198 = vmax.xlane.f32.xlu0 %v1197
  %v1199 = vpop.xlane.xlu0 %1198
  %v1200 = vsub.f32 %v1167, %v1178
  %v1201 = vsub.f32 %v1168, %v1181
  %v1202 = vsub.f32 %v1169, %v1184
  %v1203 = vsub.f32 %v1170, %v1187
  %v1204 = vsub.f32 %v1171, %v1190
  %v1205 = vsub.f32 %v1172, %v1193
  %v1206 = vsub.f32 %v1173, %v1196
  %v1207 = vsub.f32 %v1174, %v1199
  %v1208 = vmul.f32 %v1200, 1.442695
  %v1209 = vpow.pop %v1208
  %v1210 = vmul.f32 %v1201, 1.442695
  %v1211 = vpow.pop %v1210
  %v1212 = vmul.f32 %v1202, 1.442695
  %v1213 = vpow.pop %v1212
  %v1214 = vmul.f32 %v1203, 1.442695
  %v1215 = vpow.pop %v1214
  %v1216 = vmul.f32 %v1204, 1.442695
  %v1217 = vpow.pop %v1216
  %v1218 = vmul.f32 %v1205, 1.442695
  %v1219 = vpow.pop %v1218
  %v1220 = vmul.f32 %v1206, 1.442695
  %v1221 = vpow.pop %v1220
  %v1222 = vmul.f32 %v1207, 1.442695
  %v1223 = vpow.pop %v1222
  %v1224 = vsel %vm1175, %v1209, 0.0
  %1225 = vadd.xlane.f32.xlu0 %v1224
  %v1226 = vpop.xlane.xlu0 %1225
  %v1227 = vsel %vm1175, %v1211, 0.0
  %1228 = vadd.xlane.f32.xlu0 %v1227
  %v1229 = vpop.xlane.xlu0 %1228
  %v1230 = vsel %vm1175, %v1213, 0.0
  %1231 = vadd.xlane.f32.xlu0 %v1230
  %v1232 = vpop.xlane.xlu0 %1231
  %v1233 = vsel %vm1175, %v1215, 0.0
  %1234 = vadd.xlane.f32.xlu0 %v1233
  %v1235 = vpop.xlane.xlu0 %1234
  %v1236 = vsel %vm1175, %v1217, 0.0
  %1237 = vadd.xlane.f32.xlu0 %v1236
  %v1238 = vpop.xlane.xlu0 %1237
  %v1239 = vsel %vm1175, %v1219, 0.0
  %1240 = vadd.xlane.f32.xlu0 %v1239
  %v1241 = vpop.xlane.xlu0 %1240
  %v1242 = vsel %vm1175, %v1221, 0.0
  %1243 = vadd.xlane.f32.xlu0 %v1242
  %v1244 = vpop.xlane.xlu0 %1243
  %v1245 = vsel %vm1175, %v1223, 0.0
  %1246 = vadd.xlane.f32.xlu0 %v1245
  %v1247 = vpop.xlane.xlu0 %1246
  %v1248 = vrcp.pop %v1226
  %v1249 = vrcp.pop %v1229
  %v1250 = vrcp.pop %v1232
  %v1251 = vrcp.pop %v1235
  %v1252 = vrcp.pop %v1238
  %v1253 = vrcp.pop %v1241
  %v1254 = vrcp.pop %v1244
  %v1255 = vrcp.pop %v1247
  %v1256 = vmul.f32 %v1209, %v1248
  %v1257 = vmul.f32 %v1211, %v1249
  %v1258 = vmul.f32 %v1213, %v1250
  %v1259 = vmul.f32 %v1215, %v1251
  %v1260 = vmul.f32 %v1217, %v1252
  %v1261 = vmul.f32 %v1219, %v1253
  %v1262 = vmul.f32 %v1221, %v1254
  %v1263 = vmul.f32 %v1223, %v1255
  %v1264 = vpack.c.bf16 %v1256, %v1256
  %v1265 = vpack.c.bf16 %v1257, %v1257
  %v1266 = vpack.c.bf16 %v1258, %v1258
  %v1267 = vpack.c.bf16 %v1259, %v1259
  %v1268 = vpack.c.bf16 %v1260, %v1260
  %v1269 = vpack.c.bf16 %v1261, %v1261
  %v1270 = vpack.c.bf16 %v1262, %v1262
  %v1271 = vpack.c.bf16 %v1263, %v1263
  %v1274 = vunpack.c.l.b16 %v1264
  %v1275 = vunpack.c.l.b16 %v1265
  %v1276 = vpack.c.b16 %v1275, %v1274
  %v1279 = vunpack.c.l.b16 %v1038
  %v1280 = vunpack.c.l.b16 %v1039
  %v1281 = vpack.c.b16 %v1280, %v1279
  %v1284 = vsel %vm1175, %v1276, 0
  %1286 = vmatpush.bf16.msra.mxu0 0
  %1287 = vmatpush.bf16.msra.mxu0 0
  %1288 = vmatpush.bf16.msra.mxu0 0
  %1289 = vmatpush.bf16.msra.mxu0 0
  %1290 = vmatpush.bf16.msra.mxu0 0
  %1291 = vmatpush.bf16.msra.mxu0 0
  %1292 = vmatpush.bf16.msra.mxu0 0
  %1293 = vmatpush.bf16.msra.mxu0 %v1281
  %1294 = vmatmul.bf16.gmra.mxu0 %v1284
  %v1295 = vpop.f32.mrf.mxu0
  %v1296 = vadd.f32 0.0, %v1295
  %v1297 = vpop.f32.mrf.mxu0
  %v1298 = vadd.f32 0.0, %v1297
  %1299 = vdwg.mxu0
  %v1302 = vunpack.c.l.b16 %v1266
  %v1303 = vunpack.c.l.b16 %v1267
  %v1304 = vpack.c.b16 %v1303, %v1302
  %v1307 = vunpack.c.l.b16 %v1040
  %v1308 = vunpack.c.l.b16 %v1041
  %v1309 = vpack.c.b16 %v1308, %v1307
  %v1312 = vsel %vm1175, %v1304, 0
  %1314 = vmatpush.bf16.msra.mxu0 0
  %1315 = vmatpush.bf16.msra.mxu0 0
  %1316 = vmatpush.bf16.msra.mxu0 0
  %1317 = vmatpush.bf16.msra.mxu0 0
  %1318 = vmatpush.bf16.msra.mxu0 0
  %1319 = vmatpush.bf16.msra.mxu0 0
  %1320 = vmatpush.bf16.msra.mxu0 0
  %1321 = vmatpush.bf16.msra.mxu0 %v1309
  %1322 = vmatmul.bf16.gmra.mxu0 %v1312
  %v1323 = vpop.f32.mrf.mxu0
  %v1324 = vadd.f32 0.0, %v1323
  %v1325 = vpop.f32.mrf.mxu0
  %v1326 = vadd.f32 0.0, %v1325
  %1327 = vdwg.mxu0
  %v1330 = vunpack.c.l.b16 %v1268
  %v1331 = vunpack.c.l.b16 %v1269
  %v1332 = vpack.c.b16 %v1331, %v1330
  %v1335 = vunpack.c.l.b16 %v1042
  %v1336 = vunpack.c.l.b16 %v1043
  %v1337 = vpack.c.b16 %v1336, %v1335
  %v1340 = vsel %vm1175, %v1332, 0
  %1342 = vmatpush.bf16.msra.mxu0 0
  %1343 = vmatpush.bf16.msra.mxu0 0
  %1344 = vmatpush.bf16.msra.mxu0 0
  %1345 = vmatpush.bf16.msra.mxu0 0
  %1346 = vmatpush.bf16.msra.mxu0 0
  %1347 = vmatpush.bf16.msra.mxu0 0
  %1348 = vmatpush.bf16.msra.mxu0 0
  %1349 = vmatpush.bf16.msra.mxu0 %v1337
  %1350 = vmatmul.bf16.gmra.mxu0 %v1340
  %v1351 = vpop.f32.mrf.mxu0
  %v1352 = vadd.f32 0.0, %v1351
  %v1353 = vpop.f32.mrf.mxu0
  %v1354 = vadd.f32 0.0, %v1353
  %1355 = vdwg.mxu0
  %v1358 = vunpack.c.l.b16 %v1270
  %v1359 = vunpack.c.l.b16 %v1271
  %v1360 = vpack.c.b16 %v1359, %v1358
  %v1363 = vunpack.c.l.b16 %v1044
  %v1364 = vunpack.c.l.b16 %v1045
  %v1365 = vpack.c.b16 %v1364, %v1363
  %v1368 = vsel %vm1175, %v1360, 0
  %1370 = vmatpush.bf16.msra.mxu0 0
  %1371 = vmatpush.bf16.msra.mxu0 0
  %1372 = vmatpush.bf16.msra.mxu0 0
  %1373 = vmatpush.bf16.msra.mxu0 0
  %1374 = vmatpush.bf16.msra.mxu0 0
  %1375 = vmatpush.bf16.msra.mxu0 0
  %1376 = vmatpush.bf16.msra.mxu0 0
  %1377 = vmatpush.bf16.msra.mxu0 %v1365
  %1378 = vmatmul.bf16.gmra.mxu0 %v1368
  %v1379 = vpop.f32.mrf.mxu0
  %v1380 = vadd.f32 0.0, %v1379
  %v1381 = vpop.f32.mrf.mxu0
  %v1382 = vadd.f32 0.0, %v1381
  %1383 = vdwg.mxu0
  %v1384 = vrot.slane %v1352, 4
  %v1385 = vsel %vm314, %v1384, %v1296
  %v1386 = vrot.slane %v1296, 4
  %v1387 = vsel %vm314, %v1352, %v1386
  %v1389 = vunpack.c.l.s4 1983009808
  %v1390 = vunpack.c.0.s8 %v1389
  %v1391 = vperm.slane %v1385, %v1390
  %v1393 = vunpack.c.l.s4 1983009808
  %v1394 = vunpack.c.0.s8 %v1393
  %v1395 = vperm.slane %v1387, %v1394
  %v1396 = vrot.slane %v1380, 4
  %v1397 = vsel %vm314, %v1396, %v1324
  %v1398 = vrot.slane %v1324, 4
  %v1399 = vsel %vm314, %v1380, %v1398
  %v1401 = vunpack.c.l.s4 1983009808
  %v1402 = vunpack.c.0.s8 %v1401
  %v1403 = vperm.slane %v1397, %v1402
  %v1405 = vunpack.c.l.s4 1983009808
  %v1406 = vunpack.c.0.s8 %v1405
  %v1407 = vperm.slane %v1399, %v1406
  %v1408 = vrot.slane %v1403, 4
  %v1409 = vsel %vm314, %v1408, %v1391
  %v1410 = vrot.slane %v1391, 4
  %v1411 = vsel %vm314, %v1403, %v1410
  %v1413 = vunpack.c.l.s4 1934713408
  %v1414 = vunpack.c.0.s8 %v1413
  %v1415 = vperm.slane %v1409, %v1414
  %v1417 = vunpack.c.l.s4 1934713408
  %v1418 = vunpack.c.0.s8 %v1417
  %v1419 = vperm.slane %v1411, %v1418
  %v1420 = vrot.slane %v1407, 4
  %v1421 = vsel %vm314, %v1420, %v1395
  %v1422 = vrot.slane %v1395, 4
  %v1423 = vsel %vm314, %v1407, %v1422
  %v1425 = vunpack.c.l.s4 1934713408
  %v1426 = vunpack.c.0.s8 %v1425
  %v1427 = vperm.slane %v1421, %v1426
  %v1429 = vunpack.c.l.s4 1934713408
  %v1430 = vunpack.c.0.s8 %v1429
  %v1431 = vperm.slane %v1423, %v1430
  %v1432 = vrot.slane %v1415, 4
  %v1433 = vsel %vm314, 0.0, %v1432
  %v1434 = vrot.slane %v1419, 4
  %v1435 = vsel %vm314, 0.0, %v1434
  %v1436 = vrot.slane %v1427, 4
  %v1437 = vsel %vm314, 0.0, %v1436
  %v1438 = vrot.slane %v1431, 4
  %v1439 = vsel %vm314, 0.0, %v1438
  %v1440 = vrot.slane %v1354, 4
  %v1441 = vsel %vm314, %v1440, %v1298
  %v1442 = vrot.slane %v1298, 4
  %v1443 = vsel %vm314, %v1354, %v1442
  %v1445 = vunpack.c.l.s4 1983009808
  %v1446 = vunpack.c.0.s8 %v1445
  %v1447 = vperm.slane %v1441, %v1446
  %v1449 = vunpack.c.l.s4 1983009808
  %v1450 = vunpack.c.0.s8 %v1449
  %v1451 = vperm.slane %v1443, %v1450
  %v1452 = vrot.slane %v1382, 4
  %v1453 = vsel %vm314, %v1452, %v1326
  %v1454 = vrot.slane %v1326, 4
  %v1455 = vsel %vm314, %v1382, %v1454
  %v1457 = vunpack.c.l.s4 1983009808
  %v1458 = vunpack.c.0.s8 %v1457
  %v1459 = vperm.slane %v1453, %v1458
  %v1461 = vunpack.c.l.s4 1983009808
  %v1462 = vunpack.c.0.s8 %v1461
  %v1463 = vperm.slane %v1455, %v1462
  %v1464 = vrot.slane %v1459, 4
  %v1465 = vsel %vm314, %v1464, %v1447
  %v1466 = vrot.slane %v1447, 4
  %v1467 = vsel %vm314, %v1459, %v1466
  %v1469 = vunpack.c.l.s4 1934713408
  %v1470 = vunpack.c.0.s8 %v1469
  %v1471 = vperm.slane %v1465, %v1470
  %v1473 = vunpack.c.l.s4 1934713408
  %v1474 = vunpack.c.0.s8 %v1473
  %v1475 = vperm.slane %v1467, %v1474
  %v1476 = vrot.slane %v1463, 4
  %v1477 = vsel %vm314, %v1476, %v1451
  %v1478 = vrot.slane %v1451, 4
  %v1479 = vsel %vm314, %v1463, %v1478
  %v1481 = vunpack.c.l.s4 1934713408
  %v1482 = vunpack.c.0.s8 %v1481
  %v1483 = vperm.slane %v1477, %v1482
  %v1485 = vunpack.c.l.s4 1934713408
  %v1486 = vunpack.c.0.s8 %v1485
  %v1487 = vperm.slane %v1479, %v1486
  %v1488 = vrot.slane %v1471, 4
  %v1489 = vsel %vm314, 0.0, %v1488
  %v1490 = vrot.slane %v1475, 4
  %v1491 = vsel %vm314, 0.0, %v1490
  %v1492 = vrot.slane %v1483, 4
  %v1493 = vsel %vm314, 0.0, %v1492
  %v1494 = vrot.slane %v1487, 4
  %v1495 = vsel %vm314, 0.0, %v1494
  %v1496 = vsel %vm314, %v1434, %v1415
  %v1498 = vunpack.c.l.s4 1983009808
  %v1499 = vunpack.c.0.s8 %v1498
  %v1500 = vperm.slane %v1496, %v1499
  %v1501 = vrot.slane %v1435, 4
  %v1502 = vsel %vm314, %v1501, %v1433
  %v1504 = vunpack.c.l.s4 1983009808
  %v1505 = vunpack.c.0.s8 %v1504
  %v1506 = vperm.slane %v1502, %v1505
  %v1507 = vsel %vm314, %v1438, %v1427
  %v1509 = vunpack.c.l.s4 1983009808
  %v1510 = vunpack.c.0.s8 %v1509
  %v1511 = vperm.slane %v1507, %v1510
  %v1512 = vrot.slane %v1439, 4
  %v1513 = vsel %vm314, %v1512, %v1437
  %v1515 = vunpack.c.l.s4 1983009808
  %v1516 = vunpack.c.0.s8 %v1515
  %v1517 = vperm.slane %v1513, %v1516
  %v1518 = vrot.slane %v1506, 4
  %v1519 = vsel %vm314, %v1518, %v1500
  %v1520 = vrot.slane %v1500, 4
  %v1521 = vsel %vm314, %v1506, %v1520
  %v1523 = vunpack.c.l.s4 1934713408
  %v1524 = vunpack.c.0.s8 %v1523
  %v1525 = vperm.slane %v1519, %v1524
  %v1527 = vunpack.c.l.s4 1934713408
  %v1528 = vunpack.c.0.s8 %v1527
  %v1529 = vperm.slane %v1521, %v1528
  %v1530 = vrot.slane %v1517, 4
  %v1531 = vsel %vm314, %v1530, %v1511
  %v1532 = vrot.slane %v1511, 4
  %v1533 = vsel %vm314, %v1517, %v1532
  %v1535 = vunpack.c.l.s4 1934713408
  %v1536 = vunpack.c.0.s8 %v1535
  %v1537 = vperm.slane %v1531, %v1536
  %v1539 = vunpack.c.l.s4 1934713408
  %v1540 = vunpack.c.0.s8 %v1539
  %v1541 = vperm.slane %v1533, %v1540
  %v1542 = vrot.slane %v1537, 4
  %v1543 = vsel %vm314, %v1542, %v1525
  %v1544 = vrot.slane %v1525, 4
  %v1545 = vsel %vm314, %v1537, %v1544
  %v1546 = vrot.slane %v1541, 4
  %v1547 = vsel %vm314, %v1546, %v1529
  %v1548 = vrot.slane %v1529, 4
  %v1549 = vsel %vm314, %v1541, %v1548
  %v1550 = vsel %vm314, %v1490, %v1471
  %v1552 = vunpack.c.l.s4 1983009808
  %v1553 = vunpack.c.0.s8 %v1552
  %v1554 = vperm.slane %v1550, %v1553
  %v1555 = vrot.slane %v1491, 4
  %v1556 = vsel %vm314, %v1555, %v1489
  %v1558 = vunpack.c.l.s4 1983009808
  %v1559 = vunpack.c.0.s8 %v1558
  %v1560 = vperm.slane %v1556, %v1559
  %v1561 = vsel %vm314, %v1494, %v1483
  %v1563 = vunpack.c.l.s4 1983009808
  %v1564 = vunpack.c.0.s8 %v1563
  %v1565 = vperm.slane %v1561, %v1564
  %v1566 = vrot.slane %v1495, 4
  %v1567 = vsel %vm314, %v1566, %v1493
  %v1569 = vunpack.c.l.s4 1983009808
  %v1570 = vunpack.c.0.s8 %v1569
  %v1571 = vperm.slane %v1567, %v1570
  %v1572 = vrot.slane %v1560, 4
  %v1573 = vsel %vm314, %v1572, %v1554
  %v1574 = vrot.slane %v1554, 4
  %v1575 = vsel %vm314, %v1560, %v1574
  %v1577 = vunpack.c.l.s4 1934713408
  %v1578 = vunpack.c.0.s8 %v1577
  %v1579 = vperm.slane %v1573, %v1578
  %v1581 = vunpack.c.l.s4 1934713408
  %v1582 = vunpack.c.0.s8 %v1581
  %v1583 = vperm.slane %v1575, %v1582
  %v1584 = vrot.slane %v1571, 4
  %v1585 = vsel %vm314, %v1584, %v1565
  %v1586 = vrot.slane %v1565, 4
  %v1587 = vsel %vm314, %v1571, %v1586
  %v1589 = vunpack.c.l.s4 1934713408
  %v1590 = vunpack.c.0.s8 %v1589
  %v1591 = vperm.slane %v1585, %v1590
  %v1593 = vunpack.c.l.s4 1934713408
  %v1594 = vunpack.c.0.s8 %v1593
  %v1595 = vperm.slane %v1587, %v1594
  %v1596 = vrot.slane %v1591, 4
  %v1597 = vsel %vm314, %v1596, %v1579
  %v1598 = vrot.slane %v1579, 4
  %v1599 = vsel %vm314, %v1591, %v1598
  %v1600 = vrot.slane %v1595, 4
  %v1601 = vsel %vm314, %v1600, %v1583
  %v1602 = vrot.slane %v1583, 4
  %v1603 = vsel %vm314, %v1595, %v1602
  %1606 = vrot.lane.b32.xlu0 %v1545, 8
  %v1607 = vpop.permute.xlu0 %1606
  %1608 = vrot.lane.b32.xlu0 %v1599, 8
  %v1609 = vpop.permute.xlu0 %1608
  %1614 = vrot.lane.b32.xlu0 %v1547, 16
  %v1615 = vpop.permute.xlu0 %1614
  %1616 = vrot.lane.b32.xlu0 %v1601, 16
  %v1617 = vpop.permute.xlu0 %1616
  %1622 = vrot.lane.b32.xlu0 %v1549, 24
  %v1623 = vpop.permute.xlu0 %1622
  %1624 = vrot.lane.b32.xlu0 %v1603, 24
  %v1625 = vpop.permute.xlu0 %1624
  %v1628 = vsel %vm1056, %v1543, %v1607
  %v1629 = vsel %vm1056, %v1597, %v1609
  %v1630 = vsel %vm1175, %v1628, %v1615
  %v1631 = vsel %vm1175, %v1629, %v1617
  %vm1632 = vcmask 195584
  %v1633 = vsel %vm1632, %v1630, %v1623
  %v1634 = vsel %vm1632, %v1631, %v1625
  %1637 = vrot.lane.b32.xlu0 %v289, 120
  %v1638 = vpop.permute.xlu0 %1637
  %1639 = vrot.lane.b32.xlu0 %v291, 120
  %v1640 = vpop.permute.xlu0 %1639
  %1643 = vrot.lane.b32.xlu0 %v289, 112
  %v1644 = vpop.permute.xlu0 %1643
  %1645 = vrot.lane.b32.xlu0 %v291, 112
  %v1646 = vpop.permute.xlu0 %1645
  %1649 = vrot.lane.b32.xlu0 %v289, 104
  %v1650 = vpop.permute.xlu0 %1649
  %1651 = vrot.lane.b32.xlu0 %v291, 104
  %v1652 = vpop.permute.xlu0 %1651
  %v1655 = vrot.slane %v1644, 4
  %v1656 = vsel %vm314, %v1655, %v289
  %v1657 = vrot.slane %v289, 4
  %v1658 = vsel %vm314, %v1644, %v1657
  %v1660 = vunpack.c.l.s4 1983009808
  %v1661 = vunpack.c.0.s8 %v1660
  %v1662 = vperm.slane %v1656, %v1661
  %v1664 = vunpack.c.l.s4 1983009808
  %v1665 = vunpack.c.0.s8 %v1664
  %v1666 = vperm.slane %v1658, %v1665
  %v1667 = vrot.slane %v1650, 4
  %v1668 = vsel %vm314, %v1667, %v1638
  %v1669 = vrot.slane %v1638, 4
  %v1670 = vsel %vm314, %v1650, %v1669
  %v1672 = vunpack.c.l.s4 1983009808
  %v1673 = vunpack.c.0.s8 %v1672
  %v1674 = vperm.slane %v1668, %v1673
  %v1676 = vunpack.c.l.s4 1983009808
  %v1677 = vunpack.c.0.s8 %v1676
  %v1678 = vperm.slane %v1670, %v1677
  %v1679 = vrot.slane %v1674, 4
  %v1680 = vsel %vm314, %v1679, %v1662
  %v1681 = vrot.slane %v1662, 4
  %v1682 = vsel %vm314, %v1674, %v1681
  %v1684 = vunpack.c.l.s4 1934713408
  %v1685 = vunpack.c.0.s8 %v1684
  %v1686 = vperm.slane %v1680, %v1685
  %v1688 = vunpack.c.l.s4 1934713408
  %v1689 = vunpack.c.0.s8 %v1688
  %v1690 = vperm.slane %v1682, %v1689
  %v1691 = vrot.slane %v1678, 4
  %v1692 = vsel %vm314, %v1691, %v1666
  %v1693 = vrot.slane %v1666, 4
  %v1694 = vsel %vm314, %v1678, %v1693
  %v1696 = vunpack.c.l.s4 1934713408
  %v1697 = vunpack.c.0.s8 %v1696
  %v1698 = vperm.slane %v1692, %v1697
  %v1700 = vunpack.c.l.s4 1934713408
  %v1701 = vunpack.c.0.s8 %v1700
  %v1702 = vperm.slane %v1694, %v1701
  %v1703 = vrot.slane %v1686, 4
  %v1704 = vsel %vm314, 0.0, %v1703
  %v1705 = vrot.slane %v1690, 4
  %v1706 = vsel %vm314, 0.0, %v1705
  %v1707 = vrot.slane %v1698, 4
  %v1708 = vsel %vm314, 0.0, %v1707
  %v1709 = vrot.slane %v1702, 4
  %v1710 = vsel %vm314, 0.0, %v1709
  %v1711 = vrot.slane %v1646, 4
  %v1712 = vsel %vm314, %v1711, %v291
  %v1713 = vrot.slane %v291, 4
  %v1714 = vsel %vm314, %v1646, %v1713
  %v1716 = vunpack.c.l.s4 1983009808
  %v1717 = vunpack.c.0.s8 %v1716
  %v1718 = vperm.slane %v1712, %v1717
  %v1720 = vunpack.c.l.s4 1983009808
  %v1721 = vunpack.c.0.s8 %v1720
  %v1722 = vperm.slane %v1714, %v1721
  %v1723 = vrot.slane %v1652, 4
  %v1724 = vsel %vm314, %v1723, %v1640
  %v1725 = vrot.slane %v1640, 4
  %v1726 = vsel %vm314, %v1652, %v1725
  %v1728 = vunpack.c.l.s4 1983009808
  %v1729 = vunpack.c.0.s8 %v1728
  %v1730 = vperm.slane %v1724, %v1729
  %v1732 = vunpack.c.l.s4 1983009808
  %v1733 = vunpack.c.0.s8 %v1732
  %v1734 = vperm.slane %v1726, %v1733
  %v1735 = vrot.slane %v1730, 4
  %v1736 = vsel %vm314, %v1735, %v1718
  %v1737 = vrot.slane %v1718, 4
  %v1738 = vsel %vm314, %v1730, %v1737
  %v1740 = vunpack.c.l.s4 1934713408
  %v1741 = vunpack.c.0.s8 %v1740
  %v1742 = vperm.slane %v1736, %v1741
  %v1744 = vunpack.c.l.s4 1934713408
  %v1745 = vunpack.c.0.s8 %v1744
  %v1746 = vperm.slane %v1738, %v1745
  %v1747 = vrot.slane %v1734, 4
  %v1748 = vsel %vm314, %v1747, %v1722
  %v1749 = vrot.slane %v1722, 4
  %v1750 = vsel %vm314, %v1734, %v1749
  %v1752 = vunpack.c.l.s4 1934713408
  %v1753 = vunpack.c.0.s8 %v1752
  %v1754 = vperm.slane %v1748, %v1753
  %v1756 = vunpack.c.l.s4 1934713408
  %v1757 = vunpack.c.0.s8 %v1756
  %v1758 = vperm.slane %v1750, %v1757
  %v1759 = vrot.slane %v1742, 4
  %v1760 = vsel %vm314, 0.0, %v1759
  %v1761 = vrot.slane %v1746, 4
  %v1762 = vsel %vm314, 0.0, %v1761
  %v1763 = vrot.slane %v1754, 4
  %v1764 = vsel %vm314, 0.0, %v1763
  %v1765 = vrot.slane %v1758, 4
  %v1766 = vsel %vm314, 0.0, %v1765
  %v1767 = vsel %vm314, %v1705, %v1686
  %v1769 = vunpack.c.l.s4 1983009808
  %v1770 = vunpack.c.0.s8 %v1769
  %v1771 = vperm.slane %v1767, %v1770
  %v1772 = vrot.slane %v1706, 4
  %v1773 = vsel %vm314, %v1772, %v1704
  %v1775 = vunpack.c.l.s4 1983009808
  %v1776 = vunpack.c.0.s8 %v1775
  %v1777 = vperm.slane %v1773, %v1776
  %v1778 = vsel %vm314, %v1709, %v1698
  %v1780 = vunpack.c.l.s4 1983009808
  %v1781 = vunpack.c.0.s8 %v1780
  %v1782 = vperm.slane %v1778, %v1781
  %v1783 = vrot.slane %v1710, 4
  %v1784 = vsel %vm314, %v1783, %v1708
  %v1786 = vunpack.c.l.s4 1983009808
  %v1787 = vunpack.c.0.s8 %v1786
  %v1788 = vperm.slane %v1784, %v1787
  %v1789 = vrot.slane %v1777, 4
  %v1790 = vsel %vm314, %v1789, %v1771
  %v1791 = vrot.slane %v1771, 4
  %v1792 = vsel %vm314, %v1777, %v1791
  %v1794 = vunpack.c.l.s4 1934713408
  %v1795 = vunpack.c.0.s8 %v1794
  %v1796 = vperm.slane %v1790, %v1795
  %v1798 = vunpack.c.l.s4 1934713408
  %v1799 = vunpack.c.0.s8 %v1798
  %v1800 = vperm.slane %v1792, %v1799
  %v1801 = vrot.slane %v1788, 4
  %v1802 = vsel %vm314, %v1801, %v1782
  %v1803 = vrot.slane %v1782, 4
  %v1804 = vsel %vm314, %v1788, %v1803
  %v1806 = vunpack.c.l.s4 1934713408
  %v1807 = vunpack.c.0.s8 %v1806
  %v1808 = vperm.slane %v1802, %v1807
  %v1810 = vunpack.c.l.s4 1934713408
  %v1811 = vunpack.c.0.s8 %v1810
  %v1812 = vperm.slane %v1804, %v1811
  %v1813 = vrot.slane %v1808, 4
  %v1814 = vsel %vm314, %v1813, %v1796
  %v1815 = vrot.slane %v1796, 4
  %v1816 = vsel %vm314, %v1808, %v1815
  %v1817 = vrot.slane %v1812, 4
  %v1818 = vsel %vm314, %v1817, %v1800
  %v1819 = vrot.slane %v1800, 4
  %v1820 = vsel %vm314, %v1812, %v1819
  %v1821 = vsel %vm314, %v1761, %v1742
  %v1823 = vunpack.c.l.s4 1983009808
  %v1824 = vunpack.c.0.s8 %v1823
  %v1825 = vperm.slane %v1821, %v1824
  %v1826 = vrot.slane %v1762, 4
  %v1827 = vsel %vm314, %v1826, %v1760
  %v1829 = vunpack.c.l.s4 1983009808
  %v1830 = vunpack.c.0.s8 %v1829
  %v1831 = vperm.slane %v1827, %v1830
  %v1832 = vsel %vm314, %v1765, %v1754
  %v1834 = vunpack.c.l.s4 1983009808
  %v1835 = vunpack.c.0.s8 %v1834
  %v1836 = vperm.slane %v1832, %v1835
  %v1837 = vrot.slane %v1766, 4
  %v1838 = vsel %vm314, %v1837, %v1764
  %v1840 = vunpack.c.l.s4 1983009808
  %v1841 = vunpack.c.0.s8 %v1840
  %v1842 = vperm.slane %v1838, %v1841
  %v1843 = vrot.slane %v1831, 4
  %v1844 = vsel %vm314, %v1843, %v1825
  %v1845 = vrot.slane %v1825, 4
  %v1846 = vsel %vm314, %v1831, %v1845
  %v1848 = vunpack.c.l.s4 1934713408
  %v1849 = vunpack.c.0.s8 %v1848
  %v1850 = vperm.slane %v1844, %v1849
  %v1852 = vunpack.c.l.s4 1934713408
  %v1853 = vunpack.c.0.s8 %v1852
  %v1854 = vperm.slane %v1846, %v1853
  %v1855 = vrot.slane %v1842, 4
  %v1856 = vsel %vm314, %v1855, %v1836
  %v1857 = vrot.slane %v1836, 4
  %v1858 = vsel %vm314, %v1842, %v1857
  %v1860 = vunpack.c.l.s4 1934713408
  %v1861 = vunpack.c.0.s8 %v1860
  %v1862 = vperm.slane %v1856, %v1861
  %v1864 = vunpack.c.l.s4 1934713408
  %v1865 = vunpack.c.0.s8 %v1864
  %v1866 = vperm.slane %v1858, %v1865
  %v1867 = vrot.slane %v1862, 4
  %v1868 = vsel %vm314, %v1867, %v1850
  %v1869 = vrot.slane %v1850, 4
  %v1870 = vsel %vm314, %v1862, %v1869
  %v1871 = vrot.slane %v1866, 4
  %v1872 = vsel %vm314, %v1871, %v1854
  %v1873 = vrot.slane %v1854, 4
  %v1874 = vsel %vm314, %v1866, %v1873
  %v1875 = vpack.c.bf16 %v1814, %v1814
  %v1876 = vpack.c.bf16 %v1868, %v1868
  %v1877 = vpack.c.bf16 %v1816, %v1816
  %v1878 = vpack.c.bf16 %v1870, %v1870
  %v1879 = vpack.c.bf16 %v1818, %v1818
  %v1880 = vpack.c.bf16 %v1872, %v1872
  %v1881 = vpack.c.bf16 %v1820, %v1820
  %v1882 = vpack.c.bf16 %v1874, %v1874
  %1883 = vrot.lane.b32.xlu0 %v289, 96
  %v1884 = vpop.permute.xlu0 %1883
  %1885 = vrot.lane.b32.xlu0 %v291, 96
  %v1886 = vpop.permute.xlu0 %1885
  %1887 = vrot.lane.b32.xlu0 %v1638, 96
  %v1888 = vpop.permute.xlu0 %1887
  %1889 = vrot.lane.b32.xlu0 %v1640, 96
  %v1890 = vpop.permute.xlu0 %1889
  %1891 = vrot.lane.b32.xlu0 %v1644, 96
  %v1892 = vpop.permute.xlu0 %1891
  %1893 = vrot.lane.b32.xlu0 %v1646, 96
  %v1894 = vpop.permute.xlu0 %1893
  %1895 = vrot.lane.b32.xlu0 %v1650, 96
  %v1896 = vpop.permute.xlu0 %1895
  %1897 = vrot.lane.b32.xlu0 %v1652, 96
  %v1898 = vpop.permute.xlu0 %1897
  %v1907 = vrot.slane %v1892, 4
  %v1908 = vsel %vm314, %v1907, %v1884
  %v1909 = vrot.slane %v1884, 4
  %v1910 = vsel %vm314, %v1892, %v1909
  %v1912 = vunpack.c.l.s4 1983009808
  %v1913 = vunpack.c.0.s8 %v1912
  %v1914 = vperm.slane %v1908, %v1913
  %v1916 = vunpack.c.l.s4 1983009808
  %v1917 = vunpack.c.0.s8 %v1916
  %v1918 = vperm.slane %v1910, %v1917
  %v1919 = vrot.slane %v1896, 4
  %v1920 = vsel %vm314, %v1919, %v1888
  %v1921 = vrot.slane %v1888, 4
  %v1922 = vsel %vm314, %v1896, %v1921
  %v1924 = vunpack.c.l.s4 1983009808
  %v1925 = vunpack.c.0.s8 %v1924
  %v1926 = vperm.slane %v1920, %v1925
  %v1928 = vunpack.c.l.s4 1983009808
  %v1929 = vunpack.c.0.s8 %v1928
  %v1930 = vperm.slane %v1922, %v1929
  %v1931 = vrot.slane %v1926, 4
  %v1932 = vsel %vm314, %v1931, %v1914
  %v1933 = vrot.slane %v1914, 4
  %v1934 = vsel %vm314, %v1926, %v1933
  %v1936 = vunpack.c.l.s4 1934713408
  %v1937 = vunpack.c.0.s8 %v1936
  %v1938 = vperm.slane %v1932, %v1937
  %v1940 = vunpack.c.l.s4 1934713408
  %v1941 = vunpack.c.0.s8 %v1940
  %v1942 = vperm.slane %v1934, %v1941
  %v1943 = vrot.slane %v1930, 4
  %v1944 = vsel %vm314, %v1943, %v1918
  %v1945 = vrot.slane %v1918, 4
  %v1946 = vsel %vm314, %v1930, %v1945
  %v1948 = vunpack.c.l.s4 1934713408
  %v1949 = vunpack.c.0.s8 %v1948
  %v1950 = vperm.slane %v1944, %v1949
  %v1952 = vunpack.c.l.s4 1934713408
  %v1953 = vunpack.c.0.s8 %v1952
  %v1954 = vperm.slane %v1946, %v1953
  %v1955 = vrot.slane %v1938, 4
  %v1956 = vsel %vm314, 0.0, %v1955
  %v1957 = vrot.slane %v1942, 4
  %v1958 = vsel %vm314, 0.0, %v1957
  %v1959 = vrot.slane %v1950, 4
  %v1960 = vsel %vm314, 0.0, %v1959
  %v1961 = vrot.slane %v1954, 4
  %v1962 = vsel %vm314, 0.0, %v1961
  %v1963 = vrot.slane %v1894, 4
  %v1964 = vsel %vm314, %v1963, %v1886
  %v1965 = vrot.slane %v1886, 4
  %v1966 = vsel %vm314, %v1894, %v1965
  %v1968 = vunpack.c.l.s4 1983009808
  %v1969 = vunpack.c.0.s8 %v1968
  %v1970 = vperm.slane %v1964, %v1969
  %v1972 = vunpack.c.l.s4 1983009808
  %v1973 = vunpack.c.0.s8 %v1972
  %v1974 = vperm.slane %v1966, %v1973
  %v1975 = vrot.slane %v1898, 4
  %v1976 = vsel %vm314, %v1975, %v1890
  %v1977 = vrot.slane %v1890, 4
  %v1978 = vsel %vm314, %v1898, %v1977
  %v1980 = vunpack.c.l.s4 1983009808
  %v1981 = vunpack.c.0.s8 %v1980
  %v1982 = vperm.slane %v1976, %v1981
  %v1984 = vunpack.c.l.s4 1983009808
  %v1985 = vunpack.c.0.s8 %v1984
  %v1986 = vperm.slane %v1978, %v1985
  %v1987 = vrot.slane %v1982, 4
  %v1988 = vsel %vm314, %v1987, %v1970
  %v1989 = vrot.slane %v1970, 4
  %v1990 = vsel %vm314, %v1982, %v1989
  %v1992 = vunpack.c.l.s4 1934713408
  %v1993 = vunpack.c.0.s8 %v1992
  %v1994 = vperm.slane %v1988, %v1993
  %v1996 = vunpack.c.l.s4 1934713408
  %v1997 = vunpack.c.0.s8 %v1996
  %v1998 = vperm.slane %v1990, %v1997
  %v1999 = vrot.slane %v1986, 4
  %v2000 = vsel %vm314, %v1999, %v1974
  %v2001 = vrot.slane %v1974, 4
  %v2002 = vsel %vm314, %v1986, %v2001
  %v2004 = vunpack.c.l.s4 1934713408
  %v2005 = vunpack.c.0.s8 %v2004
  %v2006 = vperm.slane %v2000, %v2005
  %v2008 = vunpack.c.l.s4 1934713408
  %v2009 = vunpack.c.0.s8 %v2008
  %v2010 = vperm.slane %v2002, %v2009
  %v2011 = vrot.slane %v1994, 4
  %v2012 = vsel %vm314, 0.0, %v2011
  %v2013 = vrot.slane %v1998, 4
  %v2014 = vsel %vm314, 0.0, %v2013
  %v2015 = vrot.slane %v2006, 4
  %v2016 = vsel %vm314, 0.0, %v2015
  %v2017 = vrot.slane %v2010, 4
  %v2018 = vsel %vm314, 0.0, %v2017
  %v2019 = vsel %vm314, %v1957, %v1938
  %v2021 = vunpack.c.l.s4 1983009808
  %v2022 = vunpack.c.0.s8 %v2021
  %v2023 = vperm.slane %v2019, %v2022
  %v2024 = vrot.slane %v1958, 4
  %v2025 = vsel %vm314, %v2024, %v1956
  %v2027 = vunpack.c.l.s4 1983009808
  %v2028 = vunpack.c.0.s8 %v2027
  %v2029 = vperm.slane %v2025, %v2028
  %v2030 = vsel %vm314, %v1961, %v1950
  %v2032 = vunpack.c.l.s4 1983009808
  %v2033 = vunpack.c.0.s8 %v2032
  %v2034 = vperm.slane %v2030, %v2033
  %v2035 = vrot.slane %v1962, 4
  %v2036 = vsel %vm314, %v2035, %v1960
  %v2038 = vunpack.c.l.s4 1983009808
  %v2039 = vunpack.c.0.s8 %v2038
  %v2040 = vperm.slane %v2036, %v2039
  %v2041 = vrot.slane %v2029, 4
  %v2042 = vsel %vm314, %v2041, %v2023
  %v2043 = vrot.slane %v2023, 4
  %v2044 = vsel %vm314, %v2029, %v2043
  %v2046 = vunpack.c.l.s4 1934713408
  %v2047 = vunpack.c.0.s8 %v2046
  %v2048 = vperm.slane %v2042, %v2047
  %v2050 = vunpack.c.l.s4 1934713408
  %v2051 = vunpack.c.0.s8 %v2050
  %v2052 = vperm.slane %v2044, %v2051
  %v2053 = vrot.slane %v2040, 4
  %v2054 = vsel %vm314, %v2053, %v2034
  %v2055 = vrot.slane %v2034, 4
  %v2056 = vsel %vm314, %v2040, %v2055
  %v2058 = vunpack.c.l.s4 1934713408
  %v2059 = vunpack.c.0.s8 %v2058
  %v2060 = vperm.slane %v2054, %v2059
  %v2062 = vunpack.c.l.s4 1934713408
  %v2063 = vunpack.c.0.s8 %v2062
  %v2064 = vperm.slane %v2056, %v2063
  %v2065 = vrot.slane %v2060, 4
  %v2066 = vsel %vm314, %v2065, %v2048
  %v2067 = vrot.slane %v2048, 4
  %v2068 = vsel %vm314, %v2060, %v2067
  %v2069 = vrot.slane %v2064, 4
  %v2070 = vsel %vm314, %v2069, %v2052
  %v2071 = vrot.slane %v2052, 4
  %v2072 = vsel %vm314, %v2064, %v2071
  %v2073 = vsel %vm314, %v2013, %v1994
  %v2075 = vunpack.c.l.s4 1983009808
  %v2076 = vunpack.c.0.s8 %v2075
  %v2077 = vperm.slane %v2073, %v2076
  %v2078 = vrot.slane %v2014, 4
  %v2079 = vsel %vm314, %v2078, %v2012
  %v2081 = vunpack.c.l.s4 1983009808
  %v2082 = vunpack.c.0.s8 %v2081
  %v2083 = vperm.slane %v2079, %v2082
  %v2084 = vsel %vm314, %v2017, %v2006
  %v2086 = vunpack.c.l.s4 1983009808
  %v2087 = vunpack.c.0.s8 %v2086
  %v2088 = vperm.slane %v2084, %v2087
  %v2089 = vrot.slane %v2018, 4
  %v2090 = vsel %vm314, %v2089, %v2016
  %v2092 = vunpack.c.l.s4 1983009808
  %v2093 = vunpack.c.0.s8 %v2092
  %v2094 = vperm.slane %v2090, %v2093
  %v2095 = vrot.slane %v2083, 4
  %v2096 = vsel %vm314, %v2095, %v2077
  %v2097 = vrot.slane %v2077, 4
  %v2098 = vsel %vm314, %v2083, %v2097
  %v2100 = vunpack.c.l.s4 1934713408
  %v2101 = vunpack.c.0.s8 %v2100
  %v2102 = vperm.slane %v2096, %v2101
  %v2104 = vunpack.c.l.s4 1934713408
  %v2105 = vunpack.c.0.s8 %v2104
  %v2106 = vperm.slane %v2098, %v2105
  %v2107 = vrot.slane %v2094, 4
  %v2108 = vsel %vm314, %v2107, %v2088
  %v2109 = vrot.slane %v2088, 4
  %v2110 = vsel %vm314, %v2094, %v2109
  %v2112 = vunpack.c.l.s4 1934713408
  %v2113 = vunpack.c.0.s8 %v2112
  %v2114 = vperm.slane %v2108, %v2113
  %v2116 = vunpack.c.l.s4 1934713408
  %v2117 = vunpack.c.0.s8 %v2116
  %v2118 = vperm.slane %v2110, %v2117
  %v2119 = vrot.slane %v2114, 4
  %v2120 = vsel %vm314, %v2119, %v2102
  %v2121 = vrot.slane %v2102, 4
  %v2122 = vsel %vm314, %v2114, %v2121
  %v2123 = vrot.slane %v2118, 4
  %v2124 = vsel %vm314, %v2123, %v2106
  %v2125 = vrot.slane %v2106, 4
  %v2126 = vsel %vm314, %v2118, %v2125
  %v2127 = vpack.c.bf16 %v2066, %v2066
  %v2128 = vpack.c.bf16 %v2120, %v2120
  %v2129 = vpack.c.bf16 %v2068, %v2068
  %v2130 = vpack.c.bf16 %v2122, %v2122
  %v2131 = vpack.c.bf16 %v2070, %v2070
  %v2132 = vpack.c.bf16 %v2124, %v2124
  %v2133 = vpack.c.bf16 %v2072, %v2072
  %v2134 = vpack.c.bf16 %v2126, %v2126
  %2135 = vrot.lane.b32.xlu0 %v289, 64
  %v2136 = vpop.permute.xlu0 %2135
  %2137 = vrot.lane.b32.xlu0 %v291, 64
  %v2138 = vpop.permute.xlu0 %2137
  %2139 = vrot.lane.b32.xlu0 %v1638, 64
  %v2140 = vpop.permute.xlu0 %2139
  %2141 = vrot.lane.b32.xlu0 %v1640, 64
  %v2142 = vpop.permute.xlu0 %2141
  %2143 = vrot.lane.b32.xlu0 %v1644, 64
  %v2144 = vpop.permute.xlu0 %2143
  %2145 = vrot.lane.b32.xlu0 %v1646, 64
  %v2146 = vpop.permute.xlu0 %2145
  %2147 = vrot.lane.b32.xlu0 %v1650, 64
  %v2148 = vpop.permute.xlu0 %2147
  %2149 = vrot.lane.b32.xlu0 %v1652, 64
  %v2150 = vpop.permute.xlu0 %2149
  %v2159 = vrot.slane %v2144, 4
  %v2160 = vsel %vm314, %v2159, %v2136
  %v2161 = vrot.slane %v2136, 4
  %v2162 = vsel %vm314, %v2144, %v2161
  %v2164 = vunpack.c.l.s4 1983009808
  %v2165 = vunpack.c.0.s8 %v2164
  %v2166 = vperm.slane %v2160, %v2165
  %v2168 = vunpack.c.l.s4 1983009808
  %v2169 = vunpack.c.0.s8 %v2168
  %v2170 = vperm.slane %v2162, %v2169
  %v2171 = vrot.slane %v2148, 4
  %v2172 = vsel %vm314, %v2171, %v2140
  %v2173 = vrot.slane %v2140, 4
  %v2174 = vsel %vm314, %v2148, %v2173
  %v2176 = vunpack.c.l.s4 1983009808
  %v2177 = vunpack.c.0.s8 %v2176
  %v2178 = vperm.slane %v2172, %v2177
  %v2180 = vunpack.c.l.s4 1983009808
  %v2181 = vunpack.c.0.s8 %v2180
  %v2182 = vperm.slane %v2174, %v2181
  %v2183 = vrot.slane %v2178, 4
  %v2184 = vsel %vm314, %v2183, %v2166
  %v2185 = vrot.slane %v2166, 4
  %v2186 = vsel %vm314, %v2178, %v2185
  %v2188 = vunpack.c.l.s4 1934713408
  %v2189 = vunpack.c.0.s8 %v2188
  %v2190 = vperm.slane %v2184, %v2189
  %v2192 = vunpack.c.l.s4 1934713408
  %v2193 = vunpack.c.0.s8 %v2192
  %v2194 = vperm.slane %v2186, %v2193
  %v2195 = vrot.slane %v2182, 4
  %v2196 = vsel %vm314, %v2195, %v2170
  %v2197 = vrot.slane %v2170, 4
  %v2198 = vsel %vm314, %v2182, %v2197
  %v2200 = vunpack.c.l.s4 1934713408
  %v2201 = vunpack.c.0.s8 %v2200
  %v2202 = vperm.slane %v2196, %v2201
  %v2204 = vunpack.c.l.s4 1934713408
  %v2205 = vunpack.c.0.s8 %v2204
  %v2206 = vperm.slane %v2198, %v2205
  %v2207 = vrot.slane %v2190, 4
  %v2208 = vsel %vm314, 0.0, %v2207
  %v2209 = vrot.slane %v2194, 4
  %v2210 = vsel %vm314, 0.0, %v2209
  %v2211 = vrot.slane %v2202, 4
  %v2212 = vsel %vm314, 0.0, %v2211
  %v2213 = vrot.slane %v2206, 4
  %v2214 = vsel %vm314, 0.0, %v2213
  %v2215 = vrot.slane %v2146, 4
  %v2216 = vsel %vm314, %v2215, %v2138
  %v2217 = vrot.slane %v2138, 4
  %v2218 = vsel %vm314, %v2146, %v2217
  %v2220 = vunpack.c.l.s4 1983009808
  %v2221 = vunpack.c.0.s8 %v2220
  %v2222 = vperm.slane %v2216, %v2221
  %v2224 = vunpack.c.l.s4 1983009808
  %v2225 = vunpack.c.0.s8 %v2224
  %v2226 = vperm.slane %v2218, %v2225
  %v2227 = vrot.slane %v2150, 4
  %v2228 = vsel %vm314, %v2227, %v2142
  %v2229 = vrot.slane %v2142, 4
  %v2230 = vsel %vm314, %v2150, %v2229
  %v2232 = vunpack.c.l.s4 1983009808
  %v2233 = vunpack.c.0.s8 %v2232
  %v2234 = vperm.slane %v2228, %v2233
  %v2236 = vunpack.c.l.s4 1983009808
  %v2237 = vunpack.c.0.s8 %v2236
  %v2238 = vperm.slane %v2230, %v2237
  %v2239 = vrot.slane %v2234, 4
  %v2240 = vsel %vm314, %v2239, %v2222
  %v2241 = vrot.slane %v2222, 4
  %v2242 = vsel %vm314, %v2234, %v2241
  %v2244 = vunpack.c.l.s4 1934713408
  %v2245 = vunpack.c.0.s8 %v2244
  %v2246 = vperm.slane %v2240, %v2245
  %v2248 = vunpack.c.l.s4 1934713408
  %v2249 = vunpack.c.0.s8 %v2248
  %v2250 = vperm.slane %v2242, %v2249
  %v2251 = vrot.slane %v2238, 4
  %v2252 = vsel %vm314, %v2251, %v2226
  %v2253 = vrot.slane %v2226, 4
  %v2254 = vsel %vm314, %v2238, %v2253
  %v2256 = vunpack.c.l.s4 1934713408
  %v2257 = vunpack.c.0.s8 %v2256
  %v2258 = vperm.slane %v2252, %v2257
  %v2260 = vunpack.c.l.s4 1934713408
  %v2261 = vunpack.c.0.s8 %v2260
  %v2262 = vperm.slane %v2254, %v2261
  %v2263 = vrot.slane %v2246, 4
  %v2264 = vsel %vm314, 0.0, %v2263
  %v2265 = vrot.slane %v2250, 4
  %v2266 = vsel %vm314, 0.0, %v2265
  %v2267 = vrot.slane %v2258, 4
  %v2268 = vsel %vm314, 0.0, %v2267
  %v2269 = vrot.slane %v2262, 4
  %v2270 = vsel %vm314, 0.0, %v2269
  %v2271 = vsel %vm314, %v2209, %v2190
  %v2273 = vunpack.c.l.s4 1983009808
  %v2274 = vunpack.c.0.s8 %v2273
  %v2275 = vperm.slane %v2271, %v2274
  %v2276 = vrot.slane %v2210, 4
  %v2277 = vsel %vm314, %v2276, %v2208
  %v2279 = vunpack.c.l.s4 1983009808
  %v2280 = vunpack.c.0.s8 %v2279
  %v2281 = vperm.slane %v2277, %v2280
  %v2282 = vsel %vm314, %v2213, %v2202
  %v2284 = vunpack.c.l.s4 1983009808
  %v2285 = vunpack.c.0.s8 %v2284
  %v2286 = vperm.slane %v2282, %v2285
  %v2287 = vrot.slane %v2214, 4
  %v2288 = vsel %vm314, %v2287, %v2212
  %v2290 = vunpack.c.l.s4 1983009808
  %v2291 = vunpack.c.0.s8 %v2290
  %v2292 = vperm.slane %v2288, %v2291
  %v2293 = vrot.slane %v2281, 4
  %v2294 = vsel %vm314, %v2293, %v2275
  %v2295 = vrot.slane %v2275, 4
  %v2296 = vsel %vm314, %v2281, %v2295
  %v2298 = vunpack.c.l.s4 1934713408
  %v2299 = vunpack.c.0.s8 %v2298
  %v2300 = vperm.slane %v2294, %v2299
  %v2302 = vunpack.c.l.s4 1934713408
  %v2303 = vunpack.c.0.s8 %v2302
  %v2304 = vperm.slane %v2296, %v2303
  %v2305 = vrot.slane %v2292, 4
  %v2306 = vsel %vm314, %v2305, %v2286
  %v2307 = vrot.slane %v2286, 4
  %v2308 = vsel %vm314, %v2292, %v2307
  %v2310 = vunpack.c.l.s4 1934713408
  %v2311 = vunpack.c.0.s8 %v2310
  %v2312 = vperm.slane %v2306, %v2311
  %v2314 = vunpack.c.l.s4 1934713408
  %v2315 = vunpack.c.0.s8 %v2314
  %v2316 = vperm.slane %v2308, %v2315
  %v2317 = vrot.slane %v2312, 4
  %v2318 = vsel %vm314, %v2317, %v2300
  %v2319 = vrot.slane %v2300, 4
  %v2320 = vsel %vm314, %v2312, %v2319
  %v2321 = vrot.slane %v2316, 4
  %v2322 = vsel %vm314, %v2321, %v2304
  %v2323 = vrot.slane %v2304, 4
  %v2324 = vsel %vm314, %v2316, %v2323
  %v2325 = vsel %vm314, %v2265, %v2246
  %v2327 = vunpack.c.l.s4 1983009808
  %v2328 = vunpack.c.0.s8 %v2327
  %v2329 = vperm.slane %v2325, %v2328
  %v2330 = vrot.slane %v2266, 4
  %v2331 = vsel %vm314, %v2330, %v2264
  %v2333 = vunpack.c.l.s4 1983009808
  %v2334 = vunpack.c.0.s8 %v2333
  %v2335 = vperm.slane %v2331, %v2334
  %v2336 = vsel %vm314, %v2269, %v2258
  %v2338 = vunpack.c.l.s4 1983009808
  %v2339 = vunpack.c.0.s8 %v2338
  %v2340 = vperm.slane %v2336, %v2339
  %v2341 = vrot.slane %v2270, 4
  %v2342 = vsel %vm314, %v2341, %v2268
  %v2344 = vunpack.c.l.s4 1983009808
  %v2345 = vunpack.c.0.s8 %v2344
  %v2346 = vperm.slane %v2342, %v2345
  %v2347 = vrot.slane %v2335, 4
  %v2348 = vsel %vm314, %v2347, %v2329
  %v2349 = vrot.slane %v2329, 4
  %v2350 = vsel %vm314, %v2335, %v2349
  %v2352 = vunpack.c.l.s4 1934713408
  %v2353 = vunpack.c.0.s8 %v2352
  %v2354 = vperm.slane %v2348, %v2353
  %v2356 = vunpack.c.l.s4 1934713408
  %v2357 = vunpack.c.0.s8 %v2356
  %v2358 = vperm.slane %v2350, %v2357
  %v2359 = vrot.slane %v2346, 4
  %v2360 = vsel %vm314, %v2359, %v2340
  %v2361 = vrot.slane %v2340, 4
  %v2362 = vsel %vm314, %v2346, %v2361
  %v2364 = vunpack.c.l.s4 1934713408
  %v2365 = vunpack.c.0.s8 %v2364
  %v2366 = vperm.slane %v2360, %v2365
  %v2368 = vunpack.c.l.s4 1934713408
  %v2369 = vunpack.c.0.s8 %v2368
  %v2370 = vperm.slane %v2362, %v2369
  %v2371 = vrot.slane %v2366, 4
  %v2372 = vsel %vm314, %v2371, %v2354
  %v2373 = vrot.slane %v2354, 4
  %v2374 = vsel %vm314, %v2366, %v2373
  %v2375 = vrot.slane %v2370, 4
  %v2376 = vsel %vm314, %v2375, %v2358
  %v2377 = vrot.slane %v2358, 4
  %v2378 = vsel %vm314, %v2370, %v2377
  %v2379 = vpack.c.bf16 %v2318, %v2318
  %v2380 = vpack.c.bf16 %v2372, %v2372
  %v2381 = vpack.c.bf16 %v2320, %v2320
  %v2382 = vpack.c.bf16 %v2374, %v2374
  %v2383 = vpack.c.bf16 %v2322, %v2322
  %v2384 = vpack.c.bf16 %v2376, %v2376
  %v2385 = vpack.c.bf16 %v2324, %v2324
  %v2386 = vpack.c.bf16 %v2378, %v2378
  %v2389 = vunpack.c.l.b16 %v1875
  %v2390 = vunpack.c.l.b16 %v1876
  %v2391 = vpack.c.b16 %v2390, %v2389
  %v2394 = vunpack.c.l.b16 %v2127
  %v2395 = vunpack.c.l.b16 %v2128
  %v2396 = vpack.c.b16 %v2395, %v2394
  %v2398 = vsel %vm1056, %v2391, 0
  %v2401 = vsel %vm1056, %v2396, 0
  %2403 = vmatpush.bf16.xpose.msra.mxu0 0
  %2404 = vmatpush.bf16.xpose.msra.mxu0 0
  %2405 = vmatpush.bf16.xpose.msra.mxu0 0
  %2406 = vmatpush.bf16.xpose.msra.mxu0 0
  %2407 = vmatpush.bf16.xpose.msra.mxu0 0
  %2408 = vmatpush.bf16.xpose.msra.mxu0 0
  %2409 = vmatpush.bf16.xpose.msra.mxu0 0
  %2410 = vmatpush.bf16.xpose.msra.mxu0 %v2401
  %2411 = vmatmul.bf16.gmra.mxu0 %v2398
  %v2412 = vpop.f32.mrf.mxu0
  %v2413 = vadd.f32 0.0, %v2412
  %v2414 = vpop.f32.mrf.mxu0
  %v2415 = vadd.f32 0.0, %v2414
  %2416 = vdwg.mxu0
  %v2419 = vunpack.c.l.b16 %v1877
  %v2420 = vunpack.c.l.b16 %v1878
  %v2421 = vpack.c.b16 %v2420, %v2419
  %v2424 = vunpack.c.l.b16 %v2129
  %v2425 = vunpack.c.l.b16 %v2130
  %v2426 = vpack.c.b16 %v2425, %v2424
  %v2428 = vsel %vm1056, %v2421, 0
  %v2431 = vsel %vm1056, %v2426, 0
  %2433 = vmatpush.bf16.xpose.msra.mxu0 0
  %2434 = vmatpush.bf16.xpose.msra.mxu0 0
  %2435 = vmatpush.bf16.xpose.msra.mxu0 0
  %2436 = vmatpush.bf16.xpose.msra.mxu0 0
  %2437 = vmatpush.bf16.xpose.msra.mxu0 0
  %2438 = vmatpush.bf16.xpose.msra.mxu0 0
  %2439 = vmatpush.bf16.xpose.msra.mxu0 0
  %2440 = vmatpush.bf16.xpose.msra.mxu0 %v2431
  %2441 = vmatmul.bf16.gmra.mxu0 %v2428
  %v2442 = vpop.f32.mrf.mxu0
  %v2443 = vadd.f32 0.0, %v2442
  %v2444 = vpop.f32.mrf.mxu0
  %v2445 = vadd.f32 0.0, %v2444
  %2446 = vdwg.mxu0
  %v2449 = vunpack.c.l.b16 %v1879
  %v2450 = vunpack.c.l.b16 %v1880
  %v2451 = vpack.c.b16 %v2450, %v2449
  %v2454 = vunpack.c.l.b16 %v2131
  %v2455 = vunpack.c.l.b16 %v2132
  %v2456 = vpack.c.b16 %v2455, %v2454
  %v2458 = vsel %vm1056, %v2451, 0
  %v2461 = vsel %vm1056, %v2456, 0
  %2463 = vmatpush.bf16.xpose.msra.mxu0 0
  %2464 = vmatpush.bf16.xpose.msra.mxu0 0
  %2465 = vmatpush.bf16.xpose.msra.mxu0 0
  %2466 = vmatpush.bf16.xpose.msra.mxu0 0
  %2467 = vmatpush.bf16.xpose.msra.mxu0 0
  %2468 = vmatpush.bf16.xpose.msra.mxu0 0
  %2469 = vmatpush.bf16.xpose.msra.mxu0 0
  %2470 = vmatpush.bf16.xpose.msra.mxu0 %v2461
  %2471 = vmatmul.bf16.gmra.mxu0 %v2458
  %v2472 = vpop.f32.mrf.mxu0
  %v2473 = vadd.f32 0.0, %v2472
  %v2474 = vpop.f32.mrf.mxu0
  %v2475 = vadd.f32 0.0, %v2474
  %2476 = vdwg.mxu0
  %v2479 = vunpack.c.l.b16 %v1881
  %v2480 = vunpack.c.l.b16 %v1882
  %v2481 = vpack.c.b16 %v2480, %v2479
  %v2484 = vunpack.c.l.b16 %v2133
  %v2485 = vunpack.c.l.b16 %v2134
  %v2486 = vpack.c.b16 %v2485, %v2484
  %v2488 = vsel %vm1056, %v2481, 0
  %v2491 = vsel %vm1056, %v2486, 0
  %2493 = vmatpush.bf16.xpose.msra.mxu0 0
  %2494 = vmatpush.bf16.xpose.msra.mxu0 0
  %2495 = vmatpush.bf16.xpose.msra.mxu0 0
  %2496 = vmatpush.bf16.xpose.msra.mxu0 0
  %2497 = vmatpush.bf16.xpose.msra.mxu0 0
  %2498 = vmatpush.bf16.xpose.msra.mxu0 0
  %2499 = vmatpush.bf16.xpose.msra.mxu0 0
  %2500 = vmatpush.bf16.xpose.msra.mxu0 %v2491
  %2501 = vmatmul.bf16.gmra.mxu0 %v2488
  %v2502 = vpop.f32.mrf.mxu0
  %v2503 = vadd.f32 0.0, %v2502
  %v2504 = vpop.f32.mrf.mxu0
  %v2505 = vadd.f32 0.0, %v2504
  %2506 = vdwg.mxu0
  %v2507 = vmul.f32 %v2413, 0.35355338
  %v2508 = vmul.f32 %v2415, 0.35355338
  %v2509 = vmul.f32 %v2443, 0.35355338
  %v2510 = vmul.f32 %v2445, 0.35355338
  %v2511 = vmul.f32 %v2473, 0.35355338
  %v2512 = vmul.f32 %v2475, 0.35355338
  %v2513 = vmul.f32 %v2503, 0.35355338
  %v2514 = vmul.f32 %v2505, 0.35355338
  %v2515 = vsel %vm1175, %v2507, -inf
  %2516 = vmax.xlane.f32.xlu0 %v2515
  %v2517 = vpop.xlane.xlu0 %2516
  %v2518 = vsel %vm1175, %v2508, -inf
  %2519 = vmax.xlane.f32.xlu0 %v2518
  %v2520 = vpop.xlane.xlu0 %2519
  %v2521 = vsel %vm1175, %v2509, -inf
  %2522 = vmax.xlane.f32.xlu0 %v2521
  %v2523 = vpop.xlane.xlu0 %2522
  %v2524 = vsel %vm1175, %v2510, -inf
  %2525 = vmax.xlane.f32.xlu0 %v2524
  %v2526 = vpop.xlane.xlu0 %2525
  %v2527 = vsel %vm1175, %v2511, -inf
  %2528 = vmax.xlane.f32.xlu0 %v2527
  %v2529 = vpop.xlane.xlu0 %2528
  %v2530 = vsel %vm1175, %v2512, -inf
  %2531 = vmax.xlane.f32.xlu0 %v2530
  %v2532 = vpop.xlane.xlu0 %2531
  %v2533 = vsel %vm1175, %v2513, -inf
  %2534 = vmax.xlane.f32.xlu0 %v2533
  %v2535 = vpop.xlane.xlu0 %2534
  %v2536 = vsel %vm1175, %v2514, -inf
  %2537 = vmax.xlane.f32.xlu0 %v2536
  %v2538 = vpop.xlane.xlu0 %2537
  %v2539 = vsub.f32 %v2507, %v2517
  %v2540 = vsub.f32 %v2508, %v2520
  %v2541 = vsub.f32 %v2509, %v2523
  %v2542 = vsub.f32 %v2510, %v2526
  %v2543 = vsub.f32 %v2511, %v2529
  %v2544 = vsub.f32 %v2512, %v2532
  %v2545 = vsub.f32 %v2513, %v2535
  %v2546 = vsub.f32 %v2514, %v2538
  %v2547 = vmul.f32 %v2539, 1.442695
  %v2548 = vpow.pop %v2547
  %v2549 = vmul.f32 %v2540, 1.442695
  %v2550 = vpow.pop %v2549
  %v2551 = vmul.f32 %v2541, 1.442695
  %v2552 = vpow.pop %v2551
  %v2553 = vmul.f32 %v2542, 1.442695
  %v2554 = vpow.pop %v2553
  %v2555 = vmul.f32 %v2543, 1.442695
  %v2556 = vpow.pop %v2555
  %v2557 = vmul.f32 %v2544, 1.442695
  %v2558 = vpow.pop %v2557
  %v2559 = vmul.f32 %v2545, 1.442695
  %v2560 = vpow.pop %v2559
  %v2561 = vmul.f32 %v2546, 1.442695
  %v2562 = vpow.pop %v2561
  %v2563 = vsel %vm1175, %v2548, 0.0
  %2564 = vadd.xlane.f32.xlu0 %v2563
  %v2565 = vpop.xlane.xlu0 %2564
  %v2566 = vsel %vm1175, %v2550, 0.0
  %2567 = vadd.xlane.f32.xlu0 %v2566
  %v2568 = vpop.xlane.xlu0 %2567
  %v2569 = vsel %vm1175, %v2552, 0.0
  %2570 = vadd.xlane.f32.xlu0 %v2569
  %v2571 = vpop.xlane.xlu0 %2570
  %v2572 = vsel %vm1175, %v2554, 0.0
  %2573 = vadd.xlane.f32.xlu0 %v2572
  %v2574 = vpop.xlane.xlu0 %2573
  %v2575 = vsel %vm1175, %v2556, 0.0
  %2576 = vadd.xlane.f32.xlu0 %v2575
  %v2577 = vpop.xlane.xlu0 %2576
  %v2578 = vsel %vm1175, %v2558, 0.0
  %2579 = vadd.xlane.f32.xlu0 %v2578
  %v2580 = vpop.xlane.xlu0 %2579
  %v2581 = vsel %vm1175, %v2560, 0.0
  %2582 = vadd.xlane.f32.xlu0 %v2581
  %v2583 = vpop.xlane.xlu0 %2582
  %v2584 = vsel %vm1175, %v2562, 0.0
  %2585 = vadd.xlane.f32.xlu0 %v2584
  %v2586 = vpop.xlane.xlu0 %2585
  %v2587 = vrcp.pop %v2565
  %v2588 = vrcp.pop %v2568
  %v2589 = vrcp.pop %v2571
  %v2590 = vrcp.pop %v2574
  %v2591 = vrcp.pop %v2577
  %v2592 = vrcp.pop %v2580
  %v2593 = vrcp.pop %v2583
  %v2594 = vrcp.pop %v2586
  %v2595 = vmul.f32 %v2548, %v2587
  %v2596 = vmul.f32 %v2550, %v2588
  %v2597 = vmul.f32 %v2552, %v2589
  %v2598 = vmul.f32 %v2554, %v2590
  %v2599 = vmul.f32 %v2556, %v2591
  %v2600 = vmul.f32 %v2558, %v2592
  %v2601 = vmul.f32 %v2560, %v2593
  %v2602 = vmul.f32 %v2562, %v2594
  %v2603 = vpack.c.bf16 %v2595, %v2595
  %v2604 = vpack.c.bf16 %v2596, %v2596
  %v2605 = vpack.c.bf16 %v2597, %v2597
  %v2606 = vpack.c.bf16 %v2598, %v2598
  %v2607 = vpack.c.bf16 %v2599, %v2599
  %v2608 = vpack.c.bf16 %v2600, %v2600
  %v2609 = vpack.c.bf16 %v2601, %v2601
  %v2610 = vpack.c.bf16 %v2602, %v2602
  %v2613 = vunpack.c.l.b16 %v2603
  %v2614 = vunpack.c.l.b16 %v2604
  %v2615 = vpack.c.b16 %v2614, %v2613
  %v2618 = vunpack.c.l.b16 %v2379
  %v2619 = vunpack.c.l.b16 %v2380
  %v2620 = vpack.c.b16 %v2619, %v2618
  %v2623 = vsel %vm1175, %v2615, 0
  %2625 = vmatpush.bf16.msra.mxu0 0
  %2626 = vmatpush.bf16.msra.mxu0 0
  %2627 = vmatpush.bf16.msra.mxu0 0
  %2628 = vmatpush.bf16.msra.mxu0 0
  %2629 = vmatpush.bf16.msra.mxu0 0
  %2630 = vmatpush.bf16.msra.mxu0 0
  %2631 = vmatpush.bf16.msra.mxu0 0
  %2632 = vmatpush.bf16.msra.mxu0 %v2620
  %2633 = vmatmul.bf16.gmra.mxu0 %v2623
  %v2634 = vpop.f32.mrf.mxu0
  %v2635 = vadd.f32 0.0, %v2634
  %v2636 = vpop.f32.mrf.mxu0
  %v2637 = vadd.f32 0.0, %v2636
  %2638 = vdwg.mxu0
  %v2641 = vunpack.c.l.b16 %v2605
  %v2642 = vunpack.c.l.b16 %v2606
  %v2643 = vpack.c.b16 %v2642, %v2641
  %v2646 = vunpack.c.l.b16 %v2381
  %v2647 = vunpack.c.l.b16 %v2382
  %v2648 = vpack.c.b16 %v2647, %v2646
  %v2651 = vsel %vm1175, %v2643, 0
  %2653 = vmatpush.bf16.msra.mxu0 0
  %2654 = vmatpush.bf16.msra.mxu0 0
  %2655 = vmatpush.bf16.msra.mxu0 0
  %2656 = vmatpush.bf16.msra.mxu0 0
  %2657 = vmatpush.bf16.msra.mxu0 0
  %2658 = vmatpush.bf16.msra.mxu0 0
  %2659 = vmatpush.bf16.msra.mxu0 0
  %2660 = vmatpush.bf16.msra.mxu0 %v2648
  %2661 = vmatmul.bf16.gmra.mxu0 %v2651
  %v2662 = vpop.f32.mrf.mxu0
  %v2663 = vadd.f32 0.0, %v2662
  %v2664 = vpop.f32.mrf.mxu0
  %v2665 = vadd.f32 0.0, %v2664
  %2666 = vdwg.mxu0
  %v2669 = vunpack.c.l.b16 %v2607
  %v2670 = vunpack.c.l.b16 %v2608
  %v2671 = vpack.c.b16 %v2670, %v2669
  %v2674 = vunpack.c.l.b16 %v2383
  %v2675 = vunpack.c.l.b16 %v2384
  %v2676 = vpack.c.b16 %v2675, %v2674
  %v2679 = vsel %vm1175, %v2671, 0
  %2681 = vmatpush.bf16.msra.mxu0 0
  %2682 = vmatpush.bf16.msra.mxu0 0
  %2683 = vmatpush.bf16.msra.mxu0 0
  %2684 = vmatpush.bf16.msra.mxu0 0
  %2685 = vmatpush.bf16.msra.mxu0 0
  %2686 = vmatpush.bf16.msra.mxu0 0
  %2687 = vmatpush.bf16.msra.mxu0 0
  %2688 = vmatpush.bf16.msra.mxu0 %v2676
  %2689 = vmatmul.bf16.gmra.mxu0 %v2679
  %v2690 = vpop.f32.mrf.mxu0
  %v2691 = vadd.f32 0.0, %v2690
  %v2692 = vpop.f32.mrf.mxu0
  %v2693 = vadd.f32 0.0, %v2692
  %2694 = vdwg.mxu0
  %v2697 = vunpack.c.l.b16 %v2609
  %v2698 = vunpack.c.l.b16 %v2610
  %v2699 = vpack.c.b16 %v2698, %v2697
  %v2702 = vunpack.c.l.b16 %v2385
  %v2703 = vunpack.c.l.b16 %v2386
  %v2704 = vpack.c.b16 %v2703, %v2702
  %v2707 = vsel %vm1175, %v2699, 0
  %2709 = vmatpush.bf16.msra.mxu0 0
  %2710 = vmatpush.bf16.msra.mxu0 0
  %2711 = vmatpush.bf16.msra.mxu0 0
  %2712 = vmatpush.bf16.msra.mxu0 0
  %2713 = vmatpush.bf16.msra.mxu0 0
  %2714 = vmatpush.bf16.msra.mxu0 0
  %2715 = vmatpush.bf16.msra.mxu0 0
  %2716 = vmatpush.bf16.msra.mxu0 %v2704
  %2717 = vmatmul.bf16.gmra.mxu0 %v2707
  %v2718 = vpop.f32.mrf.mxu0
  %v2719 = vadd.f32 0.0, %v2718
  %v2720 = vpop.f32.mrf.mxu0
  %v2721 = vadd.f32 0.0, %v2720
  %2722 = vdwg.mxu0
  %v2723 = vrot.slane %v2691, 4
  %v2724 = vsel %vm314, %v2723, %v2635
  %v2725 = vrot.slane %v2635, 4
  %v2726 = vsel %vm314, %v2691, %v2725
  %v2728 = vunpack.c.l.s4 1983009808
  %v2729 = vunpack.c.0.s8 %v2728
  %v2730 = vperm.slane %v2724, %v2729
  %v2732 = vunpack.c.l.s4 1983009808
  %v2733 = vunpack.c.0.s8 %v2732
  %v2734 = vperm.slane %v2726, %v2733
  %v2735 = vrot.slane %v2719, 4
  %v2736 = vsel %vm314, %v2735, %v2663
  %v2737 = vrot.slane %v2663, 4
  %v2738 = vsel %vm314, %v2719, %v2737
  %v2740 = vunpack.c.l.s4 1983009808
  %v2741 = vunpack.c.0.s8 %v2740
  %v2742 = vperm.slane %v2736, %v2741
  %v2744 = vunpack.c.l.s4 1983009808
  %v2745 = vunpack.c.0.s8 %v2744
  %v2746 = vperm.slane %v2738, %v2745
  %v2747 = vrot.slane %v2742, 4
  %v2748 = vsel %vm314, %v2747, %v2730
  %v2749 = vrot.slane %v2730, 4
  %v2750 = vsel %vm314, %v2742, %v2749
  %v2752 = vunpack.c.l.s4 1934713408
  %v2753 = vunpack.c.0.s8 %v2752
  %v2754 = vperm.slane %v2748, %v2753
  %v2756 = vunpack.c.l.s4 1934713408
  %v2757 = vunpack.c.0.s8 %v2756
  %v2758 = vperm.slane %v2750, %v2757
  %v2759 = vrot.slane %v2746, 4
  %v2760 = vsel %vm314, %v2759, %v2734
  %v2761 = vrot.slane %v2734, 4
  %v2762 = vsel %vm314, %v2746, %v2761
  %v2764 = vunpack.c.l.s4 1934713408
  %v2765 = vunpack.c.0.s8 %v2764
  %v2766 = vperm.slane %v2760, %v2765
  %v2768 = vunpack.c.l.s4 1934713408
  %v2769 = vunpack.c.0.s8 %v2768
  %v2770 = vperm.slane %v2762, %v2769
  %v2771 = vrot.slane %v2754, 4
  %v2772 = vsel %vm314, 0.0, %v2771
  %v2773 = vrot.slane %v2758, 4
  %v2774 = vsel %vm314, 0.0, %v2773
  %v2775 = vrot.slane %v2766, 4
  %v2776 = vsel %vm314, 0.0, %v2775
  %v2777 = vrot.slane %v2770, 4
  %v2778 = vsel %vm314, 0.0, %v2777
  %v2779 = vrot.slane %v2693, 4
  %v2780 = vsel %vm314, %v2779, %v2637
  %v2781 = vrot.slane %v2637, 4
  %v2782 = vsel %vm314, %v2693, %v2781
  %v2784 = vunpack.c.l.s4 1983009808
  %v2785 = vunpack.c.0.s8 %v2784
  %v2786 = vperm.slane %v2780, %v2785
  %v2788 = vunpack.c.l.s4 1983009808
  %v2789 = vunpack.c.0.s8 %v2788
  %v2790 = vperm.slane %v2782, %v2789
  %v2791 = vrot.slane %v2721, 4
  %v2792 = vsel %vm314, %v2791, %v2665
  %v2793 = vrot.slane %v2665, 4
  %v2794 = vsel %vm314, %v2721, %v2793
  %v2796 = vunpack.c.l.s4 1983009808
  %v2797 = vunpack.c.0.s8 %v2796
  %v2798 = vperm.slane %v2792, %v2797
  %v2800 = vunpack.c.l.s4 1983009808
  %v2801 = vunpack.c.0.s8 %v2800
  %v2802 = vperm.slane %v2794, %v2801
  %v2803 = vrot.slane %v2798, 4
  %v2804 = vsel %vm314, %v2803, %v2786
  %v2805 = vrot.slane %v2786, 4
  %v2806 = vsel %vm314, %v2798, %v2805
  %v2808 = vunpack.c.l.s4 1934713408
  %v2809 = vunpack.c.0.s8 %v2808
  %v2810 = vperm.slane %v2804, %v2809
  %v2812 = vunpack.c.l.s4 1934713408
  %v2813 = vunpack.c.0.s8 %v2812
  %v2814 = vperm.slane %v2806, %v2813
  %v2815 = vrot.slane %v2802, 4
  %v2816 = vsel %vm314, %v2815, %v2790
  %v2817 = vrot.slane %v2790, 4
  %v2818 = vsel %vm314, %v2802, %v2817
  %v2820 = vunpack.c.l.s4 1934713408
  %v2821 = vunpack.c.0.s8 %v2820
  %v2822 = vperm.slane %v2816, %v2821
  %v2824 = vunpack.c.l.s4 1934713408
  %v2825 = vunpack.c.0.s8 %v2824
  %v2826 = vperm.slane %v2818, %v2825
  %v2827 = vrot.slane %v2810, 4
  %v2828 = vsel %vm314, 0.0, %v2827
  %v2829 = vrot.slane %v2814, 4
  %v2830 = vsel %vm314, 0.0, %v2829
  %v2831 = vrot.slane %v2822, 4
  %v2832 = vsel %vm314, 0.0, %v2831
  %v2833 = vrot.slane %v2826, 4
  %v2834 = vsel %vm314, 0.0, %v2833
  %v2835 = vsel %vm314, %v2773, %v2754
  %v2837 = vunpack.c.l.s4 1983009808
  %v2838 = vunpack.c.0.s8 %v2837
  %v2839 = vperm.slane %v2835, %v2838
  %v2840 = vrot.slane %v2774, 4
  %v2841 = vsel %vm314, %v2840, %v2772
  %v2843 = vunpack.c.l.s4 1983009808
  %v2844 = vunpack.c.0.s8 %v2843
  %v2845 = vperm.slane %v2841, %v2844
  %v2846 = vsel %vm314, %v2777, %v2766
  %v2848 = vunpack.c.l.s4 1983009808
  %v2849 = vunpack.c.0.s8 %v2848
  %v2850 = vperm.slane %v2846, %v2849
  %v2851 = vrot.slane %v2778, 4
  %v2852 = vsel %vm314, %v2851, %v2776
  %v2854 = vunpack.c.l.s4 1983009808
  %v2855 = vunpack.c.0.s8 %v2854
  %v2856 = vperm.slane %v2852, %v2855
  %v2857 = vrot.slane %v2845, 4
  %v2858 = vsel %vm314, %v2857, %v2839
  %v2859 = vrot.slane %v2839, 4
  %v2860 = vsel %vm314, %v2845, %v2859
  %v2862 = vunpack.c.l.s4 1934713408
  %v2863 = vunpack.c.0.s8 %v2862
  %v2864 = vperm.slane %v2858, %v2863
  %v2866 = vunpack.c.l.s4 1934713408
  %v2867 = vunpack.c.0.s8 %v2866
  %v2868 = vperm.slane %v2860, %v2867
  %v2869 = vrot.slane %v2856, 4
  %v2870 = vsel %vm314, %v2869, %v2850
  %v2871 = vrot.slane %v2850, 4
  %v2872 = vsel %vm314, %v2856, %v2871
  %v2874 = vunpack.c.l.s4 1934713408
  %v2875 = vunpack.c.0.s8 %v2874
  %v2876 = vperm.slane %v2870, %v2875
  %v2878 = vunpack.c.l.s4 1934713408
  %v2879 = vunpack.c.0.s8 %v2878
  %v2880 = vperm.slane %v2872, %v2879
  %v2881 = vrot.slane %v2876, 4
  %v2882 = vsel %vm314, %v2881, %v2864
  %v2883 = vrot.slane %v2864, 4
  %v2884 = vsel %vm314, %v2876, %v2883
  %v2885 = vrot.slane %v2880, 4
  %v2886 = vsel %vm314, %v2885, %v2868
  %v2887 = vrot.slane %v2868, 4
  %v2888 = vsel %vm314, %v2880, %v2887
  %v2889 = vsel %vm314, %v2829, %v2810
  %v2891 = vunpack.c.l.s4 1983009808
  %v2892 = vunpack.c.0.s8 %v2891
  %v2893 = vperm.slane %v2889, %v2892
  %v2894 = vrot.slane %v2830, 4
  %v2895 = vsel %vm314, %v2894, %v2828
  %v2897 = vunpack.c.l.s4 1983009808
  %v2898 = vunpack.c.0.s8 %v2897
  %v2899 = vperm.slane %v2895, %v2898
  %v2900 = vsel %vm314, %v2833, %v2822
  %v2902 = vunpack.c.l.s4 1983009808
  %v2903 = vunpack.c.0.s8 %v2902
  %v2904 = vperm.slane %v2900, %v2903
  %v2905 = vrot.slane %v2834, 4
  %v2906 = vsel %vm314, %v2905, %v2832
  %v2908 = vunpack.c.l.s4 1983009808
  %v2909 = vunpack.c.0.s8 %v2908
  %v2910 = vperm.slane %v2906, %v2909
  %v2911 = vrot.slane %v2899, 4
  %v2912 = vsel %vm314, %v2911, %v2893
  %v2913 = vrot.slane %v2893, 4
  %v2914 = vsel %vm314, %v2899, %v2913
  %v2916 = vunpack.c.l.s4 1934713408
  %v2917 = vunpack.c.0.s8 %v2916
  %v2918 = vperm.slane %v2912, %v2917
  %v2920 = vunpack.c.l.s4 1934713408
  %v2921 = vunpack.c.0.s8 %v2920
  %v2922 = vperm.slane %v2914, %v2921
  %v2923 = vrot.slane %v2910, 4
  %v2924 = vsel %vm314, %v2923, %v2904
  %v2925 = vrot.slane %v2904, 4
  %v2926 = vsel %vm314, %v2910, %v2925
  %v2928 = vunpack.c.l.s4 1934713408
  %v2929 = vunpack.c.0.s8 %v2928
  %v2930 = vperm.slane %v2924, %v2929
  %v2932 = vunpack.c.l.s4 1934713408
  %v2933 = vunpack.c.0.s8 %v2932
  %v2934 = vperm.slane %v2926, %v2933
  %v2935 = vrot.slane %v2930, 4
  %v2936 = vsel %vm314, %v2935, %v2918
  %v2937 = vrot.slane %v2918, 4
  %v2938 = vsel %vm314, %v2930, %v2937
  %v2939 = vrot.slane %v2934, 4
  %v2940 = vsel %vm314, %v2939, %v2922
  %v2941 = vrot.slane %v2922, 4
  %v2942 = vsel %vm314, %v2934, %v2941
  %2945 = vrot.lane.b32.xlu0 %v2884, 8
  %v2946 = vpop.permute.xlu0 %2945
  %2947 = vrot.lane.b32.xlu0 %v2938, 8
  %v2948 = vpop.permute.xlu0 %2947
  %2953 = vrot.lane.b32.xlu0 %v2886, 16
  %v2954 = vpop.permute.xlu0 %2953
  %2955 = vrot.lane.b32.xlu0 %v2940, 16
  %v2956 = vpop.permute.xlu0 %2955
  %2961 = vrot.lane.b32.xlu0 %v2888, 24
  %v2962 = vpop.permute.xlu0 %2961
  %2963 = vrot.lane.b32.xlu0 %v2942, 24
  %v2964 = vpop.permute.xlu0 %2963
  %v2967 = vsel %vm1056, %v2882, %v2946
  %v2968 = vsel %vm1056, %v2936, %v2948
  %v2969 = vsel %vm1175, %v2967, %v2954
  %v2970 = vsel %vm1175, %v2968, %v2956
  %v2971 = vsel %vm1632, %v2969, %v2962
  %v2972 = vsel %vm1632, %v2970, %v2964
  %v2973 = vld [vmem:[%s7] sm:$0xf]
  %v2974 = vld [vmem:[%s7 + $0x4] sm:$0xf]
  %v2975 = vld [vmem:[%s7 + $0x8] sm:$0xf]
  %v2976 = vld [vmem:[%s7 + $0xc] sm:$0xf]
  %v2977 = vpack.c.bf16 %v1634, %v1633
  %v2978 = vpack.c.bf16 %v2972, %v2971
  %v2983 = vunpack.c.l.b16 %v2973
  %v2984 = vunpack.c.l.b16 %v2974
  %v2985 = vunpack.c.l.b16 %v2975
  %v2986 = vunpack.c.l.b16 %v2976
  %v2987 = vpack.c.b16 %v2984, %v2983
  %v2988 = vpack.c.b16 %v2986, %v2985
  %v2992 = vsel %vm136, %v2977, 0
  %v2995 = vsel %vm136, %v2978, 0
  %2997 = vmatpush.bf16.msra.mxu0 0
  %2998 = vmatpush.bf16.msra.mxu0 0
  %2999 = vmatpush.bf16.msra.mxu0 0
  %3000 = vmatpush.bf16.msra.mxu0 0
  %3001 = vmatpush.bf16.msra.mxu0 0
  %3002 = vmatpush.bf16.msra.mxu0 0
  %3003 = vmatpush.bf16.msra.mxu0 %v2988
  %3004 = vmatpush.bf16.msra.mxu0 %v2987
  %3005 = vmatmul.bf16.gmra.mxu0 %v2992
  %v3006 = vpop.f32.mrf.mxu0
  %v3007 = vadd.f32 0.0, %v3006
  %v3008 = vpop.f32.mrf.mxu0
  %v3009 = vadd.f32 0.0, %v3008
  %3010 = vmatmul.bf16.gmra.mxu0 %v2995
  %v3011 = vpop.f32.mrf.mxu0
  %v3012 = vadd.f32 0.0, %v3011
  %v3013 = vpop.f32.mrf.mxu0
  %v3014 = vadd.f32 0.0, %v3013
  %3015 = vdwg.mxu0
  %v3016 = vadd.f32 %v125, %v3007
  %v3017 = vadd.f32 %v127, %v3009
  %v3018 = vadd.f32 %v130, %v3012
  %v3019 = vadd.f32 %v132, %v3014
  %v3020 = vld [vmem:[%s8] sm:$0x1]
  %v3022 = vperm.slane %v3020, 0
  %v3024 = vadd.f32 %v3016, %v3022
  %v3025 = vadd.f32 %v3017, %v3022
  %v3026 = vadd.f32 %v3018, %v3022
  %v3027 = vadd.f32 %v3019, %v3022
  %v3028 = vld [vmem:[%s9] sm:$0x1]
  %v3029 = vld [vmem:[%s10] sm:$0x1]
  %v3030 = vsel %vm136, %v3024, 0.0
  %3031 = vadd.xlane.f32.xlu0 %v3030
  %v3032 = vpop.xlane.xlu0 %3031
  %v3033 = vsel %vm136, %v3025, 0.0
  %3034 = vadd.xlane.f32.xlu0 %v3033
  %v3035 = vpop.xlane.xlu0 %3034
  %v3036 = vsel %vm136, %v3026, 0.0
  %3037 = vadd.xlane.f32.xlu0 %v3036
  %v3038 = vpop.xlane.xlu0 %3037
  %v3039 = vsel %vm136, %v3027, 0.0
  %3040 = vadd.xlane.f32.xlu0 %v3039
  %v3041 = vpop.xlane.xlu0 %3040
  %v3042 = vmul.f32 %v3032, %v155
  %v3043 = vmul.f32 %v3035, %v155
  %v3044 = vmul.f32 %v3038, %v155
  %v3045 = vmul.f32 %v3041, %v155
  %v3046 = vsub.f32 %v3024, %v3042
  %v3047 = vsub.f32 %v3025, %v3043
  %v3048 = vsub.f32 %v3026, %v3044
  %v3049 = vsub.f32 %v3027, %v3045
  %v3050 = vmul.f32 %v3046, %v3046
  %v3051 = vmul.f32 %v3047, %v3047
  %v3052 = vmul.f32 %v3048, %v3048
  %v3053 = vmul.f32 %v3049, %v3049
  %v3054 = vsel %vm136, %v3050, 0.0
  %3055 = vadd.xlane.f32.xlu0 %v3054
  %v3056 = vpop.xlane.xlu0 %3055
  %v3057 = vsel %vm136, %v3051, 0.0
  %3058 = vadd.xlane.f32.xlu0 %v3057
  %v3059 = vpop.xlane.xlu0 %3058
  %v3060 = vsel %vm136, %v3052, 0.0
  %3061 = vadd.xlane.f32.xlu0 %v3060
  %v3062 = vpop.xlane.xlu0 %3061
  %v3063 = vsel %vm136, %v3053, 0.0
  %3064 = vadd.xlane.f32.xlu0 %v3063
  %v3065 = vpop.xlane.xlu0 %3064
  %v3066 = vmul.f32 %v3056, %v155
  %v3067 = vmul.f32 %v3059, %v155
  %v3068 = vmul.f32 %v3062, %v155
  %v3069 = vmul.f32 %v3065, %v155
  %v3070 = vadd.f32 %v3066, 1e-05
  %v3071 = vadd.f32 %v3067, 1e-05
  %v3072 = vadd.f32 %v3068, 1e-05
  %v3073 = vadd.f32 %v3069, 1e-05
  %v3074 = vrsqrt.pop %v3070
  %v3075 = vmul.f32 %v3074, %v3070
  %v3076 = vmul.f32 %v3075, %v3074
  %v3077 = vmul.f32 0.5, %v3076
  %v3078 = vsub.f32 1.5, %v3077
  %v3079 = vmul.f32 %v3074, %v3078
  %vm3080 = vweird.f32 %v3070
  %vm3081 = vweird.f32 %v3074
  %vm3082 = vmor %vm3080, %vm3081
  %v3083 = vsel %vm3082, %v3074, %v3079
  %v3084 = vrsqrt.pop %v3071
  %v3085 = vmul.f32 %v3084, %v3071
  %v3086 = vmul.f32 %v3085, %v3084
  %v3087 = vmul.f32 0.5, %v3086
  %v3088 = vsub.f32 1.5, %v3087
  %v3089 = vmul.f32 %v3084, %v3088
  %vm3090 = vweird.f32 %v3071
  %vm3091 = vweird.f32 %v3084
  %vm3092 = vmor %vm3090, %vm3091
  %v3093 = vsel %vm3092, %v3084, %v3089
  %v3094 = vrsqrt.pop %v3072
  %v3095 = vmul.f32 %v3094, %v3072
  %v3096 = vmul.f32 %v3095, %v3094
  %v3097 = vmul.f32 0.5, %v3096
  %v3098 = vsub.f32 1.5, %v3097
  %v3099 = vmul.f32 %v3094, %v3098
  %vm3100 = vweird.f32 %v3072
  %vm3101 = vweird.f32 %v3094
  %vm3102 = vmor %vm3100, %vm3101
  %v3103 = vsel %vm3102, %v3094, %v3099
  %v3104 = vrsqrt.pop %v3073
  %v3105 = vmul.f32 %v3104, %v3073
  %v3106 = vmul.f32 %v3105, %v3104
  %v3107 = vmul.f32 0.5, %v3106
  %v3108 = vsub.f32 1.5, %v3107
  %v3109 = vmul.f32 %v3104, %v3108
  %vm3110 = vweird.f32 %v3073
  %vm3111 = vweird.f32 %v3104
  %vm3112 = vmor %vm3110, %vm3111
  %v3113 = vsel %vm3112, %v3104, %v3109
  %v3114 = vmul.f32 %v3046, %v3083
  %v3115 = vmul.f32 %v3047, %v3093
  %v3116 = vmul.f32 %v3048, %v3103
  %v3117 = vmul.f32 %v3049, %v3113
  %v3119 = vperm.slane %v3028, 0
  %v3121 = vmul.f32 %v3114, %v3119
  %v3122 = vmul.f32 %v3115, %v3119
  %v3123 = vmul.f32 %v3116, %v3119
  %v3124 = vmul.f32 %v3117, %v3119
  %v3126 = vperm.slane %v3029, 0
  %v3128 = vadd.f32 %v3121, %v3126
  %v3129 = vadd.f32 %v3122, %v3126
  %v3130 = vadd.f32 %v3123, %v3126
  %v3131 = vadd.f32 %v3124, %v3126
  %v3132 = vld [vmem:[%s11] sm:$0xf]
  %v3133 = vld [vmem:[%s11 + $0x4] sm:$0xf]
  %v3134 = vld [vmem:[%s11 + $0x8] sm:$0xf]
  %v3135 = vld [vmem:[%s11 + $0xc] sm:$0xf]
  %v3136 = vpack.c.bf16 %v3129, %v3128
  %v3137 = vpack.c.bf16 %v3131, %v3130
  %v3138 = vld [vmem:[%s12] sm:$0x1]
  %v3140 = vperm.slane %v3138, 0
  %v3146 = vunpack.c.l.b16 %v3132
  %v3147 = vunpack.c.l.b16 %v3133
  %v3148 = vunpack.c.l.b16 %v3134
  %v3149 = vunpack.c.l.b16 %v3135
  %v3150 = vpack.c.b16 %v3147, %v3146
  %v3151 = vpack.c.b16 %v3149, %v3148
  %v3155 = vsel %vm136, %v3136, 0
  %v3158 = vsel %vm136, %v3137, 0
  %3160 = vmatpush.bf16.msra.mxu0 0
  %3161 = vmatpush.bf16.msra.mxu0 0
  %3162 = vmatpush.bf16.msra.mxu0 0
  %3163 = vmatpush.bf16.msra.mxu0 0
  %3164 = vmatpush.bf16.msra.mxu0 0
  %3165 = vmatpush.bf16.msra.mxu0 0
  %3166 = vmatpush.bf16.msra.mxu0 %v3151
  %3167 = vmatpush.bf16.msra.mxu0 %v3150
  %3168 = vmatmul.bf16.gmra.mxu0 %v3155
  %v3169 = vpop.f32.mrf.mxu0
  %v3170 = vadd.f32 %v3140, %v3169
  %v3171 = vpop.f32.mrf.mxu0
  %v3172 = vadd.f32 %v3140, %v3171
  %3173 = vmatmul.bf16.gmra.mxu0 %v3158
  %v3174 = vpop.f32.mrf.mxu0
  %v3175 = vadd.f32 %v3140, %v3174
  %v3176 = vpop.f32.mrf.mxu0
  %v3177 = vadd.f32 %v3140, %v3176
  %3178 = vdwg.mxu0
  %v3179 = vmul.f32 %v3170, %v3170
  %v3180 = vmul.f32 %v3172, %v3172
  %v3181 = vmul.f32 %v3175, %v3175
  %v3182 = vmul.f32 %v3177, %v3177
  %v3183 = vmul.f32 %v3170, %v3179
  %v3184 = vmul.f32 %v3172, %v3180
  %v3185 = vmul.f32 %v3175, %v3181
  %v3186 = vmul.f32 %v3177, %v3182
  %v3187 = vmul.f32 %v3183, 0.044715
  %v3188 = vmul.f32 %v3184, 0.044715
  %v3189 = vmul.f32 %v3185, 0.044715
  %v3190 = vmul.f32 %v3186, 0.044715
  %v3191 = vadd.f32 %v3170, %v3187
  %v3192 = vadd.f32 %v3172, %v3188
  %v3193 = vadd.f32 %v3175, %v3189
  %v3194 = vadd.f32 %v3177, %v3190
  %v3195 = vmul.f32 %v3191, 0.7978846
  %v3196 = vmul.f32 %v3192, 0.7978846
  %v3197 = vmul.f32 %v3193, 0.7978846
  %v3198 = vmul.f32 %v3194, 0.7978846
  %v3199 = vtanh.pop %v3195
  %v3200 = vtanh.pop %v3196
  %v3201 = vtanh.pop %v3197
  %v3202 = vtanh.pop %v3198
  %v3203 = vadd.f32 %v3199, 1.0
  %v3204 = vadd.f32 %v3200, 1.0
  %v3205 = vadd.f32 %v3201, 1.0
  %v3206 = vadd.f32 %v3202, 1.0
  %v3207 = vmul.f32 %v3203, 0.5
  %v3208 = vmul.f32 %v3204, 0.5
  %v3209 = vmul.f32 %v3205, 0.5
  %v3210 = vmul.f32 %v3206, 0.5
  %v3211 = vmul.f32 %v3170, %v3207
  %v3212 = vmul.f32 %v3172, %v3208
  %v3213 = vmul.f32 %v3175, %v3209
  %v3214 = vmul.f32 %v3177, %v3210
  %v3215 = vld [vmem:[%s13] sm:$0xf]
  %v3216 = vld [vmem:[%s13 + $0x4] sm:$0xf]
  %v3217 = vld [vmem:[%s13 + $0x8] sm:$0xf]
  %v3218 = vld [vmem:[%s13 + $0xc] sm:$0xf]
  %v3219 = vld [vmem:[%s13 + $0x10] sm:$0xf]
  %v3220 = vld [vmem:[%s13 + $0x14] sm:$0xf]
  %v3221 = vld [vmem:[%s13 + $0x18] sm:$0xf]
  %v3222 = vld [vmem:[%s13 + $0x1c] sm:$0xf]
  %v3223 = vpack.c.bf16 %v3212, %v3211
  %v3224 = vpack.c.bf16 %v3214, %v3213
  %v3225 = vld [vmem:[%s14] sm:$0x1]
  %v3227 = vperm.slane %v3225, 0
  %v3237 = vunpack.c.l.b16 %v3215
  %v3238 = vunpack.c.l.b16 %v3216
  %v3239 = vunpack.c.l.b16 %v3217
  %v3240 = vunpack.c.l.b16 %v3218
  %v3241 = vunpack.c.l.b16 %v3219
  %v3242 = vunpack.c.l.b16 %v3220
  %v3243 = vunpack.c.l.b16 %v3221
  %v3244 = vunpack.c.l.b16 %v3222
  %v3245 = vpack.c.b16 %v3238, %v3237
  %v3246 = vpack.c.b16 %v3240, %v3239
  %v3247 = vpack.c.b16 %v3242, %v3241
  %v3248 = vpack.c.b16 %v3244, %v3243
  %v3254 = vsel %vm108, %v3223, 0
  %v3257 = vsel %vm108, %v3224, 0
  %3259 = vmatpush.bf16.msra.mxu0 0
  %3260 = vmatpush.bf16.msra.mxu0 0
  %3261 = vmatpush.bf16.msra.mxu0 0
  %3262 = vmatpush.bf16.msra.mxu0 0
  %3263 = vmatpush.bf16.msra.mxu0 %v3248
  %3264 = vmatpush.bf16.msra.mxu0 %v3247
  %3265 = vmatpush.bf16.msra.mxu0 %v3246
  %3266 = vmatpush.bf16.msra.mxu0 %v3245
  %3267 = vmatmul.bf16.gmra.mxu0 %v3254
  %v3268 = vpop.f32.mrf.mxu0
  %v3269 = vadd.f32 %v3227, %v3268
  %v3270 = vpop.f32.mrf.mxu0
  %v3271 = vadd.f32 %v3227, %v3270
  %3272 = vmatmul.bf16.gmra.mxu0 %v3257
  %v3273 = vpop.f32.mrf.mxu0
  %v3274 = vadd.f32 %v3227, %v3273
  %v3275 = vpop.f32.mrf.mxu0
  %v3276 = vadd.f32 %v3227, %v3275
  %3277 = vdwg.mxu0
  %v3278 = vadd.f32 %v3024, %v3269
  %v3279 = vadd.f32 %v3025, %v3271
  %v3280 = vadd.f32 %v3026, %v3274
  %v3281 = vadd.f32 %v3027, %v3276
  %v3282 = vld [vmem:[%s15] sm:$0x1]
  %v3283 = vld [vmem:[%s16] sm:$0x1]
  %v3284 = vsel %vm136, %v3278, 0.0
  %3285 = vadd.xlane.f32.xlu0 %v3284
  %v3286 = vpop.xlane.xlu0 %3285
  %v3287 = vsel %vm136, %v3279, 0.0
  %3288 = vadd.xlane.f32.xlu0 %v3287
  %v3289 = vpop.xlane.xlu0 %3288
  %v3290 = vsel %vm136, %v3280, 0.0
  %3291 = vadd.xlane.f32.xlu0 %v3290
  %v3292 = vpop.xlane.xlu0 %3291
  %v3293 = vsel %vm136, %v3281, 0.0
  %3294 = vadd.xlane.f32.xlu0 %v3293
  %v3295 = vpop.xlane.xlu0 %3294
  %v3296 = vmul.f32 %v3286, %v155
  %v3297 = vmul.f32 %v3289, %v155
  %v3298 = vmul.f32 %v3292, %v155
  %v3299 = vmul.f32 %v3295, %v155
  %v3300 = vsub.f32 %v3278, %v3296
  %v3301 = vsub.f32 %v3279, %v3297
  %v3302 = vsub.f32 %v3280, %v3298
  %v3303 = vsub.f32 %v3281, %v3299
  %v3304 = vmul.f32 %v3300, %v3300
  %v3305 = vmul.f32 %v3301, %v3301
  %v3306 = vmul.f32 %v3302, %v3302
  %v3307 = vmul.f32 %v3303, %v3303
  %v3308 = vsel %vm136, %v3304, 0.0
  %3309 = vadd.xlane.f32.xlu0 %v3308
  %v3310 = vpop.xlane.xlu0 %3309
  %v3311 = vsel %vm136, %v3305, 0.0
  %3312 = vadd.xlane.f32.xlu0 %v3311
  %v3313 = vpop.xlane.xlu0 %3312
  %v3314 = vsel %vm136, %v3306, 0.0
  %3315 = vadd.xlane.f32.xlu0 %v3314
  %v3316 = vpop.xlane.xlu0 %3315
  %v3317 = vsel %vm136, %v3307, 0.0
  %3318 = vadd.xlane.f32.xlu0 %v3317
  %v3319 = vpop.xlane.xlu0 %3318
  %v3320 = vmul.f32 %v3310, %v155
  %v3321 = vmul.f32 %v3313, %v155
  %v3322 = vmul.f32 %v3316, %v155
  %v3323 = vmul.f32 %v3319, %v155
  %v3324 = vadd.f32 %v3320, 1e-05
  %v3325 = vadd.f32 %v3321, 1e-05
  %v3326 = vadd.f32 %v3322, 1e-05
  %v3327 = vadd.f32 %v3323, 1e-05
  %v3328 = vrsqrt.pop %v3324
  %v3329 = vmul.f32 %v3328, %v3324
  %v3330 = vmul.f32 %v3329, %v3328
  %v3331 = vmul.f32 0.5, %v3330
  %v3332 = vsub.f32 1.5, %v3331
  %v3333 = vmul.f32 %v3328, %v3332
  %vm3334 = vweird.f32 %v3324
  %vm3335 = vweird.f32 %v3328
  %vm3336 = vmor %vm3334, %vm3335
  %v3337 = vsel %vm3336, %v3328, %v3333
  %v3338 = vrsqrt.pop %v3325
  %v3339 = vmul.f32 %v3338, %v3325
  %v3340 = vmul.f32 %v3339, %v3338
  %v3341 = vmul.f32 0.5, %v3340
  %v3342 = vsub.f32 1.5, %v3341
  %v3343 = vmul.f32 %v3338, %v3342
  %vm3344 = vweird.f32 %v3325
  %vm3345 = vweird.f32 %v3338
  %vm3346 = vmor %vm3344, %vm3345
  %v3347 = vsel %vm3346, %v3338, %v3343
  %v3348 = vrsqrt.pop %v3326
  %v3349 = vmul.f32 %v3348, %v3326
  %v3350 = vmul.f32 %v3349, %v3348
  %v3351 = vmul.f32 0.5, %v3350
  %v3352 = vsub.f32 1.5, %v3351
  %v3353 = vmul.f32 %v3348, %v3352
  %vm3354 = vweird.f32 %v3326
  %vm3355 = vweird.f32 %v3348
  %vm3356 = vmor %vm3354, %vm3355
  %v3357 = vsel %vm3356, %v3348, %v3353
  %v3358 = vrsqrt.pop %v3327
  %v3359 = vmul.f32 %v3358, %v3327
  %v3360 = vmul.f32 %v3359, %v3358
  %v3361 = vmul.f32 0.5, %v3360
  %v3362 = vsub.f32 1.5, %v3361
  %v3363 = vmul.f32 %v3358, %v3362
  %vm3364 = vweird.f32 %v3327
  %vm3365 = vweird.f32 %v3358
  %vm3366 = vmor %vm3364, %vm3365
  %v3367 = vsel %vm3366, %v3358, %v3363
  %v3368 = vmul.f32 %v3300, %v3337
  %v3369 = vmul.f32 %v3301, %v3347
  %v3370 = vmul.f32 %v3302, %v3357
  %v3371 = vmul.f32 %v3303, %v3367
  %v3373 = vperm.slane %v3282, 0
  %v3375 = vmul.f32 %v3368, %v3373
  %v3376 = vmul.f32 %v3369, %v3373
  %v3377 = vmul.f32 %v3370, %v3373
  %v3378 = vmul.f32 %v3371, %v3373
  %v3380 = vperm.slane %v3283, 0
  %v3382 = vadd.f32 %v3375, %v3380
  %v3383 = vadd.f32 %v3376, %v3380
  %v3384 = vadd.f32 %v3377, %v3380
  %v3385 = vadd.f32 %v3378, %v3380
  %v3386 = vld [vmem:[%s17] sm:$0xff]
  %v3387 = vld [vmem:[%s17 + $0x8] sm:$0xff]
  %v3388 = vadd.f32 %v3382, %v3386
  %v3389 = vadd.f32 %v3383, %v3387
  %v3390 = vadd.f32 %v3384, %v3386
  %v3391 = vadd.f32 %v3385, %v3387
  %v3392 = vld [vmem:[%s18] sm:$0xf]
  %v3393 = vld [vmem:[%s18 + $0x4] sm:$0xf]
  %v3394 = vld [vmem:[%s18 + $0x8] sm:$0xf]
  %v3395 = vld [vmem:[%s18 + $0xc] sm:$0xf]
  %v3396 = vpack.c.bf16 %v3389, %v3388
  %v3397 = vpack.c.bf16 %v3391, %v3390
  %v3398 = vld [vmem:[%s19] sm:$0x1]
  %v3400 = vperm.slane %v3398, 0
  %v3406 = vunpack.c.l.b16 %v3392
  %v3407 = vunpack.c.l.b16 %v3393
  %v3408 = vunpack.c.l.b16 %v3394
  %v3409 = vunpack.c.l.b16 %v3395
  %v3410 = vpack.c.b16 %v3407, %v3406
  %v3411 = vpack.c.b16 %v3409, %v3408
  %v3415 = vsel %vm136, %v3396, 0
  %v3418 = vsel %vm136, %v3397, 0
  %3420 = vmatpush.bf16.msra.mxu0 0
  %3421 = vmatpush.bf16.msra.mxu0 0
  %3422 = vmatpush.bf16.msra.mxu0 0
  %3423 = vmatpush.bf16.msra.mxu0 0
  %3424 = vmatpush.bf16.msra.mxu0 0
  %3425 = vmatpush.bf16.msra.mxu0 0
  %3426 = vmatpush.bf16.msra.mxu0 %v3411
  %3427 = vmatpush.bf16.msra.mxu0 %v3410
  %3428 = vmatmul.bf16.gmra.mxu0 %v3415
  %v3429 = vpop.f32.mrf.mxu0
  %v3430 = vadd.f32 %v3400, %v3429
  %v3431 = vpop.f32.mrf.mxu0
  %v3432 = vadd.f32 %v3400, %v3431
  %3433 = vmatmul.bf16.gmra.mxu0 %v3418
  %v3434 = vpop.f32.mrf.mxu0
  %v3435 = vadd.f32 %v3400, %v3434
  %v3436 = vpop.f32.mrf.mxu0
  %v3437 = vadd.f32 %v3400, %v3436
  %3438 = vdwg.mxu0
  %v3439 = vpack.c.bf16 %v3430, %v3430
  %v3440 = vpack.c.bf16 %v3432, %v3432
  %v3441 = vpack.c.bf16 %v3435, %v3435
  %v3442 = vpack.c.bf16 %v3437, %v3437
  %vm3443 = vcmask 257024
  %3444 = vst.msk [vmem:[%s20] sm:$0xf] %vm3443, %v3439
  %3445 = vst.msk [vmem:[%s20 + $0x4] sm:$0xf] %vm3443, %v3440
  %3446 = vst.msk [vmem:[%s20 + $0x8] sm:$0xf] %vm3443, %v3441
  %3447 = vst.msk [vmem:[%s20 + $0xc] sm:$0xf] %vm3443, %v3442
  // Predicated region
  $region82: #{_lambda_.3} parent=0 // pred_check
    _
  $region83: #{_lambda_.3} parent=0 // pred_check_branch
    %3449 = sbr.rel (0) target = $region85
  $region84: #{_lambda_.3} parent=0 // pred_region
    _
  $region85: #{_lambda_.3} parent=0 // pred_fallthru
    _
  // Predicated region
  $region86: #{_lambda_.3} parent=0 // pred_check
    _
  $region87: #{_lambda_.3} parent=0 // pred_check_branch
    %3451 = sbr.rel (0) target = $region89
  $region88: #{_lambda_.3} parent=0 // pred_region
    _
  $region89: #{_lambda_.3} parent=0 // pred_fallthru
    _

</llo_original>
